<compile_context>
chip_gen: v7x
topology: tpu7x:2x2x1
jax: 0.10.0
libtpu: 0.0.40
codegen_flags: <defaults>
</compile_context>

<pallas_src>
import math
import functools

import jax
import jax.numpy as jnp
import numpy as np
from jax import lax
from jax.experimental import pallas as pl
from jax.experimental.pallas import tpu as pltpu


def _round_up(x, m):
    return ((x + m - 1) // m) * m


def _resident_spec(block_shape, index_map):
    """BlockSpec for a block that is identical at every grid step (weights).
    Request single-buffering when the installed Pallas supports it."""
    if hasattr(pl, "Buffered"):
        try:
            return pl.BlockSpec(block_shape, index_map, pipeline_mode=pl.Buffered(1))
        except TypeError:
            pass
    return pl.BlockSpec(block_shape, index_map)


def lstm_kernel(x_ref, wx_ref, wh_ref, b_ref,          # inputs
                out_ref, h_ref, c_ref,                 # outputs
                gx_ref,                                 # VMEM scratch
                *, hidden_p, num_layers, batch_p, t_chunk, length,
                needs_mask, unroll):
    """One grid step == t_chunk timesteps.

    h_ref / c_ref are the final-state outputs; their BlockSpecs use a constant
    index_map so the blocks stay resident in VMEM for the whole grid and serve
    as the recurrent state carry.  State layout: (Bp, NL*Hp), column = j*Hp+h.
    Gate pre-activation layout: column = gate*NL*Hp + j*Hp + h (gate-major),
    gate order f, i, c, o."""
    step = pl.program_id(0)
    nlh = num_layers * hidden_p                 # width of one fused gate block
    last = (num_layers - 1) * hidden_p          # column offset of top layer's h

    @pl.when(step == 0)
    def _():                                    # state == None -> zero init
        h_ref[...] = jnp.zeros_like(h_ref)
        c_ref[...] = jnp.zeros_like(c_ref)

    # Chunk-batched input projection + fused bias: ONE (T*Bp, I) @ (I, 4*NL*Hp)
    # matmul per chunk, result parked in VMEM scratch and sliced per timestep.
    gx_ref[...] = (
        jnp.dot(x_ref[...], wx_ref[...], preferred_element_type=jnp.float32)
        + b_ref[...])

    t0 = step * t_chunk

    def body(t, carry):
        h_all, c_all = carry                                    # (Bp, NL*Hp) f32
        row = pl.multiple_of(t * batch_p, batch_p)
        gx_t = gx_ref[pl.ds(row, batch_p), :]                   # (Bp, 4*NL*Hp)
        # One block-diagonal recurrent matmul for all layers (weights read at
        # the use site so Mosaic streams them from VMEM, no hoisted live range).
        g = jnp.dot(h_all.astype(jnp.bfloat16), wh_ref[...],
                    preferred_element_type=jnp.float32) + gx_t
        f_t = jax.nn.sigmoid(g[:, 0 * nlh:1 * nlh])
        i_t = jax.nn.sigmoid(g[:, 1 * nlh:2 * nlh])
        g_t = jnp.tanh(g[:, 2 * nlh:3 * nlh])
        o_t = jax.nn.sigmoid(g[:, 3 * nlh:4 * nlh])
        c_new = f_t * c_all + i_t * g_t
        h_new = o_t * jnp.tanh(c_new)
        if needs_mask:                       # padded timesteps must not update state
            valid = (t0 + t) < length
            c_new = jnp.where(valid, c_new, c_all)
            h_new = jnp.where(valid, h_new, h_all)
        # Dense, tile-aligned (Bp, Hp) store of the top layer's hidden state.
        out_ref[pl.ds(row, batch_p), :] = h_new[:, last:last + hidden_p]
        return (h_new, c_new)

    h_fin, c_fin = lax.fori_loop(0, t_chunk, body,
                                 (h_ref[...], c_ref[...]), unroll=unroll)
    h_ref[...] = h_fin                          # state writeback once per chunk
    c_ref[...] = c_fin


@jax.jit
def lstm_block_forward(x, wh, wx, b):
    """x: (B, L, I) f32; wh: (NL, H, 4H); wx: (NL, I, 4H); b: (NL, 4H).
    Returns (outputs (B, L, H), (h_n, c_n) each (NL, B, H)) for state=None."""
    B, L, I = x.shape
    NL, H, _ = wh.shape

    Bp = _round_up(B, 8)          # sublane tile
    Hp = _round_up(H, 128)        # lane tile -> every gate slice is lane-aligned
    NLH = NL * Hp
    G = 4 * NLH                   # total fused gate width (gate-major layout)

    # Time chunk: amortize per-grid-step overhead; pad L up to a chunk multiple
    # and mask padded timesteps inside the kernel.
    T = _round_up(L, 8) if L <= 64 else 64
    Lp = _round_up(L, T)
    n_chunks = Lp // T
    needs_mask = (Lp != L)

    # ---- pack parameters (gate-major columns: col = gate*NL*Hp + layer*Hp + h)
    # Block-diagonal recurrent weight: rows = (layer_in, h_in).
    wh4 = jnp.pad(wh.reshape(NL, H, 4, H),
                  ((0, 0), (0, Hp - H), (0, 0), (0, Hp - H)))      # (NL,Hp,4,Hp)
    eye = jnp.eye(NL, dtype=wh.dtype)
    whb = (jnp.einsum('lhgo,lj->lhgjo', wh4, eye)
           .reshape(NLH, G).astype(jnp.bfloat16))                  # (NL*Hp, 4*NL*Hp)

    wx4 = jnp.pad(wx.reshape(NL, I, 4, H),
                  ((0, 0), (0, 0), (0, 0), (0, Hp - H)))           # (NL,I,4,Hp)
    wx_all = wx4.transpose(1, 2, 0, 3).reshape(I, G).astype(jnp.bfloat16)

    b4 = jnp.pad(b.reshape(NL, 4, H), ((0, 0), (0, 0), (0, Hp - H)))
    b_all = b4.transpose(1, 0, 2).reshape(1, G).astype(jnp.float32)

    # ---- input: pad batch, go time-major, pad time, flatten, cast to bf16
    x_p = jnp.pad(x, ((0, Bp - B), (0, 0), (0, 0)))                # (Bp, L, I)
    x_tm = jnp.pad(x_p.transpose(1, 0, 2), ((0, Lp - L), (0, 0), (0, 0)))
    x_2d = x_tm.reshape(Lp * Bp, I).astype(jnp.bfloat16)           # (Lp*Bp, I)

    kernel = functools.partial(
        lstm_kernel, hidden_p=Hp, num_layers=NL, batch_p=Bp, t_chunk=T,
        length=L, needs_mask=needs_mask, unroll=8)

    grid_spec = pltpu.PrefetchScalarGridSpec(
        num_scalar_prefetch=0,
        grid=(n_chunks,),
        in_specs=[
            pl.BlockSpec((T * Bp, I), lambda s: (s, 0)),   # x time-chunk (bf16)
            _resident_spec((I, G), lambda s: (0, 0)),      # Wx (resident, 1-buf)
            _resident_spec((NLH, G), lambda s: (0, 0)),    # block-diag Wh
            _resident_spec((1, G), lambda s: (0, 0)),      # bias
        ],
        out_specs=[
            pl.BlockSpec((T * Bp, Hp), lambda s: (s, 0)),  # outputs (time-major)
            pl.BlockSpec((Bp, NLH), lambda s: (0, 0)),     # final h (resident carry)
            pl.BlockSpec((Bp, NLH), lambda s: (0, 0)),     # final c (resident carry)
        ],
        scratch_shapes=[pltpu.VMEM((T * Bp, G), jnp.float32)],     # gx per chunk
    )

    # VMEM budget: weights (single-buffered) + pipelined x/out chunks + state
    # blocks + gx scratch, with generous headroom.
    need = (2 * (T * Bp * I * 2 + T * Bp * Hp * 4)
            + 2 * (whb.size * 2 + wx_all.size * 2 + b_all.size * 4)
            + 4 * (Bp * NLH * 4)
            + T * Bp * G * 4)
    vmem_limit = int(min(need + (16 << 20), 100 << 20))

    cost = pl.CostEstimate(
        flops=int(2 * Lp * Bp * (I + NLH) * G),
        transcendentals=int(5 * Lp * Bp * NLH),
        bytes_accessed=int(x_2d.size * 2 + whb.size * 2 + wx_all.size * 2
                           + b_all.size * 4 + Lp * Bp * Hp * 4
                           + 2 * Bp * NLH * 4),
    )

    outs_2d, h_p, c_p = pl.pallas_call(
        kernel,
        out_shape=(
            jax.ShapeDtypeStruct((Lp * Bp, Hp), jnp.float32),
            jax.ShapeDtypeStruct((Bp, NLH), jnp.float32),
            jax.ShapeDtypeStruct((Bp, NLH), jnp.float32),
        ),
        grid_spec=grid_spec,
        compiler_params=pltpu.CompilerParams(
            dimension_semantics=("arbitrary",),     # time carries state -> sequential
            vmem_limit_bytes=vmem_limit),
        cost_estimate=cost,
    )(x_2d, wx_all, whb, b_all)

    outputs = outs_2d.reshape(Lp, Bp, Hp)[:L, :B, :H].transpose(1, 0, 2)
    h_n = h_p.reshape(Bp, NL, Hp).transpose(1, 0, 2)[:, :B, :H]
    c_n = c_p.reshape(Bp, NL, Hp).transpose(1, 0, 2)[:, :B, :H]
    return outputs, (h_n, c_n)


def init_params(key, input_size, hidden_size, num_layers):
    """nn.Linear(input_size+hidden_size, hidden_size) per gate per layer,
    uniform(-1/sqrt(H), 1/sqrt(H)) like init_weight(). Gate order: f, i, c, o."""
    bound = 1.0 / math.sqrt(hidden_size)
    wh_layers, wx_layers, b_layers = [], [], []
    for _ in range(num_layers):
        wh_gates, wx_gates, b_gates = [], [], []
        for _gate in range(4):
            key, kw, kb = jax.random.split(key, 3)
            W = jax.random.uniform(kw, (hidden_size, input_size + hidden_size),
                                   jnp.float32, -bound, bound)   # torch layout (H, H+I)
            bvec = jax.random.uniform(kb, (hidden_size,), jnp.float32, -bound, bound)
            # z = [h, x]: first H input-columns of W hit h, last I hit x.
            wh_gates.append(W[:, :hidden_size].T)   # (H, H)
            wx_gates.append(W[:, hidden_size:].T)   # (I, H)
            b_gates.append(bvec)
        wh_layers.append(jnp.concatenate(wh_gates, axis=1))       # (H, 4H)
        wx_layers.append(jnp.concatenate(wx_gates, axis=1))       # (I, 4H)
        b_layers.append(jnp.concatenate(b_gates, axis=0))         # (4H,)
    return jnp.stack(wh_layers), jnp.stack(wx_layers), jnp.stack(b_layers)


def reference_forward(x, wh, wx, b):
    """Plain-JAX replica of the PyTorch forward, using the same mixed-precision
    policy as the kernel (bf16 matmul inputs, f32 accumulation, f32 state)."""
    B, L, I = x.shape
    NL, H, _ = wh.shape
    wh_b = wh.astype(jnp.bfloat16)
    wx_b = wx.astype(jnp.bfloat16)
    h = jnp.zeros((NL, B, H), jnp.float32)
    c = jnp.zeros((NL, B, H), jnp.float32)
    outs = []
    for t in range(L):
        xt = x[:, t, :].astype(jnp.bfloat16)
        hs, cs = [], []
        for j in range(NL):
            g = (jnp.dot(h[j].astype(jnp.bfloat16), wh_b[j],
                         preferred_element_type=jnp.float32)
                 + jnp.dot(xt, wx_b[j], preferred_element_type=jnp.float32)
                 + b[j])
            f_t = jax.nn.sigmoid(g[:, :H])
            i_t = jax.nn.sigmoid(g[:, H:2 * H])
            g_t = jnp.tanh(g[:, 2 * H:3 * H])
            o_t = jax.nn.sigmoid(g[:, 3 * H:])
            cn = f_t * c[j] + i_t * g_t
            hn = o_t * jnp.tanh(cn)
            hs.append(hn)
            cs.append(cn)
        h = jnp.stack(hs)
        c = jnp.stack(cs)
        outs.append(h[-1])
    return jnp.stack(outs, axis=1), (h, c)


if __name__ == "__main__":
    batch, length, input_size, hidden_size, num_layers = 2, 8, 16, 32, 2

    key = jax.random.PRNGKey(0)
    k_x, k_p = jax.random.split(key)
    x = jax.random.normal(k_x, (batch, length, input_size), jnp.float32)
    wh, wx, b = init_params(k_p, input_size, hidden_size, num_layers)

    outs, (h_n, c_n) = lstm_block_forward(x, wh, wx, b)
    jax.block_until_ready((outs, h_n, c_n))

    ref_outs, (ref_h, ref_c) = reference_forward(x, wh, wx, b)
    np.testing.assert_allclose(np.asarray(outs), np.asarray(ref_outs),
                               rtol=2e-3, atol=2e-3)
    np.testing.assert_allclose(np.asarray(h_n), np.asarray(ref_h),
                               rtol=2e-3, atol=2e-3)
    np.testing.assert_allclose(np.asarray(c_n), np.asarray(ref_c),
                               rtol=2e-3, atol=2e-3)

    print("KERNEL_OK")
</pallas_src>

<mosaic_0001>
module attributes {stable_mosaic.version = 11 : i64} {
  func.func @lstm_kernel(%arg0: i32, %arg1: memref<64x16xbf16, #tpu.memory_space<vmem>>, %arg2: memref<16x1024xbf16, #tpu.memory_space<vmem>>, %arg3: memref<256x1024xbf16, #tpu.memory_space<vmem>>, %arg4: memref<1x1024xf32, #tpu.memory_space<vmem>>, %arg5: memref<64x128xf32, #tpu.memory_space<vmem>>, %arg6: memref<8x256xf32, #tpu.memory_space<vmem>>, %arg7: memref<8x256xf32, #tpu.memory_space<vmem>>, %arg8: memref<64x1024xf32, #tpu.memory_space<vmem>>) attributes {dimension_semantics = [#tpu.dimension_semantics<arbitrary>], iteration_bounds = array<i64: 1>, scalar_prefetch = 0 : i64, scratch_operands = 1 : i64, tpu.core_type = #tpu.core_type<tc>, window_params = [{transform_indices = @transform_0, window_bounds = array<i64: 64, 16>}, {pipeline_mode = #tpu.pipeline_mode<synchronous>, transform_indices = @transform_1, window_bounds = array<i64: 16, 1024>}, {pipeline_mode = #tpu.pipeline_mode<synchronous>, transform_indices = @transform_2, window_bounds = array<i64: 256, 1024>}, {pipeline_mode = #tpu.pipeline_mode<synchronous>, transform_indices = @transform_3, window_bounds = array<i64: 1, 1024>}, {transform_indices = @transform_4, window_bounds = array<i64: 64, 128>}, {pipeline_mode = #tpu.pipeline_mode<synchronous>, transform_indices = @transform_5, window_bounds = array<i64: 8, 256>}, {pipeline_mode = #tpu.pipeline_mode<synchronous>, transform_indices = @transform_6, window_bounds = array<i64: 8, 256>}]} {
    %c0_i32 = arith.constant 0 : i32
    %0 = arith.cmpi eq, %arg0, %c0_i32 : i32
    %1 = arith.extui %0 : i1 to i32
    %c0_i32_0 = arith.constant 0 : i32
    %2 = arith.cmpi ne, %1, %c0_i32_0 : i32
    scf.if %2 {
      %cst_89 = arith.constant 0.000000e+00 : f32
      %302 = vector.broadcast %cst_89 : f32 to vector<8x256xf32>
      %c0_90 = arith.constant 0 : index
      %c0_91 = arith.constant 0 : index
      %303 = vector.load %arg6[%c0_90, %c0_91] : memref<8x256xf32, #tpu.memory_space<vmem>>, vector<8x256xf32>
      tpu.vector_store %arg6[%c0_90, %c0_91], %302 {strides = array<i32>} : memref<8x256xf32, #tpu.memory_space<vmem>>, vector<8x256xf32>,
      %cst_92 = arith.constant 0.000000e+00 : f32
      %304 = vector.broadcast %cst_92 : f32 to vector<8x256xf32>
      %c0_93 = arith.constant 0 : index
      %c0_94 = arith.constant 0 : index
      %305 = vector.load %arg7[%c0_93, %c0_94] : memref<8x256xf32, #tpu.memory_space<vmem>>, vector<8x256xf32>
      tpu.vector_store %arg7[%c0_93, %c0_94], %304 {strides = array<i32>} : memref<8x256xf32, #tpu.memory_space<vmem>>, vector<8x256xf32>,
    } else {
    }
    %c0 = arith.constant 0 : index
    %c0_1 = arith.constant 0 : index
    %3 = vector.load %arg1[%c0, %c0_1] : memref<64x16xbf16, #tpu.memory_space<vmem>>, vector<64x16xbf16>
    %c0_2 = arith.constant 0 : index
    %c0_3 = arith.constant 0 : index
    %4 = vector.load %arg2[%c0_2, %c0_3] : memref<16x1024xbf16, #tpu.memory_space<vmem>>, vector<16x1024xbf16>
    %cst = arith.constant dense<0.000000e+00> : vector<64x1024xf32>
    %5 = tpu.matmul %3, %4, %cst {dimension_numbers = #tpu.dot_dimension_numbers<[1], [0], [0], [1], [0, 0, 1, 1], [], []>} : vector<64x16xbf16>, vector<16x1024xbf16>, vector<64x1024xf32> -> vector<64x1024xf32>
    %c0_4 = arith.constant 0 : index
    %c0_5 = arith.constant 0 : index
    %6 = vector.load %arg4[%c0_4, %c0_5] : memref<1x1024xf32, #tpu.memory_space<vmem>>, vector<1x1024xf32>
    %7 = vector.broadcast %6 : vector<1x1024xf32> to vector<64x1024xf32>
    %8 = arith.addf %5, %7 : vector<64x1024xf32>
    %c0_6 = arith.constant 0 : index
    %c0_7 = arith.constant 0 : index
    %9 = vector.load %arg8[%c0_6, %c0_7] : memref<64x1024xf32, #tpu.memory_space<vmem>>, vector<64x1024xf32>
    tpu.vector_store %arg8[%c0_6, %c0_7], %8 {strides = array<i32>} : memref<64x1024xf32, #tpu.memory_space<vmem>>, vector<64x1024xf32>,
    %c0_8 = arith.constant 0 : index
    %c0_9 = arith.constant 0 : index
    %10 = vector.load %arg6[%c0_8, %c0_9] : memref<8x256xf32, #tpu.memory_space<vmem>>, vector<8x256xf32>
    %c0_10 = arith.constant 0 : index
    %c0_11 = arith.constant 0 : index
    %11 = vector.load %arg7[%c0_10, %c0_11] : memref<8x256xf32, #tpu.memory_space<vmem>>, vector<8x256xf32>
    %c0_i32_12 = arith.constant 0 : i32
    %c8_i32 = arith.constant 8 : i32
    %12 = arith.muli %c0_i32_12, %c8_i32 : i32
    %13 = tpu.assume_multiple %12, 8 : i32
    %14 = arith.index_cast %13 : i32 to index
    %c0_13 = arith.constant 0 : index
    %15 = vector.load %arg8[%14, %c0_13] : memref<64x1024xf32, #tpu.memory_space<vmem>>, vector<8x1024xf32>
    %16 = arith.truncf %10 : vector<8x256xf32> to vector<8x256xbf16>
    %c0_14 = arith.constant 0 : index
    %c0_15 = arith.constant 0 : index
    %17 = vector.load %arg3[%c0_14, %c0_15] : memref<256x1024xbf16, #tpu.memory_space<vmem>>, vector<256x1024xbf16>
    %cst_16 = arith.constant dense<0.000000e+00> : vector<8x1024xf32>
    %18 = tpu.matmul %16, %17, %cst_16 {dimension_numbers = #tpu.dot_dimension_numbers<[1], [0], [0], [1], [0, 0, 1, 1], [], []>} : vector<8x256xbf16>, vector<256x1024xbf16>, vector<8x1024xf32> -> vector<8x1024xf32>
    %19 = arith.addf %18, %15 : vector<8x1024xf32>
    %20 = vector.extract_strided_slice %19 {offsets = [0, 0], sizes = [8, 256], strides = [1, 1]} : vector<8x1024xf32> to vector<8x256xf32>
    %21 = arith.negf %20 : vector<8x256xf32>
    %22 = math.exp %21 : vector<8x256xf32>
    %cst_17 = arith.constant 1.000000e+00 : f32
    %23 = vector.broadcast %cst_17 : f32 to vector<8x256xf32>
    %24 = arith.addf %23, %22 : vector<8x256xf32>
    %25 = arith.divf %23, %24 : vector<8x256xf32>
    %26 = vector.extract_strided_slice %19 {offsets = [0, 256], sizes = [8, 256], strides = [1, 1]} : vector<8x1024xf32> to vector<8x256xf32>
    %27 = arith.negf %26 : vector<8x256xf32>
    %28 = math.exp %27 : vector<8x256xf32>
    %cst_18 = arith.constant 1.000000e+00 : f32
    %29 = vector.broadcast %cst_18 : f32 to vector<8x256xf32>
    %30 = arith.addf %29, %28 : vector<8x256xf32>
    %31 = arith.divf %29, %30 : vector<8x256xf32>
    %32 = vector.extract_strided_slice %19 {offsets = [0, 512], sizes = [8, 256], strides = [1, 1]} : vector<8x1024xf32> to vector<8x256xf32>
    %33 = math.tanh %32 : vector<8x256xf32>
    %34 = vector.extract_strided_slice %19 {offsets = [0, 768], sizes = [8, 256], strides = [1, 1]} : vector<8x1024xf32> to vector<8x256xf32>
    %35 = arith.negf %34 : vector<8x256xf32>
    %36 = math.exp %35 : vector<8x256xf32>
    %cst_19 = arith.constant 1.000000e+00 : f32
    %37 = vector.broadcast %cst_19 : f32 to vector<8x256xf32>
    %38 = arith.addf %37, %36 : vector<8x256xf32>
    %39 = arith.divf %37, %38 : vector<8x256xf32>
    %40 = arith.mulf %25, %11 : vector<8x256xf32>
    %41 = arith.mulf %31, %33 : vector<8x256xf32>
    %42 = arith.addf %40, %41 : vector<8x256xf32>
    %43 = math.tanh %42 : vector<8x256xf32>
    %44 = arith.mulf %39, %43 : vector<8x256xf32>
    %45 = vector.extract_strided_slice %44 {offsets = [0, 128], sizes = [8, 128], strides = [1, 1]} : vector<8x256xf32> to vector<8x128xf32>
    %46 = arith.index_cast %13 : i32 to index
    %c0_20 = arith.constant 0 : index
    %47 = vector.load %arg5[%46, %c0_20] : memref<64x128xf32, #tpu.memory_space<vmem>>, vector<8x128xf32>
    tpu.vector_store %arg5[%46, %c0_20], %45 {strides = array<i32>} : memref<64x128xf32, #tpu.memory_space<vmem>>, vector<8x128xf32>,
    %c1_i32 = arith.constant 1 : i32
    %c8_i32_21 = arith.constant 8 : i32
    %48 = arith.muli %c1_i32, %c8_i32_21 : i32
    %49 = tpu.assume_multiple %48, 8 : i32
    %50 = arith.index_cast %49 : i32 to index
    %c0_22 = arith.constant 0 : index
    %51 = vector.load %arg8[%50, %c0_22] : memref<64x1024xf32, #tpu.memory_space<vmem>>, vector<8x1024xf32>
    %52 = arith.truncf %44 : vector<8x256xf32> to vector<8x256xbf16>
    %c0_23 = arith.constant 0 : index
    %c0_24 = arith.constant 0 : index
    %53 = vector.load %arg3[%c0_23, %c0_24] : memref<256x1024xbf16, #tpu.memory_space<vmem>>, vector<256x1024xbf16>
    %cst_25 = arith.constant dense<0.000000e+00> : vector<8x1024xf32>
    %54 = tpu.matmul %52, %53, %cst_25 {dimension_numbers = #tpu.dot_dimension_numbers<[1], [0], [0], [1], [0, 0, 1, 1], [], []>} : vector<8x256xbf16>, vector<256x1024xbf16>, vector<8x1024xf32> -> vector<8x1024xf32>
    %55 = arith.addf %54, %51 : vector<8x1024xf32>
    %56 = vector.extract_strided_slice %55 {offsets = [0, 0], sizes = [8, 256], strides = [1, 1]} : vector<8x1024xf32> to vector<8x256xf32>
    %57 = arith.negf %56 : vector<8x256xf32>
    %58 = math.exp %57 : vector<8x256xf32>
    %cst_26 = arith.constant 1.000000e+00 : f32
    %59 = vector.broadcast %cst_26 : f32 to vector<8x256xf32>
    %60 = arith.addf %59, %58 : vector<8x256xf32>
    %61 = arith.divf %59, %60 : vector<8x256xf32>
    %62 = vector.extract_strided_slice %55 {offsets = [0, 256], sizes = [8, 256], strides = [1, 1]} : vector<8x1024xf32> to vector<8x256xf32>
    %63 = arith.negf %62 : vector<8x256xf32>
    %64 = math.exp %63 : vector<8x256xf32>
    %cst_27 = arith.constant 1.000000e+00 : f32
    %65 = vector.broadcast %cst_27 : f32 to vector<8x256xf32>
    %66 = arith.addf %65, %64 : vector<8x256xf32>
    %67 = arith.divf %65, %66 : vector<8x256xf32>
    %68 = vector.extract_strided_slice %55 {offsets = [0, 512], sizes = [8, 256], strides = [1, 1]} : vector<8x1024xf32> to vector<8x256xf32>
    %69 = math.tanh %68 : vector<8x256xf32>
    %70 = vector.extract_strided_slice %55 {offsets = [0, 768], sizes = [8, 256], strides = [1, 1]} : vector<8x1024xf32> to vector<8x256xf32>
    %71 = arith.negf %70 : vector<8x256xf32>
    %72 = math.exp %71 : vector<8x256xf32>
    %cst_28 = arith.constant 1.000000e+00 : f32
    %73 = vector.broadcast %cst_28 : f32 to vector<8x256xf32>
    %74 = arith.addf %73, %72 : vector<8x256xf32>
    %75 = arith.divf %73, %74 : vector<8x256xf32>
    %76 = arith.mulf %61, %42 : vector<8x256xf32>
    %77 = arith.mulf %67, %69 : vector<8x256xf32>
    %78 = arith.addf %76, %77 : vector<8x256xf32>
    %79 = math.tanh %78 : vector<8x256xf32>
    %80 = arith.mulf %75, %79 : vector<8x256xf32>
    %81 = vector.extract_strided_slice %80 {offsets = [0, 128], sizes = [8, 128], strides = [1, 1]} : vector<8x256xf32> to vector<8x128xf32>
    %82 = arith.index_cast %49 : i32 to index
    %c0_29 = arith.constant 0 : index
    %83 = vector.load %arg5[%82, %c0_29] : memref<64x128xf32, #tpu.memory_space<vmem>>, vector<8x128xf32>
    tpu.vector_store %arg5[%82, %c0_29], %81 {strides = array<i32>} : memref<64x128xf32, #tpu.memory_space<vmem>>, vector<8x128xf32>,
    %c2_i32 = arith.constant 2 : i32
    %c8_i32_30 = arith.constant 8 : i32
    %84 = arith.muli %c2_i32, %c8_i32_30 : i32
    %85 = tpu.assume_multiple %84, 8 : i32
    %86 = arith.index_cast %85 : i32 to index
    %c0_31 = arith.constant 0 : index
    %87 = vector.load %arg8[%86, %c0_31] : memref<64x1024xf32, #tpu.memory_space<vmem>>, vector<8x1024xf32>
    %88 = arith.truncf %80 : vector<8x256xf32> to vector<8x256xbf16>
    %c0_32 = arith.constant 0 : index
    %c0_33 = arith.constant 0 : index
    %89 = vector.load %arg3[%c0_32, %c0_33] : memref<256x1024xbf16, #tpu.memory_space<vmem>>, vector<256x1024xbf16>
    %cst_34 = arith.constant dense<0.000000e+00> : vector<8x1024xf32>
    %90 = tpu.matmul %88, %89, %cst_34 {dimension_numbers = #tpu.dot_dimension_numbers<[1], [0], [0], [1], [0, 0, 1, 1], [], []>} : vector<8x256xbf16>, vector<256x1024xbf16>, vector<8x1024xf32> -> vector<8x1024xf32>
    %91 = arith.addf %90, %87 : vector<8x1024xf32>
    %92 = vector.extract_strided_slice %91 {offsets = [0, 0], sizes = [8, 256], strides = [1, 1]} : vector<8x1024xf32> to vector<8x256xf32>
    %93 = arith.negf %92 : vector<8x256xf32>
    %94 = math.exp %93 : vector<8x256xf32>
    %cst_35 = arith.constant 1.000000e+00 : f32
    %95 = vector.broadcast %cst_35 : f32 to vector<8x256xf32>
    %96 = arith.addf %95, %94 : vector<8x256xf32>
    %97 = arith.divf %95, %96 : vector<8x256xf32>
    %98 = vector.extract_strided_slice %91 {offsets = [0, 256], sizes = [8, 256], strides = [1, 1]} : vector<8x1024xf32> to vector<8x256xf32>
    %99 = arith.negf %98 : vector<8x256xf32>
    %100 = math.exp %99 : vector<8x256xf32>
    %cst_36 = arith.constant 1.000000e+00 : f32
    %101 = vector.broadcast %cst_36 : f32 to vector<8x256xf32>
    %102 = arith.addf %101, %100 : vector<8x256xf32>
    %103 = arith.divf %101, %102 : vector<8x256xf32>
    %104 = vector.extract_strided_slice %91 {offsets = [0, 512], sizes = [8, 256], strides = [1, 1]} : vector<8x1024xf32> to vector<8x256xf32>
    %105 = math.tanh %104 : vector<8x256xf32>
    %106 = vector.extract_strided_slice %91 {offsets = [0, 768], sizes = [8, 256], strides = [1, 1]} : vector<8x1024xf32> to vector<8x256xf32>
    %107 = arith.negf %106 : vector<8x256xf32>
    %108 = math.exp %107 : vector<8x256xf32>
    %cst_37 = arith.constant 1.000000e+00 : f32
    %109 = vector.broadcast %cst_37 : f32 to vector<8x256xf32>
    %110 = arith.addf %109, %108 : vector<8x256xf32>
    %111 = arith.divf %109, %110 : vector<8x256xf32>
    %112 = arith.mulf %97, %78 : vector<8x256xf32>
    %113 = arith.mulf %103, %105 : vector<8x256xf32>
    %114 = arith.addf %112, %113 : vector<8x256xf32>
    %115 = math.tanh %114 : vector<8x256xf32>
    %116 = arith.mulf %111, %115 : vector<8x256xf32>
    %117 = vector.extract_strided_slice %116 {offsets = [0, 128], sizes = [8, 128], strides = [1, 1]} : vector<8x256xf32> to vector<8x128xf32>
    %118 = arith.index_cast %85 : i32 to index
    %c0_38 = arith.constant 0 : index
    %119 = vector.load %arg5[%118, %c0_38] : memref<64x128xf32, #tpu.memory_space<vmem>>, vector<8x128xf32>
    tpu.vector_store %arg5[%118, %c0_38], %117 {strides = array<i32>} : memref<64x128xf32, #tpu.memory_space<vmem>>, vector<8x128xf32>,
    %c3_i32 = arith.constant 3 : i32
    %c8_i32_39 = arith.constant 8 : i32
    %120 = arith.muli %c3_i32, %c8_i32_39 : i32
    %121 = tpu.assume_multiple %120, 8 : i32
    %122 = arith.index_cast %121 : i32 to index
    %c0_40 = arith.constant 0 : index
    %123 = vector.load %arg8[%122, %c0_40] : memref<64x1024xf32, #tpu.memory_space<vmem>>, vector<8x1024xf32>
    %124 = arith.truncf %116 : vector<8x256xf32> to vector<8x256xbf16>
    %c0_41 = arith.constant 0 : index
    %c0_42 = arith.constant 0 : index
    %125 = vector.load %arg3[%c0_41, %c0_42] : memref<256x1024xbf16, #tpu.memory_space<vmem>>, vector<256x1024xbf16>
    %cst_43 = arith.constant dense<0.000000e+00> : vector<8x1024xf32>
    %126 = tpu.matmul %124, %125, %cst_43 {dimension_numbers = #tpu.dot_dimension_numbers<[1], [0], [0], [1], [0, 0, 1, 1], [], []>} : vector<8x256xbf16>, vector<256x1024xbf16>, vector<8x1024xf32> -> vector<8x1024xf32>
    %127 = arith.addf %126, %123 : vector<8x1024xf32>
    %128 = vector.extract_strided_slice %127 {offsets = [0, 0], sizes = [8, 256], strides = [1, 1]} : vector<8x1024xf32> to vector<8x256xf32>
    %129 = arith.negf %128 : vector<8x256xf32>
    %130 = math.exp %129 : vector<8x256xf32>
    %cst_44 = arith.constant 1.000000e+00 : f32
    %131 = vector.broadcast %cst_44 : f32 to vector<8x256xf32>
    %132 = arith.addf %131, %130 : vector<8x256xf32>
    %133 = arith.divf %131, %132 : vector<8x256xf32>
    %134 = vector.extract_strided_slice %127 {offsets = [0, 256], sizes = [8, 256], strides = [1, 1]} : vector<8x1024xf32> to vector<8x256xf32>
    %135 = arith.negf %134 : vector<8x256xf32>
    %136 = math.exp %135 : vector<8x256xf32>
    %cst_45 = arith.constant 1.000000e+00 : f32
    %137 = vector.broadcast %cst_45 : f32 to vector<8x256xf32>
    %138 = arith.addf %137, %136 : vector<8x256xf32>
    %139 = arith.divf %137, %138 : vector<8x256xf32>
    %140 = vector.extract_strided_slice %127 {offsets = [0, 512], sizes = [8, 256], strides = [1, 1]} : vector<8x1024xf32> to vector<8x256xf32>
    %141 = math.tanh %140 : vector<8x256xf32>
    %142 = vector.extract_strided_slice %127 {offsets = [0, 768], sizes = [8, 256], strides = [1, 1]} : vector<8x1024xf32> to vector<8x256xf32>
    %143 = arith.negf %142 : vector<8x256xf32>
    %144 = math.exp %143 : vector<8x256xf32>
    %cst_46 = arith.constant 1.000000e+00 : f32
    %145 = vector.broadcast %cst_46 : f32 to vector<8x256xf32>
    %146 = arith.addf %145, %144 : vector<8x256xf32>
    %147 = arith.divf %145, %146 : vector<8x256xf32>
    %148 = arith.mulf %133, %114 : vector<8x256xf32>
    %149 = arith.mulf %139, %141 : vector<8x256xf32>
    %150 = arith.addf %148, %149 : vector<8x256xf32>
    %151 = math.tanh %150 : vector<8x256xf32>
    %152 = arith.mulf %147, %151 : vector<8x256xf32>
    %153 = vector.extract_strided_slice %152 {offsets = [0, 128], sizes = [8, 128], strides = [1, 1]} : vector<8x256xf32> to vector<8x128xf32>
    %154 = arith.index_cast %121 : i32 to index
    %c0_47 = arith.constant 0 : index
    %155 = vector.load %arg5[%154, %c0_47] : memref<64x128xf32, #tpu.memory_space<vmem>>, vector<8x128xf32>
    tpu.vector_store %arg5[%154, %c0_47], %153 {strides = array<i32>} : memref<64x128xf32, #tpu.memory_space<vmem>>, vector<8x128xf32>,
    %c4_i32 = arith.constant 4 : i32
    %c8_i32_48 = arith.constant 8 : i32
    %156 = arith.muli %c4_i32, %c8_i32_48 : i32
    %157 = tpu.assume_multiple %156, 8 : i32
    %158 = arith.index_cast %157 : i32 to index
    %c0_49 = arith.constant 0 : index
    %159 = vector.load %arg8[%158, %c0_49] : memref<64x1024xf32, #tpu.memory_space<vmem>>, vector<8x1024xf32>
    %160 = arith.truncf %152 : vector<8x256xf32> to vector<8x256xbf16>
    %c0_50 = arith.constant 0 : index
    %c0_51 = arith.constant 0 : index
    %161 = vector.load %arg3[%c0_50, %c0_51] : memref<256x1024xbf16, #tpu.memory_space<vmem>>, vector<256x1024xbf16>
    %cst_52 = arith.constant dense<0.000000e+00> : vector<8x1024xf32>
    %162 = tpu.matmul %160, %161, %cst_52 {dimension_numbers = #tpu.dot_dimension_numbers<[1], [0], [0], [1], [0, 0, 1, 1], [], []>} : vector<8x256xbf16>, vector<256x1024xbf16>, vector<8x1024xf32> -> vector<8x1024xf32>
    %163 = arith.addf %162, %159 : vector<8x1024xf32>
    %164 = vector.extract_strided_slice %163 {offsets = [0, 0], sizes = [8, 256], strides = [1, 1]} : vector<8x1024xf32> to vector<8x256xf32>
    %165 = arith.negf %164 : vector<8x256xf32>
    %166 = math.exp %165 : vector<8x256xf32>
    %cst_53 = arith.constant 1.000000e+00 : f32
    %167 = vector.broadcast %cst_53 : f32 to vector<8x256xf32>
    %168 = arith.addf %167, %166 : vector<8x256xf32>
    %169 = arith.divf %167, %168 : vector<8x256xf32>
    %170 = vector.extract_strided_slice %163 {offsets = [0, 256], sizes = [8, 256], strides = [1, 1]} : vector<8x1024xf32> to vector<8x256xf32>
    %171 = arith.negf %170 : vector<8x256xf32>
    %172 = math.exp %171 : vector<8x256xf32>
    %cst_54 = arith.constant 1.000000e+00 : f32
    %173 = vector.broadcast %cst_54 : f32 to vector<8x256xf32>
    %174 = arith.addf %173, %172 : vector<8x256xf32>
    %175 = arith.divf %173, %174 : vector<8x256xf32>
    %176 = vector.extract_strided_slice %163 {offsets = [0, 512], sizes = [8, 256], strides = [1, 1]} : vector<8x1024xf32> to vector<8x256xf32>
    %177 = math.tanh %176 : vector<8x256xf32>
    %178 = vector.extract_strided_slice %163 {offsets = [0, 768], sizes = [8, 256], strides = [1, 1]} : vector<8x1024xf32> to vector<8x256xf32>
    %179 = arith.negf %178 : vector<8x256xf32>
    %180 = math.exp %179 : vector<8x256xf32>
    %cst_55 = arith.constant 1.000000e+00 : f32
    %181 = vector.broadcast %cst_55 : f32 to vector<8x256xf32>
    %182 = arith.addf %181, %180 : vector<8x256xf32>
    %183 = arith.divf %181, %182 : vector<8x256xf32>
    %184 = arith.mulf %169, %150 : vector<8x256xf32>
    %185 = arith.mulf %175, %177 : vector<8x256xf32>
    %186 = arith.addf %184, %185 : vector<8x256xf32>
    %187 = math.tanh %186 : vector<8x256xf32>
    %188 = arith.mulf %183, %187 : vector<8x256xf32>
    %189 = vector.extract_strided_slice %188 {offsets = [0, 128], sizes = [8, 128], strides = [1, 1]} : vector<8x256xf32> to vector<8x128xf32>
    %190 = arith.index_cast %157 : i32 to index
    %c0_56 = arith.constant 0 : index
    %191 = vector.load %arg5[%190, %c0_56] : memref<64x128xf32, #tpu.memory_space<vmem>>, vector<8x128xf32>
    tpu.vector_store %arg5[%190, %c0_56], %189 {strides = array<i32>} : memref<64x128xf32, #tpu.memory_space<vmem>>, vector<8x128xf32>,
    %c5_i32 = arith.constant 5 : i32
    %c8_i32_57 = arith.constant 8 : i32
    %192 = arith.muli %c5_i32, %c8_i32_57 : i32
    %193 = tpu.assume_multiple %192, 8 : i32
    %194 = arith.index_cast %193 : i32 to index
    %c0_58 = arith.constant 0 : index
    %195 = vector.load %arg8[%194, %c0_58] : memref<64x1024xf32, #tpu.memory_space<vmem>>, vector<8x1024xf32>
    %196 = arith.truncf %188 : vector<8x256xf32> to vector<8x256xbf16>
    %c0_59 = arith.constant 0 : index
    %c0_60 = arith.constant 0 : index
    %197 = vector.load %arg3[%c0_59, %c0_60] : memref<256x1024xbf16, #tpu.memory_space<vmem>>, vector<256x1024xbf16>
    %cst_61 = arith.constant dense<0.000000e+00> : vector<8x1024xf32>
    %198 = tpu.matmul %196, %197, %cst_61 {dimension_numbers = #tpu.dot_dimension_numbers<[1], [0], [0], [1], [0, 0, 1, 1], [], []>} : vector<8x256xbf16>, vector<256x1024xbf16>, vector<8x1024xf32> -> vector<8x1024xf32>
    %199 = arith.addf %198, %195 : vector<8x1024xf32>
    %200 = vector.extract_strided_slice %199 {offsets = [0, 0], sizes = [8, 256], strides = [1, 1]} : vector<8x1024xf32> to vector<8x256xf32>
    %201 = arith.negf %200 : vector<8x256xf32>
    %202 = math.exp %201 : vector<8x256xf32>
    %cst_62 = arith.constant 1.000000e+00 : f32
    %203 = vector.broadcast %cst_62 : f32 to vector<8x256xf32>
    %204 = arith.addf %203, %202 : vector<8x256xf32>
    %205 = arith.divf %203, %204 : vector<8x256xf32>
    %206 = vector.extract_strided_slice %199 {offsets = [0, 256], sizes = [8, 256], strides = [1, 1]} : vector<8x1024xf32> to vector<8x256xf32>
    %207 = arith.negf %206 : vector<8x256xf32>
    %208 = math.exp %207 : vector<8x256xf32>
    %cst_63 = arith.constant 1.000000e+00 : f32
    %209 = vector.broadcast %cst_63 : f32 to vector<8x256xf32>
    %210 = arith.addf %209, %208 : vector<8x256xf32>
    %211 = arith.divf %209, %210 : vector<8x256xf32>
    %212 = vector.extract_strided_slice %199 {offsets = [0, 512], sizes = [8, 256], strides = [1, 1]} : vector<8x1024xf32> to vector<8x256xf32>
    %213 = math.tanh %212 : vector<8x256xf32>
    %214 = vector.extract_strided_slice %199 {offsets = [0, 768], sizes = [8, 256], strides = [1, 1]} : vector<8x1024xf32> to vector<8x256xf32>
    %215 = arith.negf %214 : vector<8x256xf32>
    %216 = math.exp %215 : vector<8x256xf32>
    %cst_64 = arith.constant 1.000000e+00 : f32
    %217 = vector.broadcast %cst_64 : f32 to vector<8x256xf32>
    %218 = arith.addf %217, %216 : vector<8x256xf32>
    %219 = arith.divf %217, %218 : vector<8x256xf32>
    %220 = arith.mulf %205, %186 : vector<8x256xf32>
    %221 = arith.mulf %211, %213 : vector<8x256xf32>
    %222 = arith.addf %220, %221 : vector<8x256xf32>
    %223 = math.tanh %222 : vector<8x256xf32>
    %224 = arith.mulf %219, %223 : vector<8x256xf32>
    %225 = vector.extract_strided_slice %224 {offsets = [0, 128], sizes = [8, 128], strides = [1, 1]} : vector<8x256xf32> to vector<8x128xf32>
    %226 = arith.index_cast %193 : i32 to index
    %c0_65 = arith.constant 0 : index
    %227 = vector.load %arg5[%226, %c0_65] : memref<64x128xf32, #tpu.memory_space<vmem>>, vector<8x128xf32>
    tpu.vector_store %arg5[%226, %c0_65], %225 {strides = array<i32>} : memref<64x128xf32, #tpu.memory_space<vmem>>, vector<8x128xf32>,
    %c6_i32 = arith.constant 6 : i32
    %c8_i32_66 = arith.constant 8 : i32
    %228 = arith.muli %c6_i32, %c8_i32_66 : i32
    %229 = tpu.assume_multiple %228, 8 : i32
    %230 = arith.index_cast %229 : i32 to index
    %c0_67 = arith.constant 0 : index
    %231 = vector.load %arg8[%230, %c0_67] : memref<64x1024xf32, #tpu.memory_space<vmem>>, vector<8x1024xf32>
    %232 = arith.truncf %224 : vector<8x256xf32> to vector<8x256xbf16>
    %c0_68 = arith.constant 0 : index
    %c0_69 = arith.constant 0 : index
    %233 = vector.load %arg3[%c0_68, %c0_69] : memref<256x1024xbf16, #tpu.memory_space<vmem>>, vector<256x1024xbf16>
    %cst_70 = arith.constant dense<0.000000e+00> : vector<8x1024xf32>
    %234 = tpu.matmul %232, %233, %cst_70 {dimension_numbers = #tpu.dot_dimension_numbers<[1], [0], [0], [1], [0, 0, 1, 1], [], []>} : vector<8x256xbf16>, vector<256x1024xbf16>, vector<8x1024xf32> -> vector<8x1024xf32>
    %235 = arith.addf %234, %231 : vector<8x1024xf32>
    %236 = vector.extract_strided_slice %235 {offsets = [0, 0], sizes = [8, 256], strides = [1, 1]} : vector<8x1024xf32> to vector<8x256xf32>
    %237 = arith.negf %236 : vector<8x256xf32>
    %238 = math.exp %237 : vector<8x256xf32>
    %cst_71 = arith.constant 1.000000e+00 : f32
    %239 = vector.broadcast %cst_71 : f32 to vector<8x256xf32>
    %240 = arith.addf %239, %238 : vector<8x256xf32>
    %241 = arith.divf %239, %240 : vector<8x256xf32>
    %242 = vector.extract_strided_slice %235 {offsets = [0, 256], sizes = [8, 256], strides = [1, 1]} : vector<8x1024xf32> to vector<8x256xf32>
    %243 = arith.negf %242 : vector<8x256xf32>
    %244 = math.exp %243 : vector<8x256xf32>
    %cst_72 = arith.constant 1.000000e+00 : f32
    %245 = vector.broadcast %cst_72 : f32 to vector<8x256xf32>
    %246 = arith.addf %245, %244 : vector<8x256xf32>
    %247 = arith.divf %245, %246 : vector<8x256xf32>
    %248 = vector.extract_strided_slice %235 {offsets = [0, 512], sizes = [8, 256], strides = [1, 1]} : vector<8x1024xf32> to vector<8x256xf32>
    %249 = math.tanh %248 : vector<8x256xf32>
    %250 = vector.extract_strided_slice %235 {offsets = [0, 768], sizes = [8, 256], strides = [1, 1]} : vector<8x1024xf32> to vector<8x256xf32>
    %251 = arith.negf %250 : vector<8x256xf32>
    %252 = math.exp %251 : vector<8x256xf32>
    %cst_73 = arith.constant 1.000000e+00 : f32
    %253 = vector.broadcast %cst_73 : f32 to vector<8x256xf32>
    %254 = arith.addf %253, %252 : vector<8x256xf32>
    %255 = arith.divf %253, %254 : vector<8x256xf32>
    %256 = arith.mulf %241, %222 : vector<8x256xf32>
    %257 = arith.mulf %247, %249 : vector<8x256xf32>
    %258 = arith.addf %256, %257 : vector<8x256xf32>
    %259 = math.tanh %258 : vector<8x256xf32>
    %260 = arith.mulf %255, %259 : vector<8x256xf32>
    %261 = vector.extract_strided_slice %260 {offsets = [0, 128], sizes = [8, 128], strides = [1, 1]} : vector<8x256xf32> to vector<8x128xf32>
    %262 = arith.index_cast %229 : i32 to index
    %c0_74 = arith.constant 0 : index
    %263 = vector.load %arg5[%262, %c0_74] : memref<64x128xf32, #tpu.memory_space<vmem>>, vector<8x128xf32>
    tpu.vector_store %arg5[%262, %c0_74], %261 {strides = array<i32>} : memref<64x128xf32, #tpu.memory_space<vmem>>, vector<8x128xf32>,
    %c7_i32 = arith.constant 7 : i32
    %c8_i32_75 = arith.constant 8 : i32
    %264 = arith.muli %c7_i32, %c8_i32_75 : i32
    %265 = tpu.assume_multiple %264, 8 : i32
    %266 = arith.index_cast %265 : i32 to index
    %c0_76 = arith.constant 0 : index
    %267 = vector.load %arg8[%266, %c0_76] : memref<64x1024xf32, #tpu.memory_space<vmem>>, vector<8x1024xf32>
    %268 = arith.truncf %260 : vector<8x256xf32> to vector<8x256xbf16>
    %c0_77 = arith.constant 0 : index
    %c0_78 = arith.constant 0 : index
    %269 = vector.load %arg3[%c0_77, %c0_78] : memref<256x1024xbf16, #tpu.memory_space<vmem>>, vector<256x1024xbf16>
    %cst_79 = arith.constant dense<0.000000e+00> : vector<8x1024xf32>
    %270 = tpu.matmul %268, %269, %cst_79 {dimension_numbers = #tpu.dot_dimension_numbers<[1], [0], [0], [1], [0, 0, 1, 1], [], []>} : vector<8x256xbf16>, vector<256x1024xbf16>, vector<8x1024xf32> -> vector<8x1024xf32>
    %271 = arith.addf %270, %267 : vector<8x1024xf32>
    %272 = vector.extract_strided_slice %271 {offsets = [0, 0], sizes = [8, 256], strides = [1, 1]} : vector<8x1024xf32> to vector<8x256xf32>
    %273 = arith.negf %272 : vector<8x256xf32>
    %274 = math.exp %273 : vector<8x256xf32>
    %cst_80 = arith.constant 1.000000e+00 : f32
    %275 = vector.broadcast %cst_80 : f32 to vector<8x256xf32>
    %276 = arith.addf %275, %274 : vector<8x256xf32>
    %277 = arith.divf %275, %276 : vector<8x256xf32>
    %278 = vector.extract_strided_slice %271 {offsets = [0, 256], sizes = [8, 256], strides = [1, 1]} : vector<8x1024xf32> to vector<8x256xf32>
    %279 = arith.negf %278 : vector<8x256xf32>
    %280 = math.exp %279 : vector<8x256xf32>
    %cst_81 = arith.constant 1.000000e+00 : f32
    %281 = vector.broadcast %cst_81 : f32 to vector<8x256xf32>
    %282 = arith.addf %281, %280 : vector<8x256xf32>
    %283 = arith.divf %281, %282 : vector<8x256xf32>
    %284 = vector.extract_strided_slice %271 {offsets = [0, 512], sizes = [8, 256], strides = [1, 1]} : vector<8x1024xf32> to vector<8x256xf32>
    %285 = math.tanh %284 : vector<8x256xf32>
    %286 = vector.extract_strided_slice %271 {offsets = [0, 768], sizes = [8, 256], strides = [1, 1]} : vector<8x1024xf32> to vector<8x256xf32>
    %287 = arith.negf %286 : vector<8x256xf32>
    %288 = math.exp %287 : vector<8x256xf32>
    %cst_82 = arith.constant 1.000000e+00 : f32
    %289 = vector.broadcast %cst_82 : f32 to vector<8x256xf32>
    %290 = arith.addf %289, %288 : vector<8x256xf32>
    %291 = arith.divf %289, %290 : vector<8x256xf32>
    %292 = arith.mulf %277, %258 : vector<8x256xf32>
    %293 = arith.mulf %283, %285 : vector<8x256xf32>
    %294 = arith.addf %292, %293 : vector<8x256xf32>
    %295 = math.tanh %294 : vector<8x256xf32>
    %296 = arith.mulf %291, %295 : vector<8x256xf32>
    %297 = vector.extract_strided_slice %296 {offsets = [0, 128], sizes = [8, 128], strides = [1, 1]} : vector<8x256xf32> to vector<8x128xf32>
    %298 = arith.index_cast %265 : i32 to index
    %c0_83 = arith.constant 0 : index
    %299 = vector.load %arg5[%298, %c0_83] : memref<64x128xf32, #tpu.memory_space<vmem>>, vector<8x128xf32>
    tpu.vector_store %arg5[%298, %c0_83], %297 {strides = array<i32>} : memref<64x128xf32, #tpu.memory_space<vmem>>, vector<8x128xf32>,
    %c8_i32_84 = arith.constant 8 : i32
    %c0_85 = arith.constant 0 : index
    %c0_86 = arith.constant 0 : index
    %300 = vector.load %arg6[%c0_85, %c0_86] : memref<8x256xf32, #tpu.memory_space<vmem>>, vector<8x256xf32>
    tpu.vector_store %arg6[%c0_85, %c0_86], %296 {strides = array<i32>} : memref<8x256xf32, #tpu.memory_space<vmem>>, vector<8x256xf32>,
    %c0_87 = arith.constant 0 : index
    %c0_88 = arith.constant 0 : index
    %301 = vector.load %arg7[%c0_87, %c0_88] : memref<8x256xf32, #tpu.memory_space<vmem>>, vector<8x256xf32>
    tpu.vector_store %arg7[%c0_87, %c0_88], %294 {strides = array<i32>} : memref<8x256xf32, #tpu.memory_space<vmem>>, vector<8x256xf32>,
    return
  }
  func.func @transform_0(%arg0: i32) -> (i32, i32) {
    %c0_i32 = arith.constant 0 : i32
    %c0_i32_0 = arith.constant 0 : i32
    return %arg0, %c0_i32 : i32, i32
  }
  func.func @transform_1(%arg0: i32) -> (i32, i32) {
    %c0_i32 = arith.constant 0 : i32
    %c0_i32_0 = arith.constant 0 : i32
    %c0_i32_1 = arith.constant 0 : i32
    return %c0_i32, %c0_i32_0 : i32, i32
  }
  func.func @transform_2(%arg0: i32) -> (i32, i32) {
    %c0_i32 = arith.constant 0 : i32
    %c0_i32_0 = arith.constant 0 : i32
    %c0_i32_1 = arith.constant 0 : i32
    return %c0_i32, %c0_i32_0 : i32, i32
  }
  func.func @transform_3(%arg0: i32) -> (i32, i32) {
    %c0_i32 = arith.constant 0 : i32
    %c0_i32_0 = arith.constant 0 : i32
    %c0_i32_1 = arith.constant 0 : i32
    return %c0_i32, %c0_i32_0 : i32, i32
  }
  func.func @transform_4(%arg0: i32) -> (i32, i32) {
    %c0_i32 = arith.constant 0 : i32
    %c0_i32_0 = arith.constant 0 : i32
    return %arg0, %c0_i32 : i32, i32
  }
  func.func @transform_5(%arg0: i32) -> (i32, i32) {
    %c0_i32 = arith.constant 0 : i32
    %c0_i32_0 = arith.constant 0 : i32
    %c0_i32_1 = arith.constant 0 : i32
    return %c0_i32, %c0_i32_0 : i32, i32
  }
  func.func @transform_6(%arg0: i32) -> (i32, i32) {
    %c0_i32 = arith.constant 0 : i32
    %c0_i32_0 = arith.constant 0 : i32
    %c0_i32_1 = arith.constant 0 : i32
    return %c0_i32, %c0_i32_0 : i32, i32
  }
}

</mosaic_0001>

<llo_original>
// kernel: lstm_block_forward.1
$region0: #{lstm_block_forward.1}
  #allocation0 [shape = 'u32[]', space=smem, size = 0x4, offset = 0x4, fixed_abs, tag = 'smem constant byte address 0x4 - core index']
  #allocation1 [shape = 'u32[144,128]{1,0:T(1,128)}', space=vmem, size = 0x12000, scoped, tag = 'internal scratch']
  #allocation2 [shape = 'f32[64,1024]{1,0:T(8,128)}', space=vmem, size = 0x40000, scoped, tag = 'scratch operand']
  %s0 = inlined_call_operand.vmem [shape: bf16[64,16], index: 0, kind: input, shape index: {}]
  %s1 = inlined_call_operand.vmem [shape: bf16[16,1024], index: 1, kind: input, shape index: {}]
  %s2 = inlined_call_operand.vmem [shape: bf16[256,1024], index: 2, kind: input, shape index: {}]
  %s3 = inlined_call_operand.vmem [shape: f32[1,1024], index: 3, kind: input, shape index: {}]
  %s4 = inlined_call_operand.vmem [shape: f32[64,128], index: 4, kind: output, shape index: {0}]
  %s5 = inlined_call_operand.vmem [shape: f32[8,256], index: 5, kind: output, shape index: {1}]
  %s6 = inlined_call_operand.vmem [shape: f32[8,256], index: 6, kind: output, shape index: {2}]
  %7 = xla_tuple %s4, %s5, %s6
  %s8 = sld [smem:[#allocation0]]
  $region46: #{lstm_block_forward.1} parent=0
    _
  %s10 = ssub.s32 1, %s8
  %s11 = scalar_select 0, %s10, %s8
  // Predicated region
  $region2: #{lstm_block_forward.1} parent=0 // pred_check
    _
  $region3: #{lstm_block_forward.1} parent=0 // pred_check_branch
    %13 = sbr.rel (0) target = $region5
  $region4: #{lstm_block_forward.1} parent=0 // pred_region
    _
  $region5: #{lstm_block_forward.1} parent=0 // pred_fallthru
    _
  // Predicated region
  $region6: #{lstm_block_forward.1} parent=0 // pred_check
    _
  $region7: #{lstm_block_forward.1} parent=0 // pred_check_branch
    %15 = sbr.rel (0) target = $region9
  $region8: #{lstm_block_forward.1} parent=0 // pred_region
    _
  $region9: #{lstm_block_forward.1} parent=0 // pred_fallthru
    _
  // Predicated region
  $region10: #{lstm_block_forward.1} parent=0 // pred_check
    _
  $region11: #{lstm_block_forward.1} parent=0 // pred_check_branch
    %17 = sbr.rel (0) target = $region13
  $region12: #{lstm_block_forward.1} parent=0 // pred_region
    _
  $region13: #{lstm_block_forward.1} parent=0 // pred_fallthru
    _
  // Predicated region
  $region14: #{lstm_block_forward.1} parent=0 // pred_check
    _
  $region15: #{lstm_block_forward.1} parent=0 // pred_check_branch
    %19 = sbr.rel (0) target = $region17
  $region16: #{lstm_block_forward.1} parent=0 // pred_region
    _
  $region17: #{lstm_block_forward.1} parent=0 // pred_fallthru
    _
  %p21 = scmp.eq.s32.totalorder 0, 0
  // Predicated region
  $region18: #{lstm_block_forward.1} parent=0 // pred_check
    %p22 = pneg %p21
  $region19: #{lstm_block_forward.1} parent=0 // pred_check_branch
    %24 = sbr.rel (%p22) target = $region21
  $region20: #{lstm_block_forward.1} parent=0 // pred_region
    %25 = vst [vmem:[%s5] sm:$0xff] 0.0
    %26 = vst [vmem:[%s5 + $0x8] sm:$0xff] 0.0
    %27 = vst [vmem:[%s6] sm:$0xff] 0.0
    %28 = vst [vmem:[%s6 + $0x8] sm:$0xff] 0.0
  $region21: #{lstm_block_forward.1} parent=0 // pred_fallthru
    _
  %v29 = vld [vmem:[%s0] sm:$0xf]
  %v30 = vld [vmem:[%s0 + $0x4] sm:$0xf]
  %v31 = vld [vmem:[%s0 + $0x8] sm:$0xf]
  %v32 = vld [vmem:[%s0 + $0xc] sm:$0xf]
  %v33 = vld [vmem:[%s0 + $0x10] sm:$0xf]
  %v34 = vld [vmem:[%s0 + $0x14] sm:$0xf]
  %v35 = vld [vmem:[%s0 + $0x18] sm:$0xf]
  %v36 = vld [vmem:[%s0 + $0x1c] sm:$0xf]
  %v37 = vld [vmem:[%s1] sm:$0xff]
  %v38 = vld [vmem:[%s1 + $0x8] sm:$0xff]
  %v39 = vld [vmem:[%s1 + $0x10] sm:$0xff]
  %v40 = vld [vmem:[%s1 + $0x18] sm:$0xff]
  %v41 = vld [vmem:[%s1 + $0x20] sm:$0xff]
  %v42 = vld [vmem:[%s1 + $0x28] sm:$0xff]
  %v43 = vld [vmem:[%s1 + $0x30] sm:$0xff]
  %v44 = vld [vmem:[%s1 + $0x38] sm:$0xff]
  %v45 = vld [vmem:[%s3] sm:$0xff]
  %v47 = vlaneseq
  %v48 = vshrl.u32 %v47, 7
  %v49 = vsub.s32 0, %v48
  %v50 = vrot.slane %v45, %v49
  %v51 = vlaneseq
  %v52 = vshrl.u32 %v51, 7
  %v53 = vsub.s32 1, %v52
  %v54 = vrot.slane %v45, %v53
  %v55 = vlaneseq
  %v56 = vshrl.u32 %v55, 7
  %v57 = vsub.s32 2, %v56
  %v58 = vrot.slane %v45, %v57
  %v59 = vlaneseq
  %v60 = vshrl.u32 %v59, 7
  %v61 = vsub.s32 3, %v60
  %v62 = vrot.slane %v45, %v61
  %v63 = vlaneseq
  %v64 = vshrl.u32 %v63, 7
  %v65 = vsub.s32 4, %v64
  %v66 = vrot.slane %v45, %v65
  %v67 = vlaneseq
  %v68 = vshrl.u32 %v67, 7
  %v69 = vsub.s32 5, %v68
  %v70 = vrot.slane %v45, %v69
  %v71 = vlaneseq
  %v72 = vshrl.u32 %v71, 7
  %v73 = vsub.s32 6, %v72
  %v74 = vrot.slane %v45, %v73
  %v75 = vlaneseq
  %v76 = vshrl.u32 %v75, 7
  %v77 = vsub.s32 7, %v76
  %v78 = vrot.slane %v45, %v77
  %v95 = vunpack.c.l.b16 %v29
  %v96 = vunpack.c.l.b16 %v30
  %v97 = vunpack.c.l.b16 %v31
  %v98 = vunpack.c.l.b16 %v32
  %v99 = vunpack.c.l.b16 %v33
  %v100 = vunpack.c.l.b16 %v34
  %v101 = vunpack.c.l.b16 %v35
  %v102 = vunpack.c.l.b16 %v36
  %v103 = vpack.c.b16 %v96, %v95
  %v104 = vpack.c.b16 %v98, %v97
  %v105 = vpack.c.b16 %v100, %v99
  %v106 = vpack.c.b16 %v102, %v101
  %v115 = vunpack.c.l.b16 %v37
  %v116 = vunpack.c.h.b16 %v37
  %v117 = vunpack.c.l.b16 %v38
  %v118 = vunpack.c.h.b16 %v38
  %v119 = vunpack.c.l.b16 %v39
  %v120 = vunpack.c.h.b16 %v39
  %v121 = vunpack.c.l.b16 %v40
  %v122 = vunpack.c.h.b16 %v40
  %v123 = vunpack.c.l.b16 %v41
  %v124 = vunpack.c.h.b16 %v41
  %v125 = vunpack.c.l.b16 %v42
  %v126 = vunpack.c.h.b16 %v42
  %v127 = vunpack.c.l.b16 %v43
  %v128 = vunpack.c.h.b16 %v43
  %v129 = vunpack.c.l.b16 %v44
  %v130 = vunpack.c.h.b16 %v44
  %v131 = vpack.c.b16 %v123, %v115
  %v132 = vpack.c.b16 %v124, %v116
  %v133 = vpack.c.b16 %v125, %v117
  %v134 = vpack.c.b16 %v126, %v118
  %v135 = vpack.c.b16 %v127, %v119
  %v136 = vpack.c.b16 %v128, %v120
  %v137 = vpack.c.b16 %v129, %v121
  %v138 = vpack.c.b16 %v130, %v122
  %vm147 = vcmask 130048
  %v149 = vsel %vm147, %v103, 0
  %v152 = vsel %vm147, %v104, 0
  %v155 = vsel %vm147, %v105, 0
  %v158 = vsel %vm147, %v106, 0
  %160 = vmatprep.subr.bf16.mxu0 %v132
  %161 = vmatpush1.bf16.msra.mxu0 %v131
  %162 = vmatprep.subr.bf16.mxu0 0
  %163 = vmatpush1.bf16.msra.mxu0 0
  %164 = vmatprep.subr.bf16.mxu0 0
  %165 = vmatpush1.bf16.msra.mxu0 0
  %166 = vmatprep.subr.bf16.mxu0 0
  %167 = vmatpush1.bf16.msra.mxu0 0
  %168 = vmatprep.subr.bf16.mxu0 0
  %169 = vmatpush1.bf16.msra.mxu0 0
  %170 = vmatprep.subr.bf16.mxu0 0
  %171 = vmatpush1.bf16.msra.mxu0 0
  %172 = vmatprep.subr.bf16.mxu0 0
  %173 = vmatpush1.bf16.msra.mxu0 0
  %174 = vmatprep.subr.bf16.mxu0 0
  %175 = vmatpush1.bf16.msra.mxu0 0
  %176 = vmatprep.subr.bf16.mxu0 0
  %177 = vmatpush1.bf16.msra.mxu0 0
  %178 = vmatprep.subr.bf16.mxu0 0
  %179 = vmatpush1.bf16.msra.mxu0 0
  %180 = vmatprep.subr.bf16.mxu0 0
  %181 = vmatpush1.bf16.msra.mxu0 0
  %182 = vmatprep.subr.bf16.mxu0 0
  %183 = vmatpush1.bf16.msra.mxu0 0
  %184 = vmatprep.subr.bf16.mxu0 0
  %185 = vmatpush1.bf16.msra.mxu0 0
  %186 = vmatprep.subr.bf16.mxu0 0
  %187 = vmatpush1.bf16.msra.mxu0 0
  %188 = vmatprep.subr.bf16.mxu0 0
  %189 = vmatpush1.bf16.msra.mxu0 0
  %190 = vmatprep.subr.bf16.mxu0 0
  %191 = vmatpush1.bf16.msra.mxu0 0
  %192 = vmatprep.mubr.bf16.mxu0 0
  %193 = vmatmul.mubr.bf16.gmra.mrb[0].mxu0 %v149
  %v194 = vpop.f32.mrb[0].mxu0
  %v195 = vadd.f32 %v50, %v194
  %v196 = vpop.f32.mrb[0].mxu0
  %v197 = vadd.f32 %v54, %v196
  %v198 = vpop.f32.mrb[0].mxu0
  %v199 = vadd.f32 %v50, %v198
  %v200 = vpop.f32.mrb[0].mxu0
  %v201 = vadd.f32 %v54, %v200
  %202 = vmatprep.mubr.bf16.mxu0 0
  %203 = vmatmul.mubr.bf16.gmra.mrb[0].mxu0 %v152
  %v204 = vpop.f32.mrb[0].mxu0
  %v205 = vadd.f32 %v50, %v204
  %v206 = vpop.f32.mrb[0].mxu0
  %v207 = vadd.f32 %v54, %v206
  %v208 = vpop.f32.mrb[0].mxu0
  %v209 = vadd.f32 %v50, %v208
  %v210 = vpop.f32.mrb[0].mxu0
  %v211 = vadd.f32 %v54, %v210
  %212 = vmatprep.mubr.bf16.mxu0 0
  %213 = vmatmul.mubr.bf16.gmra.mrb[0].mxu0 %v155
  %v214 = vpop.f32.mrb[0].mxu0
  %v215 = vadd.f32 %v50, %v214
  %v216 = vpop.f32.mrb[0].mxu0
  %v217 = vadd.f32 %v54, %v216
  %v218 = vpop.f32.mrb[0].mxu0
  %v219 = vadd.f32 %v50, %v218
  %v220 = vpop.f32.mrb[0].mxu0
  %v221 = vadd.f32 %v54, %v220
  %222 = vmatprep.mubr.bf16.mxu0 0
  %223 = vmatmul.mubr.bf16.gmra.mrb[0].mxu0 %v158
  %v224 = vpop.f32.mrb[0].mxu0
  %v225 = vadd.f32 %v50, %v224
  %v226 = vpop.f32.mrb[0].mxu0
  %v227 = vadd.f32 %v54, %v226
  %v228 = vpop.f32.mrb[0].mxu0
  %v229 = vadd.f32 %v50, %v228
  %v230 = vpop.f32.mrb[0].mxu0
  %v231 = vadd.f32 %v54, %v230
  %232 = vdwg.mxu0
  %233 = vmatprep.subr.bf16.mxu0 %v134
  %234 = vmatpush1.bf16.msra.mxu0 %v133
  %235 = vmatprep.subr.bf16.mxu0 0
  %236 = vmatpush1.bf16.msra.mxu0 0
  %237 = vmatprep.subr.bf16.mxu0 0
  %238 = vmatpush1.bf16.msra.mxu0 0
  %239 = vmatprep.subr.bf16.mxu0 0
  %240 = vmatpush1.bf16.msra.mxu0 0
  %241 = vmatprep.subr.bf16.mxu0 0
  %242 = vmatpush1.bf16.msra.mxu0 0
  %243 = vmatprep.subr.bf16.mxu0 0
  %244 = vmatpush1.bf16.msra.mxu0 0
  %245 = vmatprep.subr.bf16.mxu0 0
  %246 = vmatpush1.bf16.msra.mxu0 0
  %247 = vmatprep.subr.bf16.mxu0 0
  %248 = vmatpush1.bf16.msra.mxu0 0
  %249 = vmatprep.subr.bf16.mxu0 0
  %250 = vmatpush1.bf16.msra.mxu0 0
  %251 = vmatprep.subr.bf16.mxu0 0
  %252 = vmatpush1.bf16.msra.mxu0 0
  %253 = vmatprep.subr.bf16.mxu0 0
  %254 = vmatpush1.bf16.msra.mxu0 0
  %255 = vmatprep.subr.bf16.mxu0 0
  %256 = vmatpush1.bf16.msra.mxu0 0
  %257 = vmatprep.subr.bf16.mxu0 0
  %258 = vmatpush1.bf16.msra.mxu0 0
  %259 = vmatprep.subr.bf16.mxu0 0
  %260 = vmatpush1.bf16.msra.mxu0 0
  %261 = vmatprep.subr.bf16.mxu0 0
  %262 = vmatpush1.bf16.msra.mxu0 0
  %263 = vmatprep.subr.bf16.mxu0 0
  %264 = vmatpush1.bf16.msra.mxu0 0
  %265 = vmatprep.mubr.bf16.mxu0 0
  %266 = vmatmul.mubr.bf16.gmra.mrb[0].mxu0 %v149
  %v267 = vpop.f32.mrb[0].mxu0
  %v268 = vadd.f32 %v58, %v267
  %v269 = vpop.f32.mrb[0].mxu0
  %v270 = vadd.f32 %v62, %v269
  %v271 = vpop.f32.mrb[0].mxu0
  %v272 = vadd.f32 %v58, %v271
  %v273 = vpop.f32.mrb[0].mxu0
  %v274 = vadd.f32 %v62, %v273
  %275 = vmatprep.mubr.bf16.mxu0 0
  %276 = vmatmul.mubr.bf16.gmra.mrb[0].mxu0 %v152
  %v277 = vpop.f32.mrb[0].mxu0
  %v278 = vadd.f32 %v58, %v277
  %v279 = vpop.f32.mrb[0].mxu0
  %v280 = vadd.f32 %v62, %v279
  %v281 = vpop.f32.mrb[0].mxu0
  %v282 = vadd.f32 %v58, %v281
  %v283 = vpop.f32.mrb[0].mxu0
  %v284 = vadd.f32 %v62, %v283
  %285 = vmatprep.mubr.bf16.mxu0 0
  %286 = vmatmul.mubr.bf16.gmra.mrb[0].mxu0 %v155
  %v287 = vpop.f32.mrb[0].mxu0
  %v288 = vadd.f32 %v58, %v287
  %v289 = vpop.f32.mrb[0].mxu0
  %v290 = vadd.f32 %v62, %v289
  %v291 = vpop.f32.mrb[0].mxu0
  %v292 = vadd.f32 %v58, %v291
  %v293 = vpop.f32.mrb[0].mxu0
  %v294 = vadd.f32 %v62, %v293
  %295 = vmatprep.mubr.bf16.mxu0 0
  %296 = vmatmul.mubr.bf16.gmra.mrb[0].mxu0 %v158
  %v297 = vpop.f32.mrb[0].mxu0
  %v298 = vadd.f32 %v58, %v297
  %v299 = vpop.f32.mrb[0].mxu0
  %v300 = vadd.f32 %v62, %v299
  %v301 = vpop.f32.mrb[0].mxu0
  %v302 = vadd.f32 %v58, %v301
  %v303 = vpop.f32.mrb[0].mxu0
  %v304 = vadd.f32 %v62, %v303
  %305 = vdwg.mxu0
  %306 = vmatprep.subr.bf16.mxu0 %v136
  %307 = vmatpush1.bf16.msra.mxu0 %v135
  %308 = vmatprep.subr.bf16.mxu0 0
  %309 = vmatpush1.bf16.msra.mxu0 0
  %310 = vmatprep.subr.bf16.mxu0 0
  %311 = vmatpush1.bf16.msra.mxu0 0
  %312 = vmatprep.subr.bf16.mxu0 0
  %313 = vmatpush1.bf16.msra.mxu0 0
  %314 = vmatprep.subr.bf16.mxu0 0
  %315 = vmatpush1.bf16.msra.mxu0 0
  %316 = vmatprep.subr.bf16.mxu0 0
  %317 = vmatpush1.bf16.msra.mxu0 0
  %318 = vmatprep.subr.bf16.mxu0 0
  %319 = vmatpush1.bf16.msra.mxu0 0
  %320 = vmatprep.subr.bf16.mxu0 0
  %321 = vmatpush1.bf16.msra.mxu0 0
  %322 = vmatprep.subr.bf16.mxu0 0
  %323 = vmatpush1.bf16.msra.mxu0 0
  %324 = vmatprep.subr.bf16.mxu0 0
  %325 = vmatpush1.bf16.msra.mxu0 0
  %326 = vmatprep.subr.bf16.mxu0 0
  %327 = vmatpush1.bf16.msra.mxu0 0
  %328 = vmatprep.subr.bf16.mxu0 0
  %329 = vmatpush1.bf16.msra.mxu0 0
  %330 = vmatprep.subr.bf16.mxu0 0
  %331 = vmatpush1.bf16.msra.mxu0 0
  %332 = vmatprep.subr.bf16.mxu0 0
  %333 = vmatpush1.bf16.msra.mxu0 0
  %334 = vmatprep.subr.bf16.mxu0 0
  %335 = vmatpush1.bf16.msra.mxu0 0
  %336 = vmatprep.subr.bf16.mxu0 0
  %337 = vmatpush1.bf16.msra.mxu0 0
  %338 = vmatprep.mubr.bf16.mxu0 0
  %339 = vmatmul.mubr.bf16.gmra.mrb[0].mxu0 %v149
  %v340 = vpop.f32.mrb[0].mxu0
  %v341 = vadd.f32 %v66, %v340
  %v342 = vpop.f32.mrb[0].mxu0
  %v343 = vadd.f32 %v70, %v342
  %v344 = vpop.f32.mrb[0].mxu0
  %v345 = vadd.f32 %v66, %v344
  %v346 = vpop.f32.mrb[0].mxu0
  %v347 = vadd.f32 %v70, %v346
  %348 = vmatprep.mubr.bf16.mxu0 0
  %349 = vmatmul.mubr.bf16.gmra.mrb[0].mxu0 %v152
  %v350 = vpop.f32.mrb[0].mxu0
  %v351 = vadd.f32 %v66, %v350
  %v352 = vpop.f32.mrb[0].mxu0
  %v353 = vadd.f32 %v70, %v352
  %v354 = vpop.f32.mrb[0].mxu0
  %v355 = vadd.f32 %v66, %v354
  %v356 = vpop.f32.mrb[0].mxu0
  %v357 = vadd.f32 %v70, %v356
  %358 = vmatprep.mubr.bf16.mxu0 0
  %359 = vmatmul.mubr.bf16.gmra.mrb[0].mxu0 %v155
  %v360 = vpop.f32.mrb[0].mxu0
  %v361 = vadd.f32 %v66, %v360
  %v362 = vpop.f32.mrb[0].mxu0
  %v363 = vadd.f32 %v70, %v362
  %v364 = vpop.f32.mrb[0].mxu0
  %v365 = vadd.f32 %v66, %v364
  %v366 = vpop.f32.mrb[0].mxu0
  %v367 = vadd.f32 %v70, %v366
  %368 = vmatprep.mubr.bf16.mxu0 0
  %369 = vmatmul.mubr.bf16.gmra.mrb[0].mxu0 %v158
  %v370 = vpop.f32.mrb[0].mxu0
  %v371 = vadd.f32 %v66, %v370
  %v372 = vpop.f32.mrb[0].mxu0
  %v373 = vadd.f32 %v70, %v372
  %v374 = vpop.f32.mrb[0].mxu0
  %v375 = vadd.f32 %v66, %v374
  %v376 = vpop.f32.mrb[0].mxu0
  %v377 = vadd.f32 %v70, %v376
  %378 = vdwg.mxu0
  %379 = vmatprep.subr.bf16.mxu0 %v138
  %380 = vmatpush1.bf16.msra.mxu0 %v137
  %381 = vmatprep.subr.bf16.mxu0 0
  %382 = vmatpush1.bf16.msra.mxu0 0
  %383 = vmatprep.subr.bf16.mxu0 0
  %384 = vmatpush1.bf16.msra.mxu0 0
  %385 = vmatprep.subr.bf16.mxu0 0
  %386 = vmatpush1.bf16.msra.mxu0 0
  %387 = vmatprep.subr.bf16.mxu0 0
  %388 = vmatpush1.bf16.msra.mxu0 0
  %389 = vmatprep.subr.bf16.mxu0 0
  %390 = vmatpush1.bf16.msra.mxu0 0
  %391 = vmatprep.subr.bf16.mxu0 0
  %392 = vmatpush1.bf16.msra.mxu0 0
  %393 = vmatprep.subr.bf16.mxu0 0
  %394 = vmatpush1.bf16.msra.mxu0 0
  %395 = vmatprep.subr.bf16.mxu0 0
  %396 = vmatpush1.bf16.msra.mxu0 0
  %397 = vmatprep.subr.bf16.mxu0 0
  %398 = vmatpush1.bf16.msra.mxu0 0
  %399 = vmatprep.subr.bf16.mxu0 0
  %400 = vmatpush1.bf16.msra.mxu0 0
  %401 = vmatprep.subr.bf16.mxu0 0
  %402 = vmatpush1.bf16.msra.mxu0 0
  %403 = vmatprep.subr.bf16.mxu0 0
  %404 = vmatpush1.bf16.msra.mxu0 0
  %405 = vmatprep.subr.bf16.mxu0 0
  %406 = vmatpush1.bf16.msra.mxu0 0
  %407 = vmatprep.subr.bf16.mxu0 0
  %408 = vmatpush1.bf16.msra.mxu0 0
  %409 = vmatprep.subr.bf16.mxu0 0
  %410 = vmatpush1.bf16.msra.mxu0 0
  %411 = vmatprep.mubr.bf16.mxu0 0
  %412 = vmatmul.mubr.bf16.gmra.mrb[0].mxu0 %v149
  %v413 = vpop.f32.mrb[0].mxu0
  %v414 = vadd.f32 %v74, %v413
  %v415 = vpop.f32.mrb[0].mxu0
  %v416 = vadd.f32 %v78, %v415
  %v417 = vpop.f32.mrb[0].mxu0
  %v418 = vadd.f32 %v74, %v417
  %v419 = vpop.f32.mrb[0].mxu0
  %v420 = vadd.f32 %v78, %v419
  %421 = vmatprep.mubr.bf16.mxu0 0
  %422 = vmatmul.mubr.bf16.gmra.mrb[0].mxu0 %v152
  %v423 = vpop.f32.mrb[0].mxu0
  %v424 = vadd.f32 %v74, %v423
  %v425 = vpop.f32.mrb[0].mxu0
  %v426 = vadd.f32 %v78, %v425
  %v427 = vpop.f32.mrb[0].mxu0
  %v428 = vadd.f32 %v74, %v427
  %v429 = vpop.f32.mrb[0].mxu0
  %v430 = vadd.f32 %v78, %v429
  %431 = vmatprep.mubr.bf16.mxu0 0
  %432 = vmatmul.mubr.bf16.gmra.mrb[0].mxu0 %v155
  %v433 = vpop.f32.mrb[0].mxu0
  %v434 = vadd.f32 %v74, %v433
  %v435 = vpop.f32.mrb[0].mxu0
  %v436 = vadd.f32 %v78, %v435
  %v437 = vpop.f32.mrb[0].mxu0
  %v438 = vadd.f32 %v74, %v437
  %v439 = vpop.f32.mrb[0].mxu0
  %v440 = vadd.f32 %v78, %v439
  %441 = vmatprep.mubr.bf16.mxu0 0
  %442 = vmatmul.mubr.bf16.gmra.mrb[0].mxu0 %v158
  %v443 = vpop.f32.mrb[0].mxu0
  %v444 = vadd.f32 %v74, %v443
  %v445 = vpop.f32.mrb[0].mxu0
  %v446 = vadd.f32 %v78, %v445
  %v447 = vpop.f32.mrb[0].mxu0
  %v448 = vadd.f32 %v74, %v447
  %v449 = vpop.f32.mrb[0].mxu0
  %v450 = vadd.f32 %v78, %v449
  %451 = vdwg.mxu0
  %452 = vst [vmem:[#allocation2] sm:$0xff] %v195
  %453 = vst [vmem:[#allocation2 + $0x8] sm:$0xff] %v197
  %454 = vst [vmem:[#allocation2 + $0x10] sm:$0xff] %v268
  %455 = vst [vmem:[#allocation2 + $0x18] sm:$0xff] %v270
  %456 = vst [vmem:[#allocation2 + $0x20] sm:$0xff] %v341
  %457 = vst [vmem:[#allocation2 + $0x28] sm:$0xff] %v343
  %458 = vst [vmem:[#allocation2 + $0x30] sm:$0xff] %v414
  %459 = vst [vmem:[#allocation2 + $0x38] sm:$0xff] %v416
  %460 = vst [vmem:[#allocation2 + $0x40] sm:$0xff] %v199
  %461 = vst [vmem:[#allocation2 + $0x48] sm:$0xff] %v201
  %462 = vst [vmem:[#allocation2 + $0x50] sm:$0xff] %v272
  %463 = vst [vmem:[#allocation2 + $0x58] sm:$0xff] %v274
  %464 = vst [vmem:[#allocation2 + $0x60] sm:$0xff] %v345
  %465 = vst [vmem:[#allocation2 + $0x68] sm:$0xff] %v347
  %466 = vst [vmem:[#allocation2 + $0x70] sm:$0xff] %v418
  %467 = vst [vmem:[#allocation2 + $0x78] sm:$0xff] %v420
  %468 = vst [vmem:[#allocation2 + $0x80] sm:$0xff] %v205
  %469 = vst [vmem:[#allocation2 + $0x88] sm:$0xff] %v207
  %470 = vst [vmem:[#allocation2 + $0x90] sm:$0xff] %v278
  %471 = vst [vmem:[#allocation2 + $0x98] sm:$0xff] %v280
  %472 = vst [vmem:[#allocation2 + $0xa0] sm:$0xff] %v351
  %473 = vst [vmem:[#allocation2 + $0xa8] sm:$0xff] %v353
  %474 = vst [vmem:[#allocation2 + $0xb0] sm:$0xff] %v424
  %475 = vst [vmem:[#allocation2 + $0xb8] sm:$0xff] %v426
  %476 = vst [vmem:[#allocation2 + $0xc0] sm:$0xff] %v209
  %477 = vst [vmem:[#allocation2 + $0xc8] sm:$0xff] %v211
  %478 = vst [vmem:[#allocation2 + $0xd0] sm:$0xff] %v282
  %479 = vst [vmem:[#allocation2 + $0xd8] sm:$0xff] %v284
  %480 = vst [vmem:[#allocation2 + $0xe0] sm:$0xff] %v355
  %481 = vst [vmem:[#allocation2 + $0xe8] sm:$0xff] %v357
  %482 = vst [vmem:[#allocation2 + $0xf0] sm:$0xff] %v428
  %483 = vst [vmem:[#allocation2 + $0xf8] sm:$0xff] %v430
  %484 = vst [vmem:[#allocation2 + $0x100] sm:$0xff] %v215
  %485 = vst [vmem:[#allocation2 + $0x108] sm:$0xff] %v217
  %486 = vst [vmem:[#allocation2 + $0x110] sm:$0xff] %v288
  %487 = vst [vmem:[#allocation2 + $0x118] sm:$0xff] %v290
  %488 = vst [vmem:[#allocation2 + $0x120] sm:$0xff] %v361
  %489 = vst [vmem:[#allocation2 + $0x128] sm:$0xff] %v363
  %490 = vst [vmem:[#allocation2 + $0x130] sm:$0xff] %v434
  %491 = vst [vmem:[#allocation2 + $0x138] sm:$0xff] %v436
  %492 = vst [vmem:[#allocation2 + $0x140] sm:$0xff] %v219
  %493 = vst [vmem:[#allocation2 + $0x148] sm:$0xff] %v221
  %494 = vst [vmem:[#allocation2 + $0x150] sm:$0xff] %v292
  %495 = vst [vmem:[#allocation2 + $0x158] sm:$0xff] %v294
  %496 = vst [vmem:[#allocation2 + $0x160] sm:$0xff] %v365
  %497 = vst [vmem:[#allocation2 + $0x168] sm:$0xff] %v367
  %498 = vst [vmem:[#allocation2 + $0x170] sm:$0xff] %v438
  %499 = vst [vmem:[#allocation2 + $0x178] sm:$0xff] %v440
  %500 = vst [vmem:[#allocation2 + $0x180] sm:$0xff] %v225
  %501 = vst [vmem:[#allocation2 + $0x188] sm:$0xff] %v227
  %502 = vst [vmem:[#allocation2 + $0x190] sm:$0xff] %v298
  %503 = vst [vmem:[#allocation2 + $0x198] sm:$0xff] %v300
  %504 = vst [vmem:[#allocation2 + $0x1a0] sm:$0xff] %v371
  %505 = vst [vmem:[#allocation2 + $0x1a8] sm:$0xff] %v373
  %506 = vst [vmem:[#allocation2 + $0x1b0] sm:$0xff] %v444
  %507 = vst [vmem:[#allocation2 + $0x1b8] sm:$0xff] %v446
  %508 = vst [vmem:[#allocation2 + $0x1c0] sm:$0xff] %v229
  %509 = vst [vmem:[#allocation2 + $0x1c8] sm:$0xff] %v231
  %510 = vst [vmem:[#allocation2 + $0x1d0] sm:$0xff] %v302
  %511 = vst [vmem:[#allocation2 + $0x1d8] sm:$0xff] %v304
  %512 = vst [vmem:[#allocation2 + $0x1e0] sm:$0xff] %v375
  %513 = vst [vmem:[#allocation2 + $0x1e8] sm:$0xff] %v377
  %514 = vst [vmem:[#allocation2 + $0x1f0] sm:$0xff] %v448
  %515 = vst [vmem:[#allocation2 + $0x1f8] sm:$0xff] %v450
  %v516 = vld [vmem:[%s5] sm:$0xff]
  %v517 = vld [vmem:[%s5 + $0x8] sm:$0xff]
  %v518 = vld [vmem:[%s6] sm:$0xff]
  %v519 = vld [vmem:[%s6 + $0x8] sm:$0xff]
  %s520 = smul.u32 0, 8
  %s521 = smul.addr %s520, 8
  %s522 = scalar_lea.vmem [#allocation2], %s521
  %v523 = vld [vmem:[%s522] sm:$0xff]
  %v524 = vld [vmem:[%s522 + $0x8] sm:$0xff]
  %v525 = vld [vmem:[%s522 + $0x10] sm:$0xff]
  %v526 = vld [vmem:[%s522 + $0x18] sm:$0xff]
  %v527 = vld [vmem:[%s522 + $0x20] sm:$0xff]
  %v528 = vld [vmem:[%s522 + $0x28] sm:$0xff]
  %v529 = vld [vmem:[%s522 + $0x30] sm:$0xff]
  %v530 = vld [vmem:[%s522 + $0x38] sm:$0xff]
  %v531 = vpack.c.bf16 %v516, %v516
  %v532 = vpack.c.bf16 %v517, %v517
  %v533 = vld [vmem:[%s2] sm:$0xff]
  %v534 = vld [vmem:[%s2 + $0x8] sm:$0xff]
  %v535 = vld [vmem:[%s2 + $0x10] sm:$0xff]
  %v536 = vld [vmem:[%s2 + $0x18] sm:$0xff]
  %v537 = vld [vmem:[%s2 + $0x20] sm:$0xff]
  %v538 = vld [vmem:[%s2 + $0x28] sm:$0xff]
  %v539 = vld [vmem:[%s2 + $0x30] sm:$0xff]
  %v540 = vld [vmem:[%s2 + $0x38] sm:$0xff]
  %v541 = vld [vmem:[%s2 + $0x40] sm:$0xff]
  %v542 = vld [vmem:[%s2 + $0x48] sm:$0xff]
  %v543 = vld [vmem:[%s2 + $0x50] sm:$0xff]
  %v544 = vld [vmem:[%s2 + $0x58] sm:$0xff]
  %v545 = vld [vmem:[%s2 + $0x60] sm:$0xff]
  %v546 = vld [vmem:[%s2 + $0x68] sm:$0xff]
  %v547 = vld [vmem:[%s2 + $0x70] sm:$0xff]
  %v548 = vld [vmem:[%s2 + $0x78] sm:$0xff]
  %v549 = vld [vmem:[%s2 + $0x80] sm:$0xff]
  %v550 = vld [vmem:[%s2 + $0x88] sm:$0xff]
  %v551 = vld [vmem:[%s2 + $0x90] sm:$0xff]
  %v552 = vld [vmem:[%s2 + $0x98] sm:$0xff]
  %v553 = vld [vmem:[%s2 + $0xa0] sm:$0xff]
  %v554 = vld [vmem:[%s2 + $0xa8] sm:$0xff]
  %v555 = vld [vmem:[%s2 + $0xb0] sm:$0xff]
  %v556 = vld [vmem:[%s2 + $0xb8] sm:$0xff]
  %v557 = vld [vmem:[%s2 + $0xc0] sm:$0xff]
  %v558 = vld [vmem:[%s2 + $0xc8] sm:$0xff]
  %v559 = vld [vmem:[%s2 + $0xd0] sm:$0xff]
  %v560 = vld [vmem:[%s2 + $0xd8] sm:$0xff]
  %v561 = vld [vmem:[%s2 + $0xe0] sm:$0xff]
  %v562 = vld [vmem:[%s2 + $0xe8] sm:$0xff]
  %v563 = vld [vmem:[%s2 + $0xf0] sm:$0xff]
  %v564 = vld [vmem:[%s2 + $0xf8] sm:$0xff]
  %v565 = vld [vmem:[%s2 + $0x100] sm:$0xff]
  %v566 = vld [vmem:[%s2 + $0x108] sm:$0xff]
  %v567 = vld [vmem:[%s2 + $0x110] sm:$0xff]
  %v568 = vld [vmem:[%s2 + $0x118] sm:$0xff]
  %v569 = vld [vmem:[%s2 + $0x120] sm:$0xff]
  %v570 = vld [vmem:[%s2 + $0x128] sm:$0xff]
  %v571 = vld [vmem:[%s2 + $0x130] sm:$0xff]
  %v572 = vld [vmem:[%s2 + $0x138] sm:$0xff]
  %v573 = vld [vmem:[%s2 + $0x140] sm:$0xff]
  %v574 = vld [vmem:[%s2 + $0x148] sm:$0xff]
  %v575 = vld [vmem:[%s2 + $0x150] sm:$0xff]
  %v576 = vld [vmem:[%s2 + $0x158] sm:$0xff]
  %v577 = vld [vmem:[%s2 + $0x160] sm:$0xff]
  %v578 = vld [vmem:[%s2 + $0x168] sm:$0xff]
  %v579 = vld [vmem:[%s2 + $0x170] sm:$0xff]
  %v580 = vld [vmem:[%s2 + $0x178] sm:$0xff]
  %v581 = vld [vmem:[%s2 + $0x180] sm:$0xff]
  %v582 = vld [vmem:[%s2 + $0x188] sm:$0xff]
  %v583 = vld [vmem:[%s2 + $0x190] sm:$0xff]
  %v584 = vld [vmem:[%s2 + $0x198] sm:$0xff]
  %v585 = vld [vmem:[%s2 + $0x1a0] sm:$0xff]
  %v586 = vld [vmem:[%s2 + $0x1a8] sm:$0xff]
  %v587 = vld [vmem:[%s2 + $0x1b0] sm:$0xff]
  %v588 = vld [vmem:[%s2 + $0x1b8] sm:$0xff]
  %v589 = vld [vmem:[%s2 + $0x1c0] sm:$0xff]
  %v590 = vld [vmem:[%s2 + $0x1c8] sm:$0xff]
  %v591 = vld [vmem:[%s2 + $0x1d0] sm:$0xff]
  %v592 = vld [vmem:[%s2 + $0x1d8] sm:$0xff]
  %v593 = vld [vmem:[%s2 + $0x1e0] sm:$0xff]
  %v594 = vld [vmem:[%s2 + $0x1e8] sm:$0xff]
  %v595 = vld [vmem:[%s2 + $0x1f0] sm:$0xff]
  %v596 = vld [vmem:[%s2 + $0x1f8] sm:$0xff]
  %v597 = vld [vmem:[%s2 + $0x200] sm:$0xff]
  %v598 = vld [vmem:[%s2 + $0x208] sm:$0xff]
  %v599 = vld [vmem:[%s2 + $0x210] sm:$0xff]
  %v600 = vld [vmem:[%s2 + $0x218] sm:$0xff]
  %v601 = vld [vmem:[%s2 + $0x220] sm:$0xff]
  %v602 = vld [vmem:[%s2 + $0x228] sm:$0xff]
  %v603 = vld [vmem:[%s2 + $0x230] sm:$0xff]
  %v604 = vld [vmem:[%s2 + $0x238] sm:$0xff]
  %v605 = vld [vmem:[%s2 + $0x240] sm:$0xff]
  %v606 = vld [vmem:[%s2 + $0x248] sm:$0xff]
  %v607 = vld [vmem:[%s2 + $0x250] sm:$0xff]
  %v608 = vld [vmem:[%s2 + $0x258] sm:$0xff]
  %v609 = vld [vmem:[%s2 + $0x260] sm:$0xff]
  %v610 = vld [vmem:[%s2 + $0x268] sm:$0xff]
  %v611 = vld [vmem:[%s2 + $0x270] sm:$0xff]
  %v612 = vld [vmem:[%s2 + $0x278] sm:$0xff]
  %v613 = vld [vmem:[%s2 + $0x280] sm:$0xff]
  %v614 = vld [vmem:[%s2 + $0x288] sm:$0xff]
  %v615 = vld [vmem:[%s2 + $0x290] sm:$0xff]
  %v616 = vld [vmem:[%s2 + $0x298] sm:$0xff]
  %v617 = vld [vmem:[%s2 + $0x2a0] sm:$0xff]
  %v618 = vld [vmem:[%s2 + $0x2a8] sm:$0xff]
  %v619 = vld [vmem:[%s2 + $0x2b0] sm:$0xff]
  %v620 = vld [vmem:[%s2 + $0x2b8] sm:$0xff]
  %v621 = vld [vmem:[%s2 + $0x2c0] sm:$0xff]
  %v622 = vld [vmem:[%s2 + $0x2c8] sm:$0xff]
  %v623 = vld [vmem:[%s2 + $0x2d0] sm:$0xff]
  %v624 = vld [vmem:[%s2 + $0x2d8] sm:$0xff]
  %v625 = vld [vmem:[%s2 + $0x2e0] sm:$0xff]
  %v626 = vld [vmem:[%s2 + $0x2e8] sm:$0xff]
  %v627 = vld [vmem:[%s2 + $0x2f0] sm:$0xff]
  %v628 = vld [vmem:[%s2 + $0x2f8] sm:$0xff]
  %v629 = vld [vmem:[%s2 + $0x300] sm:$0xff]
  %v630 = vld [vmem:[%s2 + $0x308] sm:$0xff]
  %v631 = vld [vmem:[%s2 + $0x310] sm:$0xff]
  %v632 = vld [vmem:[%s2 + $0x318] sm:$0xff]
  %v633 = vld [vmem:[%s2 + $0x320] sm:$0xff]
  %v634 = vld [vmem:[%s2 + $0x328] sm:$0xff]
  %v635 = vld [vmem:[%s2 + $0x330] sm:$0xff]
  %v636 = vld [vmem:[%s2 + $0x338] sm:$0xff]
  %v637 = vld [vmem:[%s2 + $0x340] sm:$0xff]
  %v638 = vld [vmem:[%s2 + $0x348] sm:$0xff]
  %v639 = vld [vmem:[%s2 + $0x350] sm:$0xff]
  %v640 = vld [vmem:[%s2 + $0x358] sm:$0xff]
  %v641 = vld [vmem:[%s2 + $0x360] sm:$0xff]
  %v642 = vld [vmem:[%s2 + $0x368] sm:$0xff]
  %v643 = vld [vmem:[%s2 + $0x370] sm:$0xff]
  %v644 = vld [vmem:[%s2 + $0x378] sm:$0xff]
  %v645 = vld [vmem:[%s2 + $0x380] sm:$0xff]
  %v646 = vld [vmem:[%s2 + $0x388] sm:$0xff]
  %v647 = vld [vmem:[%s2 + $0x390] sm:$0xff]
  %v648 = vld [vmem:[%s2 + $0x398] sm:$0xff]
  %v649 = vld [vmem:[%s2 + $0x3a0] sm:$0xff]
  %v650 = vld [vmem:[%s2 + $0x3a8] sm:$0xff]
  %v651 = vld [vmem:[%s2 + $0x3b0] sm:$0xff]
  %v652 = vld [vmem:[%s2 + $0x3b8] sm:$0xff]
  %v653 = vld [vmem:[%s2 + $0x3c0] sm:$0xff]
  %v654 = vld [vmem:[%s2 + $0x3c8] sm:$0xff]
  %v655 = vld [vmem:[%s2 + $0x3d0] sm:$0xff]
  %v656 = vld [vmem:[%s2 + $0x3d8] sm:$0xff]
  %v657 = vld [vmem:[%s2 + $0x3e0] sm:$0xff]
  %v658 = vld [vmem:[%s2 + $0x3e8] sm:$0xff]
  %v659 = vld [vmem:[%s2 + $0x3f0] sm:$0xff]
  %v660 = vld [vmem:[%s2 + $0x3f8] sm:$0xff]
  %v789 = vunpack.c.l.b16 %v533
  %v790 = vunpack.c.h.b16 %v533
  %v791 = vunpack.c.l.b16 %v534
  %v792 = vunpack.c.h.b16 %v534
  %v793 = vunpack.c.l.b16 %v535
  %v794 = vunpack.c.h.b16 %v535
  %v795 = vunpack.c.l.b16 %v536
  %v796 = vunpack.c.h.b16 %v536
  %v797 = vunpack.c.l.b16 %v537
  %v798 = vunpack.c.h.b16 %v537
  %v799 = vunpack.c.l.b16 %v538
  %v800 = vunpack.c.h.b16 %v538
  %v801 = vunpack.c.l.b16 %v539
  %v802 = vunpack.c.h.b16 %v539
  %v803 = vunpack.c.l.b16 %v540
  %v804 = vunpack.c.h.b16 %v540
  %v805 = vunpack.c.l.b16 %v541
  %v806 = vunpack.c.h.b16 %v541
  %v807 = vunpack.c.l.b16 %v542
  %v808 = vunpack.c.h.b16 %v542
  %v809 = vunpack.c.l.b16 %v543
  %v810 = vunpack.c.h.b16 %v543
  %v811 = vunpack.c.l.b16 %v544
  %v812 = vunpack.c.h.b16 %v544
  %v813 = vunpack.c.l.b16 %v545
  %v814 = vunpack.c.h.b16 %v545
  %v815 = vunpack.c.l.b16 %v546
  %v816 = vunpack.c.h.b16 %v546
  %v817 = vunpack.c.l.b16 %v547
  %v818 = vunpack.c.h.b16 %v547
  %v819 = vunpack.c.l.b16 %v548
  %v820 = vunpack.c.h.b16 %v548
  %v821 = vunpack.c.l.b16 %v549
  %v822 = vunpack.c.h.b16 %v549
  %v823 = vunpack.c.l.b16 %v550
  %v824 = vunpack.c.h.b16 %v550
  %v825 = vunpack.c.l.b16 %v551
  %v826 = vunpack.c.h.b16 %v551
  %v827 = vunpack.c.l.b16 %v552
  %v828 = vunpack.c.h.b16 %v552
  %v829 = vunpack.c.l.b16 %v553
  %v830 = vunpack.c.h.b16 %v553
  %v831 = vunpack.c.l.b16 %v554
  %v832 = vunpack.c.h.b16 %v554
  %v833 = vunpack.c.l.b16 %v555
  %v834 = vunpack.c.h.b16 %v555
  %v835 = vunpack.c.l.b16 %v556
  %v836 = vunpack.c.h.b16 %v556
  %v837 = vunpack.c.l.b16 %v557
  %v838 = vunpack.c.h.b16 %v557
  %v839 = vunpack.c.l.b16 %v558
  %v840 = vunpack.c.h.b16 %v558
  %v841 = vunpack.c.l.b16 %v559
  %v842 = vunpack.c.h.b16 %v559
  %v843 = vunpack.c.l.b16 %v560
  %v844 = vunpack.c.h.b16 %v560
  %v845 = vunpack.c.l.b16 %v561
  %v846 = vunpack.c.h.b16 %v561
  %v847 = vunpack.c.l.b16 %v562
  %v848 = vunpack.c.h.b16 %v562
  %v849 = vunpack.c.l.b16 %v563
  %v850 = vunpack.c.h.b16 %v563
  %v851 = vunpack.c.l.b16 %v564
  %v852 = vunpack.c.h.b16 %v564
  %v853 = vunpack.c.l.b16 %v565
  %v854 = vunpack.c.h.b16 %v565
  %v855 = vunpack.c.l.b16 %v566
  %v856 = vunpack.c.h.b16 %v566
  %v857 = vunpack.c.l.b16 %v567
  %v858 = vunpack.c.h.b16 %v567
  %v859 = vunpack.c.l.b16 %v568
  %v860 = vunpack.c.h.b16 %v568
  %v861 = vunpack.c.l.b16 %v569
  %v862 = vunpack.c.h.b16 %v569
  %v863 = vunpack.c.l.b16 %v570
  %v864 = vunpack.c.h.b16 %v570
  %v865 = vunpack.c.l.b16 %v571
  %v866 = vunpack.c.h.b16 %v571
  %v867 = vunpack.c.l.b16 %v572
  %v868 = vunpack.c.h.b16 %v572
  %v869 = vunpack.c.l.b16 %v573
  %v870 = vunpack.c.h.b16 %v573
  %v871 = vunpack.c.l.b16 %v574
  %v872 = vunpack.c.h.b16 %v574
  %v873 = vunpack.c.l.b16 %v575
  %v874 = vunpack.c.h.b16 %v575
  %v875 = vunpack.c.l.b16 %v576
  %v876 = vunpack.c.h.b16 %v576
  %v877 = vunpack.c.l.b16 %v577
  %v878 = vunpack.c.h.b16 %v577
  %v879 = vunpack.c.l.b16 %v578
  %v880 = vunpack.c.h.b16 %v578
  %v881 = vunpack.c.l.b16 %v579
  %v882 = vunpack.c.h.b16 %v579
  %v883 = vunpack.c.l.b16 %v580
  %v884 = vunpack.c.h.b16 %v580
  %v885 = vunpack.c.l.b16 %v581
  %v886 = vunpack.c.h.b16 %v581
  %v887 = vunpack.c.l.b16 %v582
  %v888 = vunpack.c.h.b16 %v582
  %v889 = vunpack.c.l.b16 %v583
  %v890 = vunpack.c.h.b16 %v583
  %v891 = vunpack.c.l.b16 %v584
  %v892 = vunpack.c.h.b16 %v584
  %v893 = vunpack.c.l.b16 %v585
  %v894 = vunpack.c.h.b16 %v585
  %v895 = vunpack.c.l.b16 %v586
  %v896 = vunpack.c.h.b16 %v586
  %v897 = vunpack.c.l.b16 %v587
  %v898 = vunpack.c.h.b16 %v587
  %v899 = vunpack.c.l.b16 %v588
  %v900 = vunpack.c.h.b16 %v588
  %v901 = vunpack.c.l.b16 %v589
  %v902 = vunpack.c.h.b16 %v589
  %v903 = vunpack.c.l.b16 %v590
  %v904 = vunpack.c.h.b16 %v590
  %v905 = vunpack.c.l.b16 %v591
  %v906 = vunpack.c.h.b16 %v591
  %v907 = vunpack.c.l.b16 %v592
  %v908 = vunpack.c.h.b16 %v592
  %v909 = vunpack.c.l.b16 %v593
  %v910 = vunpack.c.h.b16 %v593
  %v911 = vunpack.c.l.b16 %v594
  %v912 = vunpack.c.h.b16 %v594
  %v913 = vunpack.c.l.b16 %v595
  %v914 = vunpack.c.h.b16 %v595
  %v915 = vunpack.c.l.b16 %v596
  %v916 = vunpack.c.h.b16 %v596
  %v917 = vunpack.c.l.b16 %v597
  %v918 = vunpack.c.h.b16 %v597
  %v919 = vunpack.c.l.b16 %v598
  %v920 = vunpack.c.h.b16 %v598
  %v921 = vunpack.c.l.b16 %v599
  %v922 = vunpack.c.h.b16 %v599
  %v923 = vunpack.c.l.b16 %v600
  %v924 = vunpack.c.h.b16 %v600
  %v925 = vunpack.c.l.b16 %v601
  %v926 = vunpack.c.h.b16 %v601
  %v927 = vunpack.c.l.b16 %v602
  %v928 = vunpack.c.h.b16 %v602
  %v929 = vunpack.c.l.b16 %v603
  %v930 = vunpack.c.h.b16 %v603
  %v931 = vunpack.c.l.b16 %v604
  %v932 = vunpack.c.h.b16 %v604
  %v933 = vunpack.c.l.b16 %v605
  %v934 = vunpack.c.h.b16 %v605
  %v935 = vunpack.c.l.b16 %v606
  %v936 = vunpack.c.h.b16 %v606
  %v937 = vunpack.c.l.b16 %v607
  %v938 = vunpack.c.h.b16 %v607
  %v939 = vunpack.c.l.b16 %v608
  %v940 = vunpack.c.h.b16 %v608
  %v941 = vunpack.c.l.b16 %v609
  %v942 = vunpack.c.h.b16 %v609
  %v943 = vunpack.c.l.b16 %v610
  %v944 = vunpack.c.h.b16 %v610
  %v945 = vunpack.c.l.b16 %v611
  %v946 = vunpack.c.h.b16 %v611
  %v947 = vunpack.c.l.b16 %v612
  %v948 = vunpack.c.h.b16 %v612
  %v949 = vunpack.c.l.b16 %v613
  %v950 = vunpack.c.h.b16 %v613
  %v951 = vunpack.c.l.b16 %v614
  %v952 = vunpack.c.h.b16 %v614
  %v953 = vunpack.c.l.b16 %v615
  %v954 = vunpack.c.h.b16 %v615
  %v955 = vunpack.c.l.b16 %v616
  %v956 = vunpack.c.h.b16 %v616
  %v957 = vunpack.c.l.b16 %v617
  %v958 = vunpack.c.h.b16 %v617
  %v959 = vunpack.c.l.b16 %v618
  %v960 = vunpack.c.h.b16 %v618
  %v961 = vunpack.c.l.b16 %v619
  %v962 = vunpack.c.h.b16 %v619
  %v963 = vunpack.c.l.b16 %v620
  %v964 = vunpack.c.h.b16 %v620
  %v965 = vunpack.c.l.b16 %v621
  %v966 = vunpack.c.h.b16 %v621
  %v967 = vunpack.c.l.b16 %v622
  %v968 = vunpack.c.h.b16 %v622
  %v969 = vunpack.c.l.b16 %v623
  %v970 = vunpack.c.h.b16 %v623
  %v971 = vunpack.c.l.b16 %v624
  %v972 = vunpack.c.h.b16 %v624
  %v973 = vunpack.c.l.b16 %v625
  %v974 = vunpack.c.h.b16 %v625
  %v975 = vunpack.c.l.b16 %v626
  %v976 = vunpack.c.h.b16 %v626
  %v977 = vunpack.c.l.b16 %v627
  %v978 = vunpack.c.h.b16 %v627
  %v979 = vunpack.c.l.b16 %v628
  %v980 = vunpack.c.h.b16 %v628
  %v981 = vunpack.c.l.b16 %v629
  %v982 = vunpack.c.h.b16 %v629
  %v983 = vunpack.c.l.b16 %v630
  %v984 = vunpack.c.h.b16 %v630
  %v985 = vunpack.c.l.b16 %v631
  %v986 = vunpack.c.h.b16 %v631
  %v987 = vunpack.c.l.b16 %v632
  %v988 = vunpack.c.h.b16 %v632
  %v989 = vunpack.c.l.b16 %v633
  %v990 = vunpack.c.h.b16 %v633
  %v991 = vunpack.c.l.b16 %v634
  %v992 = vunpack.c.h.b16 %v634
  %v993 = vunpack.c.l.b16 %v635
  %v994 = vunpack.c.h.b16 %v635
  %v995 = vunpack.c.l.b16 %v636
  %v996 = vunpack.c.h.b16 %v636
  %v997 = vunpack.c.l.b16 %v637
  %v998 = vunpack.c.h.b16 %v637
  %v999 = vunpack.c.l.b16 %v638
  %v1000 = vunpack.c.h.b16 %v638
  %v1001 = vunpack.c.l.b16 %v639
  %v1002 = vunpack.c.h.b16 %v639
  %v1003 = vunpack.c.l.b16 %v640
  %v1004 = vunpack.c.h.b16 %v640
  %v1005 = vunpack.c.l.b16 %v641
  %v1006 = vunpack.c.h.b16 %v641
  %v1007 = vunpack.c.l.b16 %v642
  %v1008 = vunpack.c.h.b16 %v642
  %v1009 = vunpack.c.l.b16 %v643
  %v1010 = vunpack.c.h.b16 %v643
  %v1011 = vunpack.c.l.b16 %v644
  %v1012 = vunpack.c.h.b16 %v644
  %v1013 = vunpack.c.l.b16 %v645
  %v1014 = vunpack.c.h.b16 %v645
  %v1015 = vunpack.c.l.b16 %v646
  %v1016 = vunpack.c.h.b16 %v646
  %v1017 = vunpack.c.l.b16 %v647
  %v1018 = vunpack.c.h.b16 %v647
  %v1019 = vunpack.c.l.b16 %v648
  %v1020 = vunpack.c.h.b16 %v648
  %v1021 = vunpack.c.l.b16 %v649
  %v1022 = vunpack.c.h.b16 %v649
  %v1023 = vunpack.c.l.b16 %v650
  %v1024 = vunpack.c.h.b16 %v650
  %v1025 = vunpack.c.l.b16 %v651
  %v1026 = vunpack.c.h.b16 %v651
  %v1027 = vunpack.c.l.b16 %v652
  %v1028 = vunpack.c.h.b16 %v652
  %v1029 = vunpack.c.l.b16 %v653
  %v1030 = vunpack.c.h.b16 %v653
  %v1031 = vunpack.c.l.b16 %v654
  %v1032 = vunpack.c.h.b16 %v654
  %v1033 = vunpack.c.l.b16 %v655
  %v1034 = vunpack.c.h.b16 %v655
  %v1035 = vunpack.c.l.b16 %v656
  %v1036 = vunpack.c.h.b16 %v656
  %v1037 = vunpack.c.l.b16 %v657
  %v1038 = vunpack.c.h.b16 %v657
  %v1039 = vunpack.c.l.b16 %v658
  %v1040 = vunpack.c.h.b16 %v658
  %v1041 = vunpack.c.l.b16 %v659
  %v1042 = vunpack.c.h.b16 %v659
  %v1043 = vunpack.c.l.b16 %v660
  %v1044 = vunpack.c.h.b16 %v660
  %v1045 = vpack.c.b16 %v797, %v789
  %v1046 = vpack.c.b16 %v798, %v790
  %v1047 = vpack.c.b16 %v799, %v791
  %v1048 = vpack.c.b16 %v800, %v792
  %v1049 = vpack.c.b16 %v801, %v793
  %v1050 = vpack.c.b16 %v802, %v794
  %v1051 = vpack.c.b16 %v803, %v795
  %v1052 = vpack.c.b16 %v804, %v796
  %v1053 = vpack.c.b16 %v813, %v805
  %v1054 = vpack.c.b16 %v814, %v806
  %v1055 = vpack.c.b16 %v815, %v807
  %v1056 = vpack.c.b16 %v816, %v808
  %v1057 = vpack.c.b16 %v817, %v809
  %v1058 = vpack.c.b16 %v818, %v810
  %v1059 = vpack.c.b16 %v819, %v811
  %v1060 = vpack.c.b16 %v820, %v812
  %v1061 = vpack.c.b16 %v829, %v821
  %v1062 = vpack.c.b16 %v830, %v822
  %v1063 = vpack.c.b16 %v831, %v823
  %v1064 = vpack.c.b16 %v832, %v824
  %v1065 = vpack.c.b16 %v833, %v825
  %v1066 = vpack.c.b16 %v834, %v826
  %v1067 = vpack.c.b16 %v835, %v827
  %v1068 = vpack.c.b16 %v836, %v828
  %v1069 = vpack.c.b16 %v845, %v837
  %v1070 = vpack.c.b16 %v846, %v838
  %v1071 = vpack.c.b16 %v847, %v839
  %v1072 = vpack.c.b16 %v848, %v840
  %v1073 = vpack.c.b16 %v849, %v841
  %v1074 = vpack.c.b16 %v850, %v842
  %v1075 = vpack.c.b16 %v851, %v843
  %v1076 = vpack.c.b16 %v852, %v844
  %v1077 = vpack.c.b16 %v861, %v853
  %v1078 = vpack.c.b16 %v862, %v854
  %v1079 = vpack.c.b16 %v863, %v855
  %v1080 = vpack.c.b16 %v864, %v856
  %v1081 = vpack.c.b16 %v865, %v857
  %v1082 = vpack.c.b16 %v866, %v858
  %v1083 = vpack.c.b16 %v867, %v859
  %v1084 = vpack.c.b16 %v868, %v860
  %v1085 = vpack.c.b16 %v877, %v869
  %v1086 = vpack.c.b16 %v878, %v870
  %v1087 = vpack.c.b16 %v879, %v871
  %v1088 = vpack.c.b16 %v880, %v872
  %v1089 = vpack.c.b16 %v881, %v873
  %v1090 = vpack.c.b16 %v882, %v874
  %v1091 = vpack.c.b16 %v883, %v875
  %v1092 = vpack.c.b16 %v884, %v876
  %v1093 = vpack.c.b16 %v893, %v885
  %v1094 = vpack.c.b16 %v894, %v886
  %v1095 = vpack.c.b16 %v895, %v887
  %v1096 = vpack.c.b16 %v896, %v888
  %v1097 = vpack.c.b16 %v897, %v889
  %v1098 = vpack.c.b16 %v898, %v890
  %v1099 = vpack.c.b16 %v899, %v891
  %v1100 = vpack.c.b16 %v900, %v892
  %v1101 = vpack.c.b16 %v909, %v901
  %v1102 = vpack.c.b16 %v910, %v902
  %v1103 = vpack.c.b16 %v911, %v903
  %v1104 = vpack.c.b16 %v912, %v904
  %v1105 = vpack.c.b16 %v913, %v905
  %v1106 = vpack.c.b16 %v914, %v906
  %v1107 = vpack.c.b16 %v915, %v907
  %v1108 = vpack.c.b16 %v916, %v908
  %v1109 = vpack.c.b16 %v925, %v917
  %v1110 = vpack.c.b16 %v926, %v918
  %v1111 = vpack.c.b16 %v927, %v919
  %v1112 = vpack.c.b16 %v928, %v920
  %v1113 = vpack.c.b16 %v929, %v921
  %v1114 = vpack.c.b16 %v930, %v922
  %v1115 = vpack.c.b16 %v931, %v923
  %v1116 = vpack.c.b16 %v932, %v924
  %v1117 = vpack.c.b16 %v941, %v933
  %v1118 = vpack.c.b16 %v942, %v934
  %v1119 = vpack.c.b16 %v943, %v935
  %v1120 = vpack.c.b16 %v944, %v936
  %v1121 = vpack.c.b16 %v945, %v937
  %v1122 = vpack.c.b16 %v946, %v938
  %v1123 = vpack.c.b16 %v947, %v939
  %v1124 = vpack.c.b16 %v948, %v940
  %v1125 = vpack.c.b16 %v957, %v949
  %v1126 = vpack.c.b16 %v958, %v950
  %v1127 = vpack.c.b16 %v959, %v951
  %v1128 = vpack.c.b16 %v960, %v952
  %v1129 = vpack.c.b16 %v961, %v953
  %v1130 = vpack.c.b16 %v962, %v954
  %v1131 = vpack.c.b16 %v963, %v955
  %v1132 = vpack.c.b16 %v964, %v956
  %v1133 = vpack.c.b16 %v973, %v965
  %v1134 = vpack.c.b16 %v974, %v966
  %v1135 = vpack.c.b16 %v975, %v967
  %v1136 = vpack.c.b16 %v976, %v968
  %v1137 = vpack.c.b16 %v977, %v969
  %v1138 = vpack.c.b16 %v978, %v970
  %v1139 = vpack.c.b16 %v979, %v971
  %v1140 = vpack.c.b16 %v980, %v972
  %v1141 = vpack.c.b16 %v989, %v981
  %v1142 = vpack.c.b16 %v990, %v982
  %v1143 = vpack.c.b16 %v991, %v983
  %v1144 = vpack.c.b16 %v992, %v984
  %v1145 = vpack.c.b16 %v993, %v985
  %v1146 = vpack.c.b16 %v994, %v986
  %v1147 = vpack.c.b16 %v995, %v987
  %v1148 = vpack.c.b16 %v996, %v988
  %v1149 = vpack.c.b16 %v1005, %v997
  %v1150 = vpack.c.b16 %v1006, %v998
  %v1151 = vpack.c.b16 %v1007, %v999
  %v1152 = vpack.c.b16 %v1008, %v1000
  %v1153 = vpack.c.b16 %v1009, %v1001
  %v1154 = vpack.c.b16 %v1010, %v1002
  %v1155 = vpack.c.b16 %v1011, %v1003
  %v1156 = vpack.c.b16 %v1012, %v1004
  %v1157 = vpack.c.b16 %v1021, %v1013
  %v1158 = vpack.c.b16 %v1022, %v1014
  %v1159 = vpack.c.b16 %v1023, %v1015
  %v1160 = vpack.c.b16 %v1024, %v1016
  %v1161 = vpack.c.b16 %v1025, %v1017
  %v1162 = vpack.c.b16 %v1026, %v1018
  %v1163 = vpack.c.b16 %v1027, %v1019
  %v1164 = vpack.c.b16 %v1028, %v1020
  %v1165 = vpack.c.b16 %v1037, %v1029
  %v1166 = vpack.c.b16 %v1038, %v1030
  %v1167 = vpack.c.b16 %v1039, %v1031
  %v1168 = vpack.c.b16 %v1040, %v1032
  %v1169 = vpack.c.b16 %v1041, %v1033
  %v1170 = vpack.c.b16 %v1042, %v1034
  %v1171 = vpack.c.b16 %v1043, %v1035
  %v1172 = vpack.c.b16 %v1044, %v1036
  %1301 = vmatprep.subr.bf16.mxu0 %v1046
  %1302 = vmatpush1.bf16.msra.mxu0 %v1045
  %1303 = vmatprep.subr.bf16.mxu0 %v1054
  %1304 = vmatpush1.bf16.msra.mxu0 %v1053
  %1305 = vmatprep.subr.bf16.mxu0 %v1062
  %1306 = vmatpush1.bf16.msra.mxu0 %v1061
  %1307 = vmatprep.subr.bf16.mxu0 %v1070
  %1308 = vmatpush1.bf16.msra.mxu0 %v1069
  %1309 = vmatprep.subr.bf16.mxu0 %v1078
  %1310 = vmatpush1.bf16.msra.mxu0 %v1077
  %1311 = vmatprep.subr.bf16.mxu0 %v1086
  %1312 = vmatpush1.bf16.msra.mxu0 %v1085
  %1313 = vmatprep.subr.bf16.mxu0 %v1094
  %1314 = vmatpush1.bf16.msra.mxu0 %v1093
  %1315 = vmatprep.subr.bf16.mxu0 %v1102
  %1316 = vmatpush1.bf16.msra.mxu0 %v1101
  %1317 = vmatprep.subr.bf16.mxu0 %v1110
  %1318 = vmatpush1.bf16.msra.mxu0 %v1109
  %1319 = vmatprep.subr.bf16.mxu0 %v1118
  %1320 = vmatpush1.bf16.msra.mxu0 %v1117
  %1321 = vmatprep.subr.bf16.mxu0 %v1126
  %1322 = vmatpush1.bf16.msra.mxu0 %v1125
  %1323 = vmatprep.subr.bf16.mxu0 %v1134
  %1324 = vmatpush1.bf16.msra.mxu0 %v1133
  %1325 = vmatprep.subr.bf16.mxu0 %v1142
  %1326 = vmatpush1.bf16.msra.mxu0 %v1141
  %1327 = vmatprep.subr.bf16.mxu0 %v1150
  %1328 = vmatpush1.bf16.msra.mxu0 %v1149
  %1329 = vmatprep.subr.bf16.mxu0 %v1158
  %1330 = vmatpush1.bf16.msra.mxu0 %v1157
  %1331 = vmatprep.subr.bf16.mxu0 %v1166
  %1332 = vmatpush1.bf16.msra.mxu0 %v1165
  %1333 = vmatprep.mubr.bf16.mxu0 %v532
  %1334 = vmatmul.mubr.bf16.gmra.mrb[0].mxu0 %v531
  %v1335 = vpop.f32.mrb[0].mxu0
  %v1336 = vadd.f32 %v523, %v1335
  %v1337 = vpop.f32.mrb[0].mxu0
  %v1338 = vadd.f32 %v524, %v1337
  %v1339 = vpop.f32.mrb[0].mxu0
  %v1340 = vpop.f32.mrb[0].mxu0
  %1341 = vdwg.mxu0
  %1342 = vmatprep.subr.bf16.mxu0 %v1048
  %1343 = vmatpush1.bf16.msra.mxu0 %v1047
  %1344 = vmatprep.subr.bf16.mxu0 %v1056
  %1345 = vmatpush1.bf16.msra.mxu0 %v1055
  %1346 = vmatprep.subr.bf16.mxu0 %v1064
  %1347 = vmatpush1.bf16.msra.mxu0 %v1063
  %1348 = vmatprep.subr.bf16.mxu0 %v1072
  %1349 = vmatpush1.bf16.msra.mxu0 %v1071
  %1350 = vmatprep.subr.bf16.mxu0 %v1080
  %1351 = vmatpush1.bf16.msra.mxu0 %v1079
  %1352 = vmatprep.subr.bf16.mxu0 %v1088
  %1353 = vmatpush1.bf16.msra.mxu0 %v1087
  %1354 = vmatprep.subr.bf16.mxu0 %v1096
  %1355 = vmatpush1.bf16.msra.mxu0 %v1095
  %1356 = vmatprep.subr.bf16.mxu0 %v1104
  %1357 = vmatpush1.bf16.msra.mxu0 %v1103
  %1358 = vmatprep.subr.bf16.mxu0 %v1112
  %1359 = vmatpush1.bf16.msra.mxu0 %v1111
  %1360 = vmatprep.subr.bf16.mxu0 %v1120
  %1361 = vmatpush1.bf16.msra.mxu0 %v1119
  %1362 = vmatprep.subr.bf16.mxu0 %v1128
  %1363 = vmatpush1.bf16.msra.mxu0 %v1127
  %1364 = vmatprep.subr.bf16.mxu0 %v1136
  %1365 = vmatpush1.bf16.msra.mxu0 %v1135
  %1366 = vmatprep.subr.bf16.mxu0 %v1144
  %1367 = vmatpush1.bf16.msra.mxu0 %v1143
  %1368 = vmatprep.subr.bf16.mxu0 %v1152
  %1369 = vmatpush1.bf16.msra.mxu0 %v1151
  %1370 = vmatprep.subr.bf16.mxu0 %v1160
  %1371 = vmatpush1.bf16.msra.mxu0 %v1159
  %1372 = vmatprep.subr.bf16.mxu0 %v1168
  %1373 = vmatpush1.bf16.msra.mxu0 %v1167
  %1374 = vmatprep.mubr.bf16.mxu0 %v532
  %1375 = vmatmul.mubr.bf16.gmra.mrb[0].mxu0 %v531
  %v1376 = vpop.f32.mrb[0].mxu0
  %v1377 = vadd.f32 %v525, %v1376
  %v1378 = vpop.f32.mrb[0].mxu0
  %v1379 = vadd.f32 %v526, %v1378
  %v1380 = vpop.f32.mrb[0].mxu0
  %v1381 = vpop.f32.mrb[0].mxu0
  %1382 = vdwg.mxu0
  %1383 = vmatprep.subr.bf16.mxu0 %v1050
  %1384 = vmatpush1.bf16.msra.mxu0 %v1049
  %1385 = vmatprep.subr.bf16.mxu0 %v1058
  %1386 = vmatpush1.bf16.msra.mxu0 %v1057
  %1387 = vmatprep.subr.bf16.mxu0 %v1066
  %1388 = vmatpush1.bf16.msra.mxu0 %v1065
  %1389 = vmatprep.subr.bf16.mxu0 %v1074
  %1390 = vmatpush1.bf16.msra.mxu0 %v1073
  %1391 = vmatprep.subr.bf16.mxu0 %v1082
  %1392 = vmatpush1.bf16.msra.mxu0 %v1081
  %1393 = vmatprep.subr.bf16.mxu0 %v1090
  %1394 = vmatpush1.bf16.msra.mxu0 %v1089
  %1395 = vmatprep.subr.bf16.mxu0 %v1098
  %1396 = vmatpush1.bf16.msra.mxu0 %v1097
  %1397 = vmatprep.subr.bf16.mxu0 %v1106
  %1398 = vmatpush1.bf16.msra.mxu0 %v1105
  %1399 = vmatprep.subr.bf16.mxu0 %v1114
  %1400 = vmatpush1.bf16.msra.mxu0 %v1113
  %1401 = vmatprep.subr.bf16.mxu0 %v1122
  %1402 = vmatpush1.bf16.msra.mxu0 %v1121
  %1403 = vmatprep.subr.bf16.mxu0 %v1130
  %1404 = vmatpush1.bf16.msra.mxu0 %v1129
  %1405 = vmatprep.subr.bf16.mxu0 %v1138
  %1406 = vmatpush1.bf16.msra.mxu0 %v1137
  %1407 = vmatprep.subr.bf16.mxu0 %v1146
  %1408 = vmatpush1.bf16.msra.mxu0 %v1145
  %1409 = vmatprep.subr.bf16.mxu0 %v1154
  %1410 = vmatpush1.bf16.msra.mxu0 %v1153
  %1411 = vmatprep.subr.bf16.mxu0 %v1162
  %1412 = vmatpush1.bf16.msra.mxu0 %v1161
  %1413 = vmatprep.subr.bf16.mxu0 %v1170
  %1414 = vmatpush1.bf16.msra.mxu0 %v1169
  %1415 = vmatprep.mubr.bf16.mxu0 %v532
  %1416 = vmatmul.mubr.bf16.gmra.mrb[0].mxu0 %v531
  %v1417 = vpop.f32.mrb[0].mxu0
  %v1418 = vadd.f32 %v527, %v1417
  %v1419 = vpop.f32.mrb[0].mxu0
  %v1420 = vadd.f32 %v528, %v1419
  %v1421 = vpop.f32.mrb[0].mxu0
  %v1422 = vpop.f32.mrb[0].mxu0
  %1423 = vdwg.mxu0
  %1424 = vmatprep.subr.bf16.mxu0 %v1052
  %1425 = vmatpush1.bf16.msra.mxu0 %v1051
  %1426 = vmatprep.subr.bf16.mxu0 %v1060
  %1427 = vmatpush1.bf16.msra.mxu0 %v1059
  %1428 = vmatprep.subr.bf16.mxu0 %v1068
  %1429 = vmatpush1.bf16.msra.mxu0 %v1067
  %1430 = vmatprep.subr.bf16.mxu0 %v1076
  %1431 = vmatpush1.bf16.msra.mxu0 %v1075
  %1432 = vmatprep.subr.bf16.mxu0 %v1084
  %1433 = vmatpush1.bf16.msra.mxu0 %v1083
  %1434 = vmatprep.subr.bf16.mxu0 %v1092
  %1435 = vmatpush1.bf16.msra.mxu0 %v1091
  %1436 = vmatprep.subr.bf16.mxu0 %v1100
  %1437 = vmatpush1.bf16.msra.mxu0 %v1099
  %1438 = vmatprep.subr.bf16.mxu0 %v1108
  %1439 = vmatpush1.bf16.msra.mxu0 %v1107
  %1440 = vmatprep.subr.bf16.mxu0 %v1116
  %1441 = vmatpush1.bf16.msra.mxu0 %v1115
  %1442 = vmatprep.subr.bf16.mxu0 %v1124
  %1443 = vmatpush1.bf16.msra.mxu0 %v1123
  %1444 = vmatprep.subr.bf16.mxu0 %v1132
  %1445 = vmatpush1.bf16.msra.mxu0 %v1131
  %1446 = vmatprep.subr.bf16.mxu0 %v1140
  %1447 = vmatpush1.bf16.msra.mxu0 %v1139
  %1448 = vmatprep.subr.bf16.mxu0 %v1148
  %1449 = vmatpush1.bf16.msra.mxu0 %v1147
  %1450 = vmatprep.subr.bf16.mxu0 %v1156
  %1451 = vmatpush1.bf16.msra.mxu0 %v1155
  %1452 = vmatprep.subr.bf16.mxu0 %v1164
  %1453 = vmatpush1.bf16.msra.mxu0 %v1163
  %1454 = vmatprep.subr.bf16.mxu0 %v1172
  %1455 = vmatpush1.bf16.msra.mxu0 %v1171
  %1456 = vmatprep.mubr.bf16.mxu0 %v532
  %1457 = vmatmul.mubr.bf16.gmra.mrb[0].mxu0 %v531
  %v1458 = vpop.f32.mrb[0].mxu0
  %v1459 = vadd.f32 %v529, %v1458
  %v1460 = vpop.f32.mrb[0].mxu0
  %v1461 = vadd.f32 %v530, %v1460
  %v1462 = vpop.f32.mrb[0].mxu0
  %v1463 = vpop.f32.mrb[0].mxu0
  %1464 = vdwg.mxu0
  %v1465 = vxor.u32 %v1336, 2147483648
  %v1466 = vxor.u32 %v1338, 2147483648
  %v1467 = vmul.f32 %v1465, 1.442695
  %v1468 = vpow.pop %v1467
  %v1469 = vmul.f32 %v1466, 1.442695
  %v1470 = vpow.pop %v1469
  %v1471 = vadd.f32 %v1468, 1.0
  %v1472 = vadd.f32 %v1470, 1.0
  %v1473 = vrcp.pop %v1471
  %v1474 = vmul.f32 1.0, %v1473
  %v1475 = vrcp.pop %v1472
  %v1476 = vmul.f32 1.0, %v1475
  %v1477 = vxor.u32 %v1377, 2147483648
  %v1478 = vxor.u32 %v1379, 2147483648
  %v1479 = vmul.f32 %v1477, 1.442695
  %v1480 = vpow.pop %v1479
  %v1481 = vmul.f32 %v1478, 1.442695
  %v1482 = vpow.pop %v1481
  %v1483 = vadd.f32 %v1480, 1.0
  %v1484 = vadd.f32 %v1482, 1.0
  %v1485 = vrcp.pop %v1483
  %v1486 = vmul.f32 1.0, %v1485
  %v1487 = vrcp.pop %v1484
  %v1488 = vmul.f32 1.0, %v1487
  %v1489 = vtanh.pop %v1418
  %v1490 = vtanh.pop %v1420
  %v1491 = vxor.u32 %v1459, 2147483648
  %v1492 = vxor.u32 %v1461, 2147483648
  %v1493 = vmul.f32 %v1491, 1.442695
  %v1494 = vpow.pop %v1493
  %v1495 = vmul.f32 %v1492, 1.442695
  %v1496 = vpow.pop %v1495
  %v1497 = vadd.f32 %v1494, 1.0
  %v1498 = vadd.f32 %v1496, 1.0
  %v1499 = vrcp.pop %v1497
  %v1500 = vmul.f32 1.0, %v1499
  %v1501 = vrcp.pop %v1498
  %v1502 = vmul.f32 1.0, %v1501
  %v1503 = vmul.f32 %v1474, %v518
  %v1504 = vmul.f32 %v1476, %v519
  %v1505 = vmul.f32 %v1486, %v1489
  %v1506 = vmul.f32 %v1488, %v1490
  %v1507 = vadd.f32 %v1503, %v1505
  %v1508 = vadd.f32 %v1504, %v1506
  %v1509 = vtanh.pop %v1507
  %v1510 = vtanh.pop %v1508
  %v1511 = vmul.f32 %v1500, %v1509
  %v1512 = vmul.f32 %v1502, %v1510
  %1513 = vst [vmem:[%s4] sm:$0xff] %v1512
  %s1514 = smul.u32 1, 8
  %s1515 = smul.addr %s1514, 8
  %s1516 = scalar_lea.vmem [#allocation2], %s1515
  %v1517 = vld [vmem:[%s1516] sm:$0xff]
  %v1518 = vld [vmem:[%s1516 + $0x8] sm:$0xff]
  %v1519 = vld [vmem:[%s1516 + $0x10] sm:$0xff]
  %v1520 = vld [vmem:[%s1516 + $0x18] sm:$0xff]
  %v1521 = vld [vmem:[%s1516 + $0x20] sm:$0xff]
  %v1522 = vld [vmem:[%s1516 + $0x28] sm:$0xff]
  %v1523 = vld [vmem:[%s1516 + $0x30] sm:$0xff]
  %v1524 = vld [vmem:[%s1516 + $0x38] sm:$0xff]
  %v1525 = vpack.c.bf16 %v1511, %v1511
  %v1526 = vpack.c.bf16 %v1512, %v1512
  %v1527 = vld [vmem:[%s2] sm:$0xff]
  %v1528 = vld [vmem:[%s2 + $0x8] sm:$0xff]
  %v1529 = vld [vmem:[%s2 + $0x10] sm:$0xff]
  %v1530 = vld [vmem:[%s2 + $0x18] sm:$0xff]
  %v1531 = vld [vmem:[%s2 + $0x20] sm:$0xff]
  %v1532 = vld [vmem:[%s2 + $0x28] sm:$0xff]
  %v1533 = vld [vmem:[%s2 + $0x30] sm:$0xff]
  %v1534 = vld [vmem:[%s2 + $0x38] sm:$0xff]
  %v1535 = vld [vmem:[%s2 + $0x40] sm:$0xff]
  %v1536 = vld [vmem:[%s2 + $0x48] sm:$0xff]
  %v1537 = vld [vmem:[%s2 + $0x50] sm:$0xff]
  %v1538 = vld [vmem:[%s2 + $0x58] sm:$0xff]
  %v1539 = vld [vmem:[%s2 + $0x60] sm:$0xff]
  %v1540 = vld [vmem:[%s2 + $0x68] sm:$0xff]
  %v1541 = vld [vmem:[%s2 + $0x70] sm:$0xff]
  %v1542 = vld [vmem:[%s2 + $0x78] sm:$0xff]
  %v1543 = vld [vmem:[%s2 + $0x80] sm:$0xff]
  %v1544 = vld [vmem:[%s2 + $0x88] sm:$0xff]
  %v1545 = vld [vmem:[%s2 + $0x90] sm:$0xff]
  %v1546 = vld [vmem:[%s2 + $0x98] sm:$0xff]
  %v1547 = vld [vmem:[%s2 + $0xa0] sm:$0xff]
  %v1548 = vld [vmem:[%s2 + $0xa8] sm:$0xff]
  %v1549 = vld [vmem:[%s2 + $0xb0] sm:$0xff]
  %v1550 = vld [vmem:[%s2 + $0xb8] sm:$0xff]
  %v1551 = vld [vmem:[%s2 + $0xc0] sm:$0xff]
  %v1552 = vld [vmem:[%s2 + $0xc8] sm:$0xff]
  %v1553 = vld [vmem:[%s2 + $0xd0] sm:$0xff]
  %v1554 = vld [vmem:[%s2 + $0xd8] sm:$0xff]
  %v1555 = vld [vmem:[%s2 + $0xe0] sm:$0xff]
  %v1556 = vld [vmem:[%s2 + $0xe8] sm:$0xff]
  %v1557 = vld [vmem:[%s2 + $0xf0] sm:$0xff]
  %v1558 = vld [vmem:[%s2 + $0xf8] sm:$0xff]
  %v1559 = vld [vmem:[%s2 + $0x100] sm:$0xff]
  %v1560 = vld [vmem:[%s2 + $0x108] sm:$0xff]
  %v1561 = vld [vmem:[%s2 + $0x110] sm:$0xff]
  %v1562 = vld [vmem:[%s2 + $0x118] sm:$0xff]
  %v1563 = vld [vmem:[%s2 + $0x120] sm:$0xff]
  %v1564 = vld [vmem:[%s2 + $0x128] sm:$0xff]
  %v1565 = vld [vmem:[%s2 + $0x130] sm:$0xff]
  %v1566 = vld [vmem:[%s2 + $0x138] sm:$0xff]
  %v1567 = vld [vmem:[%s2 + $0x140] sm:$0xff]
  %v1568 = vld [vmem:[%s2 + $0x148] sm:$0xff]
  %v1569 = vld [vmem:[%s2 + $0x150] sm:$0xff]
  %v1570 = vld [vmem:[%s2 + $0x158] sm:$0xff]
  %v1571 = vld [vmem:[%s2 + $0x160] sm:$0xff]
  %v1572 = vld [vmem:[%s2 + $0x168] sm:$0xff]
  %v1573 = vld [vmem:[%s2 + $0x170] sm:$0xff]
  %v1574 = vld [vmem:[%s2 + $0x178] sm:$0xff]
  %v1575 = vld [vmem:[%s2 + $0x180] sm:$0xff]
  %v1576 = vld [vmem:[%s2 + $0x188] sm:$0xff]
  %v1577 = vld [vmem:[%s2 + $0x190] sm:$0xff]
  %v1578 = vld [vmem:[%s2 + $0x198] sm:$0xff]
  %v1579 = vld [vmem:[%s2 + $0x1a0] sm:$0xff]
  %v1580 = vld [vmem:[%s2 + $0x1a8] sm:$0xff]
  %v1581 = vld [vmem:[%s2 + $0x1b0] sm:$0xff]
  %v1582 = vld [vmem:[%s2 + $0x1b8] sm:$0xff]
  %v1583 = vld [vmem:[%s2 + $0x1c0] sm:$0xff]
  %v1584 = vld [vmem:[%s2 + $0x1c8] sm:$0xff]
  %v1585 = vld [vmem:[%s2 + $0x1d0] sm:$0xff]
  %v1586 = vld [vmem:[%s2 + $0x1d8] sm:$0xff]
  %v1587 = vld [vmem:[%s2 + $0x1e0] sm:$0xff]
  %v1588 = vld [vmem:[%s2 + $0x1e8] sm:$0xff]
  %v1589 = vld [vmem:[%s2 + $0x1f0] sm:$0xff]
  %v1590 = vld [vmem:[%s2 + $0x1f8] sm:$0xff]
  %v1591 = vld [vmem:[%s2 + $0x200] sm:$0xff]
  %v1592 = vld [vmem:[%s2 + $0x208] sm:$0xff]
  %v1593 = vld [vmem:[%s2 + $0x210] sm:$0xff]
  %v1594 = vld [vmem:[%s2 + $0x218] sm:$0xff]
  %v1595 = vld [vmem:[%s2 + $0x220] sm:$0xff]
  %v1596 = vld [vmem:[%s2 + $0x228] sm:$0xff]
  %v1597 = vld [vmem:[%s2 + $0x230] sm:$0xff]
  %v1598 = vld [vmem:[%s2 + $0x238] sm:$0xff]
  %v1599 = vld [vmem:[%s2 + $0x240] sm:$0xff]
  %v1600 = vld [vmem:[%s2 + $0x248] sm:$0xff]
  %v1601 = vld [vmem:[%s2 + $0x250] sm:$0xff]
  %v1602 = vld [vmem:[%s2 + $0x258] sm:$0xff]
  %v1603 = vld [vmem:[%s2 + $0x260] sm:$0xff]
  %v1604 = vld [vmem:[%s2 + $0x268] sm:$0xff]
  %v1605 = vld [vmem:[%s2 + $0x270] sm:$0xff]
  %v1606 = vld [vmem:[%s2 + $0x278] sm:$0xff]
  %v1607 = vld [vmem:[%s2 + $0x280] sm:$0xff]
  %v1608 = vld [vmem:[%s2 + $0x288] sm:$0xff]
  %v1609 = vld [vmem:[%s2 + $0x290] sm:$0xff]
  %v1610 = vld [vmem:[%s2 + $0x298] sm:$0xff]
  %v1611 = vld [vmem:[%s2 + $0x2a0] sm:$0xff]
  %v1612 = vld [vmem:[%s2 + $0x2a8] sm:$0xff]
  %v1613 = vld [vmem:[%s2 + $0x2b0] sm:$0xff]
  %v1614 = vld [vmem:[%s2 + $0x2b8] sm:$0xff]
  %v1615 = vld [vmem:[%s2 + $0x2c0] sm:$0xff]
  %v1616 = vld [vmem:[%s2 + $0x2c8] sm:$0xff]
  %v1617 = vld [vmem:[%s2 + $0x2d0] sm:$0xff]
  %v1618 = vld [vmem:[%s2 + $0x2d8] sm:$0xff]
  %v1619 = vld [vmem:[%s2 + $0x2e0] sm:$0xff]
  %v1620 = vld [vmem:[%s2 + $0x2e8] sm:$0xff]
  %v1621 = vld [vmem:[%s2 + $0x2f0] sm:$0xff]
  %v1622 = vld [vmem:[%s2 + $0x2f8] sm:$0xff]
  %v1623 = vld [vmem:[%s2 + $0x300] sm:$0xff]
  %v1624 = vld [vmem:[%s2 + $0x308] sm:$0xff]
  %v1625 = vld [vmem:[%s2 + $0x310] sm:$0xff]
  %v1626 = vld [vmem:[%s2 + $0x318] sm:$0xff]
  %v1627 = vld [vmem:[%s2 + $0x320] sm:$0xff]
  %v1628 = vld [vmem:[%s2 + $0x328] sm:$0xff]
  %v1629 = vld [vmem:[%s2 + $0x330] sm:$0xff]
  %v1630 = vld [vmem:[%s2 + $0x338] sm:$0xff]
  %v1631 = vld [vmem:[%s2 + $0x340] sm:$0xff]
  %v1632 = vld [vmem:[%s2 + $0x348] sm:$0xff]
  %v1633 = vld [vmem:[%s2 + $0x350] sm:$0xff]
  %v1634 = vld [vmem:[%s2 + $0x358] sm:$0xff]
  %v1635 = vld [vmem:[%s2 + $0x360] sm:$0xff]
  %v1636 = vld [vmem:[%s2 + $0x368] sm:$0xff]
  %v1637 = vld [vmem:[%s2 + $0x370] sm:$0xff]
  %v1638 = vld [vmem:[%s2 + $0x378] sm:$0xff]
  %v1639 = vld [vmem:[%s2 + $0x380] sm:$0xff]
  %v1640 = vld [vmem:[%s2 + $0x388] sm:$0xff]
  %v1641 = vld [vmem:[%s2 + $0x390] sm:$0xff]
  %v1642 = vld [vmem:[%s2 + $0x398] sm:$0xff]
  %v1643 = vld [vmem:[%s2 + $0x3a0] sm:$0xff]
  %v1644 = vld [vmem:[%s2 + $0x3a8] sm:$0xff]
  %v1645 = vld [vmem:[%s2 + $0x3b0] sm:$0xff]
  %v1646 = vld [vmem:[%s2 + $0x3b8] sm:$0xff]
  %v1647 = vld [vmem:[%s2 + $0x3c0] sm:$0xff]
  %v1648 = vld [vmem:[%s2 + $0x3c8] sm:$0xff]
  %v1649 = vld [vmem:[%s2 + $0x3d0] sm:$0xff]
  %v1650 = vld [vmem:[%s2 + $0x3d8] sm:$0xff]
  %v1651 = vld [vmem:[%s2 + $0x3e0] sm:$0xff]
  %v1652 = vld [vmem:[%s2 + $0x3e8] sm:$0xff]
  %v1653 = vld [vmem:[%s2 + $0x3f0] sm:$0xff]
  %v1654 = vld [vmem:[%s2 + $0x3f8] sm:$0xff]
  %v1783 = vunpack.c.l.b16 %v1527
  %v1784 = vunpack.c.h.b16 %v1527
  %v1785 = vunpack.c.l.b16 %v1528
  %v1786 = vunpack.c.h.b16 %v1528
  %v1787 = vunpack.c.l.b16 %v1529
  %v1788 = vunpack.c.h.b16 %v1529
  %v1789 = vunpack.c.l.b16 %v1530
  %v1790 = vunpack.c.h.b16 %v1530
  %v1791 = vunpack.c.l.b16 %v1531
  %v1792 = vunpack.c.h.b16 %v1531
  %v1793 = vunpack.c.l.b16 %v1532
  %v1794 = vunpack.c.h.b16 %v1532
  %v1795 = vunpack.c.l.b16 %v1533
  %v1796 = vunpack.c.h.b16 %v1533
  %v1797 = vunpack.c.l.b16 %v1534
  %v1798 = vunpack.c.h.b16 %v1534
  %v1799 = vunpack.c.l.b16 %v1535
  %v1800 = vunpack.c.h.b16 %v1535
  %v1801 = vunpack.c.l.b16 %v1536
  %v1802 = vunpack.c.h.b16 %v1536
  %v1803 = vunpack.c.l.b16 %v1537
  %v1804 = vunpack.c.h.b16 %v1537
  %v1805 = vunpack.c.l.b16 %v1538
  %v1806 = vunpack.c.h.b16 %v1538
  %v1807 = vunpack.c.l.b16 %v1539
  %v1808 = vunpack.c.h.b16 %v1539
  %v1809 = vunpack.c.l.b16 %v1540
  %v1810 = vunpack.c.h.b16 %v1540
  %v1811 = vunpack.c.l.b16 %v1541
  %v1812 = vunpack.c.h.b16 %v1541
  %v1813 = vunpack.c.l.b16 %v1542
  %v1814 = vunpack.c.h.b16 %v1542
  %v1815 = vunpack.c.l.b16 %v1543
  %v1816 = vunpack.c.h.b16 %v1543
  %v1817 = vunpack.c.l.b16 %v1544
  %v1818 = vunpack.c.h.b16 %v1544
  %v1819 = vunpack.c.l.b16 %v1545
  %v1820 = vunpack.c.h.b16 %v1545
  %v1821 = vunpack.c.l.b16 %v1546
  %v1822 = vunpack.c.h.b16 %v1546
  %v1823 = vunpack.c.l.b16 %v1547
  %v1824 = vunpack.c.h.b16 %v1547
  %v1825 = vunpack.c.l.b16 %v1548
  %v1826 = vunpack.c.h.b16 %v1548
  %v1827 = vunpack.c.l.b16 %v1549
  %v1828 = vunpack.c.h.b16 %v1549
  %v1829 = vunpack.c.l.b16 %v1550
  %v1830 = vunpack.c.h.b16 %v1550
  %v1831 = vunpack.c.l.b16 %v1551
  %v1832 = vunpack.c.h.b16 %v1551
  %v1833 = vunpack.c.l.b16 %v1552
  %v1834 = vunpack.c.h.b16 %v1552
  %v1835 = vunpack.c.l.b16 %v1553
  %v1836 = vunpack.c.h.b16 %v1553
  %v1837 = vunpack.c.l.b16 %v1554
  %v1838 = vunpack.c.h.b16 %v1554
  %v1839 = vunpack.c.l.b16 %v1555
  %v1840 = vunpack.c.h.b16 %v1555
  %v1841 = vunpack.c.l.b16 %v1556
  %v1842 = vunpack.c.h.b16 %v1556
  %v1843 = vunpack.c.l.b16 %v1557
  %v1844 = vunpack.c.h.b16 %v1557
  %v1845 = vunpack.c.l.b16 %v1558
  %v1846 = vunpack.c.h.b16 %v1558
  %v1847 = vunpack.c.l.b16 %v1559
  %v1848 = vunpack.c.h.b16 %v1559
  %v1849 = vunpack.c.l.b16 %v1560
  %v1850 = vunpack.c.h.b16 %v1560
  %v1851 = vunpack.c.l.b16 %v1561
  %v1852 = vunpack.c.h.b16 %v1561
  %v1853 = vunpack.c.l.b16 %v1562
  %v1854 = vunpack.c.h.b16 %v1562
  %v1855 = vunpack.c.l.b16 %v1563
  %v1856 = vunpack.c.h.b16 %v1563
  %v1857 = vunpack.c.l.b16 %v1564
  %v1858 = vunpack.c.h.b16 %v1564
  %v1859 = vunpack.c.l.b16 %v1565
  %v1860 = vunpack.c.h.b16 %v1565
  %v1861 = vunpack.c.l.b16 %v1566
  %v1862 = vunpack.c.h.b16 %v1566
  %v1863 = vunpack.c.l.b16 %v1567
  %v1864 = vunpack.c.h.b16 %v1567
  %v1865 = vunpack.c.l.b16 %v1568
  %v1866 = vunpack.c.h.b16 %v1568
  %v1867 = vunpack.c.l.b16 %v1569
  %v1868 = vunpack.c.h.b16 %v1569
  %v1869 = vunpack.c.l.b16 %v1570
  %v1870 = vunpack.c.h.b16 %v1570
  %v1871 = vunpack.c.l.b16 %v1571
  %v1872 = vunpack.c.h.b16 %v1571
  %v1873 = vunpack.c.l.b16 %v1572
  %v1874 = vunpack.c.h.b16 %v1572
  %v1875 = vunpack.c.l.b16 %v1573
  %v1876 = vunpack.c.h.b16 %v1573
  %v1877 = vunpack.c.l.b16 %v1574
  %v1878 = vunpack.c.h.b16 %v1574
  %v1879 = vunpack.c.l.b16 %v1575
  %v1880 = vunpack.c.h.b16 %v1575
  %v1881 = vunpack.c.l.b16 %v1576
  %v1882 = vunpack.c.h.b16 %v1576
  %v1883 = vunpack.c.l.b16 %v1577
  %v1884 = vunpack.c.h.b16 %v1577
  %v1885 = vunpack.c.l.b16 %v1578
  %v1886 = vunpack.c.h.b16 %v1578
  %v1887 = vunpack.c.l.b16 %v1579
  %v1888 = vunpack.c.h.b16 %v1579
  %v1889 = vunpack.c.l.b16 %v1580
  %v1890 = vunpack.c.h.b16 %v1580
  %v1891 = vunpack.c.l.b16 %v1581
  %v1892 = vunpack.c.h.b16 %v1581
  %v1893 = vunpack.c.l.b16 %v1582
  %v1894 = vunpack.c.h.b16 %v1582
  %v1895 = vunpack.c.l.b16 %v1583
  %v1896 = vunpack.c.h.b16 %v1583
  %v1897 = vunpack.c.l.b16 %v1584
  %v1898 = vunpack.c.h.b16 %v1584
  %v1899 = vunpack.c.l.b16 %v1585
  %v1900 = vunpack.c.h.b16 %v1585
  %v1901 = vunpack.c.l.b16 %v1586
  %v1902 = vunpack.c.h.b16 %v1586
  %v1903 = vunpack.c.l.b16 %v1587
  %v1904 = vunpack.c.h.b16 %v1587
  %v1905 = vunpack.c.l.b16 %v1588
  %v1906 = vunpack.c.h.b16 %v1588
  %v1907 = vunpack.c.l.b16 %v1589
  %v1908 = vunpack.c.h.b16 %v1589
  %v1909 = vunpack.c.l.b16 %v1590
  %v1910 = vunpack.c.h.b16 %v1590
  %v1911 = vunpack.c.l.b16 %v1591
  %v1912 = vunpack.c.h.b16 %v1591
  %v1913 = vunpack.c.l.b16 %v1592
  %v1914 = vunpack.c.h.b16 %v1592
  %v1915 = vunpack.c.l.b16 %v1593
  %v1916 = vunpack.c.h.b16 %v1593
  %v1917 = vunpack.c.l.b16 %v1594
  %v1918 = vunpack.c.h.b16 %v1594
  %v1919 = vunpack.c.l.b16 %v1595
  %v1920 = vunpack.c.h.b16 %v1595
  %v1921 = vunpack.c.l.b16 %v1596
  %v1922 = vunpack.c.h.b16 %v1596
  %v1923 = vunpack.c.l.b16 %v1597
  %v1924 = vunpack.c.h.b16 %v1597
  %v1925 = vunpack.c.l.b16 %v1598
  %v1926 = vunpack.c.h.b16 %v1598
  %v1927 = vunpack.c.l.b16 %v1599
  %v1928 = vunpack.c.h.b16 %v1599
  %v1929 = vunpack.c.l.b16 %v1600
  %v1930 = vunpack.c.h.b16 %v1600
  %v1931 = vunpack.c.l.b16 %v1601
  %v1932 = vunpack.c.h.b16 %v1601
  %v1933 = vunpack.c.l.b16 %v1602
  %v1934 = vunpack.c.h.b16 %v1602
  %v1935 = vunpack.c.l.b16 %v1603
  %v1936 = vunpack.c.h.b16 %v1603
  %v1937 = vunpack.c.l.b16 %v1604
  %v1938 = vunpack.c.h.b16 %v1604
  %v1939 = vunpack.c.l.b16 %v1605
  %v1940 = vunpack.c.h.b16 %v1605
  %v1941 = vunpack.c.l.b16 %v1606
  %v1942 = vunpack.c.h.b16 %v1606
  %v1943 = vunpack.c.l.b16 %v1607
  %v1944 = vunpack.c.h.b16 %v1607
  %v1945 = vunpack.c.l.b16 %v1608
  %v1946 = vunpack.c.h.b16 %v1608
  %v1947 = vunpack.c.l.b16 %v1609
  %v1948 = vunpack.c.h.b16 %v1609
  %v1949 = vunpack.c.l.b16 %v1610
  %v1950 = vunpack.c.h.b16 %v1610
  %v1951 = vunpack.c.l.b16 %v1611
  %v1952 = vunpack.c.h.b16 %v1611
  %v1953 = vunpack.c.l.b16 %v1612
  %v1954 = vunpack.c.h.b16 %v1612
  %v1955 = vunpack.c.l.b16 %v1613
  %v1956 = vunpack.c.h.b16 %v1613
  %v1957 = vunpack.c.l.b16 %v1614
  %v1958 = vunpack.c.h.b16 %v1614
  %v1959 = vunpack.c.l.b16 %v1615
  %v1960 = vunpack.c.h.b16 %v1615
  %v1961 = vunpack.c.l.b16 %v1616
  %v1962 = vunpack.c.h.b16 %v1616
  %v1963 = vunpack.c.l.b16 %v1617
  %v1964 = vunpack.c.h.b16 %v1617
  %v1965 = vunpack.c.l.b16 %v1618
  %v1966 = vunpack.c.h.b16 %v1618
  %v1967 = vunpack.c.l.b16 %v1619
  %v1968 = vunpack.c.h.b16 %v1619
  %v1969 = vunpack.c.l.b16 %v1620
  %v1970 = vunpack.c.h.b16 %v1620
  %v1971 = vunpack.c.l.b16 %v1621
  %v1972 = vunpack.c.h.b16 %v1621
  %v1973 = vunpack.c.l.b16 %v1622
  %v1974 = vunpack.c.h.b16 %v1622
  %v1975 = vunpack.c.l.b16 %v1623
  %v1976 = vunpack.c.h.b16 %v1623
  %v1977 = vunpack.c.l.b16 %v1624
  %v1978 = vunpack.c.h.b16 %v1624
  %v1979 = vunpack.c.l.b16 %v1625
  %v1980 = vunpack.c.h.b16 %v1625
  %v1981 = vunpack.c.l.b16 %v1626
  %v1982 = vunpack.c.h.b16 %v1626
  %v1983 = vunpack.c.l.b16 %v1627
  %v1984 = vunpack.c.h.b16 %v1627
  %v1985 = vunpack.c.l.b16 %v1628
  %v1986 = vunpack.c.h.b16 %v1628
  %v1987 = vunpack.c.l.b16 %v1629
  %v1988 = vunpack.c.h.b16 %v1629
  %v1989 = vunpack.c.l.b16 %v1630
  %v1990 = vunpack.c.h.b16 %v1630
  %v1991 = vunpack.c.l.b16 %v1631
  %v1992 = vunpack.c.h.b16 %v1631
  %v1993 = vunpack.c.l.b16 %v1632
  %v1994 = vunpack.c.h.b16 %v1632
  %v1995 = vunpack.c.l.b16 %v1633
  %v1996 = vunpack.c.h.b16 %v1633
  %v1997 = vunpack.c.l.b16 %v1634
  %v1998 = vunpack.c.h.b16 %v1634
  %v1999 = vunpack.c.l.b16 %v1635
  %v2000 = vunpack.c.h.b16 %v1635
  %v2001 = vunpack.c.l.b16 %v1636
  %v2002 = vunpack.c.h.b16 %v1636
  %v2003 = vunpack.c.l.b16 %v1637
  %v2004 = vunpack.c.h.b16 %v1637
  %v2005 = vunpack.c.l.b16 %v1638
  %v2006 = vunpack.c.h.b16 %v1638
  %v2007 = vunpack.c.l.b16 %v1639
  %v2008 = vunpack.c.h.b16 %v1639
  %v2009 = vunpack.c.l.b16 %v1640
  %v2010 = vunpack.c.h.b16 %v1640
  %v2011 = vunpack.c.l.b16 %v1641
  %v2012 = vunpack.c.h.b16 %v1641
  %v2013 = vunpack.c.l.b16 %v1642
  %v2014 = vunpack.c.h.b16 %v1642
  %v2015 = vunpack.c.l.b16 %v1643
  %v2016 = vunpack.c.h.b16 %v1643
  %v2017 = vunpack.c.l.b16 %v1644
  %v2018 = vunpack.c.h.b16 %v1644
  %v2019 = vunpack.c.l.b16 %v1645
  %v2020 = vunpack.c.h.b16 %v1645
  %v2021 = vunpack.c.l.b16 %v1646
  %v2022 = vunpack.c.h.b16 %v1646
  %v2023 = vunpack.c.l.b16 %v1647
  %v2024 = vunpack.c.h.b16 %v1647
  %v2025 = vunpack.c.l.b16 %v1648
  %v2026 = vunpack.c.h.b16 %v1648
  %v2027 = vunpack.c.l.b16 %v1649
  %v2028 = vunpack.c.h.b16 %v1649
  %v2029 = vunpack.c.l.b16 %v1650
  %v2030 = vunpack.c.h.b16 %v1650
  %v2031 = vunpack.c.l.b16 %v1651
  %v2032 = vunpack.c.h.b16 %v1651
  %v2033 = vunpack.c.l.b16 %v1652
  %v2034 = vunpack.c.h.b16 %v1652
  %v2035 = vunpack.c.l.b16 %v1653
  %v2036 = vunpack.c.h.b16 %v1653
  %v2037 = vunpack.c.l.b16 %v1654
  %v2038 = vunpack.c.h.b16 %v1654
  %v2039 = vpack.c.b16 %v1791, %v1783
  %v2040 = vpack.c.b16 %v1792, %v1784
  %v2041 = vpack.c.b16 %v1793, %v1785
  %v2042 = vpack.c.b16 %v1794, %v1786
  %v2043 = vpack.c.b16 %v1795, %v1787
  %v2044 = vpack.c.b16 %v1796, %v1788
  %v2045 = vpack.c.b16 %v1797, %v1789
  %v2046 = vpack.c.b16 %v1798, %v1790
  %v2047 = vpack.c.b16 %v1807, %v1799
  %v2048 = vpack.c.b16 %v1808, %v1800
  %v2049 = vpack.c.b16 %v1809, %v1801
  %v2050 = vpack.c.b16 %v1810, %v1802
  %v2051 = vpack.c.b16 %v1811, %v1803
  %v2052 = vpack.c.b16 %v1812, %v1804
  %v2053 = vpack.c.b16 %v1813, %v1805
  %v2054 = vpack.c.b16 %v1814, %v1806
  %v2055 = vpack.c.b16 %v1823, %v1815
  %v2056 = vpack.c.b16 %v1824, %v1816
  %v2057 = vpack.c.b16 %v1825, %v1817
  %v2058 = vpack.c.b16 %v1826, %v1818
  %v2059 = vpack.c.b16 %v1827, %v1819
  %v2060 = vpack.c.b16 %v1828, %v1820
  %v2061 = vpack.c.b16 %v1829, %v1821
  %v2062 = vpack.c.b16 %v1830, %v1822
  %v2063 = vpack.c.b16 %v1839, %v1831
  %v2064 = vpack.c.b16 %v1840, %v1832
  %v2065 = vpack.c.b16 %v1841, %v1833
  %v2066 = vpack.c.b16 %v1842, %v1834
  %v2067 = vpack.c.b16 %v1843, %v1835
  %v2068 = vpack.c.b16 %v1844, %v1836
  %v2069 = vpack.c.b16 %v1845, %v1837
  %v2070 = vpack.c.b16 %v1846, %v1838
  %v2071 = vpack.c.b16 %v1855, %v1847
  %v2072 = vpack.c.b16 %v1856, %v1848
  %v2073 = vpack.c.b16 %v1857, %v1849
  %v2074 = vpack.c.b16 %v1858, %v1850
  %v2075 = vpack.c.b16 %v1859, %v1851
  %v2076 = vpack.c.b16 %v1860, %v1852
  %v2077 = vpack.c.b16 %v1861, %v1853
  %v2078 = vpack.c.b16 %v1862, %v1854
  %v2079 = vpack.c.b16 %v1871, %v1863
  %v2080 = vpack.c.b16 %v1872, %v1864
  %v2081 = vpack.c.b16 %v1873, %v1865
  %v2082 = vpack.c.b16 %v1874, %v1866
  %v2083 = vpack.c.b16 %v1875, %v1867
  %v2084 = vpack.c.b16 %v1876, %v1868
  %v2085 = vpack.c.b16 %v1877, %v1869
  %v2086 = vpack.c.b16 %v1878, %v1870
  %v2087 = vpack.c.b16 %v1887, %v1879
  %v2088 = vpack.c.b16 %v1888, %v1880
  %v2089 = vpack.c.b16 %v1889, %v1881
  %v2090 = vpack.c.b16 %v1890, %v1882
  %v2091 = vpack.c.b16 %v1891, %v1883
  %v2092 = vpack.c.b16 %v1892, %v1884
  %v2093 = vpack.c.b16 %v1893, %v1885
  %v2094 = vpack.c.b16 %v1894, %v1886
  %v2095 = vpack.c.b16 %v1903, %v1895
  %v2096 = vpack.c.b16 %v1904, %v1896
  %v2097 = vpack.c.b16 %v1905, %v1897
  %v2098 = vpack.c.b16 %v1906, %v1898
  %v2099 = vpack.c.b16 %v1907, %v1899
  %v2100 = vpack.c.b16 %v1908, %v1900
  %v2101 = vpack.c.b16 %v1909, %v1901
  %v2102 = vpack.c.b16 %v1910, %v1902
  %v2103 = vpack.c.b16 %v1919, %v1911
  %v2104 = vpack.c.b16 %v1920, %v1912
  %v2105 = vpack.c.b16 %v1921, %v1913
  %v2106 = vpack.c.b16 %v1922, %v1914
  %v2107 = vpack.c.b16 %v1923, %v1915
  %v2108 = vpack.c.b16 %v1924, %v1916
  %v2109 = vpack.c.b16 %v1925, %v1917
  %v2110 = vpack.c.b16 %v1926, %v1918
  %v2111 = vpack.c.b16 %v1935, %v1927
  %v2112 = vpack.c.b16 %v1936, %v1928
  %v2113 = vpack.c.b16 %v1937, %v1929
  %v2114 = vpack.c.b16 %v1938, %v1930
  %v2115 = vpack.c.b16 %v1939, %v1931
  %v2116 = vpack.c.b16 %v1940, %v1932
  %v2117 = vpack.c.b16 %v1941, %v1933
  %v2118 = vpack.c.b16 %v1942, %v1934
  %v2119 = vpack.c.b16 %v1951, %v1943
  %v2120 = vpack.c.b16 %v1952, %v1944
  %v2121 = vpack.c.b16 %v1953, %v1945
  %v2122 = vpack.c.b16 %v1954, %v1946
  %v2123 = vpack.c.b16 %v1955, %v1947
  %v2124 = vpack.c.b16 %v1956, %v1948
  %v2125 = vpack.c.b16 %v1957, %v1949
  %v2126 = vpack.c.b16 %v1958, %v1950
  %v2127 = vpack.c.b16 %v1967, %v1959
  %v2128 = vpack.c.b16 %v1968, %v1960
  %v2129 = vpack.c.b16 %v1969, %v1961
  %v2130 = vpack.c.b16 %v1970, %v1962
  %v2131 = vpack.c.b16 %v1971, %v1963
  %v2132 = vpack.c.b16 %v1972, %v1964
  %v2133 = vpack.c.b16 %v1973, %v1965
  %v2134 = vpack.c.b16 %v1974, %v1966
  %v2135 = vpack.c.b16 %v1983, %v1975
  %v2136 = vpack.c.b16 %v1984, %v1976
  %v2137 = vpack.c.b16 %v1985, %v1977
  %v2138 = vpack.c.b16 %v1986, %v1978
  %v2139 = vpack.c.b16 %v1987, %v1979
  %v2140 = vpack.c.b16 %v1988, %v1980
  %v2141 = vpack.c.b16 %v1989, %v1981
  %v2142 = vpack.c.b16 %v1990, %v1982
  %v2143 = vpack.c.b16 %v1999, %v1991
  %v2144 = vpack.c.b16 %v2000, %v1992
  %v2145 = vpack.c.b16 %v2001, %v1993
  %v2146 = vpack.c.b16 %v2002, %v1994
  %v2147 = vpack.c.b16 %v2003, %v1995
  %v2148 = vpack.c.b16 %v2004, %v1996
  %v2149 = vpack.c.b16 %v2005, %v1997
  %v2150 = vpack.c.b16 %v2006, %v1998
  %v2151 = vpack.c.b16 %v2015, %v2007
  %v2152 = vpack.c.b16 %v2016, %v2008
  %v2153 = vpack.c.b16 %v2017, %v2009
  %v2154 = vpack.c.b16 %v2018, %v2010
  %v2155 = vpack.c.b16 %v2019, %v2011
  %v2156 = vpack.c.b16 %v2020, %v2012
  %v2157 = vpack.c.b16 %v2021, %v2013
  %v2158 = vpack.c.b16 %v2022, %v2014
  %v2159 = vpack.c.b16 %v2031, %v2023
  %v2160 = vpack.c.b16 %v2032, %v2024
  %v2161 = vpack.c.b16 %v2033, %v2025
  %v2162 = vpack.c.b16 %v2034, %v2026
  %v2163 = vpack.c.b16 %v2035, %v2027
  %v2164 = vpack.c.b16 %v2036, %v2028
  %v2165 = vpack.c.b16 %v2037, %v2029
  %v2166 = vpack.c.b16 %v2038, %v2030
  %2295 = vmatprep.subr.bf16.mxu0 %v2040
  %2296 = vmatpush1.bf16.msra.mxu0 %v2039
  %2297 = vmatprep.subr.bf16.mxu0 %v2048
  %2298 = vmatpush1.bf16.msra.mxu0 %v2047
  %2299 = vmatprep.subr.bf16.mxu0 %v2056
  %2300 = vmatpush1.bf16.msra.mxu0 %v2055
  %2301 = vmatprep.subr.bf16.mxu0 %v2064
  %2302 = vmatpush1.bf16.msra.mxu0 %v2063
  %2303 = vmatprep.subr.bf16.mxu0 %v2072
  %2304 = vmatpush1.bf16.msra.mxu0 %v2071
  %2305 = vmatprep.subr.bf16.mxu0 %v2080
  %2306 = vmatpush1.bf16.msra.mxu0 %v2079
  %2307 = vmatprep.subr.bf16.mxu0 %v2088
  %2308 = vmatpush1.bf16.msra.mxu0 %v2087
  %2309 = vmatprep.subr.bf16.mxu0 %v2096
  %2310 = vmatpush1.bf16.msra.mxu0 %v2095
  %2311 = vmatprep.subr.bf16.mxu0 %v2104
  %2312 = vmatpush1.bf16.msra.mxu0 %v2103
  %2313 = vmatprep.subr.bf16.mxu0 %v2112
  %2314 = vmatpush1.bf16.msra.mxu0 %v2111
  %2315 = vmatprep.subr.bf16.mxu0 %v2120
  %2316 = vmatpush1.bf16.msra.mxu0 %v2119
  %2317 = vmatprep.subr.bf16.mxu0 %v2128
  %2318 = vmatpush1.bf16.msra.mxu0 %v2127
  %2319 = vmatprep.subr.bf16.mxu0 %v2136
  %2320 = vmatpush1.bf16.msra.mxu0 %v2135
  %2321 = vmatprep.subr.bf16.mxu0 %v2144
  %2322 = vmatpush1.bf16.msra.mxu0 %v2143
  %2323 = vmatprep.subr.bf16.mxu0 %v2152
  %2324 = vmatpush1.bf16.msra.mxu0 %v2151
  %2325 = vmatprep.subr.bf16.mxu0 %v2160
  %2326 = vmatpush1.bf16.msra.mxu0 %v2159
  %2327 = vmatprep.mubr.bf16.mxu0 %v1526
  %2328 = vmatmul.mubr.bf16.gmra.mrb[0].mxu0 %v1525
  %v2329 = vpop.f32.mrb[0].mxu0
  %v2330 = vadd.f32 %v1517, %v2329
  %v2331 = vpop.f32.mrb[0].mxu0
  %v2332 = vadd.f32 %v1518, %v2331
  %v2333 = vpop.f32.mrb[0].mxu0
  %v2334 = vpop.f32.mrb[0].mxu0
  %2335 = vdwg.mxu0
  %2336 = vmatprep.subr.bf16.mxu0 %v2042
  %2337 = vmatpush1.bf16.msra.mxu0 %v2041
  %2338 = vmatprep.subr.bf16.mxu0 %v2050
  %2339 = vmatpush1.bf16.msra.mxu0 %v2049
  %2340 = vmatprep.subr.bf16.mxu0 %v2058
  %2341 = vmatpush1.bf16.msra.mxu0 %v2057
  %2342 = vmatprep.subr.bf16.mxu0 %v2066
  %2343 = vmatpush1.bf16.msra.mxu0 %v2065
  %2344 = vmatprep.subr.bf16.mxu0 %v2074
  %2345 = vmatpush1.bf16.msra.mxu0 %v2073
  %2346 = vmatprep.subr.bf16.mxu0 %v2082
  %2347 = vmatpush1.bf16.msra.mxu0 %v2081
  %2348 = vmatprep.subr.bf16.mxu0 %v2090
  %2349 = vmatpush1.bf16.msra.mxu0 %v2089
  %2350 = vmatprep.subr.bf16.mxu0 %v2098
  %2351 = vmatpush1.bf16.msra.mxu0 %v2097
  %2352 = vmatprep.subr.bf16.mxu0 %v2106
  %2353 = vmatpush1.bf16.msra.mxu0 %v2105
  %2354 = vmatprep.subr.bf16.mxu0 %v2114
  %2355 = vmatpush1.bf16.msra.mxu0 %v2113
  %2356 = vmatprep.subr.bf16.mxu0 %v2122
  %2357 = vmatpush1.bf16.msra.mxu0 %v2121
  %2358 = vmatprep.subr.bf16.mxu0 %v2130
  %2359 = vmatpush1.bf16.msra.mxu0 %v2129
  %2360 = vmatprep.subr.bf16.mxu0 %v2138
  %2361 = vmatpush1.bf16.msra.mxu0 %v2137
  %2362 = vmatprep.subr.bf16.mxu0 %v2146
  %2363 = vmatpush1.bf16.msra.mxu0 %v2145
  %2364 = vmatprep.subr.bf16.mxu0 %v2154
  %2365 = vmatpush1.bf16.msra.mxu0 %v2153
  %2366 = vmatprep.subr.bf16.mxu0 %v2162
  %2367 = vmatpush1.bf16.msra.mxu0 %v2161
  %2368 = vmatprep.mubr.bf16.mxu0 %v1526
  %2369 = vmatmul.mubr.bf16.gmra.mrb[0].mxu0 %v1525
  %v2370 = vpop.f32.mrb[0].mxu0
  %v2371 = vadd.f32 %v1519, %v2370
  %v2372 = vpop.f32.mrb[0].mxu0
  %v2373 = vadd.f32 %v1520, %v2372
  %v2374 = vpop.f32.mrb[0].mxu0
  %v2375 = vpop.f32.mrb[0].mxu0
  %2376 = vdwg.mxu0
  %2377 = vmatprep.subr.bf16.mxu0 %v2044
  %2378 = vmatpush1.bf16.msra.mxu0 %v2043
  %2379 = vmatprep.subr.bf16.mxu0 %v2052
  %2380 = vmatpush1.bf16.msra.mxu0 %v2051
  %2381 = vmatprep.subr.bf16.mxu0 %v2060
  %2382 = vmatpush1.bf16.msra.mxu0 %v2059
  %2383 = vmatprep.subr.bf16.mxu0 %v2068
  %2384 = vmatpush1.bf16.msra.mxu0 %v2067
  %2385 = vmatprep.subr.bf16.mxu0 %v2076
  %2386 = vmatpush1.bf16.msra.mxu0 %v2075
  %2387 = vmatprep.subr.bf16.mxu0 %v2084
  %2388 = vmatpush1.bf16.msra.mxu0 %v2083
  %2389 = vmatprep.subr.bf16.mxu0 %v2092
  %2390 = vmatpush1.bf16.msra.mxu0 %v2091
  %2391 = vmatprep.subr.bf16.mxu0 %v2100
  %2392 = vmatpush1.bf16.msra.mxu0 %v2099
  %2393 = vmatprep.subr.bf16.mxu0 %v2108
  %2394 = vmatpush1.bf16.msra.mxu0 %v2107
  %2395 = vmatprep.subr.bf16.mxu0 %v2116
  %2396 = vmatpush1.bf16.msra.mxu0 %v2115
  %2397 = vmatprep.subr.bf16.mxu0 %v2124
  %2398 = vmatpush1.bf16.msra.mxu0 %v2123
  %2399 = vmatprep.subr.bf16.mxu0 %v2132
  %2400 = vmatpush1.bf16.msra.mxu0 %v2131
  %2401 = vmatprep.subr.bf16.mxu0 %v2140
  %2402 = vmatpush1.bf16.msra.mxu0 %v2139
  %2403 = vmatprep.subr.bf16.mxu0 %v2148
  %2404 = vmatpush1.bf16.msra.mxu0 %v2147
  %2405 = vmatprep.subr.bf16.mxu0 %v2156
  %2406 = vmatpush1.bf16.msra.mxu0 %v2155
  %2407 = vmatprep.subr.bf16.mxu0 %v2164
  %2408 = vmatpush1.bf16.msra.mxu0 %v2163
  %2409 = vmatprep.mubr.bf16.mxu0 %v1526
  %2410 = vmatmul.mubr.bf16.gmra.mrb[0].mxu0 %v1525
  %v2411 = vpop.f32.mrb[0].mxu0
  %v2412 = vadd.f32 %v1521, %v2411
  %v2413 = vpop.f32.mrb[0].mxu0
  %v2414 = vadd.f32 %v1522, %v2413
  %v2415 = vpop.f32.mrb[0].mxu0
  %v2416 = vpop.f32.mrb[0].mxu0
  %2417 = vdwg.mxu0
  %2418 = vmatprep.subr.bf16.mxu0 %v2046
  %2419 = vmatpush1.bf16.msra.mxu0 %v2045
  %2420 = vmatprep.subr.bf16.mxu0 %v2054
  %2421 = vmatpush1.bf16.msra.mxu0 %v2053
  %2422 = vmatprep.subr.bf16.mxu0 %v2062
  %2423 = vmatpush1.bf16.msra.mxu0 %v2061
  %2424 = vmatprep.subr.bf16.mxu0 %v2070
  %2425 = vmatpush1.bf16.msra.mxu0 %v2069
  %2426 = vmatprep.subr.bf16.mxu0 %v2078
  %2427 = vmatpush1.bf16.msra.mxu0 %v2077
  %2428 = vmatprep.subr.bf16.mxu0 %v2086
  %2429 = vmatpush1.bf16.msra.mxu0 %v2085
  %2430 = vmatprep.subr.bf16.mxu0 %v2094
  %2431 = vmatpush1.bf16.msra.mxu0 %v2093
  %2432 = vmatprep.subr.bf16.mxu0 %v2102
  %2433 = vmatpush1.bf16.msra.mxu0 %v2101
  %2434 = vmatprep.subr.bf16.mxu0 %v2110
  %2435 = vmatpush1.bf16.msra.mxu0 %v2109
  %2436 = vmatprep.subr.bf16.mxu0 %v2118
  %2437 = vmatpush1.bf16.msra.mxu0 %v2117
  %2438 = vmatprep.subr.bf16.mxu0 %v2126
  %2439 = vmatpush1.bf16.msra.mxu0 %v2125
  %2440 = vmatprep.subr.bf16.mxu0 %v2134
  %2441 = vmatpush1.bf16.msra.mxu0 %v2133
  %2442 = vmatprep.subr.bf16.mxu0 %v2142
  %2443 = vmatpush1.bf16.msra.mxu0 %v2141
  %2444 = vmatprep.subr.bf16.mxu0 %v2150
  %2445 = vmatpush1.bf16.msra.mxu0 %v2149
  %2446 = vmatprep.subr.bf16.mxu0 %v2158
  %2447 = vmatpush1.bf16.msra.mxu0 %v2157
  %2448 = vmatprep.subr.bf16.mxu0 %v2166
  %2449 = vmatpush1.bf16.msra.mxu0 %v2165
  %2450 = vmatprep.mubr.bf16.mxu0 %v1526
  %2451 = vmatmul.mubr.bf16.gmra.mrb[0].mxu0 %v1525
  %v2452 = vpop.f32.mrb[0].mxu0
  %v2453 = vadd.f32 %v1523, %v2452
  %v2454 = vpop.f32.mrb[0].mxu0
  %v2455 = vadd.f32 %v1524, %v2454
  %v2456 = vpop.f32.mrb[0].mxu0
  %v2457 = vpop.f32.mrb[0].mxu0
  %2458 = vdwg.mxu0
  %v2459 = vxor.u32 %v2330, 2147483648
  %v2460 = vxor.u32 %v2332, 2147483648
  %v2461 = vmul.f32 %v2459, 1.442695
  %v2462 = vpow.pop %v2461
  %v2463 = vmul.f32 %v2460, 1.442695
  %v2464 = vpow.pop %v2463
  %v2465 = vadd.f32 %v2462, 1.0
  %v2466 = vadd.f32 %v2464, 1.0
  %v2467 = vrcp.pop %v2465
  %v2468 = vmul.f32 1.0, %v2467
  %v2469 = vrcp.pop %v2466
  %v2470 = vmul.f32 1.0, %v2469
  %v2471 = vxor.u32 %v2371, 2147483648
  %v2472 = vxor.u32 %v2373, 2147483648
  %v2473 = vmul.f32 %v2471, 1.442695
  %v2474 = vpow.pop %v2473
  %v2475 = vmul.f32 %v2472, 1.442695
  %v2476 = vpow.pop %v2475
  %v2477 = vadd.f32 %v2474, 1.0
  %v2478 = vadd.f32 %v2476, 1.0
  %v2479 = vrcp.pop %v2477
  %v2480 = vmul.f32 1.0, %v2479
  %v2481 = vrcp.pop %v2478
  %v2482 = vmul.f32 1.0, %v2481
  %v2483 = vtanh.pop %v2412
  %v2484 = vtanh.pop %v2414
  %v2485 = vxor.u32 %v2453, 2147483648
  %v2486 = vxor.u32 %v2455, 2147483648
  %v2487 = vmul.f32 %v2485, 1.442695
  %v2488 = vpow.pop %v2487
  %v2489 = vmul.f32 %v2486, 1.442695
  %v2490 = vpow.pop %v2489
  %v2491 = vadd.f32 %v2488, 1.0
  %v2492 = vadd.f32 %v2490, 1.0
  %v2493 = vrcp.pop %v2491
  %v2494 = vmul.f32 1.0, %v2493
  %v2495 = vrcp.pop %v2492
  %v2496 = vmul.f32 1.0, %v2495
  %v2497 = vmul.f32 %v2468, %v1507
  %v2498 = vmul.f32 %v2470, %v1508
  %v2499 = vmul.f32 %v2480, %v2483
  %v2500 = vmul.f32 %v2482, %v2484
  %v2501 = vadd.f32 %v2497, %v2499
  %v2502 = vadd.f32 %v2498, %v2500
  %v2503 = vtanh.pop %v2501
  %v2504 = vtanh.pop %v2502
  %v2505 = vmul.f32 %v2494, %v2503
  %v2506 = vmul.f32 %v2496, %v2504
  %s2507 = scalar_lea.vmem %s4, 8
  %2508 = vst [vmem:[%s2507] sm:$0xff] %v2506
  %s2509 = smul.u32 2, 8
  %s2510 = smul.addr %s2509, 8
  %s2511 = scalar_lea.vmem [#allocation2], %s2510
  %v2512 = vld [vmem:[%s2511] sm:$0xff]
  %v2513 = vld [vmem:[%s2511 + $0x8] sm:$0xff]
  %v2514 = vld [vmem:[%s2511 + $0x10] sm:$0xff]
  %v2515 = vld [vmem:[%s2511 + $0x18] sm:$0xff]
  %v2516 = vld [vmem:[%s2511 + $0x20] sm:$0xff]
  %v2517 = vld [vmem:[%s2511 + $0x28] sm:$0xff]
  %v2518 = vld [vmem:[%s2511 + $0x30] sm:$0xff]
  %v2519 = vld [vmem:[%s2511 + $0x38] sm:$0xff]
  %v2520 = vpack.c.bf16 %v2505, %v2505
  %v2521 = vpack.c.bf16 %v2506, %v2506
  %v2522 = vld [vmem:[%s2] sm:$0xff]
  %v2523 = vld [vmem:[%s2 + $0x8] sm:$0xff]
  %v2524 = vld [vmem:[%s2 + $0x10] sm:$0xff]
  %v2525 = vld [vmem:[%s2 + $0x18] sm:$0xff]
  %v2526 = vld [vmem:[%s2 + $0x20] sm:$0xff]
  %v2527 = vld [vmem:[%s2 + $0x28] sm:$0xff]
  %v2528 = vld [vmem:[%s2 + $0x30] sm:$0xff]
  %v2529 = vld [vmem:[%s2 + $0x38] sm:$0xff]
  %v2530 = vld [vmem:[%s2 + $0x40] sm:$0xff]
  %v2531 = vld [vmem:[%s2 + $0x48] sm:$0xff]
  %v2532 = vld [vmem:[%s2 + $0x50] sm:$0xff]
  %v2533 = vld [vmem:[%s2 + $0x58] sm:$0xff]
  %v2534 = vld [vmem:[%s2 + $0x60] sm:$0xff]
  %v2535 = vld [vmem:[%s2 + $0x68] sm:$0xff]
  %v2536 = vld [vmem:[%s2 + $0x70] sm:$0xff]
  %v2537 = vld [vmem:[%s2 + $0x78] sm:$0xff]
  %v2538 = vld [vmem:[%s2 + $0x80] sm:$0xff]
  %v2539 = vld [vmem:[%s2 + $0x88] sm:$0xff]
  %v2540 = vld [vmem:[%s2 + $0x90] sm:$0xff]
  %v2541 = vld [vmem:[%s2 + $0x98] sm:$0xff]
  %v2542 = vld [vmem:[%s2 + $0xa0] sm:$0xff]
  %v2543 = vld [vmem:[%s2 + $0xa8] sm:$0xff]
  %v2544 = vld [vmem:[%s2 + $0xb0] sm:$0xff]
  %v2545 = vld [vmem:[%s2 + $0xb8] sm:$0xff]
  %v2546 = vld [vmem:[%s2 + $0xc0] sm:$0xff]
  %v2547 = vld [vmem:[%s2 + $0xc8] sm:$0xff]
  %v2548 = vld [vmem:[%s2 + $0xd0] sm:$0xff]
  %v2549 = vld [vmem:[%s2 + $0xd8] sm:$0xff]
  %v2550 = vld [vmem:[%s2 + $0xe0] sm:$0xff]
  %v2551 = vld [vmem:[%s2 + $0xe8] sm:$0xff]
  %v2552 = vld [vmem:[%s2 + $0xf0] sm:$0xff]
  %v2553 = vld [vmem:[%s2 + $0xf8] sm:$0xff]
  %v2554 = vld [vmem:[%s2 + $0x100] sm:$0xff]
  %v2555 = vld [vmem:[%s2 + $0x108] sm:$0xff]
  %v2556 = vld [vmem:[%s2 + $0x110] sm:$0xff]
  %v2557 = vld [vmem:[%s2 + $0x118] sm:$0xff]
  %v2558 = vld [vmem:[%s2 + $0x120] sm:$0xff]
  %v2559 = vld [vmem:[%s2 + $0x128] sm:$0xff]
  %v2560 = vld [vmem:[%s2 + $0x130] sm:$0xff]
  %v2561 = vld [vmem:[%s2 + $0x138] sm:$0xff]
  %v2562 = vld [vmem:[%s2 + $0x140] sm:$0xff]
  %v2563 = vld [vmem:[%s2 + $0x148] sm:$0xff]
  %v2564 = vld [vmem:[%s2 + $0x150] sm:$0xff]
  %v2565 = vld [vmem:[%s2 + $0x158] sm:$0xff]
  %v2566 = vld [vmem:[%s2 + $0x160] sm:$0xff]
  %v2567 = vld [vmem:[%s2 + $0x168] sm:$0xff]
  %v2568 = vld [vmem:[%s2 + $0x170] sm:$0xff]
  %v2569 = vld [vmem:[%s2 + $0x178] sm:$0xff]
  %v2570 = vld [vmem:[%s2 + $0x180] sm:$0xff]
  %v2571 = vld [vmem:[%s2 + $0x188] sm:$0xff]
  %v2572 = vld [vmem:[%s2 + $0x190] sm:$0xff]
  %v2573 = vld [vmem:[%s2 + $0x198] sm:$0xff]
  %v2574 = vld [vmem:[%s2 + $0x1a0] sm:$0xff]
  %v2575 = vld [vmem:[%s2 + $0x1a8] sm:$0xff]
  %v2576 = vld [vmem:[%s2 + $0x1b0] sm:$0xff]
  %v2577 = vld [vmem:[%s2 + $0x1b8] sm:$0xff]
  %v2578 = vld [vmem:[%s2 + $0x1c0] sm:$0xff]
  %v2579 = vld [vmem:[%s2 + $0x1c8] sm:$0xff]
  %v2580 = vld [vmem:[%s2 + $0x1d0] sm:$0xff]
  %v2581 = vld [vmem:[%s2 + $0x1d8] sm:$0xff]
  %v2582 = vld [vmem:[%s2 + $0x1e0] sm:$0xff]
  %v2583 = vld [vmem:[%s2 + $0x1e8] sm:$0xff]
  %v2584 = vld [vmem:[%s2 + $0x1f0] sm:$0xff]
  %v2585 = vld [vmem:[%s2 + $0x1f8] sm:$0xff]
  %v2586 = vld [vmem:[%s2 + $0x200] sm:$0xff]
  %v2587 = vld [vmem:[%s2 + $0x208] sm:$0xff]
  %v2588 = vld [vmem:[%s2 + $0x210] sm:$0xff]
  %v2589 = vld [vmem:[%s2 + $0x218] sm:$0xff]
  %v2590 = vld [vmem:[%s2 + $0x220] sm:$0xff]
  %v2591 = vld [vmem:[%s2 + $0x228] sm:$0xff]
  %v2592 = vld [vmem:[%s2 + $0x230] sm:$0xff]
  %v2593 = vld [vmem:[%s2 + $0x238] sm:$0xff]
  %v2594 = vld [vmem:[%s2 + $0x240] sm:$0xff]
  %v2595 = vld [vmem:[%s2 + $0x248] sm:$0xff]
  %v2596 = vld [vmem:[%s2 + $0x250] sm:$0xff]
  %v2597 = vld [vmem:[%s2 + $0x258] sm:$0xff]
  %v2598 = vld [vmem:[%s2 + $0x260] sm:$0xff]
  %v2599 = vld [vmem:[%s2 + $0x268] sm:$0xff]
  %v2600 = vld [vmem:[%s2 + $0x270] sm:$0xff]
  %v2601 = vld [vmem:[%s2 + $0x278] sm:$0xff]
  %v2602 = vld [vmem:[%s2 + $0x280] sm:$0xff]
  %v2603 = vld [vmem:[%s2 + $0x288] sm:$0xff]
  %v2604 = vld [vmem:[%s2 + $0x290] sm:$0xff]
  %v2605 = vld [vmem:[%s2 + $0x298] sm:$0xff]
  %v2606 = vld [vmem:[%s2 + $0x2a0] sm:$0xff]
  %v2607 = vld [vmem:[%s2 + $0x2a8] sm:$0xff]
  %v2608 = vld [vmem:[%s2 + $0x2b0] sm:$0xff]
  %v2609 = vld [vmem:[%s2 + $0x2b8] sm:$0xff]
  %v2610 = vld [vmem:[%s2 + $0x2c0] sm:$0xff]
  %v2611 = vld [vmem:[%s2 + $0x2c8] sm:$0xff]
  %v2612 = vld [vmem:[%s2 + $0x2d0] sm:$0xff]
  %v2613 = vld [vmem:[%s2 + $0x2d8] sm:$0xff]
  %v2614 = vld [vmem:[%s2 + $0x2e0] sm:$0xff]
  %v2615 = vld [vmem:[%s2 + $0x2e8] sm:$0xff]
  %v2616 = vld [vmem:[%s2 + $0x2f0] sm:$0xff]
  %v2617 = vld [vmem:[%s2 + $0x2f8] sm:$0xff]
  %v2618 = vld [vmem:[%s2 + $0x300] sm:$0xff]
  %v2619 = vld [vmem:[%s2 + $0x308] sm:$0xff]
  %v2620 = vld [vmem:[%s2 + $0x310] sm:$0xff]
  %v2621 = vld [vmem:[%s2 + $0x318] sm:$0xff]
  %v2622 = vld [vmem:[%s2 + $0x320] sm:$0xff]
  %v2623 = vld [vmem:[%s2 + $0x328] sm:$0xff]
  %v2624 = vld [vmem:[%s2 + $0x330] sm:$0xff]
  %v2625 = vld [vmem:[%s2 + $0x338] sm:$0xff]
  %v2626 = vld [vmem:[%s2 + $0x340] sm:$0xff]
  %v2627 = vld [vmem:[%s2 + $0x348] sm:$0xff]
  %v2628 = vld [vmem:[%s2 + $0x350] sm:$0xff]
  %v2629 = vld [vmem:[%s2 + $0x358] sm:$0xff]
  %v2630 = vld [vmem:[%s2 + $0x360] sm:$0xff]
  %v2631 = vld [vmem:[%s2 + $0x368] sm:$0xff]
  %v2632 = vld [vmem:[%s2 + $0x370] sm:$0xff]
  %v2633 = vld [vmem:[%s2 + $0x378] sm:$0xff]
  %v2634 = vld [vmem:[%s2 + $0x380] sm:$0xff]
  %v2635 = vld [vmem:[%s2 + $0x388] sm:$0xff]
  %v2636 = vld [vmem:[%s2 + $0x390] sm:$0xff]
  %v2637 = vld [vmem:[%s2 + $0x398] sm:$0xff]
  %v2638 = vld [vmem:[%s2 + $0x3a0] sm:$0xff]
  %v2639 = vld [vmem:[%s2 + $0x3a8] sm:$0xff]
  %v2640 = vld [vmem:[%s2 + $0x3b0] sm:$0xff]
  %v2641 = vld [vmem:[%s2 + $0x3b8] sm:$0xff]
  %v2642 = vld [vmem:[%s2 + $0x3c0] sm:$0xff]
  %v2643 = vld [vmem:[%s2 + $0x3c8] sm:$0xff]
  %v2644 = vld [vmem:[%s2 + $0x3d0] sm:$0xff]
  %v2645 = vld [vmem:[%s2 + $0x3d8] sm:$0xff]
  %v2646 = vld [vmem:[%s2 + $0x3e0] sm:$0xff]
  %v2647 = vld [vmem:[%s2 + $0x3e8] sm:$0xff]
  %v2648 = vld [vmem:[%s2 + $0x3f0] sm:$0xff]
  %v2649 = vld [vmem:[%s2 + $0x3f8] sm:$0xff]
  %v2778 = vunpack.c.l.b16 %v2522
  %v2779 = vunpack.c.h.b16 %v2522
  %v2780 = vunpack.c.l.b16 %v2523
  %v2781 = vunpack.c.h.b16 %v2523
  %v2782 = vunpack.c.l.b16 %v2524
  %v2783 = vunpack.c.h.b16 %v2524
  %v2784 = vunpack.c.l.b16 %v2525
  %v2785 = vunpack.c.h.b16 %v2525
  %v2786 = vunpack.c.l.b16 %v2526
  %v2787 = vunpack.c.h.b16 %v2526
  %v2788 = vunpack.c.l.b16 %v2527
  %v2789 = vunpack.c.h.b16 %v2527
  %v2790 = vunpack.c.l.b16 %v2528
  %v2791 = vunpack.c.h.b16 %v2528
  %v2792 = vunpack.c.l.b16 %v2529
  %v2793 = vunpack.c.h.b16 %v2529
  %v2794 = vunpack.c.l.b16 %v2530
  %v2795 = vunpack.c.h.b16 %v2530
  %v2796 = vunpack.c.l.b16 %v2531
  %v2797 = vunpack.c.h.b16 %v2531
  %v2798 = vunpack.c.l.b16 %v2532
  %v2799 = vunpack.c.h.b16 %v2532
  %v2800 = vunpack.c.l.b16 %v2533
  %v2801 = vunpack.c.h.b16 %v2533
  %v2802 = vunpack.c.l.b16 %v2534
  %v2803 = vunpack.c.h.b16 %v2534
  %v2804 = vunpack.c.l.b16 %v2535
  %v2805 = vunpack.c.h.b16 %v2535
  %v2806 = vunpack.c.l.b16 %v2536
  %v2807 = vunpack.c.h.b16 %v2536
  %v2808 = vunpack.c.l.b16 %v2537
  %v2809 = vunpack.c.h.b16 %v2537
  %v2810 = vunpack.c.l.b16 %v2538
  %v2811 = vunpack.c.h.b16 %v2538
  %v2812 = vunpack.c.l.b16 %v2539
  %v2813 = vunpack.c.h.b16 %v2539
  %v2814 = vunpack.c.l.b16 %v2540
  %v2815 = vunpack.c.h.b16 %v2540
  %v2816 = vunpack.c.l.b16 %v2541
  %v2817 = vunpack.c.h.b16 %v2541
  %v2818 = vunpack.c.l.b16 %v2542
  %v2819 = vunpack.c.h.b16 %v2542
  %v2820 = vunpack.c.l.b16 %v2543
  %v2821 = vunpack.c.h.b16 %v2543
  %v2822 = vunpack.c.l.b16 %v2544
  %v2823 = vunpack.c.h.b16 %v2544
  %v2824 = vunpack.c.l.b16 %v2545
  %v2825 = vunpack.c.h.b16 %v2545
  %v2826 = vunpack.c.l.b16 %v2546
  %v2827 = vunpack.c.h.b16 %v2546
  %v2828 = vunpack.c.l.b16 %v2547
  %v2829 = vunpack.c.h.b16 %v2547
  %v2830 = vunpack.c.l.b16 %v2548
  %v2831 = vunpack.c.h.b16 %v2548
  %v2832 = vunpack.c.l.b16 %v2549
  %v2833 = vunpack.c.h.b16 %v2549
  %v2834 = vunpack.c.l.b16 %v2550
  %v2835 = vunpack.c.h.b16 %v2550
  %v2836 = vunpack.c.l.b16 %v2551
  %v2837 = vunpack.c.h.b16 %v2551
  %v2838 = vunpack.c.l.b16 %v2552
  %v2839 = vunpack.c.h.b16 %v2552
  %v2840 = vunpack.c.l.b16 %v2553
  %v2841 = vunpack.c.h.b16 %v2553
  %v2842 = vunpack.c.l.b16 %v2554
  %v2843 = vunpack.c.h.b16 %v2554
  %v2844 = vunpack.c.l.b16 %v2555
  %v2845 = vunpack.c.h.b16 %v2555
  %v2846 = vunpack.c.l.b16 %v2556
  %v2847 = vunpack.c.h.b16 %v2556
  %v2848 = vunpack.c.l.b16 %v2557
  %v2849 = vunpack.c.h.b16 %v2557
  %v2850 = vunpack.c.l.b16 %v2558
  %v2851 = vunpack.c.h.b16 %v2558
  %v2852 = vunpack.c.l.b16 %v2559
  %v2853 = vunpack.c.h.b16 %v2559
  %v2854 = vunpack.c.l.b16 %v2560
  %v2855 = vunpack.c.h.b16 %v2560
  %v2856 = vunpack.c.l.b16 %v2561
  %v2857 = vunpack.c.h.b16 %v2561
  %v2858 = vunpack.c.l.b16 %v2562
  %v2859 = vunpack.c.h.b16 %v2562
  %v2860 = vunpack.c.l.b16 %v2563
  %v2861 = vunpack.c.h.b16 %v2563
  %v2862 = vunpack.c.l.b16 %v2564
  %v2863 = vunpack.c.h.b16 %v2564
  %v2864 = vunpack.c.l.b16 %v2565
  %v2865 = vunpack.c.h.b16 %v2565
  %v2866 = vunpack.c.l.b16 %v2566
  %v2867 = vunpack.c.h.b16 %v2566
  %v2868 = vunpack.c.l.b16 %v2567
  %v2869 = vunpack.c.h.b16 %v2567
  %v2870 = vunpack.c.l.b16 %v2568
  %v2871 = vunpack.c.h.b16 %v2568
  %v2872 = vunpack.c.l.b16 %v2569
  %v2873 = vunpack.c.h.b16 %v2569
  %v2874 = vunpack.c.l.b16 %v2570
  %v2875 = vunpack.c.h.b16 %v2570
  %v2876 = vunpack.c.l.b16 %v2571
  %v2877 = vunpack.c.h.b16 %v2571
  %v2878 = vunpack.c.l.b16 %v2572
  %v2879 = vunpack.c.h.b16 %v2572
  %v2880 = vunpack.c.l.b16 %v2573
  %v2881 = vunpack.c.h.b16 %v2573
  %v2882 = vunpack.c.l.b16 %v2574
  %v2883 = vunpack.c.h.b16 %v2574
  %v2884 = vunpack.c.l.b16 %v2575
  %v2885 = vunpack.c.h.b16 %v2575
  %v2886 = vunpack.c.l.b16 %v2576
  %v2887 = vunpack.c.h.b16 %v2576
  %v2888 = vunpack.c.l.b16 %v2577
  %v2889 = vunpack.c.h.b16 %v2577
  %v2890 = vunpack.c.l.b16 %v2578
  %v2891 = vunpack.c.h.b16 %v2578
  %v2892 = vunpack.c.l.b16 %v2579
  %v2893 = vunpack.c.h.b16 %v2579
  %v2894 = vunpack.c.l.b16 %v2580
  %v2895 = vunpack.c.h.b16 %v2580
  %v2896 = vunpack.c.l.b16 %v2581
  %v2897 = vunpack.c.h.b16 %v2581
  %v2898 = vunpack.c.l.b16 %v2582
  %v2899 = vunpack.c.h.b16 %v2582
  %v2900 = vunpack.c.l.b16 %v2583
  %v2901 = vunpack.c.h.b16 %v2583
  %v2902 = vunpack.c.l.b16 %v2584
  %v2903 = vunpack.c.h.b16 %v2584
  %v2904 = vunpack.c.l.b16 %v2585
  %v2905 = vunpack.c.h.b16 %v2585
  %v2906 = vunpack.c.l.b16 %v2586
  %v2907 = vunpack.c.h.b16 %v2586
  %v2908 = vunpack.c.l.b16 %v2587
  %v2909 = vunpack.c.h.b16 %v2587
  %v2910 = vunpack.c.l.b16 %v2588
  %v2911 = vunpack.c.h.b16 %v2588
  %v2912 = vunpack.c.l.b16 %v2589
  %v2913 = vunpack.c.h.b16 %v2589
  %v2914 = vunpack.c.l.b16 %v2590
  %v2915 = vunpack.c.h.b16 %v2590
  %v2916 = vunpack.c.l.b16 %v2591
  %v2917 = vunpack.c.h.b16 %v2591
  %v2918 = vunpack.c.l.b16 %v2592
  %v2919 = vunpack.c.h.b16 %v2592
  %v2920 = vunpack.c.l.b16 %v2593
  %v2921 = vunpack.c.h.b16 %v2593
  %v2922 = vunpack.c.l.b16 %v2594
  %v2923 = vunpack.c.h.b16 %v2594
  %v2924 = vunpack.c.l.b16 %v2595
  %v2925 = vunpack.c.h.b16 %v2595
  %v2926 = vunpack.c.l.b16 %v2596
  %v2927 = vunpack.c.h.b16 %v2596
  %v2928 = vunpack.c.l.b16 %v2597
  %v2929 = vunpack.c.h.b16 %v2597
  %v2930 = vunpack.c.l.b16 %v2598
  %v2931 = vunpack.c.h.b16 %v2598
  %v2932 = vunpack.c.l.b16 %v2599
  %v2933 = vunpack.c.h.b16 %v2599
  %v2934 = vunpack.c.l.b16 %v2600
  %v2935 = vunpack.c.h.b16 %v2600
  %v2936 = vunpack.c.l.b16 %v2601
  %v2937 = vunpack.c.h.b16 %v2601
  %v2938 = vunpack.c.l.b16 %v2602
  %v2939 = vunpack.c.h.b16 %v2602
  %v2940 = vunpack.c.l.b16 %v2603
  %v2941 = vunpack.c.h.b16 %v2603
  %v2942 = vunpack.c.l.b16 %v2604
  %v2943 = vunpack.c.h.b16 %v2604
  %v2944 = vunpack.c.l.b16 %v2605
  %v2945 = vunpack.c.h.b16 %v2605
  %v2946 = vunpack.c.l.b16 %v2606
  %v2947 = vunpack.c.h.b16 %v2606
  %v2948 = vunpack.c.l.b16 %v2607
  %v2949 = vunpack.c.h.b16 %v2607
  %v2950 = vunpack.c.l.b16 %v2608
  %v2951 = vunpack.c.h.b16 %v2608
  %v2952 = vunpack.c.l.b16 %v2609
  %v2953 = vunpack.c.h.b16 %v2609
  %v2954 = vunpack.c.l.b16 %v2610
  %v2955 = vunpack.c.h.b16 %v2610
  %v2956 = vunpack.c.l.b16 %v2611
  %v2957 = vunpack.c.h.b16 %v2611
  %v2958 = vunpack.c.l.b16 %v2612
  %v2959 = vunpack.c.h.b16 %v2612
  %v2960 = vunpack.c.l.b16 %v2613
  %v2961 = vunpack.c.h.b16 %v2613
  %v2962 = vunpack.c.l.b16 %v2614
  %v2963 = vunpack.c.h.b16 %v2614
  %v2964 = vunpack.c.l.b16 %v2615
  %v2965 = vunpack.c.h.b16 %v2615
  %v2966 = vunpack.c.l.b16 %v2616
  %v2967 = vunpack.c.h.b16 %v2616
  %v2968 = vunpack.c.l.b16 %v2617
  %v2969 = vunpack.c.h.b16 %v2617
  %v2970 = vunpack.c.l.b16 %v2618
  %v2971 = vunpack.c.h.b16 %v2618
  %v2972 = vunpack.c.l.b16 %v2619
  %v2973 = vunpack.c.h.b16 %v2619
  %v2974 = vunpack.c.l.b16 %v2620
  %v2975 = vunpack.c.h.b16 %v2620
  %v2976 = vunpack.c.l.b16 %v2621
  %v2977 = vunpack.c.h.b16 %v2621
  %v2978 = vunpack.c.l.b16 %v2622
  %v2979 = vunpack.c.h.b16 %v2622
  %v2980 = vunpack.c.l.b16 %v2623
  %v2981 = vunpack.c.h.b16 %v2623
  %v2982 = vunpack.c.l.b16 %v2624
  %v2983 = vunpack.c.h.b16 %v2624
  %v2984 = vunpack.c.l.b16 %v2625
  %v2985 = vunpack.c.h.b16 %v2625
  %v2986 = vunpack.c.l.b16 %v2626
  %v2987 = vunpack.c.h.b16 %v2626
  %v2988 = vunpack.c.l.b16 %v2627
  %v2989 = vunpack.c.h.b16 %v2627
  %v2990 = vunpack.c.l.b16 %v2628
  %v2991 = vunpack.c.h.b16 %v2628
  %v2992 = vunpack.c.l.b16 %v2629
  %v2993 = vunpack.c.h.b16 %v2629
  %v2994 = vunpack.c.l.b16 %v2630
  %v2995 = vunpack.c.h.b16 %v2630
  %v2996 = vunpack.c.l.b16 %v2631
  %v2997 = vunpack.c.h.b16 %v2631
  %v2998 = vunpack.c.l.b16 %v2632
  %v2999 = vunpack.c.h.b16 %v2632
  %v3000 = vunpack.c.l.b16 %v2633
  %v3001 = vunpack.c.h.b16 %v2633
  %v3002 = vunpack.c.l.b16 %v2634
  %v3003 = vunpack.c.h.b16 %v2634
  %v3004 = vunpack.c.l.b16 %v2635
  %v3005 = vunpack.c.h.b16 %v2635
  %v3006 = vunpack.c.l.b16 %v2636
  %v3007 = vunpack.c.h.b16 %v2636
  %v3008 = vunpack.c.l.b16 %v2637
  %v3009 = vunpack.c.h.b16 %v2637
  %v3010 = vunpack.c.l.b16 %v2638
  %v3011 = vunpack.c.h.b16 %v2638
  %v3012 = vunpack.c.l.b16 %v2639
  %v3013 = vunpack.c.h.b16 %v2639
  %v3014 = vunpack.c.l.b16 %v2640
  %v3015 = vunpack.c.h.b16 %v2640
  %v3016 = vunpack.c.l.b16 %v2641
  %v3017 = vunpack.c.h.b16 %v2641
  %v3018 = vunpack.c.l.b16 %v2642
  %v3019 = vunpack.c.h.b16 %v2642
  %v3020 = vunpack.c.l.b16 %v2643
  %v3021 = vunpack.c.h.b16 %v2643
  %v3022 = vunpack.c.l.b16 %v2644
  %v3023 = vunpack.c.h.b16 %v2644
  %v3024 = vunpack.c.l.b16 %v2645
  %v3025 = vunpack.c.h.b16 %v2645
  %v3026 = vunpack.c.l.b16 %v2646
  %v3027 = vunpack.c.h.b16 %v2646
  %v3028 = vunpack.c.l.b16 %v2647
  %v3029 = vunpack.c.h.b16 %v2647
  %v3030 = vunpack.c.l.b16 %v2648
  %v3031 = vunpack.c.h.b16 %v2648
  %v3032 = vunpack.c.l.b16 %v2649
  %v3033 = vunpack.c.h.b16 %v2649
  %v3034 = vpack.c.b16 %v2786, %v2778
  %v3035 = vpack.c.b16 %v2787, %v2779
  %v3036 = vpack.c.b16 %v2788, %v2780
  %v3037 = vpack.c.b16 %v2789, %v2781
  %v3038 = vpack.c.b16 %v2790, %v2782
  %v3039 = vpack.c.b16 %v2791, %v2783
  %v3040 = vpack.c.b16 %v2792, %v2784
  %v3041 = vpack.c.b16 %v2793, %v2785
  %v3042 = vpack.c.b16 %v2802, %v2794
  %v3043 = vpack.c.b16 %v2803, %v2795
  %v3044 = vpack.c.b16 %v2804, %v2796
  %v3045 = vpack.c.b16 %v2805, %v2797
  %v3046 = vpack.c.b16 %v2806, %v2798
  %v3047 = vpack.c.b16 %v2807, %v2799
  %v3048 = vpack.c.b16 %v2808, %v2800
  %v3049 = vpack.c.b16 %v2809, %v2801
  %v3050 = vpack.c.b16 %v2818, %v2810
  %v3051 = vpack.c.b16 %v2819, %v2811
  %v3052 = vpack.c.b16 %v2820, %v2812
  %v3053 = vpack.c.b16 %v2821, %v2813
  %v3054 = vpack.c.b16 %v2822, %v2814
  %v3055 = vpack.c.b16 %v2823, %v2815
  %v3056 = vpack.c.b16 %v2824, %v2816
  %v3057 = vpack.c.b16 %v2825, %v2817
  %v3058 = vpack.c.b16 %v2834, %v2826
  %v3059 = vpack.c.b16 %v2835, %v2827
  %v3060 = vpack.c.b16 %v2836, %v2828
  %v3061 = vpack.c.b16 %v2837, %v2829
  %v3062 = vpack.c.b16 %v2838, %v2830
  %v3063 = vpack.c.b16 %v2839, %v2831
  %v3064 = vpack.c.b16 %v2840, %v2832
  %v3065 = vpack.c.b16 %v2841, %v2833
  %v3066 = vpack.c.b16 %v2850, %v2842
  %v3067 = vpack.c.b16 %v2851, %v2843
  %v3068 = vpack.c.b16 %v2852, %v2844
  %v3069 = vpack.c.b16 %v2853, %v2845
  %v3070 = vpack.c.b16 %v2854, %v2846
  %v3071 = vpack.c.b16 %v2855, %v2847
  %v3072 = vpack.c.b16 %v2856, %v2848
  %v3073 = vpack.c.b16 %v2857, %v2849
  %v3074 = vpack.c.b16 %v2866, %v2858
  %v3075 = vpack.c.b16 %v2867, %v2859
  %v3076 = vpack.c.b16 %v2868, %v2860
  %v3077 = vpack.c.b16 %v2869, %v2861
  %v3078 = vpack.c.b16 %v2870, %v2862
  %v3079 = vpack.c.b16 %v2871, %v2863
  %v3080 = vpack.c.b16 %v2872, %v2864
  %v3081 = vpack.c.b16 %v2873, %v2865
  %v3082 = vpack.c.b16 %v2882, %v2874
  %v3083 = vpack.c.b16 %v2883, %v2875
  %v3084 = vpack.c.b16 %v2884, %v2876
  %v3085 = vpack.c.b16 %v2885, %v2877
  %v3086 = vpack.c.b16 %v2886, %v2878
  %v3087 = vpack.c.b16 %v2887, %v2879
  %v3088 = vpack.c.b16 %v2888, %v2880
  %v3089 = vpack.c.b16 %v2889, %v2881
  %v3090 = vpack.c.b16 %v2898, %v2890
  %v3091 = vpack.c.b16 %v2899, %v2891
  %v3092 = vpack.c.b16 %v2900, %v2892
  %v3093 = vpack.c.b16 %v2901, %v2893
  %v3094 = vpack.c.b16 %v2902, %v2894
  %v3095 = vpack.c.b16 %v2903, %v2895
  %v3096 = vpack.c.b16 %v2904, %v2896
  %v3097 = vpack.c.b16 %v2905, %v2897
  %v3098 = vpack.c.b16 %v2914, %v2906
  %v3099 = vpack.c.b16 %v2915, %v2907
  %v3100 = vpack.c.b16 %v2916, %v2908
  %v3101 = vpack.c.b16 %v2917, %v2909
  %v3102 = vpack.c.b16 %v2918, %v2910
  %v3103 = vpack.c.b16 %v2919, %v2911
  %v3104 = vpack.c.b16 %v2920, %v2912
  %v3105 = vpack.c.b16 %v2921, %v2913
  %v3106 = vpack.c.b16 %v2930, %v2922
  %v3107 = vpack.c.b16 %v2931, %v2923
  %v3108 = vpack.c.b16 %v2932, %v2924
  %v3109 = vpack.c.b16 %v2933, %v2925
  %v3110 = vpack.c.b16 %v2934, %v2926
  %v3111 = vpack.c.b16 %v2935, %v2927
  %v3112 = vpack.c.b16 %v2936, %v2928
  %v3113 = vpack.c.b16 %v2937, %v2929
  %v3114 = vpack.c.b16 %v2946, %v2938
  %v3115 = vpack.c.b16 %v2947, %v2939
  %v3116 = vpack.c.b16 %v2948, %v2940
  %v3117 = vpack.c.b16 %v2949, %v2941
  %v3118 = vpack.c.b16 %v2950, %v2942
  %v3119 = vpack.c.b16 %v2951, %v2943
  %v3120 = vpack.c.b16 %v2952, %v2944
  %v3121 = vpack.c.b16 %v2953, %v2945
  %v3122 = vpack.c.b16 %v2962, %v2954
  %v3123 = vpack.c.b16 %v2963, %v2955
  %v3124 = vpack.c.b16 %v2964, %v2956
  %v3125 = vpack.c.b16 %v2965, %v2957
  %v3126 = vpack.c.b16 %v2966, %v2958
  %v3127 = vpack.c.b16 %v2967, %v2959
  %v3128 = vpack.c.b16 %v2968, %v2960
  %v3129 = vpack.c.b16 %v2969, %v2961
  %v3130 = vpack.c.b16 %v2978, %v2970
  %v3131 = vpack.c.b16 %v2979, %v2971
  %v3132 = vpack.c.b16 %v2980, %v2972
  %v3133 = vpack.c.b16 %v2981, %v2973
  %v3134 = vpack.c.b16 %v2982, %v2974
  %v3135 = vpack.c.b16 %v2983, %v2975
  %v3136 = vpack.c.b16 %v2984, %v2976
  %v3137 = vpack.c.b16 %v2985, %v2977
  %v3138 = vpack.c.b16 %v2994, %v2986
  %v3139 = vpack.c.b16 %v2995, %v2987
  %v3140 = vpack.c.b16 %v2996, %v2988
  %v3141 = vpack.c.b16 %v2997, %v2989
  %v3142 = vpack.c.b16 %v2998, %v2990
  %v3143 = vpack.c.b16 %v2999, %v2991
  %v3144 = vpack.c.b16 %v3000, %v2992
  %v3145 = vpack.c.b16 %v3001, %v2993
  %v3146 = vpack.c.b16 %v3010, %v3002
  %v3147 = vpack.c.b16 %v3011, %v3003
  %v3148 = vpack.c.b16 %v3012, %v3004
  %v3149 = vpack.c.b16 %v3013, %v3005
  %v3150 = vpack.c.b16 %v3014, %v3006
  %v3151 = vpack.c.b16 %v3015, %v3007
  %v3152 = vpack.c.b16 %v3016, %v3008
  %v3153 = vpack.c.b16 %v3017, %v3009
  %v3154 = vpack.c.b16 %v3026, %v3018
  %v3155 = vpack.c.b16 %v3027, %v3019
  %v3156 = vpack.c.b16 %v3028, %v3020
  %v3157 = vpack.c.b16 %v3029, %v3021
  %v3158 = vpack.c.b16 %v3030, %v3022
  %v3159 = vpack.c.b16 %v3031, %v3023
  %v3160 = vpack.c.b16 %v3032, %v3024
  %v3161 = vpack.c.b16 %v3033, %v3025
  %3290 = vmatprep.subr.bf16.mxu0 %v3035
  %3291 = vmatpush1.bf16.msra.mxu0 %v3034
  %3292 = vmatprep.subr.bf16.mxu0 %v3043
  %3293 = vmatpush1.bf16.msra.mxu0 %v3042
  %3294 = vmatprep.subr.bf16.mxu0 %v3051
  %3295 = vmatpush1.bf16.msra.mxu0 %v3050
  %3296 = vmatprep.subr.bf16.mxu0 %v3059
  %3297 = vmatpush1.bf16.msra.mxu0 %v3058
  %3298 = vmatprep.subr.bf16.mxu0 %v3067
  %3299 = vmatpush1.bf16.msra.mxu0 %v3066
  %3300 = vmatprep.subr.bf16.mxu0 %v3075
  %3301 = vmatpush1.bf16.msra.mxu0 %v3074
  %3302 = vmatprep.subr.bf16.mxu0 %v3083
  %3303 = vmatpush1.bf16.msra.mxu0 %v3082
  %3304 = vmatprep.subr.bf16.mxu0 %v3091
  %3305 = vmatpush1.bf16.msra.mxu0 %v3090
  %3306 = vmatprep.subr.bf16.mxu0 %v3099
  %3307 = vmatpush1.bf16.msra.mxu0 %v3098
  %3308 = vmatprep.subr.bf16.mxu0 %v3107
  %3309 = vmatpush1.bf16.msra.mxu0 %v3106
  %3310 = vmatprep.subr.bf16.mxu0 %v3115
  %3311 = vmatpush1.bf16.msra.mxu0 %v3114
  %3312 = vmatprep.subr.bf16.mxu0 %v3123
  %3313 = vmatpush1.bf16.msra.mxu0 %v3122
  %3314 = vmatprep.subr.bf16.mxu0 %v3131
  %3315 = vmatpush1.bf16.msra.mxu0 %v3130
  %3316 = vmatprep.subr.bf16.mxu0 %v3139
  %3317 = vmatpush1.bf16.msra.mxu0 %v3138
  %3318 = vmatprep.subr.bf16.mxu0 %v3147
  %3319 = vmatpush1.bf16.msra.mxu0 %v3146
  %3320 = vmatprep.subr.bf16.mxu0 %v3155
  %3321 = vmatpush1.bf16.msra.mxu0 %v3154
  %3322 = vmatprep.mubr.bf16.mxu0 %v2521
  %3323 = vmatmul.mubr.bf16.gmra.mrb[0].mxu0 %v2520
  %v3324 = vpop.f32.mrb[0].mxu0
  %v3325 = vadd.f32 %v2512, %v3324
  %v3326 = vpop.f32.mrb[0].mxu0
  %v3327 = vadd.f32 %v2513, %v3326
  %v3328 = vpop.f32.mrb[0].mxu0
  %v3329 = vpop.f32.mrb[0].mxu0
  %3330 = vdwg.mxu0
  %3331 = vmatprep.subr.bf16.mxu0 %v3037
  %3332 = vmatpush1.bf16.msra.mxu0 %v3036
  %3333 = vmatprep.subr.bf16.mxu0 %v3045
  %3334 = vmatpush1.bf16.msra.mxu0 %v3044
  %3335 = vmatprep.subr.bf16.mxu0 %v3053
  %3336 = vmatpush1.bf16.msra.mxu0 %v3052
  %3337 = vmatprep.subr.bf16.mxu0 %v3061
  %3338 = vmatpush1.bf16.msra.mxu0 %v3060
  %3339 = vmatprep.subr.bf16.mxu0 %v3069
  %3340 = vmatpush1.bf16.msra.mxu0 %v3068
  %3341 = vmatprep.subr.bf16.mxu0 %v3077
  %3342 = vmatpush1.bf16.msra.mxu0 %v3076
  %3343 = vmatprep.subr.bf16.mxu0 %v3085
  %3344 = vmatpush1.bf16.msra.mxu0 %v3084
  %3345 = vmatprep.subr.bf16.mxu0 %v3093
  %3346 = vmatpush1.bf16.msra.mxu0 %v3092
  %3347 = vmatprep.subr.bf16.mxu0 %v3101
  %3348 = vmatpush1.bf16.msra.mxu0 %v3100
  %3349 = vmatprep.subr.bf16.mxu0 %v3109
  %3350 = vmatpush1.bf16.msra.mxu0 %v3108
  %3351 = vmatprep.subr.bf16.mxu0 %v3117
  %3352 = vmatpush1.bf16.msra.mxu0 %v3116
  %3353 = vmatprep.subr.bf16.mxu0 %v3125
  %3354 = vmatpush1.bf16.msra.mxu0 %v3124
  %3355 = vmatprep.subr.bf16.mxu0 %v3133
  %3356 = vmatpush1.bf16.msra.mxu0 %v3132
  %3357 = vmatprep.subr.bf16.mxu0 %v3141
  %3358 = vmatpush1.bf16.msra.mxu0 %v3140
  %3359 = vmatprep.subr.bf16.mxu0 %v3149
  %3360 = vmatpush1.bf16.msra.mxu0 %v3148
  %3361 = vmatprep.subr.bf16.mxu0 %v3157
  %3362 = vmatpush1.bf16.msra.mxu0 %v3156
  %3363 = vmatprep.mubr.bf16.mxu0 %v2521
  %3364 = vmatmul.mubr.bf16.gmra.mrb[0].mxu0 %v2520
  %v3365 = vpop.f32.mrb[0].mxu0
  %v3366 = vadd.f32 %v2514, %v3365
  %v3367 = vpop.f32.mrb[0].mxu0
  %v3368 = vadd.f32 %v2515, %v3367
  %v3369 = vpop.f32.mrb[0].mxu0
  %v3370 = vpop.f32.mrb[0].mxu0
  %3371 = vdwg.mxu0
  %3372 = vmatprep.subr.bf16.mxu0 %v3039
  %3373 = vmatpush1.bf16.msra.mxu0 %v3038
  %3374 = vmatprep.subr.bf16.mxu0 %v3047
  %3375 = vmatpush1.bf16.msra.mxu0 %v3046
  %3376 = vmatprep.subr.bf16.mxu0 %v3055
  %3377 = vmatpush1.bf16.msra.mxu0 %v3054
  %3378 = vmatprep.subr.bf16.mxu0 %v3063
  %3379 = vmatpush1.bf16.msra.mxu0 %v3062
  %3380 = vmatprep.subr.bf16.mxu0 %v3071
  %3381 = vmatpush1.bf16.msra.mxu0 %v3070
  %3382 = vmatprep.subr.bf16.mxu0 %v3079
  %3383 = vmatpush1.bf16.msra.mxu0 %v3078
  %3384 = vmatprep.subr.bf16.mxu0 %v3087
  %3385 = vmatpush1.bf16.msra.mxu0 %v3086
  %3386 = vmatprep.subr.bf16.mxu0 %v3095
  %3387 = vmatpush1.bf16.msra.mxu0 %v3094
  %3388 = vmatprep.subr.bf16.mxu0 %v3103
  %3389 = vmatpush1.bf16.msra.mxu0 %v3102
  %3390 = vmatprep.subr.bf16.mxu0 %v3111
  %3391 = vmatpush1.bf16.msra.mxu0 %v3110
  %3392 = vmatprep.subr.bf16.mxu0 %v3119
  %3393 = vmatpush1.bf16.msra.mxu0 %v3118
  %3394 = vmatprep.subr.bf16.mxu0 %v3127
  %3395 = vmatpush1.bf16.msra.mxu0 %v3126
  %3396 = vmatprep.subr.bf16.mxu0 %v3135
  %3397 = vmatpush1.bf16.msra.mxu0 %v3134
  %3398 = vmatprep.subr.bf16.mxu0 %v3143
  %3399 = vmatpush1.bf16.msra.mxu0 %v3142
  %3400 = vmatprep.subr.bf16.mxu0 %v3151
  %3401 = vmatpush1.bf16.msra.mxu0 %v3150
  %3402 = vmatprep.subr.bf16.mxu0 %v3159
  %3403 = vmatpush1.bf16.msra.mxu0 %v3158
  %3404 = vmatprep.mubr.bf16.mxu0 %v2521
  %3405 = vmatmul.mubr.bf16.gmra.mrb[0].mxu0 %v2520
  %v3406 = vpop.f32.mrb[0].mxu0
  %v3407 = vadd.f32 %v2516, %v3406
  %v3408 = vpop.f32.mrb[0].mxu0
  %v3409 = vadd.f32 %v2517, %v3408
  %v3410 = vpop.f32.mrb[0].mxu0
  %v3411 = vpop.f32.mrb[0].mxu0
  %3412 = vdwg.mxu0
  %3413 = vmatprep.subr.bf16.mxu0 %v3041
  %3414 = vmatpush1.bf16.msra.mxu0 %v3040
  %3415 = vmatprep.subr.bf16.mxu0 %v3049
  %3416 = vmatpush1.bf16.msra.mxu0 %v3048
  %3417 = vmatprep.subr.bf16.mxu0 %v3057
  %3418 = vmatpush1.bf16.msra.mxu0 %v3056
  %3419 = vmatprep.subr.bf16.mxu0 %v3065
  %3420 = vmatpush1.bf16.msra.mxu0 %v3064
  %3421 = vmatprep.subr.bf16.mxu0 %v3073
  %3422 = vmatpush1.bf16.msra.mxu0 %v3072
  %3423 = vmatprep.subr.bf16.mxu0 %v3081
  %3424 = vmatpush1.bf16.msra.mxu0 %v3080
  %3425 = vmatprep.subr.bf16.mxu0 %v3089
  %3426 = vmatpush1.bf16.msra.mxu0 %v3088
  %3427 = vmatprep.subr.bf16.mxu0 %v3097
  %3428 = vmatpush1.bf16.msra.mxu0 %v3096
  %3429 = vmatprep.subr.bf16.mxu0 %v3105
  %3430 = vmatpush1.bf16.msra.mxu0 %v3104
  %3431 = vmatprep.subr.bf16.mxu0 %v3113
  %3432 = vmatpush1.bf16.msra.mxu0 %v3112
  %3433 = vmatprep.subr.bf16.mxu0 %v3121
  %3434 = vmatpush1.bf16.msra.mxu0 %v3120
  %3435 = vmatprep.subr.bf16.mxu0 %v3129
  %3436 = vmatpush1.bf16.msra.mxu0 %v3128
  %3437 = vmatprep.subr.bf16.mxu0 %v3137
  %3438 = vmatpush1.bf16.msra.mxu0 %v3136
  %3439 = vmatprep.subr.bf16.mxu0 %v3145
  %3440 = vmatpush1.bf16.msra.mxu0 %v3144
  %3441 = vmatprep.subr.bf16.mxu0 %v3153
  %3442 = vmatpush1.bf16.msra.mxu0 %v3152
  %3443 = vmatprep.subr.bf16.mxu0 %v3161
  %3444 = vmatpush1.bf16.msra.mxu0 %v3160
  %3445 = vmatprep.mubr.bf16.mxu0 %v2521
  %3446 = vmatmul.mubr.bf16.gmra.mrb[0].mxu0 %v2520
  %v3447 = vpop.f32.mrb[0].mxu0
  %v3448 = vadd.f32 %v2518, %v3447
  %v3449 = vpop.f32.mrb[0].mxu0
  %v3450 = vadd.f32 %v2519, %v3449
  %v3451 = vpop.f32.mrb[0].mxu0
  %v3452 = vpop.f32.mrb[0].mxu0
  %3453 = vdwg.mxu0
  %v3454 = vxor.u32 %v3325, 2147483648
  %v3455 = vxor.u32 %v3327, 2147483648
  %v3456 = vmul.f32 %v3454, 1.442695
  %v3457 = vpow.pop %v3456
  %v3458 = vmul.f32 %v3455, 1.442695
  %v3459 = vpow.pop %v3458
  %v3460 = vadd.f32 %v3457, 1.0
  %v3461 = vadd.f32 %v3459, 1.0
  %v3462 = vrcp.pop %v3460
  %v3463 = vmul.f32 1.0, %v3462
  %v3464 = vrcp.pop %v3461
  %v3465 = vmul.f32 1.0, %v3464
  %v3466 = vxor.u32 %v3366, 2147483648
  %v3467 = vxor.u32 %v3368, 2147483648
  %v3468 = vmul.f32 %v3466, 1.442695
  %v3469 = vpow.pop %v3468
  %v3470 = vmul.f32 %v3467, 1.442695
  %v3471 = vpow.pop %v3470
  %v3472 = vadd.f32 %v3469, 1.0
  %v3473 = vadd.f32 %v3471, 1.0
  %v3474 = vrcp.pop %v3472
  %v3475 = vmul.f32 1.0, %v3474
  %v3476 = vrcp.pop %v3473
  %v3477 = vmul.f32 1.0, %v3476
  %v3478 = vtanh.pop %v3407
  %v3479 = vtanh.pop %v3409
  %v3480 = vxor.u32 %v3448, 2147483648
  %v3481 = vxor.u32 %v3450, 2147483648
  %v3482 = vmul.f32 %v3480, 1.442695
  %v3483 = vpow.pop %v3482
  %v3484 = vmul.f32 %v3481, 1.442695
  %v3485 = vpow.pop %v3484
  %v3486 = vadd.f32 %v3483, 1.0
  %v3487 = vadd.f32 %v3485, 1.0
  %v3488 = vrcp.pop %v3486
  %v3489 = vmul.f32 1.0, %v3488
  %v3490 = vrcp.pop %v3487
  %v3491 = vmul.f32 1.0, %v3490
  %v3492 = vmul.f32 %v3463, %v2501
  %v3493 = vmul.f32 %v3465, %v2502
  %v3494 = vmul.f32 %v3475, %v3478
  %v3495 = vmul.f32 %v3477, %v3479
  %v3496 = vadd.f32 %v3492, %v3494
  %v3497 = vadd.f32 %v3493, %v3495
  %v3498 = vtanh.pop %v3496
  %v3499 = vtanh.pop %v3497
  %v3500 = vmul.f32 %v3489, %v3498
  %v3501 = vmul.f32 %v3491, %v3499
  %s3502 = scalar_lea.vmem %s4, 16
  %3503 = vst [vmem:[%s3502] sm:$0xff] %v3501
  %s3504 = smul.u32 3, 8
  %s3505 = smul.addr %s3504, 8
  %s3506 = scalar_lea.vmem [#allocation2], %s3505
  %v3507 = vld [vmem:[%s3506] sm:$0xff]
  %v3508 = vld [vmem:[%s3506 + $0x8] sm:$0xff]
  %v3509 = vld [vmem:[%s3506 + $0x10] sm:$0xff]
  %v3510 = vld [vmem:[%s3506 + $0x18] sm:$0xff]
  %v3511 = vld [vmem:[%s3506 + $0x20] sm:$0xff]
  %v3512 = vld [vmem:[%s3506 + $0x28] sm:$0xff]
  %v3513 = vld [vmem:[%s3506 + $0x30] sm:$0xff]
  %v3514 = vld [vmem:[%s3506 + $0x38] sm:$0xff]
  %v3515 = vpack.c.bf16 %v3500, %v3500
  %v3516 = vpack.c.bf16 %v3501, %v3501
  %v3517 = vld [vmem:[%s2] sm:$0xff]
  %v3518 = vld [vmem:[%s2 + $0x8] sm:$0xff]
  %v3519 = vld [vmem:[%s2 + $0x10] sm:$0xff]
  %v3520 = vld [vmem:[%s2 + $0x18] sm:$0xff]
  %v3521 = vld [vmem:[%s2 + $0x20] sm:$0xff]
  %v3522 = vld [vmem:[%s2 + $0x28] sm:$0xff]
  %v3523 = vld [vmem:[%s2 + $0x30] sm:$0xff]
  %v3524 = vld [vmem:[%s2 + $0x38] sm:$0xff]
  %v3525 = vld [vmem:[%s2 + $0x40] sm:$0xff]
  %v3526 = vld [vmem:[%s2 + $0x48] sm:$0xff]
  %v3527 = vld [vmem:[%s2 + $0x50] sm:$0xff]
  %v3528 = vld [vmem:[%s2 + $0x58] sm:$0xff]
  %v3529 = vld [vmem:[%s2 + $0x60] sm:$0xff]
  %v3530 = vld [vmem:[%s2 + $0x68] sm:$0xff]
  %v3531 = vld [vmem:[%s2 + $0x70] sm:$0xff]
  %v3532 = vld [vmem:[%s2 + $0x78] sm:$0xff]
  %v3533 = vld [vmem:[%s2 + $0x80] sm:$0xff]
  %v3534 = vld [vmem:[%s2 + $0x88] sm:$0xff]
  %v3535 = vld [vmem:[%s2 + $0x90] sm:$0xff]
  %v3536 = vld [vmem:[%s2 + $0x98] sm:$0xff]
  %v3537 = vld [vmem:[%s2 + $0xa0] sm:$0xff]
  %v3538 = vld [vmem:[%s2 + $0xa8] sm:$0xff]
  %v3539 = vld [vmem:[%s2 + $0xb0] sm:$0xff]
  %v3540 = vld [vmem:[%s2 + $0xb8] sm:$0xff]
  %v3541 = vld [vmem:[%s2 + $0xc0] sm:$0xff]
  %v3542 = vld [vmem:[%s2 + $0xc8] sm:$0xff]
  %v3543 = vld [vmem:[%s2 + $0xd0] sm:$0xff]
  %v3544 = vld [vmem:[%s2 + $0xd8] sm:$0xff]
  %v3545 = vld [vmem:[%s2 + $0xe0] sm:$0xff]
  %v3546 = vld [vmem:[%s2 + $0xe8] sm:$0xff]
  %v3547 = vld [vmem:[%s2 + $0xf0] sm:$0xff]
  %v3548 = vld [vmem:[%s2 + $0xf8] sm:$0xff]
  %v3549 = vld [vmem:[%s2 + $0x100] sm:$0xff]
  %v3550 = vld [vmem:[%s2 + $0x108] sm:$0xff]
  %v3551 = vld [vmem:[%s2 + $0x110] sm:$0xff]
  %v3552 = vld [vmem:[%s2 + $0x118] sm:$0xff]
  %v3553 = vld [vmem:[%s2 + $0x120] sm:$0xff]
  %v3554 = vld [vmem:[%s2 + $0x128] sm:$0xff]
  %v3555 = vld [vmem:[%s2 + $0x130] sm:$0xff]
  %v3556 = vld [vmem:[%s2 + $0x138] sm:$0xff]
  %v3557 = vld [vmem:[%s2 + $0x140] sm:$0xff]
  %v3558 = vld [vmem:[%s2 + $0x148] sm:$0xff]
  %v3559 = vld [vmem:[%s2 + $0x150] sm:$0xff]
  %v3560 = vld [vmem:[%s2 + $0x158] sm:$0xff]
  %v3561 = vld [vmem:[%s2 + $0x160] sm:$0xff]
  %v3562 = vld [vmem:[%s2 + $0x168] sm:$0xff]
  %v3563 = vld [vmem:[%s2 + $0x170] sm:$0xff]
  %v3564 = vld [vmem:[%s2 + $0x178] sm:$0xff]
  %v3565 = vld [vmem:[%s2 + $0x180] sm:$0xff]
  %v3566 = vld [vmem:[%s2 + $0x188] sm:$0xff]
  %v3567 = vld [vmem:[%s2 + $0x190] sm:$0xff]
  %v3568 = vld [vmem:[%s2 + $0x198] sm:$0xff]
  %v3569 = vld [vmem:[%s2 + $0x1a0] sm:$0xff]
  %v3570 = vld [vmem:[%s2 + $0x1a8] sm:$0xff]
  %v3571 = vld [vmem:[%s2 + $0x1b0] sm:$0xff]
  %v3572 = vld [vmem:[%s2 + $0x1b8] sm:$0xff]
  %v3573 = vld [vmem:[%s2 + $0x1c0] sm:$0xff]
  %v3574 = vld [vmem:[%s2 + $0x1c8] sm:$0xff]
  %v3575 = vld [vmem:[%s2 + $0x1d0] sm:$0xff]
  %v3576 = vld [vmem:[%s2 + $0x1d8] sm:$0xff]
  %v3577 = vld [vmem:[%s2 + $0x1e0] sm:$0xff]
  %v3578 = vld [vmem:[%s2 + $0x1e8] sm:$0xff]
  %v3579 = vld [vmem:[%s2 + $0x1f0] sm:$0xff]
  %v3580 = vld [vmem:[%s2 + $0x1f8] sm:$0xff]
  %v3581 = vld [vmem:[%s2 + $0x200] sm:$0xff]
  %v3582 = vld [vmem:[%s2 + $0x208] sm:$0xff]
  %v3583 = vld [vmem:[%s2 + $0x210] sm:$0xff]
  %v3584 = vld [vmem:[%s2 + $0x218] sm:$0xff]
  %v3585 = vld [vmem:[%s2 + $0x220] sm:$0xff]
  %v3586 = vld [vmem:[%s2 + $0x228] sm:$0xff]
  %v3587 = vld [vmem:[%s2 + $0x230] sm:$0xff]
  %v3588 = vld [vmem:[%s2 + $0x238] sm:$0xff]
  %v3589 = vld [vmem:[%s2 + $0x240] sm:$0xff]
  %v3590 = vld [vmem:[%s2 + $0x248] sm:$0xff]
  %v3591 = vld [vmem:[%s2 + $0x250] sm:$0xff]
  %v3592 = vld [vmem:[%s2 + $0x258] sm:$0xff]
  %v3593 = vld [vmem:[%s2 + $0x260] sm:$0xff]
  %v3594 = vld [vmem:[%s2 + $0x268] sm:$0xff]
  %v3595 = vld [vmem:[%s2 + $0x270] sm:$0xff]
  %v3596 = vld [vmem:[%s2 + $0x278] sm:$0xff]
  %v3597 = vld [vmem:[%s2 + $0x280] sm:$0xff]
  %v3598 = vld [vmem:[%s2 + $0x288] sm:$0xff]
  %v3599 = vld [vmem:[%s2 + $0x290] sm:$0xff]
  %v3600 = vld [vmem:[%s2 + $0x298] sm:$0xff]
  %v3601 = vld [vmem:[%s2 + $0x2a0] sm:$0xff]
  %v3602 = vld [vmem:[%s2 + $0x2a8] sm:$0xff]
  %v3603 = vld [vmem:[%s2 + $0x2b0] sm:$0xff]
  %v3604 = vld [vmem:[%s2 + $0x2b8] sm:$0xff]
  %v3605 = vld [vmem:[%s2 + $0x2c0] sm:$0xff]
  %v3606 = vld [vmem:[%s2 + $0x2c8] sm:$0xff]
  %v3607 = vld [vmem:[%s2 + $0x2d0] sm:$0xff]
  %v3608 = vld [vmem:[%s2 + $0x2d8] sm:$0xff]
  %v3609 = vld [vmem:[%s2 + $0x2e0] sm:$0xff]
  %v3610 = vld [vmem:[%s2 + $0x2e8] sm:$0xff]
  %v3611 = vld [vmem:[%s2 + $0x2f0] sm:$0xff]
  %v3612 = vld [vmem:[%s2 + $0x2f8] sm:$0xff]
  %v3613 = vld [vmem:[%s2 + $0x300] sm:$0xff]
  %v3614 = vld [vmem:[%s2 + $0x308] sm:$0xff]
  %v3615 = vld [vmem:[%s2 + $0x310] sm:$0xff]
  %v3616 = vld [vmem:[%s2 + $0x318] sm:$0xff]
  %v3617 = vld [vmem:[%s2 + $0x320] sm:$0xff]
  %v3618 = vld [vmem:[%s2 + $0x328] sm:$0xff]
  %v3619 = vld [vmem:[%s2 + $0x330] sm:$0xff]
  %v3620 = vld [vmem:[%s2 + $0x338] sm:$0xff]
  %v3621 = vld [vmem:[%s2 + $0x340] sm:$0xff]
  %v3622 = vld [vmem:[%s2 + $0x348] sm:$0xff]
  %v3623 = vld [vmem:[%s2 + $0x350] sm:$0xff]
  %v3624 = vld [vmem:[%s2 + $0x358] sm:$0xff]
  %v3625 = vld [vmem:[%s2 + $0x360] sm:$0xff]
  %v3626 = vld [vmem:[%s2 + $0x368] sm:$0xff]
  %v3627 = vld [vmem:[%s2 + $0x370] sm:$0xff]
  %v3628 = vld [vmem:[%s2 + $0x378] sm:$0xff]
  %v3629 = vld [vmem:[%s2 + $0x380] sm:$0xff]
  %v3630 = vld [vmem:[%s2 + $0x388] sm:$0xff]
  %v3631 = vld [vmem:[%s2 + $0x390] sm:$0xff]
  %v3632 = vld [vmem:[%s2 + $0x398] sm:$0xff]
  %v3633 = vld [vmem:[%s2 + $0x3a0] sm:$0xff]
  %v3634 = vld [vmem:[%s2 + $0x3a8] sm:$0xff]
  %v3635 = vld [vmem:[%s2 + $0x3b0] sm:$0xff]
  %v3636 = vld [vmem:[%s2 + $0x3b8] sm:$0xff]
  %v3637 = vld [vmem:[%s2 + $0x3c0] sm:$0xff]
  %v3638 = vld [vmem:[%s2 + $0x3c8] sm:$0xff]
  %v3639 = vld [vmem:[%s2 + $0x3d0] sm:$0xff]
  %v3640 = vld [vmem:[%s2 + $0x3d8] sm:$0xff]
  %v3641 = vld [vmem:[%s2 + $0x3e0] sm:$0xff]
  %v3642 = vld [vmem:[%s2 + $0x3e8] sm:$0xff]
  %v3643 = vld [vmem:[%s2 + $0x3f0] sm:$0xff]
  %v3644 = vld [vmem:[%s2 + $0x3f8] sm:$0xff]
  %v3773 = vunpack.c.l.b16 %v3517
  %v3774 = vunpack.c.h.b16 %v3517
  %v3775 = vunpack.c.l.b16 %v3518
  %v3776 = vunpack.c.h.b16 %v3518
  %v3777 = vunpack.c.l.b16 %v3519
  %v3778 = vunpack.c.h.b16 %v3519
  %v3779 = vunpack.c.l.b16 %v3520
  %v3780 = vunpack.c.h.b16 %v3520
  %v3781 = vunpack.c.l.b16 %v3521
  %v3782 = vunpack.c.h.b16 %v3521
  %v3783 = vunpack.c.l.b16 %v3522
  %v3784 = vunpack.c.h.b16 %v3522
  %v3785 = vunpack.c.l.b16 %v3523
  %v3786 = vunpack.c.h.b16 %v3523
  %v3787 = vunpack.c.l.b16 %v3524
  %v3788 = vunpack.c.h.b16 %v3524
  %v3789 = vunpack.c.l.b16 %v3525
  %v3790 = vunpack.c.h.b16 %v3525
  %v3791 = vunpack.c.l.b16 %v3526
  %v3792 = vunpack.c.h.b16 %v3526
  %v3793 = vunpack.c.l.b16 %v3527
  %v3794 = vunpack.c.h.b16 %v3527
  %v3795 = vunpack.c.l.b16 %v3528
  %v3796 = vunpack.c.h.b16 %v3528
  %v3797 = vunpack.c.l.b16 %v3529
  %v3798 = vunpack.c.h.b16 %v3529
  %v3799 = vunpack.c.l.b16 %v3530
  %v3800 = vunpack.c.h.b16 %v3530
  %v3801 = vunpack.c.l.b16 %v3531
  %v3802 = vunpack.c.h.b16 %v3531
  %v3803 = vunpack.c.l.b16 %v3532
  %v3804 = vunpack.c.h.b16 %v3532
  %v3805 = vunpack.c.l.b16 %v3533
  %v3806 = vunpack.c.h.b16 %v3533
  %v3807 = vunpack.c.l.b16 %v3534
  %v3808 = vunpack.c.h.b16 %v3534
  %v3809 = vunpack.c.l.b16 %v3535
  %v3810 = vunpack.c.h.b16 %v3535
  %v3811 = vunpack.c.l.b16 %v3536
  %v3812 = vunpack.c.h.b16 %v3536
  %v3813 = vunpack.c.l.b16 %v3537
  %v3814 = vunpack.c.h.b16 %v3537
  %v3815 = vunpack.c.l.b16 %v3538
  %v3816 = vunpack.c.h.b16 %v3538
  %v3817 = vunpack.c.l.b16 %v3539
  %v3818 = vunpack.c.h.b16 %v3539
  %v3819 = vunpack.c.l.b16 %v3540
  %v3820 = vunpack.c.h.b16 %v3540
  %v3821 = vunpack.c.l.b16 %v3541
  %v3822 = vunpack.c.h.b16 %v3541
  %v3823 = vunpack.c.l.b16 %v3542
  %v3824 = vunpack.c.h.b16 %v3542
  %v3825 = vunpack.c.l.b16 %v3543
  %v3826 = vunpack.c.h.b16 %v3543
  %v3827 = vunpack.c.l.b16 %v3544
  %v3828 = vunpack.c.h.b16 %v3544
  %v3829 = vunpack.c.l.b16 %v3545
  %v3830 = vunpack.c.h.b16 %v3545
  %v3831 = vunpack.c.l.b16 %v3546
  %v3832 = vunpack.c.h.b16 %v3546
  %v3833 = vunpack.c.l.b16 %v3547
  %v3834 = vunpack.c.h.b16 %v3547
  %v3835 = vunpack.c.l.b16 %v3548
  %v3836 = vunpack.c.h.b16 %v3548
  %v3837 = vunpack.c.l.b16 %v3549
  %v3838 = vunpack.c.h.b16 %v3549
  %v3839 = vunpack.c.l.b16 %v3550
  %v3840 = vunpack.c.h.b16 %v3550
  %v3841 = vunpack.c.l.b16 %v3551
  %v3842 = vunpack.c.h.b16 %v3551
  %v3843 = vunpack.c.l.b16 %v3552
  %v3844 = vunpack.c.h.b16 %v3552
  %v3845 = vunpack.c.l.b16 %v3553
  %v3846 = vunpack.c.h.b16 %v3553
  %v3847 = vunpack.c.l.b16 %v3554
  %v3848 = vunpack.c.h.b16 %v3554
  %v3849 = vunpack.c.l.b16 %v3555
  %v3850 = vunpack.c.h.b16 %v3555
  %v3851 = vunpack.c.l.b16 %v3556
  %v3852 = vunpack.c.h.b16 %v3556
  %v3853 = vunpack.c.l.b16 %v3557
  %v3854 = vunpack.c.h.b16 %v3557
  %v3855 = vunpack.c.l.b16 %v3558
  %v3856 = vunpack.c.h.b16 %v3558
  %v3857 = vunpack.c.l.b16 %v3559
  %v3858 = vunpack.c.h.b16 %v3559
  %v3859 = vunpack.c.l.b16 %v3560
  %v3860 = vunpack.c.h.b16 %v3560
  %v3861 = vunpack.c.l.b16 %v3561
  %v3862 = vunpack.c.h.b16 %v3561
  %v3863 = vunpack.c.l.b16 %v3562
  %v3864 = vunpack.c.h.b16 %v3562
  %v3865 = vunpack.c.l.b16 %v3563
  %v3866 = vunpack.c.h.b16 %v3563
  %v3867 = vunpack.c.l.b16 %v3564
  %v3868 = vunpack.c.h.b16 %v3564
  %v3869 = vunpack.c.l.b16 %v3565
  %v3870 = vunpack.c.h.b16 %v3565
  %v3871 = vunpack.c.l.b16 %v3566
  %v3872 = vunpack.c.h.b16 %v3566
  %v3873 = vunpack.c.l.b16 %v3567
  %v3874 = vunpack.c.h.b16 %v3567
  %v3875 = vunpack.c.l.b16 %v3568
  %v3876 = vunpack.c.h.b16 %v3568
  %v3877 = vunpack.c.l.b16 %v3569
  %v3878 = vunpack.c.h.b16 %v3569
  %v3879 = vunpack.c.l.b16 %v3570
  %v3880 = vunpack.c.h.b16 %v3570
  %v3881 = vunpack.c.l.b16 %v3571
  %v3882 = vunpack.c.h.b16 %v3571
  %v3883 = vunpack.c.l.b16 %v3572
  %v3884 = vunpack.c.h.b16 %v3572
  %v3885 = vunpack.c.l.b16 %v3573
  %v3886 = vunpack.c.h.b16 %v3573
  %v3887 = vunpack.c.l.b16 %v3574
  %v3888 = vunpack.c.h.b16 %v3574
  %v3889 = vunpack.c.l.b16 %v3575
  %v3890 = vunpack.c.h.b16 %v3575
  %v3891 = vunpack.c.l.b16 %v3576
  %v3892 = vunpack.c.h.b16 %v3576
  %v3893 = vunpack.c.l.b16 %v3577
  %v3894 = vunpack.c.h.b16 %v3577
  %v3895 = vunpack.c.l.b16 %v3578
  %v3896 = vunpack.c.h.b16 %v3578
  %v3897 = vunpack.c.l.b16 %v3579
  %v3898 = vunpack.c.h.b16 %v3579
  %v3899 = vunpack.c.l.b16 %v3580
  %v3900 = vunpack.c.h.b16 %v3580
  %v3901 = vunpack.c.l.b16 %v3581
  %v3902 = vunpack.c.h.b16 %v3581
  %v3903 = vunpack.c.l.b16 %v3582
  %v3904 = vunpack.c.h.b16 %v3582
  %v3905 = vunpack.c.l.b16 %v3583
  %v3906 = vunpack.c.h.b16 %v3583
  %v3907 = vunpack.c.l.b16 %v3584
  %v3908 = vunpack.c.h.b16 %v3584
  %v3909 = vunpack.c.l.b16 %v3585
  %v3910 = vunpack.c.h.b16 %v3585
  %v3911 = vunpack.c.l.b16 %v3586
  %v3912 = vunpack.c.h.b16 %v3586
  %v3913 = vunpack.c.l.b16 %v3587
  %v3914 = vunpack.c.h.b16 %v3587
  %v3915 = vunpack.c.l.b16 %v3588
  %v3916 = vunpack.c.h.b16 %v3588
  %v3917 = vunpack.c.l.b16 %v3589
  %v3918 = vunpack.c.h.b16 %v3589
  %v3919 = vunpack.c.l.b16 %v3590
  %v3920 = vunpack.c.h.b16 %v3590
  %v3921 = vunpack.c.l.b16 %v3591
  %v3922 = vunpack.c.h.b16 %v3591
  %v3923 = vunpack.c.l.b16 %v3592
  %v3924 = vunpack.c.h.b16 %v3592
  %v3925 = vunpack.c.l.b16 %v3593
  %v3926 = vunpack.c.h.b16 %v3593
  %v3927 = vunpack.c.l.b16 %v3594
  %v3928 = vunpack.c.h.b16 %v3594
  %v3929 = vunpack.c.l.b16 %v3595
  %v3930 = vunpack.c.h.b16 %v3595
  %v3931 = vunpack.c.l.b16 %v3596
  %v3932 = vunpack.c.h.b16 %v3596
  %v3933 = vunpack.c.l.b16 %v3597
  %v3934 = vunpack.c.h.b16 %v3597
  %v3935 = vunpack.c.l.b16 %v3598
  %v3936 = vunpack.c.h.b16 %v3598
  %v3937 = vunpack.c.l.b16 %v3599
  %v3938 = vunpack.c.h.b16 %v3599
  %v3939 = vunpack.c.l.b16 %v3600
  %v3940 = vunpack.c.h.b16 %v3600
  %v3941 = vunpack.c.l.b16 %v3601
  %v3942 = vunpack.c.h.b16 %v3601
  %v3943 = vunpack.c.l.b16 %v3602
  %v3944 = vunpack.c.h.b16 %v3602
  %v3945 = vunpack.c.l.b16 %v3603
  %v3946 = vunpack.c.h.b16 %v3603
  %v3947 = vunpack.c.l.b16 %v3604
  %v3948 = vunpack.c.h.b16 %v3604
  %v3949 = vunpack.c.l.b16 %v3605
  %v3950 = vunpack.c.h.b16 %v3605
  %v3951 = vunpack.c.l.b16 %v3606
  %v3952 = vunpack.c.h.b16 %v3606
  %v3953 = vunpack.c.l.b16 %v3607
  %v3954 = vunpack.c.h.b16 %v3607
  %v3955 = vunpack.c.l.b16 %v3608
  %v3956 = vunpack.c.h.b16 %v3608
  %v3957 = vunpack.c.l.b16 %v3609
  %v3958 = vunpack.c.h.b16 %v3609
  %v3959 = vunpack.c.l.b16 %v3610
  %v3960 = vunpack.c.h.b16 %v3610
  %v3961 = vunpack.c.l.b16 %v3611
  %v3962 = vunpack.c.h.b16 %v3611
  %v3963 = vunpack.c.l.b16 %v3612
  %v3964 = vunpack.c.h.b16 %v3612
  %v3965 = vunpack.c.l.b16 %v3613
  %v3966 = vunpack.c.h.b16 %v3613
  %v3967 = vunpack.c.l.b16 %v3614
  %v3968 = vunpack.c.h.b16 %v3614
  %v3969 = vunpack.c.l.b16 %v3615
  %v3970 = vunpack.c.h.b16 %v3615
  %v3971 = vunpack.c.l.b16 %v3616
  %v3972 = vunpack.c.h.b16 %v3616
  %v3973 = vunpack.c.l.b16 %v3617
  %v3974 = vunpack.c.h.b16 %v3617
  %v3975 = vunpack.c.l.b16 %v3618
  %v3976 = vunpack.c.h.b16 %v3618
  %v3977 = vunpack.c.l.b16 %v3619
  %v3978 = vunpack.c.h.b16 %v3619
  %v3979 = vunpack.c.l.b16 %v3620
  %v3980 = vunpack.c.h.b16 %v3620
  %v3981 = vunpack.c.l.b16 %v3621
  %v3982 = vunpack.c.h.b16 %v3621
  %v3983 = vunpack.c.l.b16 %v3622
  %v3984 = vunpack.c.h.b16 %v3622
  %v3985 = vunpack.c.l.b16 %v3623
  %v3986 = vunpack.c.h.b16 %v3623
  %v3987 = vunpack.c.l.b16 %v3624
  %v3988 = vunpack.c.h.b16 %v3624
  %v3989 = vunpack.c.l.b16 %v3625
  %v3990 = vunpack.c.h.b16 %v3625
  %v3991 = vunpack.c.l.b16 %v3626
  %v3992 = vunpack.c.h.b16 %v3626
  %v3993 = vunpack.c.l.b16 %v3627
  %v3994 = vunpack.c.h.b16 %v3627
  %v3995 = vunpack.c.l.b16 %v3628
  %v3996 = vunpack.c.h.b16 %v3628
  %v3997 = vunpack.c.l.b16 %v3629
  %v3998 = vunpack.c.h.b16 %v3629
  %v3999 = vunpack.c.l.b16 %v3630
  %v4000 = vunpack.c.h.b16 %v3630
  %v4001 = vunpack.c.l.b16 %v3631
  %v4002 = vunpack.c.h.b16 %v3631
  %v4003 = vunpack.c.l.b16 %v3632
  %v4004 = vunpack.c.h.b16 %v3632
  %v4005 = vunpack.c.l.b16 %v3633
  %v4006 = vunpack.c.h.b16 %v3633
  %v4007 = vunpack.c.l.b16 %v3634
  %v4008 = vunpack.c.h.b16 %v3634
  %v4009 = vunpack.c.l.b16 %v3635
  %v4010 = vunpack.c.h.b16 %v3635
  %v4011 = vunpack.c.l.b16 %v3636
  %v4012 = vunpack.c.h.b16 %v3636
  %v4013 = vunpack.c.l.b16 %v3637
  %v4014 = vunpack.c.h.b16 %v3637
  %v4015 = vunpack.c.l.b16 %v3638
  %v4016 = vunpack.c.h.b16 %v3638
  %v4017 = vunpack.c.l.b16 %v3639
  %v4018 = vunpack.c.h.b16 %v3639
  %v4019 = vunpack.c.l.b16 %v3640
  %v4020 = vunpack.c.h.b16 %v3640
  %v4021 = vunpack.c.l.b16 %v3641
  %v4022 = vunpack.c.h.b16 %v3641
  %v4023 = vunpack.c.l.b16 %v3642
  %v4024 = vunpack.c.h.b16 %v3642
  %v4025 = vunpack.c.l.b16 %v3643
  %v4026 = vunpack.c.h.b16 %v3643
  %v4027 = vunpack.c.l.b16 %v3644
  %v4028 = vunpack.c.h.b16 %v3644
  %v4029 = vpack.c.b16 %v3781, %v3773
  %v4030 = vpack.c.b16 %v3782, %v3774
  %v4031 = vpack.c.b16 %v3783, %v3775
  %v4032 = vpack.c.b16 %v3784, %v3776
  %v4033 = vpack.c.b16 %v3785, %v3777
  %v4034 = vpack.c.b16 %v3786, %v3778
  %v4035 = vpack.c.b16 %v3787, %v3779
  %v4036 = vpack.c.b16 %v3788, %v3780
  %v4037 = vpack.c.b16 %v3797, %v3789
  %v4038 = vpack.c.b16 %v3798, %v3790
  %v4039 = vpack.c.b16 %v3799, %v3791
  %v4040 = vpack.c.b16 %v3800, %v3792
  %v4041 = vpack.c.b16 %v3801, %v3793
  %v4042 = vpack.c.b16 %v3802, %v3794
  %v4043 = vpack.c.b16 %v3803, %v3795
  %v4044 = vpack.c.b16 %v3804, %v3796
  %v4045 = vpack.c.b16 %v3813, %v3805
  %v4046 = vpack.c.b16 %v3814, %v3806
  %v4047 = vpack.c.b16 %v3815, %v3807
  %v4048 = vpack.c.b16 %v3816, %v3808
  %v4049 = vpack.c.b16 %v3817, %v3809
  %v4050 = vpack.c.b16 %v3818, %v3810
  %v4051 = vpack.c.b16 %v3819, %v3811
  %v4052 = vpack.c.b16 %v3820, %v3812
  %v4053 = vpack.c.b16 %v3829, %v3821
  %v4054 = vpack.c.b16 %v3830, %v3822
  %v4055 = vpack.c.b16 %v3831, %v3823
  %v4056 = vpack.c.b16 %v3832, %v3824
  %v4057 = vpack.c.b16 %v3833, %v3825
  %v4058 = vpack.c.b16 %v3834, %v3826
  %v4059 = vpack.c.b16 %v3835, %v3827
  %v4060 = vpack.c.b16 %v3836, %v3828
  %v4061 = vpack.c.b16 %v3845, %v3837
  %v4062 = vpack.c.b16 %v3846, %v3838
  %v4063 = vpack.c.b16 %v3847, %v3839
  %v4064 = vpack.c.b16 %v3848, %v3840
  %v4065 = vpack.c.b16 %v3849, %v3841
  %v4066 = vpack.c.b16 %v3850, %v3842
  %v4067 = vpack.c.b16 %v3851, %v3843
  %v4068 = vpack.c.b16 %v3852, %v3844
  %v4069 = vpack.c.b16 %v3861, %v3853
  %v4070 = vpack.c.b16 %v3862, %v3854
  %v4071 = vpack.c.b16 %v3863, %v3855
  %v4072 = vpack.c.b16 %v3864, %v3856
  %v4073 = vpack.c.b16 %v3865, %v3857
  %v4074 = vpack.c.b16 %v3866, %v3858
  %v4075 = vpack.c.b16 %v3867, %v3859
  %v4076 = vpack.c.b16 %v3868, %v3860
  %v4077 = vpack.c.b16 %v3877, %v3869
  %v4078 = vpack.c.b16 %v3878, %v3870
  %v4079 = vpack.c.b16 %v3879, %v3871
  %v4080 = vpack.c.b16 %v3880, %v3872
  %v4081 = vpack.c.b16 %v3881, %v3873
  %v4082 = vpack.c.b16 %v3882, %v3874
  %v4083 = vpack.c.b16 %v3883, %v3875
  %v4084 = vpack.c.b16 %v3884, %v3876
  %v4085 = vpack.c.b16 %v3893, %v3885
  %v4086 = vpack.c.b16 %v3894, %v3886
  %v4087 = vpack.c.b16 %v3895, %v3887
  %v4088 = vpack.c.b16 %v3896, %v3888
  %v4089 = vpack.c.b16 %v3897, %v3889
  %v4090 = vpack.c.b16 %v3898, %v3890
  %v4091 = vpack.c.b16 %v3899, %v3891
  %v4092 = vpack.c.b16 %v3900, %v3892
  %v4093 = vpack.c.b16 %v3909, %v3901
  %v4094 = vpack.c.b16 %v3910, %v3902
  %v4095 = vpack.c.b16 %v3911, %v3903
  %v4096 = vpack.c.b16 %v3912, %v3904
  %v4097 = vpack.c.b16 %v3913, %v3905
  %v4098 = vpack.c.b16 %v3914, %v3906
  %v4099 = vpack.c.b16 %v3915, %v3907
  %v4100 = vpack.c.b16 %v3916, %v3908
  %v4101 = vpack.c.b16 %v3925, %v3917
  %v4102 = vpack.c.b16 %v3926, %v3918
  %v4103 = vpack.c.b16 %v3927, %v3919
  %v4104 = vpack.c.b16 %v3928, %v3920
  %v4105 = vpack.c.b16 %v3929, %v3921
  %v4106 = vpack.c.b16 %v3930, %v3922
  %v4107 = vpack.c.b16 %v3931, %v3923
  %v4108 = vpack.c.b16 %v3932, %v3924
  %v4109 = vpack.c.b16 %v3941, %v3933
  %v4110 = vpack.c.b16 %v3942, %v3934
  %v4111 = vpack.c.b16 %v3943, %v3935
  %v4112 = vpack.c.b16 %v3944, %v3936
  %v4113 = vpack.c.b16 %v3945, %v3937
  %v4114 = vpack.c.b16 %v3946, %v3938
  %v4115 = vpack.c.b16 %v3947, %v3939
  %v4116 = vpack.c.b16 %v3948, %v3940
  %v4117 = vpack.c.b16 %v3957, %v3949
  %v4118 = vpack.c.b16 %v3958, %v3950
  %v4119 = vpack.c.b16 %v3959, %v3951
  %v4120 = vpack.c.b16 %v3960, %v3952
  %v4121 = vpack.c.b16 %v3961, %v3953
  %v4122 = vpack.c.b16 %v3962, %v3954
  %v4123 = vpack.c.b16 %v3963, %v3955
  %v4124 = vpack.c.b16 %v3964, %v3956
  %v4125 = vpack.c.b16 %v3973, %v3965
  %v4126 = vpack.c.b16 %v3974, %v3966
  %v4127 = vpack.c.b16 %v3975, %v3967
  %v4128 = vpack.c.b16 %v3976, %v3968
  %v4129 = vpack.c.b16 %v3977, %v3969
  %v4130 = vpack.c.b16 %v3978, %v3970
  %v4131 = vpack.c.b16 %v3979, %v3971
  %v4132 = vpack.c.b16 %v3980, %v3972
  %v4133 = vpack.c.b16 %v3989, %v3981
  %v4134 = vpack.c.b16 %v3990, %v3982
  %v4135 = vpack.c.b16 %v3991, %v3983
  %v4136 = vpack.c.b16 %v3992, %v3984
  %v4137 = vpack.c.b16 %v3993, %v3985
  %v4138 = vpack.c.b16 %v3994, %v3986
  %v4139 = vpack.c.b16 %v3995, %v3987
  %v4140 = vpack.c.b16 %v3996, %v3988
  %v4141 = vpack.c.b16 %v4005, %v3997
  %v4142 = vpack.c.b16 %v4006, %v3998
  %v4143 = vpack.c.b16 %v4007, %v3999
  %v4144 = vpack.c.b16 %v4008, %v4000
  %v4145 = vpack.c.b16 %v4009, %v4001
  %v4146 = vpack.c.b16 %v4010, %v4002
  %v4147 = vpack.c.b16 %v4011, %v4003
  %v4148 = vpack.c.b16 %v4012, %v4004
  %v4149 = vpack.c.b16 %v4021, %v4013
  %v4150 = vpack.c.b16 %v4022, %v4014
  %v4151 = vpack.c.b16 %v4023, %v4015
  %v4152 = vpack.c.b16 %v4024, %v4016
  %v4153 = vpack.c.b16 %v4025, %v4017
  %v4154 = vpack.c.b16 %v4026, %v4018
  %v4155 = vpack.c.b16 %v4027, %v4019
  %v4156 = vpack.c.b16 %v4028, %v4020
  %4285 = vmatprep.subr.bf16.mxu0 %v4030
  %4286 = vmatpush1.bf16.msra.mxu0 %v4029
  %4287 = vmatprep.subr.bf16.mxu0 %v4038
  %4288 = vmatpush1.bf16.msra.mxu0 %v4037
  %4289 = vmatprep.subr.bf16.mxu0 %v4046
  %4290 = vmatpush1.bf16.msra.mxu0 %v4045
  %4291 = vmatprep.subr.bf16.mxu0 %v4054
  %4292 = vmatpush1.bf16.msra.mxu0 %v4053
  %4293 = vmatprep.subr.bf16.mxu0 %v4062
  %4294 = vmatpush1.bf16.msra.mxu0 %v4061
  %4295 = vmatprep.subr.bf16.mxu0 %v4070
  %4296 = vmatpush1.bf16.msra.mxu0 %v4069
  %4297 = vmatprep.subr.bf16.mxu0 %v4078
  %4298 = vmatpush1.bf16.msra.mxu0 %v4077
  %4299 = vmatprep.subr.bf16.mxu0 %v4086
  %4300 = vmatpush1.bf16.msra.mxu0 %v4085
  %4301 = vmatprep.subr.bf16.mxu0 %v4094
  %4302 = vmatpush1.bf16.msra.mxu0 %v4093
  %4303 = vmatprep.subr.bf16.mxu0 %v4102
  %4304 = vmatpush1.bf16.msra.mxu0 %v4101
  %4305 = vmatprep.subr.bf16.mxu0 %v4110
  %4306 = vmatpush1.bf16.msra.mxu0 %v4109
  %4307 = vmatprep.subr.bf16.mxu0 %v4118
  %4308 = vmatpush1.bf16.msra.mxu0 %v4117
  %4309 = vmatprep.subr.bf16.mxu0 %v4126
  %4310 = vmatpush1.bf16.msra.mxu0 %v4125
  %4311 = vmatprep.subr.bf16.mxu0 %v4134
  %4312 = vmatpush1.bf16.msra.mxu0 %v4133
  %4313 = vmatprep.subr.bf16.mxu0 %v4142
  %4314 = vmatpush1.bf16.msra.mxu0 %v4141
  %4315 = vmatprep.subr.bf16.mxu0 %v4150
  %4316 = vmatpush1.bf16.msra.mxu0 %v4149
  %4317 = vmatprep.mubr.bf16.mxu0 %v3516
  %4318 = vmatmul.mubr.bf16.gmra.mrb[0].mxu0 %v3515
  %v4319 = vpop.f32.mrb[0].mxu0
  %v4320 = vadd.f32 %v3507, %v4319
  %v4321 = vpop.f32.mrb[0].mxu0
  %v4322 = vadd.f32 %v3508, %v4321
  %v4323 = vpop.f32.mrb[0].mxu0
  %v4324 = vpop.f32.mrb[0].mxu0
  %4325 = vdwg.mxu0
  %4326 = vmatprep.subr.bf16.mxu0 %v4032
  %4327 = vmatpush1.bf16.msra.mxu0 %v4031
  %4328 = vmatprep.subr.bf16.mxu0 %v4040
  %4329 = vmatpush1.bf16.msra.mxu0 %v4039
  %4330 = vmatprep.subr.bf16.mxu0 %v4048
  %4331 = vmatpush1.bf16.msra.mxu0 %v4047
  %4332 = vmatprep.subr.bf16.mxu0 %v4056
  %4333 = vmatpush1.bf16.msra.mxu0 %v4055
  %4334 = vmatprep.subr.bf16.mxu0 %v4064
  %4335 = vmatpush1.bf16.msra.mxu0 %v4063
  %4336 = vmatprep.subr.bf16.mxu0 %v4072
  %4337 = vmatpush1.bf16.msra.mxu0 %v4071
  %4338 = vmatprep.subr.bf16.mxu0 %v4080
  %4339 = vmatpush1.bf16.msra.mxu0 %v4079
  %4340 = vmatprep.subr.bf16.mxu0 %v4088
  %4341 = vmatpush1.bf16.msra.mxu0 %v4087
  %4342 = vmatprep.subr.bf16.mxu0 %v4096
  %4343 = vmatpush1.bf16.msra.mxu0 %v4095
  %4344 = vmatprep.subr.bf16.mxu0 %v4104
  %4345 = vmatpush1.bf16.msra.mxu0 %v4103
  %4346 = vmatprep.subr.bf16.mxu0 %v4112
  %4347 = vmatpush1.bf16.msra.mxu0 %v4111
  %4348 = vmatprep.subr.bf16.mxu0 %v4120
  %4349 = vmatpush1.bf16.msra.mxu0 %v4119
  %4350 = vmatprep.subr.bf16.mxu0 %v4128
  %4351 = vmatpush1.bf16.msra.mxu0 %v4127
  %4352 = vmatprep.subr.bf16.mxu0 %v4136
  %4353 = vmatpush1.bf16.msra.mxu0 %v4135
  %4354 = vmatprep.subr.bf16.mxu0 %v4144
  %4355 = vmatpush1.bf16.msra.mxu0 %v4143
  %4356 = vmatprep.subr.bf16.mxu0 %v4152
  %4357 = vmatpush1.bf16.msra.mxu0 %v4151
  %4358 = vmatprep.mubr.bf16.mxu0 %v3516
  %4359 = vmatmul.mubr.bf16.gmra.mrb[0].mxu0 %v3515
  %v4360 = vpop.f32.mrb[0].mxu0
  %v4361 = vadd.f32 %v3509, %v4360
  %v4362 = vpop.f32.mrb[0].mxu0
  %v4363 = vadd.f32 %v3510, %v4362
  %v4364 = vpop.f32.mrb[0].mxu0
  %v4365 = vpop.f32.mrb[0].mxu0
  %4366 = vdwg.mxu0
  %4367 = vmatprep.subr.bf16.mxu0 %v4034
  %4368 = vmatpush1.bf16.msra.mxu0 %v4033
  %4369 = vmatprep.subr.bf16.mxu0 %v4042
  %4370 = vmatpush1.bf16.msra.mxu0 %v4041
  %4371 = vmatprep.subr.bf16.mxu0 %v4050
  %4372 = vmatpush1.bf16.msra.mxu0 %v4049
  %4373 = vmatprep.subr.bf16.mxu0 %v4058
  %4374 = vmatpush1.bf16.msra.mxu0 %v4057
  %4375 = vmatprep.subr.bf16.mxu0 %v4066
  %4376 = vmatpush1.bf16.msra.mxu0 %v4065
  %4377 = vmatprep.subr.bf16.mxu0 %v4074
  %4378 = vmatpush1.bf16.msra.mxu0 %v4073
  %4379 = vmatprep.subr.bf16.mxu0 %v4082
  %4380 = vmatpush1.bf16.msra.mxu0 %v4081
  %4381 = vmatprep.subr.bf16.mxu0 %v4090
  %4382 = vmatpush1.bf16.msra.mxu0 %v4089
  %4383 = vmatprep.subr.bf16.mxu0 %v4098
  %4384 = vmatpush1.bf16.msra.mxu0 %v4097
  %4385 = vmatprep.subr.bf16.mxu0 %v4106
  %4386 = vmatpush1.bf16.msra.mxu0 %v4105
  %4387 = vmatprep.subr.bf16.mxu0 %v4114
  %4388 = vmatpush1.bf16.msra.mxu0 %v4113
  %4389 = vmatprep.subr.bf16.mxu0 %v4122
  %4390 = vmatpush1.bf16.msra.mxu0 %v4121
  %4391 = vmatprep.subr.bf16.mxu0 %v4130
  %4392 = vmatpush1.bf16.msra.mxu0 %v4129
  %4393 = vmatprep.subr.bf16.mxu0 %v4138
  %4394 = vmatpush1.bf16.msra.mxu0 %v4137
  %4395 = vmatprep.subr.bf16.mxu0 %v4146
  %4396 = vmatpush1.bf16.msra.mxu0 %v4145
  %4397 = vmatprep.subr.bf16.mxu0 %v4154
  %4398 = vmatpush1.bf16.msra.mxu0 %v4153
  %4399 = vmatprep.mubr.bf16.mxu0 %v3516
  %4400 = vmatmul.mubr.bf16.gmra.mrb[0].mxu0 %v3515
  %v4401 = vpop.f32.mrb[0].mxu0
  %v4402 = vadd.f32 %v3511, %v4401
  %v4403 = vpop.f32.mrb[0].mxu0
  %v4404 = vadd.f32 %v3512, %v4403
  %v4405 = vpop.f32.mrb[0].mxu0
  %v4406 = vpop.f32.mrb[0].mxu0
  %4407 = vdwg.mxu0
  %4408 = vmatprep.subr.bf16.mxu0 %v4036
  %4409 = vmatpush1.bf16.msra.mxu0 %v4035
  %4410 = vmatprep.subr.bf16.mxu0 %v4044
  %4411 = vmatpush1.bf16.msra.mxu0 %v4043
  %4412 = vmatprep.subr.bf16.mxu0 %v4052
  %4413 = vmatpush1.bf16.msra.mxu0 %v4051
  %4414 = vmatprep.subr.bf16.mxu0 %v4060
  %4415 = vmatpush1.bf16.msra.mxu0 %v4059
  %4416 = vmatprep.subr.bf16.mxu0 %v4068
  %4417 = vmatpush1.bf16.msra.mxu0 %v4067
  %4418 = vmatprep.subr.bf16.mxu0 %v4076
  %4419 = vmatpush1.bf16.msra.mxu0 %v4075
  %4420 = vmatprep.subr.bf16.mxu0 %v4084
  %4421 = vmatpush1.bf16.msra.mxu0 %v4083
  %4422 = vmatprep.subr.bf16.mxu0 %v4092
  %4423 = vmatpush1.bf16.msra.mxu0 %v4091
  %4424 = vmatprep.subr.bf16.mxu0 %v4100
  %4425 = vmatpush1.bf16.msra.mxu0 %v4099
  %4426 = vmatprep.subr.bf16.mxu0 %v4108
  %4427 = vmatpush1.bf16.msra.mxu0 %v4107
  %4428 = vmatprep.subr.bf16.mxu0 %v4116
  %4429 = vmatpush1.bf16.msra.mxu0 %v4115
  %4430 = vmatprep.subr.bf16.mxu0 %v4124
  %4431 = vmatpush1.bf16.msra.mxu0 %v4123
  %4432 = vmatprep.subr.bf16.mxu0 %v4132
  %4433 = vmatpush1.bf16.msra.mxu0 %v4131
  %4434 = vmatprep.subr.bf16.mxu0 %v4140
  %4435 = vmatpush1.bf16.msra.mxu0 %v4139
  %4436 = vmatprep.subr.bf16.mxu0 %v4148
  %4437 = vmatpush1.bf16.msra.mxu0 %v4147
  %4438 = vmatprep.subr.bf16.mxu0 %v4156
  %4439 = vmatpush1.bf16.msra.mxu0 %v4155
  %4440 = vmatprep.mubr.bf16.mxu0 %v3516
  %4441 = vmatmul.mubr.bf16.gmra.mrb[0].mxu0 %v3515
  %v4442 = vpop.f32.mrb[0].mxu0
  %v4443 = vadd.f32 %v3513, %v4442
  %v4444 = vpop.f32.mrb[0].mxu0
  %v4445 = vadd.f32 %v3514, %v4444
  %v4446 = vpop.f32.mrb[0].mxu0
  %v4447 = vpop.f32.mrb[0].mxu0
  %4448 = vdwg.mxu0
  %v4449 = vxor.u32 %v4320, 2147483648
  %v4450 = vxor.u32 %v4322, 2147483648
  %v4451 = vmul.f32 %v4449, 1.442695
  %v4452 = vpow.pop %v4451
  %v4453 = vmul.f32 %v4450, 1.442695
  %v4454 = vpow.pop %v4453
  %v4455 = vadd.f32 %v4452, 1.0
  %v4456 = vadd.f32 %v4454, 1.0
  %v4457 = vrcp.pop %v4455
  %v4458 = vmul.f32 1.0, %v4457
  %v4459 = vrcp.pop %v4456
  %v4460 = vmul.f32 1.0, %v4459
  %v4461 = vxor.u32 %v4361, 2147483648
  %v4462 = vxor.u32 %v4363, 2147483648
  %v4463 = vmul.f32 %v4461, 1.442695
  %v4464 = vpow.pop %v4463
  %v4465 = vmul.f32 %v4462, 1.442695
  %v4466 = vpow.pop %v4465
  %v4467 = vadd.f32 %v4464, 1.0
  %v4468 = vadd.f32 %v4466, 1.0
  %v4469 = vrcp.pop %v4467
  %v4470 = vmul.f32 1.0, %v4469
  %v4471 = vrcp.pop %v4468
  %v4472 = vmul.f32 1.0, %v4471
  %v4473 = vtanh.pop %v4402
  %v4474 = vtanh.pop %v4404
  %v4475 = vxor.u32 %v4443, 2147483648
  %v4476 = vxor.u32 %v4445, 2147483648
  %v4477 = vmul.f32 %v4475, 1.442695
  %v4478 = vpow.pop %v4477
  %v4479 = vmul.f32 %v4476, 1.442695
  %v4480 = vpow.pop %v4479
  %v4481 = vadd.f32 %v4478, 1.0
  %v4482 = vadd.f32 %v4480, 1.0
  %v4483 = vrcp.pop %v4481
  %v4484 = vmul.f32 1.0, %v4483
  %v4485 = vrcp.pop %v4482
  %v4486 = vmul.f32 1.0, %v4485
  %v4487 = vmul.f32 %v4458, %v3496
  %v4488 = vmul.f32 %v4460, %v3497
  %v4489 = vmul.f32 %v4470, %v4473
  %v4490 = vmul.f32 %v4472, %v4474
  %v4491 = vadd.f32 %v4487, %v4489
  %v4492 = vadd.f32 %v4488, %v4490
  %v4493 = vtanh.pop %v4491
  %v4494 = vtanh.pop %v4492
  %v4495 = vmul.f32 %v4484, %v4493
  %v4496 = vmul.f32 %v4486, %v4494
  %s4497 = scalar_lea.vmem %s4, 24
  %4498 = vst [vmem:[%s4497] sm:$0xff] %v4496
  %s4499 = smul.u32 4, 8
  %s4500 = smul.addr %s4499, 8
  %s4501 = scalar_lea.vmem [#allocation2], %s4500
  %v4502 = vld [vmem:[%s4501] sm:$0xff]
  %v4503 = vld [vmem:[%s4501 + $0x8] sm:$0xff]
  %v4504 = vld [vmem:[%s4501 + $0x10] sm:$0xff]
  %v4505 = vld [vmem:[%s4501 + $0x18] sm:$0xff]
  %v4506 = vld [vmem:[%s4501 + $0x20] sm:$0xff]
  %v4507 = vld [vmem:[%s4501 + $0x28] sm:$0xff]
  %v4508 = vld [vmem:[%s4501 + $0x30] sm:$0xff]
  %v4509 = vld [vmem:[%s4501 + $0x38] sm:$0xff]
  %v4510 = vpack.c.bf16 %v4495, %v4495
  %v4511 = vpack.c.bf16 %v4496, %v4496
  %v4512 = vld [vmem:[%s2] sm:$0xff]
  %v4513 = vld [vmem:[%s2 + $0x8] sm:$0xff]
  %v4514 = vld [vmem:[%s2 + $0x10] sm:$0xff]
  %v4515 = vld [vmem:[%s2 + $0x18] sm:$0xff]
  %v4516 = vld [vmem:[%s2 + $0x20] sm:$0xff]
  %v4517 = vld [vmem:[%s2 + $0x28] sm:$0xff]
  %v4518 = vld [vmem:[%s2 + $0x30] sm:$0xff]
  %v4519 = vld [vmem:[%s2 + $0x38] sm:$0xff]
  %v4520 = vld [vmem:[%s2 + $0x40] sm:$0xff]
  %v4521 = vld [vmem:[%s2 + $0x48] sm:$0xff]
  %v4522 = vld [vmem:[%s2 + $0x50] sm:$0xff]
  %v4523 = vld [vmem:[%s2 + $0x58] sm:$0xff]
  %v4524 = vld [vmem:[%s2 + $0x60] sm:$0xff]
  %v4525 = vld [vmem:[%s2 + $0x68] sm:$0xff]
  %v4526 = vld [vmem:[%s2 + $0x70] sm:$0xff]
  %v4527 = vld [vmem:[%s2 + $0x78] sm:$0xff]
  %v4528 = vld [vmem:[%s2 + $0x80] sm:$0xff]
  %v4529 = vld [vmem:[%s2 + $0x88] sm:$0xff]
  %v4530 = vld [vmem:[%s2 + $0x90] sm:$0xff]
  %v4531 = vld [vmem:[%s2 + $0x98] sm:$0xff]
  %v4532 = vld [vmem:[%s2 + $0xa0] sm:$0xff]
  %v4533 = vld [vmem:[%s2 + $0xa8] sm:$0xff]
  %v4534 = vld [vmem:[%s2 + $0xb0] sm:$0xff]
  %v4535 = vld [vmem:[%s2 + $0xb8] sm:$0xff]
  %v4536 = vld [vmem:[%s2 + $0xc0] sm:$0xff]
  %v4537 = vld [vmem:[%s2 + $0xc8] sm:$0xff]
  %v4538 = vld [vmem:[%s2 + $0xd0] sm:$0xff]
  %v4539 = vld [vmem:[%s2 + $0xd8] sm:$0xff]
  %v4540 = vld [vmem:[%s2 + $0xe0] sm:$0xff]
  %v4541 = vld [vmem:[%s2 + $0xe8] sm:$0xff]
  %v4542 = vld [vmem:[%s2 + $0xf0] sm:$0xff]
  %v4543 = vld [vmem:[%s2 + $0xf8] sm:$0xff]
  %v4544 = vld [vmem:[%s2 + $0x100] sm:$0xff]
  %v4545 = vld [vmem:[%s2 + $0x108] sm:$0xff]
  %v4546 = vld [vmem:[%s2 + $0x110] sm:$0xff]
  %v4547 = vld [vmem:[%s2 + $0x118] sm:$0xff]
  %v4548 = vld [vmem:[%s2 + $0x120] sm:$0xff]
  %v4549 = vld [vmem:[%s2 + $0x128] sm:$0xff]
  %v4550 = vld [vmem:[%s2 + $0x130] sm:$0xff]
  %v4551 = vld [vmem:[%s2 + $0x138] sm:$0xff]
  %v4552 = vld [vmem:[%s2 + $0x140] sm:$0xff]
  %v4553 = vld [vmem:[%s2 + $0x148] sm:$0xff]
  %v4554 = vld [vmem:[%s2 + $0x150] sm:$0xff]
  %v4555 = vld [vmem:[%s2 + $0x158] sm:$0xff]
  %v4556 = vld [vmem:[%s2 + $0x160] sm:$0xff]
  %v4557 = vld [vmem:[%s2 + $0x168] sm:$0xff]
  %v4558 = vld [vmem:[%s2 + $0x170] sm:$0xff]
  %v4559 = vld [vmem:[%s2 + $0x178] sm:$0xff]
  %v4560 = vld [vmem:[%s2 + $0x180] sm:$0xff]
  %v4561 = vld [vmem:[%s2 + $0x188] sm:$0xff]
  %v4562 = vld [vmem:[%s2 + $0x190] sm:$0xff]
  %v4563 = vld [vmem:[%s2 + $0x198] sm:$0xff]
  %v4564 = vld [vmem:[%s2 + $0x1a0] sm:$0xff]
  %v4565 = vld [vmem:[%s2 + $0x1a8] sm:$0xff]
  %v4566 = vld [vmem:[%s2 + $0x1b0] sm:$0xff]
  %v4567 = vld [vmem:[%s2 + $0x1b8] sm:$0xff]
  %v4568 = vld [vmem:[%s2 + $0x1c0] sm:$0xff]
  %v4569 = vld [vmem:[%s2 + $0x1c8] sm:$0xff]
  %v4570 = vld [vmem:[%s2 + $0x1d0] sm:$0xff]
  %v4571 = vld [vmem:[%s2 + $0x1d8] sm:$0xff]
  %v4572 = vld [vmem:[%s2 + $0x1e0] sm:$0xff]
  %v4573 = vld [vmem:[%s2 + $0x1e8] sm:$0xff]
  %v4574 = vld [vmem:[%s2 + $0x1f0] sm:$0xff]
  %v4575 = vld [vmem:[%s2 + $0x1f8] sm:$0xff]
  %v4576 = vld [vmem:[%s2 + $0x200] sm:$0xff]
  %v4577 = vld [vmem:[%s2 + $0x208] sm:$0xff]
  %v4578 = vld [vmem:[%s2 + $0x210] sm:$0xff]
  %v4579 = vld [vmem:[%s2 + $0x218] sm:$0xff]
  %v4580 = vld [vmem:[%s2 + $0x220] sm:$0xff]
  %v4581 = vld [vmem:[%s2 + $0x228] sm:$0xff]
  %v4582 = vld [vmem:[%s2 + $0x230] sm:$0xff]
  %v4583 = vld [vmem:[%s2 + $0x238] sm:$0xff]
  %v4584 = vld [vmem:[%s2 + $0x240] sm:$0xff]
  %v4585 = vld [vmem:[%s2 + $0x248] sm:$0xff]
  %v4586 = vld [vmem:[%s2 + $0x250] sm:$0xff]
  %v4587 = vld [vmem:[%s2 + $0x258] sm:$0xff]
  %v4588 = vld [vmem:[%s2 + $0x260] sm:$0xff]
  %v4589 = vld [vmem:[%s2 + $0x268] sm:$0xff]
  %v4590 = vld [vmem:[%s2 + $0x270] sm:$0xff]
  %v4591 = vld [vmem:[%s2 + $0x278] sm:$0xff]
  %v4592 = vld [vmem:[%s2 + $0x280] sm:$0xff]
  %v4593 = vld [vmem:[%s2 + $0x288] sm:$0xff]
  %v4594 = vld [vmem:[%s2 + $0x290] sm:$0xff]
  %v4595 = vld [vmem:[%s2 + $0x298] sm:$0xff]
  %v4596 = vld [vmem:[%s2 + $0x2a0] sm:$0xff]
  %v4597 = vld [vmem:[%s2 + $0x2a8] sm:$0xff]
  %v4598 = vld [vmem:[%s2 + $0x2b0] sm:$0xff]
  %v4599 = vld [vmem:[%s2 + $0x2b8] sm:$0xff]
  %v4600 = vld [vmem:[%s2 + $0x2c0] sm:$0xff]
  %v4601 = vld [vmem:[%s2 + $0x2c8] sm:$0xff]
  %v4602 = vld [vmem:[%s2 + $0x2d0] sm:$0xff]
  %v4603 = vld [vmem:[%s2 + $0x2d8] sm:$0xff]
  %v4604 = vld [vmem:[%s2 + $0x2e0] sm:$0xff]
  %v4605 = vld [vmem:[%s2 + $0x2e8] sm:$0xff]
  %v4606 = vld [vmem:[%s2 + $0x2f0] sm:$0xff]
  %v4607 = vld [vmem:[%s2 + $0x2f8] sm:$0xff]
  %v4608 = vld [vmem:[%s2 + $0x300] sm:$0xff]
  %v4609 = vld [vmem:[%s2 + $0x308] sm:$0xff]
  %v4610 = vld [vmem:[%s2 + $0x310] sm:$0xff]
  %v4611 = vld [vmem:[%s2 + $0x318] sm:$0xff]
  %v4612 = vld [vmem:[%s2 + $0x320] sm:$0xff]
  %v4613 = vld [vmem:[%s2 + $0x328] sm:$0xff]
  %v4614 = vld [vmem:[%s2 + $0x330] sm:$0xff]
  %v4615 = vld [vmem:[%s2 + $0x338] sm:$0xff]
  %v4616 = vld [vmem:[%s2 + $0x340] sm:$0xff]
  %v4617 = vld [vmem:[%s2 + $0x348] sm:$0xff]
  %v4618 = vld [vmem:[%s2 + $0x350] sm:$0xff]
  %v4619 = vld [vmem:[%s2 + $0x358] sm:$0xff]
  %v4620 = vld [vmem:[%s2 + $0x360] sm:$0xff]
  %v4621 = vld [vmem:[%s2 + $0x368] sm:$0xff]
  %v4622 = vld [vmem:[%s2 + $0x370] sm:$0xff]
  %v4623 = vld [vmem:[%s2 + $0x378] sm:$0xff]
  %v4624 = vld [vmem:[%s2 + $0x380] sm:$0xff]
  %v4625 = vld [vmem:[%s2 + $0x388] sm:$0xff]
  %v4626 = vld [vmem:[%s2 + $0x390] sm:$0xff]
  %v4627 = vld [vmem:[%s2 + $0x398] sm:$0xff]
  %v4628 = vld [vmem:[%s2 + $0x3a0] sm:$0xff]
  %v4629 = vld [vmem:[%s2 + $0x3a8] sm:$0xff]
  %v4630 = vld [vmem:[%s2 + $0x3b0] sm:$0xff]
  %v4631 = vld [vmem:[%s2 + $0x3b8] sm:$0xff]
  %v4632 = vld [vmem:[%s2 + $0x3c0] sm:$0xff]
  %v4633 = vld [vmem:[%s2 + $0x3c8] sm:$0xff]
  %v4634 = vld [vmem:[%s2 + $0x3d0] sm:$0xff]
  %v4635 = vld [vmem:[%s2 + $0x3d8] sm:$0xff]
  %v4636 = vld [vmem:[%s2 + $0x3e0] sm:$0xff]
  %v4637 = vld [vmem:[%s2 + $0x3e8] sm:$0xff]
  %v4638 = vld [vmem:[%s2 + $0x3f0] sm:$0xff]
  %v4639 = vld [vmem:[%s2 + $0x3f8] sm:$0xff]
  %v4768 = vunpack.c.l.b16 %v4512
  %v4769 = vunpack.c.h.b16 %v4512
  %v4770 = vunpack.c.l.b16 %v4513
  %v4771 = vunpack.c.h.b16 %v4513
  %v4772 = vunpack.c.l.b16 %v4514
  %v4773 = vunpack.c.h.b16 %v4514
  %v4774 = vunpack.c.l.b16 %v4515
  %v4775 = vunpack.c.h.b16 %v4515
  %v4776 = vunpack.c.l.b16 %v4516
  %v4777 = vunpack.c.h.b16 %v4516
  %v4778 = vunpack.c.l.b16 %v4517
  %v4779 = vunpack.c.h.b16 %v4517
  %v4780 = vunpack.c.l.b16 %v4518
  %v4781 = vunpack.c.h.b16 %v4518
  %v4782 = vunpack.c.l.b16 %v4519
  %v4783 = vunpack.c.h.b16 %v4519
  %v4784 = vunpack.c.l.b16 %v4520
  %v4785 = vunpack.c.h.b16 %v4520
  %v4786 = vunpack.c.l.b16 %v4521
  %v4787 = vunpack.c.h.b16 %v4521
  %v4788 = vunpack.c.l.b16 %v4522
  %v4789 = vunpack.c.h.b16 %v4522
  %v4790 = vunpack.c.l.b16 %v4523
  %v4791 = vunpack.c.h.b16 %v4523
  %v4792 = vunpack.c.l.b16 %v4524
  %v4793 = vunpack.c.h.b16 %v4524
  %v4794 = vunpack.c.l.b16 %v4525
  %v4795 = vunpack.c.h.b16 %v4525
  %v4796 = vunpack.c.l.b16 %v4526
  %v4797 = vunpack.c.h.b16 %v4526
  %v4798 = vunpack.c.l.b16 %v4527
  %v4799 = vunpack.c.h.b16 %v4527
  %v4800 = vunpack.c.l.b16 %v4528
  %v4801 = vunpack.c.h.b16 %v4528
  %v4802 = vunpack.c.l.b16 %v4529
  %v4803 = vunpack.c.h.b16 %v4529
  %v4804 = vunpack.c.l.b16 %v4530
  %v4805 = vunpack.c.h.b16 %v4530
  %v4806 = vunpack.c.l.b16 %v4531
  %v4807 = vunpack.c.h.b16 %v4531
  %v4808 = vunpack.c.l.b16 %v4532
  %v4809 = vunpack.c.h.b16 %v4532
  %v4810 = vunpack.c.l.b16 %v4533
  %v4811 = vunpack.c.h.b16 %v4533
  %v4812 = vunpack.c.l.b16 %v4534
  %v4813 = vunpack.c.h.b16 %v4534
  %v4814 = vunpack.c.l.b16 %v4535
  %v4815 = vunpack.c.h.b16 %v4535
  %v4816 = vunpack.c.l.b16 %v4536
  %v4817 = vunpack.c.h.b16 %v4536
  %v4818 = vunpack.c.l.b16 %v4537
  %v4819 = vunpack.c.h.b16 %v4537
  %v4820 = vunpack.c.l.b16 %v4538
  %v4821 = vunpack.c.h.b16 %v4538
  %v4822 = vunpack.c.l.b16 %v4539
  %v4823 = vunpack.c.h.b16 %v4539
  %v4824 = vunpack.c.l.b16 %v4540
  %v4825 = vunpack.c.h.b16 %v4540
  %v4826 = vunpack.c.l.b16 %v4541
  %v4827 = vunpack.c.h.b16 %v4541
  %v4828 = vunpack.c.l.b16 %v4542
  %v4829 = vunpack.c.h.b16 %v4542
  %v4830 = vunpack.c.l.b16 %v4543
  %v4831 = vunpack.c.h.b16 %v4543
  %v4832 = vunpack.c.l.b16 %v4544
  %v4833 = vunpack.c.h.b16 %v4544
  %v4834 = vunpack.c.l.b16 %v4545
  %v4835 = vunpack.c.h.b16 %v4545
  %v4836 = vunpack.c.l.b16 %v4546
  %v4837 = vunpack.c.h.b16 %v4546
  %v4838 = vunpack.c.l.b16 %v4547
  %v4839 = vunpack.c.h.b16 %v4547
  %v4840 = vunpack.c.l.b16 %v4548
  %v4841 = vunpack.c.h.b16 %v4548
  %v4842 = vunpack.c.l.b16 %v4549
  %v4843 = vunpack.c.h.b16 %v4549
  %v4844 = vunpack.c.l.b16 %v4550
  %v4845 = vunpack.c.h.b16 %v4550
  %v4846 = vunpack.c.l.b16 %v4551
  %v4847 = vunpack.c.h.b16 %v4551
  %v4848 = vunpack.c.l.b16 %v4552
  %v4849 = vunpack.c.h.b16 %v4552
  %v4850 = vunpack.c.l.b16 %v4553
  %v4851 = vunpack.c.h.b16 %v4553
  %v4852 = vunpack.c.l.b16 %v4554
  %v4853 = vunpack.c.h.b16 %v4554
  %v4854 = vunpack.c.l.b16 %v4555
  %v4855 = vunpack.c.h.b16 %v4555
  %v4856 = vunpack.c.l.b16 %v4556
  %v4857 = vunpack.c.h.b16 %v4556
  %v4858 = vunpack.c.l.b16 %v4557
  %v4859 = vunpack.c.h.b16 %v4557
  %v4860 = vunpack.c.l.b16 %v4558
  %v4861 = vunpack.c.h.b16 %v4558
  %v4862 = vunpack.c.l.b16 %v4559
  %v4863 = vunpack.c.h.b16 %v4559
  %v4864 = vunpack.c.l.b16 %v4560
  %v4865 = vunpack.c.h.b16 %v4560
  %v4866 = vunpack.c.l.b16 %v4561
  %v4867 = vunpack.c.h.b16 %v4561
  %v4868 = vunpack.c.l.b16 %v4562
  %v4869 = vunpack.c.h.b16 %v4562
  %v4870 = vunpack.c.l.b16 %v4563
  %v4871 = vunpack.c.h.b16 %v4563
  %v4872 = vunpack.c.l.b16 %v4564
  %v4873 = vunpack.c.h.b16 %v4564
  %v4874 = vunpack.c.l.b16 %v4565
  %v4875 = vunpack.c.h.b16 %v4565
  %v4876 = vunpack.c.l.b16 %v4566
  %v4877 = vunpack.c.h.b16 %v4566
  %v4878 = vunpack.c.l.b16 %v4567
  %v4879 = vunpack.c.h.b16 %v4567
  %v4880 = vunpack.c.l.b16 %v4568
  %v4881 = vunpack.c.h.b16 %v4568
  %v4882 = vunpack.c.l.b16 %v4569
  %v4883 = vunpack.c.h.b16 %v4569
  %v4884 = vunpack.c.l.b16 %v4570
  %v4885 = vunpack.c.h.b16 %v4570
  %v4886 = vunpack.c.l.b16 %v4571
  %v4887 = vunpack.c.h.b16 %v4571
  %v4888 = vunpack.c.l.b16 %v4572
  %v4889 = vunpack.c.h.b16 %v4572
  %v4890 = vunpack.c.l.b16 %v4573
  %v4891 = vunpack.c.h.b16 %v4573
  %v4892 = vunpack.c.l.b16 %v4574
  %v4893 = vunpack.c.h.b16 %v4574
  %v4894 = vunpack.c.l.b16 %v4575
  %v4895 = vunpack.c.h.b16 %v4575
  %v4896 = vunpack.c.l.b16 %v4576
  %v4897 = vunpack.c.h.b16 %v4576
  %v4898 = vunpack.c.l.b16 %v4577
  %v4899 = vunpack.c.h.b16 %v4577
  %v4900 = vunpack.c.l.b16 %v4578
  %v4901 = vunpack.c.h.b16 %v4578
  %v4902 = vunpack.c.l.b16 %v4579
  %v4903 = vunpack.c.h.b16 %v4579
  %v4904 = vunpack.c.l.b16 %v4580
  %v4905 = vunpack.c.h.b16 %v4580
  %v4906 = vunpack.c.l.b16 %v4581
  %v4907 = vunpack.c.h.b16 %v4581
  %v4908 = vunpack.c.l.b16 %v4582
  %v4909 = vunpack.c.h.b16 %v4582
  %v4910 = vunpack.c.l.b16 %v4583
  %v4911 = vunpack.c.h.b16 %v4583
  %v4912 = vunpack.c.l.b16 %v4584
  %v4913 = vunpack.c.h.b16 %v4584
  %v4914 = vunpack.c.l.b16 %v4585
  %v4915 = vunpack.c.h.b16 %v4585
  %v4916 = vunpack.c.l.b16 %v4586
  %v4917 = vunpack.c.h.b16 %v4586
  %v4918 = vunpack.c.l.b16 %v4587
  %v4919 = vunpack.c.h.b16 %v4587
  %v4920 = vunpack.c.l.b16 %v4588
  %v4921 = vunpack.c.h.b16 %v4588
  %v4922 = vunpack.c.l.b16 %v4589
  %v4923 = vunpack.c.h.b16 %v4589
  %v4924 = vunpack.c.l.b16 %v4590
  %v4925 = vunpack.c.h.b16 %v4590
  %v4926 = vunpack.c.l.b16 %v4591
  %v4927 = vunpack.c.h.b16 %v4591
  %v4928 = vunpack.c.l.b16 %v4592
  %v4929 = vunpack.c.h.b16 %v4592
  %v4930 = vunpack.c.l.b16 %v4593
  %v4931 = vunpack.c.h.b16 %v4593
  %v4932 = vunpack.c.l.b16 %v4594
  %v4933 = vunpack.c.h.b16 %v4594
  %v4934 = vunpack.c.l.b16 %v4595
  %v4935 = vunpack.c.h.b16 %v4595
  %v4936 = vunpack.c.l.b16 %v4596
  %v4937 = vunpack.c.h.b16 %v4596
  %v4938 = vunpack.c.l.b16 %v4597
  %v4939 = vunpack.c.h.b16 %v4597
  %v4940 = vunpack.c.l.b16 %v4598
  %v4941 = vunpack.c.h.b16 %v4598
  %v4942 = vunpack.c.l.b16 %v4599
  %v4943 = vunpack.c.h.b16 %v4599
  %v4944 = vunpack.c.l.b16 %v4600
  %v4945 = vunpack.c.h.b16 %v4600
  %v4946 = vunpack.c.l.b16 %v4601
  %v4947 = vunpack.c.h.b16 %v4601
  %v4948 = vunpack.c.l.b16 %v4602
  %v4949 = vunpack.c.h.b16 %v4602
  %v4950 = vunpack.c.l.b16 %v4603
  %v4951 = vunpack.c.h.b16 %v4603
  %v4952 = vunpack.c.l.b16 %v4604
  %v4953 = vunpack.c.h.b16 %v4604
  %v4954 = vunpack.c.l.b16 %v4605
  %v4955 = vunpack.c.h.b16 %v4605
  %v4956 = vunpack.c.l.b16 %v4606
  %v4957 = vunpack.c.h.b16 %v4606
  %v4958 = vunpack.c.l.b16 %v4607
  %v4959 = vunpack.c.h.b16 %v4607
  %v4960 = vunpack.c.l.b16 %v4608
  %v4961 = vunpack.c.h.b16 %v4608
  %v4962 = vunpack.c.l.b16 %v4609
  %v4963 = vunpack.c.h.b16 %v4609
  %v4964 = vunpack.c.l.b16 %v4610
  %v4965 = vunpack.c.h.b16 %v4610
  %v4966 = vunpack.c.l.b16 %v4611
  %v4967 = vunpack.c.h.b16 %v4611
  %v4968 = vunpack.c.l.b16 %v4612
  %v4969 = vunpack.c.h.b16 %v4612
  %v4970 = vunpack.c.l.b16 %v4613
  %v4971 = vunpack.c.h.b16 %v4613
  %v4972 = vunpack.c.l.b16 %v4614
  %v4973 = vunpack.c.h.b16 %v4614
  %v4974 = vunpack.c.l.b16 %v4615
  %v4975 = vunpack.c.h.b16 %v4615
  %v4976 = vunpack.c.l.b16 %v4616
  %v4977 = vunpack.c.h.b16 %v4616
  %v4978 = vunpack.c.l.b16 %v4617
  %v4979 = vunpack.c.h.b16 %v4617
  %v4980 = vunpack.c.l.b16 %v4618
  %v4981 = vunpack.c.h.b16 %v4618
  %v4982 = vunpack.c.l.b16 %v4619
  %v4983 = vunpack.c.h.b16 %v4619
  %v4984 = vunpack.c.l.b16 %v4620
  %v4985 = vunpack.c.h.b16 %v4620
  %v4986 = vunpack.c.l.b16 %v4621
  %v4987 = vunpack.c.h.b16 %v4621
  %v4988 = vunpack.c.l.b16 %v4622
  %v4989 = vunpack.c.h.b16 %v4622
  %v4990 = vunpack.c.l.b16 %v4623
  %v4991 = vunpack.c.h.b16 %v4623
  %v4992 = vunpack.c.l.b16 %v4624
  %v4993 = vunpack.c.h.b16 %v4624
  %v4994 = vunpack.c.l.b16 %v4625
  %v4995 = vunpack.c.h.b16 %v4625
  %v4996 = vunpack.c.l.b16 %v4626
  %v4997 = vunpack.c.h.b16 %v4626
  %v4998 = vunpack.c.l.b16 %v4627
  %v4999 = vunpack.c.h.b16 %v4627
  %v5000 = vunpack.c.l.b16 %v4628
  %v5001 = vunpack.c.h.b16 %v4628
  %v5002 = vunpack.c.l.b16 %v4629
  %v5003 = vunpack.c.h.b16 %v4629
  %v5004 = vunpack.c.l.b16 %v4630
  %v5005 = vunpack.c.h.b16 %v4630
  %v5006 = vunpack.c.l.b16 %v4631
  %v5007 = vunpack.c.h.b16 %v4631
  %v5008 = vunpack.c.l.b16 %v4632
  %v5009 = vunpack.c.h.b16 %v4632
  %v5010 = vunpack.c.l.b16 %v4633
  %v5011 = vunpack.c.h.b16 %v4633
  %v5012 = vunpack.c.l.b16 %v4634
  %v5013 = vunpack.c.h.b16 %v4634
  %v5014 = vunpack.c.l.b16 %v4635
  %v5015 = vunpack.c.h.b16 %v4635
  %v5016 = vunpack.c.l.b16 %v4636
  %v5017 = vunpack.c.h.b16 %v4636
  %v5018 = vunpack.c.l.b16 %v4637
  %v5019 = vunpack.c.h.b16 %v4637
  %v5020 = vunpack.c.l.b16 %v4638
  %v5021 = vunpack.c.h.b16 %v4638
  %v5022 = vunpack.c.l.b16 %v4639
  %v5023 = vunpack.c.h.b16 %v4639
  %v5024 = vpack.c.b16 %v4776, %v4768
  %v5025 = vpack.c.b16 %v4777, %v4769
  %v5026 = vpack.c.b16 %v4778, %v4770
  %v5027 = vpack.c.b16 %v4779, %v4771
  %v5028 = vpack.c.b16 %v4780, %v4772
  %v5029 = vpack.c.b16 %v4781, %v4773
  %v5030 = vpack.c.b16 %v4782, %v4774
  %v5031 = vpack.c.b16 %v4783, %v4775
  %v5032 = vpack.c.b16 %v4792, %v4784
  %v5033 = vpack.c.b16 %v4793, %v4785
  %v5034 = vpack.c.b16 %v4794, %v4786
  %v5035 = vpack.c.b16 %v4795, %v4787
  %v5036 = vpack.c.b16 %v4796, %v4788
  %v5037 = vpack.c.b16 %v4797, %v4789
  %v5038 = vpack.c.b16 %v4798, %v4790
  %v5039 = vpack.c.b16 %v4799, %v4791
  %v5040 = vpack.c.b16 %v4808, %v4800
  %v5041 = vpack.c.b16 %v4809, %v4801
  %v5042 = vpack.c.b16 %v4810, %v4802
  %v5043 = vpack.c.b16 %v4811, %v4803
  %v5044 = vpack.c.b16 %v4812, %v4804
  %v5045 = vpack.c.b16 %v4813, %v4805
  %v5046 = vpack.c.b16 %v4814, %v4806
  %v5047 = vpack.c.b16 %v4815, %v4807
  %v5048 = vpack.c.b16 %v4824, %v4816
  %v5049 = vpack.c.b16 %v4825, %v4817
  %v5050 = vpack.c.b16 %v4826, %v4818
  %v5051 = vpack.c.b16 %v4827, %v4819
  %v5052 = vpack.c.b16 %v4828, %v4820
  %v5053 = vpack.c.b16 %v4829, %v4821
  %v5054 = vpack.c.b16 %v4830, %v4822
  %v5055 = vpack.c.b16 %v4831, %v4823
  %v5056 = vpack.c.b16 %v4840, %v4832
  %v5057 = vpack.c.b16 %v4841, %v4833
  %v5058 = vpack.c.b16 %v4842, %v4834
  %v5059 = vpack.c.b16 %v4843, %v4835
  %v5060 = vpack.c.b16 %v4844, %v4836
  %v5061 = vpack.c.b16 %v4845, %v4837
  %v5062 = vpack.c.b16 %v4846, %v4838
  %v5063 = vpack.c.b16 %v4847, %v4839
  %v5064 = vpack.c.b16 %v4856, %v4848
  %v5065 = vpack.c.b16 %v4857, %v4849
  %v5066 = vpack.c.b16 %v4858, %v4850
  %v5067 = vpack.c.b16 %v4859, %v4851
  %v5068 = vpack.c.b16 %v4860, %v4852
  %v5069 = vpack.c.b16 %v4861, %v4853
  %v5070 = vpack.c.b16 %v4862, %v4854
  %v5071 = vpack.c.b16 %v4863, %v4855
  %v5072 = vpack.c.b16 %v4872, %v4864
  %v5073 = vpack.c.b16 %v4873, %v4865
  %v5074 = vpack.c.b16 %v4874, %v4866
  %v5075 = vpack.c.b16 %v4875, %v4867
  %v5076 = vpack.c.b16 %v4876, %v4868
  %v5077 = vpack.c.b16 %v4877, %v4869
  %v5078 = vpack.c.b16 %v4878, %v4870
  %v5079 = vpack.c.b16 %v4879, %v4871
  %v5080 = vpack.c.b16 %v4888, %v4880
  %v5081 = vpack.c.b16 %v4889, %v4881
  %v5082 = vpack.c.b16 %v4890, %v4882
  %v5083 = vpack.c.b16 %v4891, %v4883
  %v5084 = vpack.c.b16 %v4892, %v4884
  %v5085 = vpack.c.b16 %v4893, %v4885
  %v5086 = vpack.c.b16 %v4894, %v4886
  %v5087 = vpack.c.b16 %v4895, %v4887
  %v5088 = vpack.c.b16 %v4904, %v4896
  %v5089 = vpack.c.b16 %v4905, %v4897
  %v5090 = vpack.c.b16 %v4906, %v4898
  %v5091 = vpack.c.b16 %v4907, %v4899
  %v5092 = vpack.c.b16 %v4908, %v4900
  %v5093 = vpack.c.b16 %v4909, %v4901
  %v5094 = vpack.c.b16 %v4910, %v4902
  %v5095 = vpack.c.b16 %v4911, %v4903
  %v5096 = vpack.c.b16 %v4920, %v4912
  %v5097 = vpack.c.b16 %v4921, %v4913
  %v5098 = vpack.c.b16 %v4922, %v4914
  %v5099 = vpack.c.b16 %v4923, %v4915
  %v5100 = vpack.c.b16 %v4924, %v4916
  %v5101 = vpack.c.b16 %v4925, %v4917
  %v5102 = vpack.c.b16 %v4926, %v4918
  %v5103 = vpack.c.b16 %v4927, %v4919
  %v5104 = vpack.c.b16 %v4936, %v4928
  %v5105 = vpack.c.b16 %v4937, %v4929
  %v5106 = vpack.c.b16 %v4938, %v4930
  %v5107 = vpack.c.b16 %v4939, %v4931
  %v5108 = vpack.c.b16 %v4940, %v4932
  %v5109 = vpack.c.b16 %v4941, %v4933
  %v5110 = vpack.c.b16 %v4942, %v4934
  %v5111 = vpack.c.b16 %v4943, %v4935
  %v5112 = vpack.c.b16 %v4952, %v4944
  %v5113 = vpack.c.b16 %v4953, %v4945
  %v5114 = vpack.c.b16 %v4954, %v4946
  %v5115 = vpack.c.b16 %v4955, %v4947
  %v5116 = vpack.c.b16 %v4956, %v4948
  %v5117 = vpack.c.b16 %v4957, %v4949
  %v5118 = vpack.c.b16 %v4958, %v4950
  %v5119 = vpack.c.b16 %v4959, %v4951
  %v5120 = vpack.c.b16 %v4968, %v4960
  %v5121 = vpack.c.b16 %v4969, %v4961
  %v5122 = vpack.c.b16 %v4970, %v4962
  %v5123 = vpack.c.b16 %v4971, %v4963
  %v5124 = vpack.c.b16 %v4972, %v4964
  %v5125 = vpack.c.b16 %v4973, %v4965
  %v5126 = vpack.c.b16 %v4974, %v4966
  %v5127 = vpack.c.b16 %v4975, %v4967
  %v5128 = vpack.c.b16 %v4984, %v4976
  %v5129 = vpack.c.b16 %v4985, %v4977
  %v5130 = vpack.c.b16 %v4986, %v4978
  %v5131 = vpack.c.b16 %v4987, %v4979
  %v5132 = vpack.c.b16 %v4988, %v4980
  %v5133 = vpack.c.b16 %v4989, %v4981
  %v5134 = vpack.c.b16 %v4990, %v4982
  %v5135 = vpack.c.b16 %v4991, %v4983
  %v5136 = vpack.c.b16 %v5000, %v4992
  %v5137 = vpack.c.b16 %v5001, %v4993
  %v5138 = vpack.c.b16 %v5002, %v4994
  %v5139 = vpack.c.b16 %v5003, %v4995
  %v5140 = vpack.c.b16 %v5004, %v4996
  %v5141 = vpack.c.b16 %v5005, %v4997
  %v5142 = vpack.c.b16 %v5006, %v4998
  %v5143 = vpack.c.b16 %v5007, %v4999
  %v5144 = vpack.c.b16 %v5016, %v5008
  %v5145 = vpack.c.b16 %v5017, %v5009
  %v5146 = vpack.c.b16 %v5018, %v5010
  %v5147 = vpack.c.b16 %v5019, %v5011
  %v5148 = vpack.c.b16 %v5020, %v5012
  %v5149 = vpack.c.b16 %v5021, %v5013
  %v5150 = vpack.c.b16 %v5022, %v5014
  %v5151 = vpack.c.b16 %v5023, %v5015
  %5280 = vmatprep.subr.bf16.mxu0 %v5025
  %5281 = vmatpush1.bf16.msra.mxu0 %v5024
  %5282 = vmatprep.subr.bf16.mxu0 %v5033
  %5283 = vmatpush1.bf16.msra.mxu0 %v5032
  %5284 = vmatprep.subr.bf16.mxu0 %v5041
  %5285 = vmatpush1.bf16.msra.mxu0 %v5040
  %5286 = vmatprep.subr.bf16.mxu0 %v5049
  %5287 = vmatpush1.bf16.msra.mxu0 %v5048
  %5288 = vmatprep.subr.bf16.mxu0 %v5057
  %5289 = vmatpush1.bf16.msra.mxu0 %v5056
  %5290 = vmatprep.subr.bf16.mxu0 %v5065
  %5291 = vmatpush1.bf16.msra.mxu0 %v5064
  %5292 = vmatprep.subr.bf16.mxu0 %v5073
  %5293 = vmatpush1.bf16.msra.mxu0 %v5072
  %5294 = vmatprep.subr.bf16.mxu0 %v5081
  %5295 = vmatpush1.bf16.msra.mxu0 %v5080
  %5296 = vmatprep.subr.bf16.mxu0 %v5089
  %5297 = vmatpush1.bf16.msra.mxu0 %v5088
  %5298 = vmatprep.subr.bf16.mxu0 %v5097
  %5299 = vmatpush1.bf16.msra.mxu0 %v5096
  %5300 = vmatprep.subr.bf16.mxu0 %v5105
  %5301 = vmatpush1.bf16.msra.mxu0 %v5104
  %5302 = vmatprep.subr.bf16.mxu0 %v5113
  %5303 = vmatpush1.bf16.msra.mxu0 %v5112
  %5304 = vmatprep.subr.bf16.mxu0 %v5121
  %5305 = vmatpush1.bf16.msra.mxu0 %v5120
  %5306 = vmatprep.subr.bf16.mxu0 %v5129
  %5307 = vmatpush1.bf16.msra.mxu0 %v5128
  %5308 = vmatprep.subr.bf16.mxu0 %v5137
  %5309 = vmatpush1.bf16.msra.mxu0 %v5136
  %5310 = vmatprep.subr.bf16.mxu0 %v5145
  %5311 = vmatpush1.bf16.msra.mxu0 %v5144
  %5312 = vmatprep.mubr.bf16.mxu0 %v4511
  %5313 = vmatmul.mubr.bf16.gmra.mrb[0].mxu0 %v4510
  %v5314 = vpop.f32.mrb[0].mxu0
  %v5315 = vadd.f32 %v4502, %v5314
  %v5316 = vpop.f32.mrb[0].mxu0
  %v5317 = vadd.f32 %v4503, %v5316
  %v5318 = vpop.f32.mrb[0].mxu0
  %v5319 = vpop.f32.mrb[0].mxu0
  %5320 = vdwg.mxu0
  %5321 = vmatprep.subr.bf16.mxu0 %v5027
  %5322 = vmatpush1.bf16.msra.mxu0 %v5026
  %5323 = vmatprep.subr.bf16.mxu0 %v5035
  %5324 = vmatpush1.bf16.msra.mxu0 %v5034
  %5325 = vmatprep.subr.bf16.mxu0 %v5043
  %5326 = vmatpush1.bf16.msra.mxu0 %v5042
  %5327 = vmatprep.subr.bf16.mxu0 %v5051
  %5328 = vmatpush1.bf16.msra.mxu0 %v5050
  %5329 = vmatprep.subr.bf16.mxu0 %v5059
  %5330 = vmatpush1.bf16.msra.mxu0 %v5058
  %5331 = vmatprep.subr.bf16.mxu0 %v5067
  %5332 = vmatpush1.bf16.msra.mxu0 %v5066
  %5333 = vmatprep.subr.bf16.mxu0 %v5075
  %5334 = vmatpush1.bf16.msra.mxu0 %v5074
  %5335 = vmatprep.subr.bf16.mxu0 %v5083
  %5336 = vmatpush1.bf16.msra.mxu0 %v5082
  %5337 = vmatprep.subr.bf16.mxu0 %v5091
  %5338 = vmatpush1.bf16.msra.mxu0 %v5090
  %5339 = vmatprep.subr.bf16.mxu0 %v5099
  %5340 = vmatpush1.bf16.msra.mxu0 %v5098
  %5341 = vmatprep.subr.bf16.mxu0 %v5107
  %5342 = vmatpush1.bf16.msra.mxu0 %v5106
  %5343 = vmatprep.subr.bf16.mxu0 %v5115
  %5344 = vmatpush1.bf16.msra.mxu0 %v5114
  %5345 = vmatprep.subr.bf16.mxu0 %v5123
  %5346 = vmatpush1.bf16.msra.mxu0 %v5122
  %5347 = vmatprep.subr.bf16.mxu0 %v5131
  %5348 = vmatpush1.bf16.msra.mxu0 %v5130
  %5349 = vmatprep.subr.bf16.mxu0 %v5139
  %5350 = vmatpush1.bf16.msra.mxu0 %v5138
  %5351 = vmatprep.subr.bf16.mxu0 %v5147
  %5352 = vmatpush1.bf16.msra.mxu0 %v5146
  %5353 = vmatprep.mubr.bf16.mxu0 %v4511
  %5354 = vmatmul.mubr.bf16.gmra.mrb[0].mxu0 %v4510
  %v5355 = vpop.f32.mrb[0].mxu0
  %v5356 = vadd.f32 %v4504, %v5355
  %v5357 = vpop.f32.mrb[0].mxu0
  %v5358 = vadd.f32 %v4505, %v5357
  %v5359 = vpop.f32.mrb[0].mxu0
  %v5360 = vpop.f32.mrb[0].mxu0
  %5361 = vdwg.mxu0
  %5362 = vmatprep.subr.bf16.mxu0 %v5029
  %5363 = vmatpush1.bf16.msra.mxu0 %v5028
  %5364 = vmatprep.subr.bf16.mxu0 %v5037
  %5365 = vmatpush1.bf16.msra.mxu0 %v5036
  %5366 = vmatprep.subr.bf16.mxu0 %v5045
  %5367 = vmatpush1.bf16.msra.mxu0 %v5044
  %5368 = vmatprep.subr.bf16.mxu0 %v5053
  %5369 = vmatpush1.bf16.msra.mxu0 %v5052
  %5370 = vmatprep.subr.bf16.mxu0 %v5061
  %5371 = vmatpush1.bf16.msra.mxu0 %v5060
  %5372 = vmatprep.subr.bf16.mxu0 %v5069
  %5373 = vmatpush1.bf16.msra.mxu0 %v5068
  %5374 = vmatprep.subr.bf16.mxu0 %v5077
  %5375 = vmatpush1.bf16.msra.mxu0 %v5076
  %5376 = vmatprep.subr.bf16.mxu0 %v5085
  %5377 = vmatpush1.bf16.msra.mxu0 %v5084
  %5378 = vmatprep.subr.bf16.mxu0 %v5093
  %5379 = vmatpush1.bf16.msra.mxu0 %v5092
  %5380 = vmatprep.subr.bf16.mxu0 %v5101
  %5381 = vmatpush1.bf16.msra.mxu0 %v5100
  %5382 = vmatprep.subr.bf16.mxu0 %v5109
  %5383 = vmatpush1.bf16.msra.mxu0 %v5108
  %5384 = vmatprep.subr.bf16.mxu0 %v5117
  %5385 = vmatpush1.bf16.msra.mxu0 %v5116
  %5386 = vmatprep.subr.bf16.mxu0 %v5125
  %5387 = vmatpush1.bf16.msra.mxu0 %v5124
  %5388 = vmatprep.subr.bf16.mxu0 %v5133
  %5389 = vmatpush1.bf16.msra.mxu0 %v5132
  %5390 = vmatprep.subr.bf16.mxu0 %v5141
  %5391 = vmatpush1.bf16.msra.mxu0 %v5140
  %5392 = vmatprep.subr.bf16.mxu0 %v5149
  %5393 = vmatpush1.bf16.msra.mxu0 %v5148
  %5394 = vmatprep.mubr.bf16.mxu0 %v4511
  %5395 = vmatmul.mubr.bf16.gmra.mrb[0].mxu0 %v4510
  %v5396 = vpop.f32.mrb[0].mxu0
  %v5397 = vadd.f32 %v4506, %v5396
  %v5398 = vpop.f32.mrb[0].mxu0
  %v5399 = vadd.f32 %v4507, %v5398
  %v5400 = vpop.f32.mrb[0].mxu0
  %v5401 = vpop.f32.mrb[0].mxu0
  %5402 = vdwg.mxu0
  %5403 = vmatprep.subr.bf16.mxu0 %v5031
  %5404 = vmatpush1.bf16.msra.mxu0 %v5030
  %5405 = vmatprep.subr.bf16.mxu0 %v5039
  %5406 = vmatpush1.bf16.msra.mxu0 %v5038
  %5407 = vmatprep.subr.bf16.mxu0 %v5047
  %5408 = vmatpush1.bf16.msra.mxu0 %v5046
  %5409 = vmatprep.subr.bf16.mxu0 %v5055
  %5410 = vmatpush1.bf16.msra.mxu0 %v5054
  %5411 = vmatprep.subr.bf16.mxu0 %v5063
  %5412 = vmatpush1.bf16.msra.mxu0 %v5062
  %5413 = vmatprep.subr.bf16.mxu0 %v5071
  %5414 = vmatpush1.bf16.msra.mxu0 %v5070
  %5415 = vmatprep.subr.bf16.mxu0 %v5079
  %5416 = vmatpush1.bf16.msra.mxu0 %v5078
  %5417 = vmatprep.subr.bf16.mxu0 %v5087
  %5418 = vmatpush1.bf16.msra.mxu0 %v5086
  %5419 = vmatprep.subr.bf16.mxu0 %v5095
  %5420 = vmatpush1.bf16.msra.mxu0 %v5094
  %5421 = vmatprep.subr.bf16.mxu0 %v5103
  %5422 = vmatpush1.bf16.msra.mxu0 %v5102
  %5423 = vmatprep.subr.bf16.mxu0 %v5111
  %5424 = vmatpush1.bf16.msra.mxu0 %v5110
  %5425 = vmatprep.subr.bf16.mxu0 %v5119
  %5426 = vmatpush1.bf16.msra.mxu0 %v5118
  %5427 = vmatprep.subr.bf16.mxu0 %v5127
  %5428 = vmatpush1.bf16.msra.mxu0 %v5126
  %5429 = vmatprep.subr.bf16.mxu0 %v5135
  %5430 = vmatpush1.bf16.msra.mxu0 %v5134
  %5431 = vmatprep.subr.bf16.mxu0 %v5143
  %5432 = vmatpush1.bf16.msra.mxu0 %v5142
  %5433 = vmatprep.subr.bf16.mxu0 %v5151
  %5434 = vmatpush1.bf16.msra.mxu0 %v5150
  %5435 = vmatprep.mubr.bf16.mxu0 %v4511
  %5436 = vmatmul.mubr.bf16.gmra.mrb[0].mxu0 %v4510
  %v5437 = vpop.f32.mrb[0].mxu0
  %v5438 = vadd.f32 %v4508, %v5437
  %v5439 = vpop.f32.mrb[0].mxu0
  %v5440 = vadd.f32 %v4509, %v5439
  %v5441 = vpop.f32.mrb[0].mxu0
  %v5442 = vpop.f32.mrb[0].mxu0
  %5443 = vdwg.mxu0
  %v5444 = vxor.u32 %v5315, 2147483648
  %v5445 = vxor.u32 %v5317, 2147483648
  %v5446 = vmul.f32 %v5444, 1.442695
  %v5447 = vpow.pop %v5446
  %v5448 = vmul.f32 %v5445, 1.442695
  %v5449 = vpow.pop %v5448
  %v5450 = vadd.f32 %v5447, 1.0
  %v5451 = vadd.f32 %v5449, 1.0
  %v5452 = vrcp.pop %v5450
  %v5453 = vmul.f32 1.0, %v5452
  %v5454 = vrcp.pop %v5451
  %v5455 = vmul.f32 1.0, %v5454
  %v5456 = vxor.u32 %v5356, 2147483648
  %v5457 = vxor.u32 %v5358, 2147483648
  %v5458 = vmul.f32 %v5456, 1.442695
  %v5459 = vpow.pop %v5458
  %v5460 = vmul.f32 %v5457, 1.442695
  %v5461 = vpow.pop %v5460
  %v5462 = vadd.f32 %v5459, 1.0
  %v5463 = vadd.f32 %v5461, 1.0
  %v5464 = vrcp.pop %v5462
  %v5465 = vmul.f32 1.0, %v5464
  %v5466 = vrcp.pop %v5463
  %v5467 = vmul.f32 1.0, %v5466
  %v5468 = vtanh.pop %v5397
  %v5469 = vtanh.pop %v5399
  %v5470 = vxor.u32 %v5438, 2147483648
  %v5471 = vxor.u32 %v5440, 2147483648
  %v5472 = vmul.f32 %v5470, 1.442695
  %v5473 = vpow.pop %v5472
  %v5474 = vmul.f32 %v5471, 1.442695
  %v5475 = vpow.pop %v5474
  %v5476 = vadd.f32 %v5473, 1.0
  %v5477 = vadd.f32 %v5475, 1.0
  %v5478 = vrcp.pop %v5476
  %v5479 = vmul.f32 1.0, %v5478
  %v5480 = vrcp.pop %v5477
  %v5481 = vmul.f32 1.0, %v5480
  %v5482 = vmul.f32 %v5453, %v4491
  %v5483 = vmul.f32 %v5455, %v4492
  %v5484 = vmul.f32 %v5465, %v5468
  %v5485 = vmul.f32 %v5467, %v5469
  %v5486 = vadd.f32 %v5482, %v5484
  %v5487 = vadd.f32 %v5483, %v5485
  %v5488 = vtanh.pop %v5486
  %v5489 = vtanh.pop %v5487
  %v5490 = vmul.f32 %v5479, %v5488
  %v5491 = vmul.f32 %v5481, %v5489
  %s5492 = scalar_lea.vmem %s4, 32
  %5493 = vst [vmem:[%s5492] sm:$0xff] %v5491
  %s5494 = smul.u32 5, 8
  %s5495 = smul.addr %s5494, 8
  %s5496 = scalar_lea.vmem [#allocation2], %s5495
  %v5497 = vld [vmem:[%s5496] sm:$0xff]
  %v5498 = vld [vmem:[%s5496 + $0x8] sm:$0xff]
  %v5499 = vld [vmem:[%s5496 + $0x10] sm:$0xff]
  %v5500 = vld [vmem:[%s5496 + $0x18] sm:$0xff]
  %v5501 = vld [vmem:[%s5496 + $0x20] sm:$0xff]
  %v5502 = vld [vmem:[%s5496 + $0x28] sm:$0xff]
  %v5503 = vld [vmem:[%s5496 + $0x30] sm:$0xff]
  %v5504 = vld [vmem:[%s5496 + $0x38] sm:$0xff]
  %v5505 = vpack.c.bf16 %v5490, %v5490
  %v5506 = vpack.c.bf16 %v5491, %v5491
  %v5507 = vld [vmem:[%s2] sm:$0xff]
  %v5508 = vld [vmem:[%s2 + $0x8] sm:$0xff]
  %v5509 = vld [vmem:[%s2 + $0x10] sm:$0xff]
  %v5510 = vld [vmem:[%s2 + $0x18] sm:$0xff]
  %v5511 = vld [vmem:[%s2 + $0x20] sm:$0xff]
  %v5512 = vld [vmem:[%s2 + $0x28] sm:$0xff]
  %v5513 = vld [vmem:[%s2 + $0x30] sm:$0xff]
  %v5514 = vld [vmem:[%s2 + $0x38] sm:$0xff]
  %v5515 = vld [vmem:[%s2 + $0x40] sm:$0xff]
  %v5516 = vld [vmem:[%s2 + $0x48] sm:$0xff]
  %v5517 = vld [vmem:[%s2 + $0x50] sm:$0xff]
  %v5518 = vld [vmem:[%s2 + $0x58] sm:$0xff]
  %v5519 = vld [vmem:[%s2 + $0x60] sm:$0xff]
  %v5520 = vld [vmem:[%s2 + $0x68] sm:$0xff]
  %v5521 = vld [vmem:[%s2 + $0x70] sm:$0xff]
  %v5522 = vld [vmem:[%s2 + $0x78] sm:$0xff]
  %v5523 = vld [vmem:[%s2 + $0x80] sm:$0xff]
  %v5524 = vld [vmem:[%s2 + $0x88] sm:$0xff]
  %v5525 = vld [vmem:[%s2 + $0x90] sm:$0xff]
  %v5526 = vld [vmem:[%s2 + $0x98] sm:$0xff]
  %v5527 = vld [vmem:[%s2 + $0xa0] sm:$0xff]
  %v5528 = vld [vmem:[%s2 + $0xa8] sm:$0xff]
  %v5529 = vld [vmem:[%s2 + $0xb0] sm:$0xff]
  %v5530 = vld [vmem:[%s2 + $0xb8] sm:$0xff]
  %v5531 = vld [vmem:[%s2 + $0xc0] sm:$0xff]
  %v5532 = vld [vmem:[%s2 + $0xc8] sm:$0xff]
  %v5533 = vld [vmem:[%s2 + $0xd0] sm:$0xff]
  %v5534 = vld [vmem:[%s2 + $0xd8] sm:$0xff]
  %v5535 = vld [vmem:[%s2 + $0xe0] sm:$0xff]
  %v5536 = vld [vmem:[%s2 + $0xe8] sm:$0xff]
  %v5537 = vld [vmem:[%s2 + $0xf0] sm:$0xff]
  %v5538 = vld [vmem:[%s2 + $0xf8] sm:$0xff]
  %v5539 = vld [vmem:[%s2 + $0x100] sm:$0xff]
  %v5540 = vld [vmem:[%s2 + $0x108] sm:$0xff]
  %v5541 = vld [vmem:[%s2 + $0x110] sm:$0xff]
  %v5542 = vld [vmem:[%s2 + $0x118] sm:$0xff]
  %v5543 = vld [vmem:[%s2 + $0x120] sm:$0xff]
  %v5544 = vld [vmem:[%s2 + $0x128] sm:$0xff]
  %v5545 = vld [vmem:[%s2 + $0x130] sm:$0xff]
  %v5546 = vld [vmem:[%s2 + $0x138] sm:$0xff]
  %v5547 = vld [vmem:[%s2 + $0x140] sm:$0xff]
  %v5548 = vld [vmem:[%s2 + $0x148] sm:$0xff]
  %v5549 = vld [vmem:[%s2 + $0x150] sm:$0xff]
  %v5550 = vld [vmem:[%s2 + $0x158] sm:$0xff]
  %v5551 = vld [vmem:[%s2 + $0x160] sm:$0xff]
  %v5552 = vld [vmem:[%s2 + $0x168] sm:$0xff]
  %v5553 = vld [vmem:[%s2 + $0x170] sm:$0xff]
  %v5554 = vld [vmem:[%s2 + $0x178] sm:$0xff]
  %v5555 = vld [vmem:[%s2 + $0x180] sm:$0xff]
  %v5556 = vld [vmem:[%s2 + $0x188] sm:$0xff]
  %v5557 = vld [vmem:[%s2 + $0x190] sm:$0xff]
  %v5558 = vld [vmem:[%s2 + $0x198] sm:$0xff]
  %v5559 = vld [vmem:[%s2 + $0x1a0] sm:$0xff]
  %v5560 = vld [vmem:[%s2 + $0x1a8] sm:$0xff]
  %v5561 = vld [vmem:[%s2 + $0x1b0] sm:$0xff]
  %v5562 = vld [vmem:[%s2 + $0x1b8] sm:$0xff]
  %v5563 = vld [vmem:[%s2 + $0x1c0] sm:$0xff]
  %v5564 = vld [vmem:[%s2 + $0x1c8] sm:$0xff]
  %v5565 = vld [vmem:[%s2 + $0x1d0] sm:$0xff]
  %v5566 = vld [vmem:[%s2 + $0x1d8] sm:$0xff]
  %v5567 = vld [vmem:[%s2 + $0x1e0] sm:$0xff]
  %v5568 = vld [vmem:[%s2 + $0x1e8] sm:$0xff]
  %v5569 = vld [vmem:[%s2 + $0x1f0] sm:$0xff]
  %v5570 = vld [vmem:[%s2 + $0x1f8] sm:$0xff]
  %v5571 = vld [vmem:[%s2 + $0x200] sm:$0xff]
  %v5572 = vld [vmem:[%s2 + $0x208] sm:$0xff]
  %v5573 = vld [vmem:[%s2 + $0x210] sm:$0xff]
  %v5574 = vld [vmem:[%s2 + $0x218] sm:$0xff]
  %v5575 = vld [vmem:[%s2 + $0x220] sm:$0xff]
  %v5576 = vld [vmem:[%s2 + $0x228] sm:$0xff]
  %v5577 = vld [vmem:[%s2 + $0x230] sm:$0xff]
  %v5578 = vld [vmem:[%s2 + $0x238] sm:$0xff]
  %v5579 = vld [vmem:[%s2 + $0x240] sm:$0xff]
  %v5580 = vld [vmem:[%s2 + $0x248] sm:$0xff]
  %v5581 = vld [vmem:[%s2 + $0x250] sm:$0xff]
  %v5582 = vld [vmem:[%s2 + $0x258] sm:$0xff]
  %v5583 = vld [vmem:[%s2 + $0x260] sm:$0xff]
  %v5584 = vld [vmem:[%s2 + $0x268] sm:$0xff]
  %v5585 = vld [vmem:[%s2 + $0x270] sm:$0xff]
  %v5586 = vld [vmem:[%s2 + $0x278] sm:$0xff]
  %v5587 = vld [vmem:[%s2 + $0x280] sm:$0xff]
  %v5588 = vld [vmem:[%s2 + $0x288] sm:$0xff]
  %v5589 = vld [vmem:[%s2 + $0x290] sm:$0xff]
  %v5590 = vld [vmem:[%s2 + $0x298] sm:$0xff]
  %v5591 = vld [vmem:[%s2 + $0x2a0] sm:$0xff]
  %v5592 = vld [vmem:[%s2 + $0x2a8] sm:$0xff]
  %v5593 = vld [vmem:[%s2 + $0x2b0] sm:$0xff]
  %v5594 = vld [vmem:[%s2 + $0x2b8] sm:$0xff]
  %v5595 = vld [vmem:[%s2 + $0x2c0] sm:$0xff]
  %v5596 = vld [vmem:[%s2 + $0x2c8] sm:$0xff]
  %v5597 = vld [vmem:[%s2 + $0x2d0] sm:$0xff]
  %v5598 = vld [vmem:[%s2 + $0x2d8] sm:$0xff]
  %v5599 = vld [vmem:[%s2 + $0x2e0] sm:$0xff]
  %v5600 = vld [vmem:[%s2 + $0x2e8] sm:$0xff]
  %v5601 = vld [vmem:[%s2 + $0x2f0] sm:$0xff]
  %v5602 = vld [vmem:[%s2 + $0x2f8] sm:$0xff]
  %v5603 = vld [vmem:[%s2 + $0x300] sm:$0xff]
  %v5604 = vld [vmem:[%s2 + $0x308] sm:$0xff]
  %v5605 = vld [vmem:[%s2 + $0x310] sm:$0xff]
  %v5606 = vld [vmem:[%s2 + $0x318] sm:$0xff]
  %v5607 = vld [vmem:[%s2 + $0x320] sm:$0xff]
  %v5608 = vld [vmem:[%s2 + $0x328] sm:$0xff]
  %v5609 = vld [vmem:[%s2 + $0x330] sm:$0xff]
  %v5610 = vld [vmem:[%s2 + $0x338] sm:$0xff]
  %v5611 = vld [vmem:[%s2 + $0x340] sm:$0xff]
  %v5612 = vld [vmem:[%s2 + $0x348] sm:$0xff]
  %v5613 = vld [vmem:[%s2 + $0x350] sm:$0xff]
  %v5614 = vld [vmem:[%s2 + $0x358] sm:$0xff]
  %v5615 = vld [vmem:[%s2 + $0x360] sm:$0xff]
  %v5616 = vld [vmem:[%s2 + $0x368] sm:$0xff]
  %v5617 = vld [vmem:[%s2 + $0x370] sm:$0xff]
  %v5618 = vld [vmem:[%s2 + $0x378] sm:$0xff]
  %v5619 = vld [vmem:[%s2 + $0x380] sm:$0xff]
  %v5620 = vld [vmem:[%s2 + $0x388] sm:$0xff]
  %v5621 = vld [vmem:[%s2 + $0x390] sm:$0xff]
  %v5622 = vld [vmem:[%s2 + $0x398] sm:$0xff]
  %v5623 = vld [vmem:[%s2 + $0x3a0] sm:$0xff]
  %v5624 = vld [vmem:[%s2 + $0x3a8] sm:$0xff]
  %v5625 = vld [vmem:[%s2 + $0x3b0] sm:$0xff]
  %v5626 = vld [vmem:[%s2 + $0x3b8] sm:$0xff]
  %v5627 = vld [vmem:[%s2 + $0x3c0] sm:$0xff]
  %v5628 = vld [vmem:[%s2 + $0x3c8] sm:$0xff]
  %v5629 = vld [vmem:[%s2 + $0x3d0] sm:$0xff]
  %v5630 = vld [vmem:[%s2 + $0x3d8] sm:$0xff]
  %v5631 = vld [vmem:[%s2 + $0x3e0] sm:$0xff]
  %v5632 = vld [vmem:[%s2 + $0x3e8] sm:$0xff]
  %v5633 = vld [vmem:[%s2 + $0x3f0] sm:$0xff]
  %v5634 = vld [vmem:[%s2 + $0x3f8] sm:$0xff]
  %v5763 = vunpack.c.l.b16 %v5507
  %v5764 = vunpack.c.h.b16 %v5507
  %v5765 = vunpack.c.l.b16 %v5508
  %v5766 = vunpack.c.h.b16 %v5508
  %v5767 = vunpack.c.l.b16 %v5509
  %v5768 = vunpack.c.h.b16 %v5509
  %v5769 = vunpack.c.l.b16 %v5510
  %v5770 = vunpack.c.h.b16 %v5510
  %v5771 = vunpack.c.l.b16 %v5511
  %v5772 = vunpack.c.h.b16 %v5511
  %v5773 = vunpack.c.l.b16 %v5512
  %v5774 = vunpack.c.h.b16 %v5512
  %v5775 = vunpack.c.l.b16 %v5513
  %v5776 = vunpack.c.h.b16 %v5513
  %v5777 = vunpack.c.l.b16 %v5514
  %v5778 = vunpack.c.h.b16 %v5514
  %v5779 = vunpack.c.l.b16 %v5515
  %v5780 = vunpack.c.h.b16 %v5515
  %v5781 = vunpack.c.l.b16 %v5516
  %v5782 = vunpack.c.h.b16 %v5516
  %v5783 = vunpack.c.l.b16 %v5517
  %v5784 = vunpack.c.h.b16 %v5517
  %v5785 = vunpack.c.l.b16 %v5518
  %v5786 = vunpack.c.h.b16 %v5518
  %v5787 = vunpack.c.l.b16 %v5519
  %v5788 = vunpack.c.h.b16 %v5519
  %v5789 = vunpack.c.l.b16 %v5520
  %v5790 = vunpack.c.h.b16 %v5520
  %v5791 = vunpack.c.l.b16 %v5521
  %v5792 = vunpack.c.h.b16 %v5521
  %v5793 = vunpack.c.l.b16 %v5522
  %v5794 = vunpack.c.h.b16 %v5522
  %v5795 = vunpack.c.l.b16 %v5523
  %v5796 = vunpack.c.h.b16 %v5523
  %v5797 = vunpack.c.l.b16 %v5524
  %v5798 = vunpack.c.h.b16 %v5524
  %v5799 = vunpack.c.l.b16 %v5525
  %v5800 = vunpack.c.h.b16 %v5525
  %v5801 = vunpack.c.l.b16 %v5526
  %v5802 = vunpack.c.h.b16 %v5526
  %v5803 = vunpack.c.l.b16 %v5527
  %v5804 = vunpack.c.h.b16 %v5527
  %v5805 = vunpack.c.l.b16 %v5528
  %v5806 = vunpack.c.h.b16 %v5528
  %v5807 = vunpack.c.l.b16 %v5529
  %v5808 = vunpack.c.h.b16 %v5529
  %v5809 = vunpack.c.l.b16 %v5530
  %v5810 = vunpack.c.h.b16 %v5530
  %v5811 = vunpack.c.l.b16 %v5531
  %v5812 = vunpack.c.h.b16 %v5531
  %v5813 = vunpack.c.l.b16 %v5532
  %v5814 = vunpack.c.h.b16 %v5532
  %v5815 = vunpack.c.l.b16 %v5533
  %v5816 = vunpack.c.h.b16 %v5533
  %v5817 = vunpack.c.l.b16 %v5534
  %v5818 = vunpack.c.h.b16 %v5534
  %v5819 = vunpack.c.l.b16 %v5535
  %v5820 = vunpack.c.h.b16 %v5535
  %v5821 = vunpack.c.l.b16 %v5536
  %v5822 = vunpack.c.h.b16 %v5536
  %v5823 = vunpack.c.l.b16 %v5537
  %v5824 = vunpack.c.h.b16 %v5537
  %v5825 = vunpack.c.l.b16 %v5538
  %v5826 = vunpack.c.h.b16 %v5538
  %v5827 = vunpack.c.l.b16 %v5539
  %v5828 = vunpack.c.h.b16 %v5539
  %v5829 = vunpack.c.l.b16 %v5540
  %v5830 = vunpack.c.h.b16 %v5540
  %v5831 = vunpack.c.l.b16 %v5541
  %v5832 = vunpack.c.h.b16 %v5541
  %v5833 = vunpack.c.l.b16 %v5542
  %v5834 = vunpack.c.h.b16 %v5542
  %v5835 = vunpack.c.l.b16 %v5543
  %v5836 = vunpack.c.h.b16 %v5543
  %v5837 = vunpack.c.l.b16 %v5544
  %v5838 = vunpack.c.h.b16 %v5544
  %v5839 = vunpack.c.l.b16 %v5545
  %v5840 = vunpack.c.h.b16 %v5545
  %v5841 = vunpack.c.l.b16 %v5546
  %v5842 = vunpack.c.h.b16 %v5546
  %v5843 = vunpack.c.l.b16 %v5547
  %v5844 = vunpack.c.h.b16 %v5547
  %v5845 = vunpack.c.l.b16 %v5548
  %v5846 = vunpack.c.h.b16 %v5548
  %v5847 = vunpack.c.l.b16 %v5549
  %v5848 = vunpack.c.h.b16 %v5549
  %v5849 = vunpack.c.l.b16 %v5550
  %v5850 = vunpack.c.h.b16 %v5550
  %v5851 = vunpack.c.l.b16 %v5551
  %v5852 = vunpack.c.h.b16 %v5551
  %v5853 = vunpack.c.l.b16 %v5552
  %v5854 = vunpack.c.h.b16 %v5552
  %v5855 = vunpack.c.l.b16 %v5553
  %v5856 = vunpack.c.h.b16 %v5553
  %v5857 = vunpack.c.l.b16 %v5554
  %v5858 = vunpack.c.h.b16 %v5554
  %v5859 = vunpack.c.l.b16 %v5555
  %v5860 = vunpack.c.h.b16 %v5555
  %v5861 = vunpack.c.l.b16 %v5556
  %v5862 = vunpack.c.h.b16 %v5556
  %v5863 = vunpack.c.l.b16 %v5557
  %v5864 = vunpack.c.h.b16 %v5557
  %v5865 = vunpack.c.l.b16 %v5558
  %v5866 = vunpack.c.h.b16 %v5558
  %v5867 = vunpack.c.l.b16 %v5559
  %v5868 = vunpack.c.h.b16 %v5559
  %v5869 = vunpack.c.l.b16 %v5560
  %v5870 = vunpack.c.h.b16 %v5560
  %v5871 = vunpack.c.l.b16 %v5561
  %v5872 = vunpack.c.h.b16 %v5561
  %v5873 = vunpack.c.l.b16 %v5562
  %v5874 = vunpack.c.h.b16 %v5562
  %v5875 = vunpack.c.l.b16 %v5563
  %v5876 = vunpack.c.h.b16 %v5563
  %v5877 = vunpack.c.l.b16 %v5564
  %v5878 = vunpack.c.h.b16 %v5564
  %v5879 = vunpack.c.l.b16 %v5565
  %v5880 = vunpack.c.h.b16 %v5565
  %v5881 = vunpack.c.l.b16 %v5566
  %v5882 = vunpack.c.h.b16 %v5566
  %v5883 = vunpack.c.l.b16 %v5567
  %v5884 = vunpack.c.h.b16 %v5567
  %v5885 = vunpack.c.l.b16 %v5568
  %v5886 = vunpack.c.h.b16 %v5568
  %v5887 = vunpack.c.l.b16 %v5569
  %v5888 = vunpack.c.h.b16 %v5569
  %v5889 = vunpack.c.l.b16 %v5570
  %v5890 = vunpack.c.h.b16 %v5570
  %v5891 = vunpack.c.l.b16 %v5571
  %v5892 = vunpack.c.h.b16 %v5571
  %v5893 = vunpack.c.l.b16 %v5572
  %v5894 = vunpack.c.h.b16 %v5572
  %v5895 = vunpack.c.l.b16 %v5573
  %v5896 = vunpack.c.h.b16 %v5573
  %v5897 = vunpack.c.l.b16 %v5574
  %v5898 = vunpack.c.h.b16 %v5574
  %v5899 = vunpack.c.l.b16 %v5575
  %v5900 = vunpack.c.h.b16 %v5575
  %v5901 = vunpack.c.l.b16 %v5576
  %v5902 = vunpack.c.h.b16 %v5576
  %v5903 = vunpack.c.l.b16 %v5577
  %v5904 = vunpack.c.h.b16 %v5577
  %v5905 = vunpack.c.l.b16 %v5578
  %v5906 = vunpack.c.h.b16 %v5578
  %v5907 = vunpack.c.l.b16 %v5579
  %v5908 = vunpack.c.h.b16 %v5579
  %v5909 = vunpack.c.l.b16 %v5580
  %v5910 = vunpack.c.h.b16 %v5580
  %v5911 = vunpack.c.l.b16 %v5581
  %v5912 = vunpack.c.h.b16 %v5581
  %v5913 = vunpack.c.l.b16 %v5582
  %v5914 = vunpack.c.h.b16 %v5582
  %v5915 = vunpack.c.l.b16 %v5583
  %v5916 = vunpack.c.h.b16 %v5583
  %v5917 = vunpack.c.l.b16 %v5584
  %v5918 = vunpack.c.h.b16 %v5584
  %v5919 = vunpack.c.l.b16 %v5585
  %v5920 = vunpack.c.h.b16 %v5585
  %v5921 = vunpack.c.l.b16 %v5586
  %v5922 = vunpack.c.h.b16 %v5586
  %v5923 = vunpack.c.l.b16 %v5587
  %v5924 = vunpack.c.h.b16 %v5587
  %v5925 = vunpack.c.l.b16 %v5588
  %v5926 = vunpack.c.h.b16 %v5588
  %v5927 = vunpack.c.l.b16 %v5589
  %v5928 = vunpack.c.h.b16 %v5589
  %v5929 = vunpack.c.l.b16 %v5590
  %v5930 = vunpack.c.h.b16 %v5590
  %v5931 = vunpack.c.l.b16 %v5591
  %v5932 = vunpack.c.h.b16 %v5591
  %v5933 = vunpack.c.l.b16 %v5592
  %v5934 = vunpack.c.h.b16 %v5592
  %v5935 = vunpack.c.l.b16 %v5593
  %v5936 = vunpack.c.h.b16 %v5593
  %v5937 = vunpack.c.l.b16 %v5594
  %v5938 = vunpack.c.h.b16 %v5594
  %v5939 = vunpack.c.l.b16 %v5595
  %v5940 = vunpack.c.h.b16 %v5595
  %v5941 = vunpack.c.l.b16 %v5596
  %v5942 = vunpack.c.h.b16 %v5596
  %v5943 = vunpack.c.l.b16 %v5597
  %v5944 = vunpack.c.h.b16 %v5597
  %v5945 = vunpack.c.l.b16 %v5598
  %v5946 = vunpack.c.h.b16 %v5598
  %v5947 = vunpack.c.l.b16 %v5599
  %v5948 = vunpack.c.h.b16 %v5599
  %v5949 = vunpack.c.l.b16 %v5600
  %v5950 = vunpack.c.h.b16 %v5600
  %v5951 = vunpack.c.l.b16 %v5601
  %v5952 = vunpack.c.h.b16 %v5601
  %v5953 = vunpack.c.l.b16 %v5602
  %v5954 = vunpack.c.h.b16 %v5602
  %v5955 = vunpack.c.l.b16 %v5603
  %v5956 = vunpack.c.h.b16 %v5603
  %v5957 = vunpack.c.l.b16 %v5604
  %v5958 = vunpack.c.h.b16 %v5604
  %v5959 = vunpack.c.l.b16 %v5605
  %v5960 = vunpack.c.h.b16 %v5605
  %v5961 = vunpack.c.l.b16 %v5606
  %v5962 = vunpack.c.h.b16 %v5606
  %v5963 = vunpack.c.l.b16 %v5607
  %v5964 = vunpack.c.h.b16 %v5607
  %v5965 = vunpack.c.l.b16 %v5608
  %v5966 = vunpack.c.h.b16 %v5608
  %v5967 = vunpack.c.l.b16 %v5609
  %v5968 = vunpack.c.h.b16 %v5609
  %v5969 = vunpack.c.l.b16 %v5610
  %v5970 = vunpack.c.h.b16 %v5610
  %v5971 = vunpack.c.l.b16 %v5611
  %v5972 = vunpack.c.h.b16 %v5611
  %v5973 = vunpack.c.l.b16 %v5612
  %v5974 = vunpack.c.h.b16 %v5612
  %v5975 = vunpack.c.l.b16 %v5613
  %v5976 = vunpack.c.h.b16 %v5613
  %v5977 = vunpack.c.l.b16 %v5614
  %v5978 = vunpack.c.h.b16 %v5614
  %v5979 = vunpack.c.l.b16 %v5615
  %v5980 = vunpack.c.h.b16 %v5615
  %v5981 = vunpack.c.l.b16 %v5616
  %v5982 = vunpack.c.h.b16 %v5616
  %v5983 = vunpack.c.l.b16 %v5617
  %v5984 = vunpack.c.h.b16 %v5617
  %v5985 = vunpack.c.l.b16 %v5618
  %v5986 = vunpack.c.h.b16 %v5618
  %v5987 = vunpack.c.l.b16 %v5619
  %v5988 = vunpack.c.h.b16 %v5619
  %v5989 = vunpack.c.l.b16 %v5620
  %v5990 = vunpack.c.h.b16 %v5620
  %v5991 = vunpack.c.l.b16 %v5621
  %v5992 = vunpack.c.h.b16 %v5621
  %v5993 = vunpack.c.l.b16 %v5622
  %v5994 = vunpack.c.h.b16 %v5622
  %v5995 = vunpack.c.l.b16 %v5623
  %v5996 = vunpack.c.h.b16 %v5623
  %v5997 = vunpack.c.l.b16 %v5624
  %v5998 = vunpack.c.h.b16 %v5624
  %v5999 = vunpack.c.l.b16 %v5625
  %v6000 = vunpack.c.h.b16 %v5625
  %v6001 = vunpack.c.l.b16 %v5626
  %v6002 = vunpack.c.h.b16 %v5626
  %v6003 = vunpack.c.l.b16 %v5627
  %v6004 = vunpack.c.h.b16 %v5627
  %v6005 = vunpack.c.l.b16 %v5628
  %v6006 = vunpack.c.h.b16 %v5628
  %v6007 = vunpack.c.l.b16 %v5629
  %v6008 = vunpack.c.h.b16 %v5629
  %v6009 = vunpack.c.l.b16 %v5630
  %v6010 = vunpack.c.h.b16 %v5630
  %v6011 = vunpack.c.l.b16 %v5631
  %v6012 = vunpack.c.h.b16 %v5631
  %v6013 = vunpack.c.l.b16 %v5632
  %v6014 = vunpack.c.h.b16 %v5632
  %v6015 = vunpack.c.l.b16 %v5633
  %v6016 = vunpack.c.h.b16 %v5633
  %v6017 = vunpack.c.l.b16 %v5634
  %v6018 = vunpack.c.h.b16 %v5634
  %v6019 = vpack.c.b16 %v5771, %v5763
  %v6020 = vpack.c.b16 %v5772, %v5764
  %v6021 = vpack.c.b16 %v5773, %v5765
  %v6022 = vpack.c.b16 %v5774, %v5766
  %v6023 = vpack.c.b16 %v5775, %v5767
  %v6024 = vpack.c.b16 %v5776, %v5768
  %v6025 = vpack.c.b16 %v5777, %v5769
  %v6026 = vpack.c.b16 %v5778, %v5770
  %v6027 = vpack.c.b16 %v5787, %v5779
  %v6028 = vpack.c.b16 %v5788, %v5780
  %v6029 = vpack.c.b16 %v5789, %v5781
  %v6030 = vpack.c.b16 %v5790, %v5782
  %v6031 = vpack.c.b16 %v5791, %v5783
  %v6032 = vpack.c.b16 %v5792, %v5784
  %v6033 = vpack.c.b16 %v5793, %v5785
  %v6034 = vpack.c.b16 %v5794, %v5786
  %v6035 = vpack.c.b16 %v5803, %v5795
  %v6036 = vpack.c.b16 %v5804, %v5796
  %v6037 = vpack.c.b16 %v5805, %v5797
  %v6038 = vpack.c.b16 %v5806, %v5798
  %v6039 = vpack.c.b16 %v5807, %v5799
  %v6040 = vpack.c.b16 %v5808, %v5800
  %v6041 = vpack.c.b16 %v5809, %v5801
  %v6042 = vpack.c.b16 %v5810, %v5802
  %v6043 = vpack.c.b16 %v5819, %v5811
  %v6044 = vpack.c.b16 %v5820, %v5812
  %v6045 = vpack.c.b16 %v5821, %v5813
  %v6046 = vpack.c.b16 %v5822, %v5814
  %v6047 = vpack.c.b16 %v5823, %v5815
  %v6048 = vpack.c.b16 %v5824, %v5816
  %v6049 = vpack.c.b16 %v5825, %v5817
  %v6050 = vpack.c.b16 %v5826, %v5818
  %v6051 = vpack.c.b16 %v5835, %v5827
  %v6052 = vpack.c.b16 %v5836, %v5828
  %v6053 = vpack.c.b16 %v5837, %v5829
  %v6054 = vpack.c.b16 %v5838, %v5830
  %v6055 = vpack.c.b16 %v5839, %v5831
  %v6056 = vpack.c.b16 %v5840, %v5832
  %v6057 = vpack.c.b16 %v5841, %v5833
  %v6058 = vpack.c.b16 %v5842, %v5834
  %v6059 = vpack.c.b16 %v5851, %v5843
  %v6060 = vpack.c.b16 %v5852, %v5844
  %v6061 = vpack.c.b16 %v5853, %v5845
  %v6062 = vpack.c.b16 %v5854, %v5846
  %v6063 = vpack.c.b16 %v5855, %v5847
  %v6064 = vpack.c.b16 %v5856, %v5848
  %v6065 = vpack.c.b16 %v5857, %v5849
  %v6066 = vpack.c.b16 %v5858, %v5850
  %v6067 = vpack.c.b16 %v5867, %v5859
  %v6068 = vpack.c.b16 %v5868, %v5860
  %v6069 = vpack.c.b16 %v5869, %v5861
  %v6070 = vpack.c.b16 %v5870, %v5862
  %v6071 = vpack.c.b16 %v5871, %v5863
  %v6072 = vpack.c.b16 %v5872, %v5864
  %v6073 = vpack.c.b16 %v5873, %v5865
  %v6074 = vpack.c.b16 %v5874, %v5866
  %v6075 = vpack.c.b16 %v5883, %v5875
  %v6076 = vpack.c.b16 %v5884, %v5876
  %v6077 = vpack.c.b16 %v5885, %v5877
  %v6078 = vpack.c.b16 %v5886, %v5878
  %v6079 = vpack.c.b16 %v5887, %v5879
  %v6080 = vpack.c.b16 %v5888, %v5880
  %v6081 = vpack.c.b16 %v5889, %v5881
  %v6082 = vpack.c.b16 %v5890, %v5882
  %v6083 = vpack.c.b16 %v5899, %v5891
  %v6084 = vpack.c.b16 %v5900, %v5892
  %v6085 = vpack.c.b16 %v5901, %v5893
  %v6086 = vpack.c.b16 %v5902, %v5894
  %v6087 = vpack.c.b16 %v5903, %v5895
  %v6088 = vpack.c.b16 %v5904, %v5896
  %v6089 = vpack.c.b16 %v5905, %v5897
  %v6090 = vpack.c.b16 %v5906, %v5898
  %v6091 = vpack.c.b16 %v5915, %v5907
  %v6092 = vpack.c.b16 %v5916, %v5908
  %v6093 = vpack.c.b16 %v5917, %v5909
  %v6094 = vpack.c.b16 %v5918, %v5910
  %v6095 = vpack.c.b16 %v5919, %v5911
  %v6096 = vpack.c.b16 %v5920, %v5912
  %v6097 = vpack.c.b16 %v5921, %v5913
  %v6098 = vpack.c.b16 %v5922, %v5914
  %v6099 = vpack.c.b16 %v5931, %v5923
  %v6100 = vpack.c.b16 %v5932, %v5924
  %v6101 = vpack.c.b16 %v5933, %v5925
  %v6102 = vpack.c.b16 %v5934, %v5926
  %v6103 = vpack.c.b16 %v5935, %v5927
  %v6104 = vpack.c.b16 %v5936, %v5928
  %v6105 = vpack.c.b16 %v5937, %v5929
  %v6106 = vpack.c.b16 %v5938, %v5930
  %v6107 = vpack.c.b16 %v5947, %v5939
  %v6108 = vpack.c.b16 %v5948, %v5940
  %v6109 = vpack.c.b16 %v5949, %v5941
  %v6110 = vpack.c.b16 %v5950, %v5942
  %v6111 = vpack.c.b16 %v5951, %v5943
  %v6112 = vpack.c.b16 %v5952, %v5944
  %v6113 = vpack.c.b16 %v5953, %v5945
  %v6114 = vpack.c.b16 %v5954, %v5946
  %v6115 = vpack.c.b16 %v5963, %v5955
  %v6116 = vpack.c.b16 %v5964, %v5956
  %v6117 = vpack.c.b16 %v5965, %v5957
  %v6118 = vpack.c.b16 %v5966, %v5958
  %v6119 = vpack.c.b16 %v5967, %v5959
  %v6120 = vpack.c.b16 %v5968, %v5960
  %v6121 = vpack.c.b16 %v5969, %v5961
  %v6122 = vpack.c.b16 %v5970, %v5962
  %v6123 = vpack.c.b16 %v5979, %v5971
  %v6124 = vpack.c.b16 %v5980, %v5972
  %v6125 = vpack.c.b16 %v5981, %v5973
  %v6126 = vpack.c.b16 %v5982, %v5974
  %v6127 = vpack.c.b16 %v5983, %v5975
  %v6128 = vpack.c.b16 %v5984, %v5976
  %v6129 = vpack.c.b16 %v5985, %v5977
  %v6130 = vpack.c.b16 %v5986, %v5978
  %v6131 = vpack.c.b16 %v5995, %v5987
  %v6132 = vpack.c.b16 %v5996, %v5988
  %v6133 = vpack.c.b16 %v5997, %v5989
  %v6134 = vpack.c.b16 %v5998, %v5990
  %v6135 = vpack.c.b16 %v5999, %v5991
  %v6136 = vpack.c.b16 %v6000, %v5992
  %v6137 = vpack.c.b16 %v6001, %v5993
  %v6138 = vpack.c.b16 %v6002, %v5994
  %v6139 = vpack.c.b16 %v6011, %v6003
  %v6140 = vpack.c.b16 %v6012, %v6004
  %v6141 = vpack.c.b16 %v6013, %v6005
  %v6142 = vpack.c.b16 %v6014, %v6006
  %v6143 = vpack.c.b16 %v6015, %v6007
  %v6144 = vpack.c.b16 %v6016, %v6008
  %v6145 = vpack.c.b16 %v6017, %v6009
  %v6146 = vpack.c.b16 %v6018, %v6010
  %6275 = vmatprep.subr.bf16.mxu0 %v6020
  %6276 = vmatpush1.bf16.msra.mxu0 %v6019
  %6277 = vmatprep.subr.bf16.mxu0 %v6028
  %6278 = vmatpush1.bf16.msra.mxu0 %v6027
  %6279 = vmatprep.subr.bf16.mxu0 %v6036
  %6280 = vmatpush1.bf16.msra.mxu0 %v6035
  %6281 = vmatprep.subr.bf16.mxu0 %v6044
  %6282 = vmatpush1.bf16.msra.mxu0 %v6043
  %6283 = vmatprep.subr.bf16.mxu0 %v6052
  %6284 = vmatpush1.bf16.msra.mxu0 %v6051
  %6285 = vmatprep.subr.bf16.mxu0 %v6060
  %6286 = vmatpush1.bf16.msra.mxu0 %v6059
  %6287 = vmatprep.subr.bf16.mxu0 %v6068
  %6288 = vmatpush1.bf16.msra.mxu0 %v6067
  %6289 = vmatprep.subr.bf16.mxu0 %v6076
  %6290 = vmatpush1.bf16.msra.mxu0 %v6075
  %6291 = vmatprep.subr.bf16.mxu0 %v6084
  %6292 = vmatpush1.bf16.msra.mxu0 %v6083
  %6293 = vmatprep.subr.bf16.mxu0 %v6092
  %6294 = vmatpush1.bf16.msra.mxu0 %v6091
  %6295 = vmatprep.subr.bf16.mxu0 %v6100
  %6296 = vmatpush1.bf16.msra.mxu0 %v6099
  %6297 = vmatprep.subr.bf16.mxu0 %v6108
  %6298 = vmatpush1.bf16.msra.mxu0 %v6107
  %6299 = vmatprep.subr.bf16.mxu0 %v6116
  %6300 = vmatpush1.bf16.msra.mxu0 %v6115
  %6301 = vmatprep.subr.bf16.mxu0 %v6124
  %6302 = vmatpush1.bf16.msra.mxu0 %v6123
  %6303 = vmatprep.subr.bf16.mxu0 %v6132
  %6304 = vmatpush1.bf16.msra.mxu0 %v6131
  %6305 = vmatprep.subr.bf16.mxu0 %v6140
  %6306 = vmatpush1.bf16.msra.mxu0 %v6139
  %6307 = vmatprep.mubr.bf16.mxu0 %v5506
  %6308 = vmatmul.mubr.bf16.gmra.mrb[0].mxu0 %v5505
  %v6309 = vpop.f32.mrb[0].mxu0
  %v6310 = vadd.f32 %v5497, %v6309
  %v6311 = vpop.f32.mrb[0].mxu0
  %v6312 = vadd.f32 %v5498, %v6311
  %v6313 = vpop.f32.mrb[0].mxu0
  %v6314 = vpop.f32.mrb[0].mxu0
  %6315 = vdwg.mxu0
  %6316 = vmatprep.subr.bf16.mxu0 %v6022
  %6317 = vmatpush1.bf16.msra.mxu0 %v6021
  %6318 = vmatprep.subr.bf16.mxu0 %v6030
  %6319 = vmatpush1.bf16.msra.mxu0 %v6029
  %6320 = vmatprep.subr.bf16.mxu0 %v6038
  %6321 = vmatpush1.bf16.msra.mxu0 %v6037
  %6322 = vmatprep.subr.bf16.mxu0 %v6046
  %6323 = vmatpush1.bf16.msra.mxu0 %v6045
  %6324 = vmatprep.subr.bf16.mxu0 %v6054
  %6325 = vmatpush1.bf16.msra.mxu0 %v6053
  %6326 = vmatprep.subr.bf16.mxu0 %v6062
  %6327 = vmatpush1.bf16.msra.mxu0 %v6061
  %6328 = vmatprep.subr.bf16.mxu0 %v6070
  %6329 = vmatpush1.bf16.msra.mxu0 %v6069
  %6330 = vmatprep.subr.bf16.mxu0 %v6078
  %6331 = vmatpush1.bf16.msra.mxu0 %v6077
  %6332 = vmatprep.subr.bf16.mxu0 %v6086
  %6333 = vmatpush1.bf16.msra.mxu0 %v6085
  %6334 = vmatprep.subr.bf16.mxu0 %v6094
  %6335 = vmatpush1.bf16.msra.mxu0 %v6093
  %6336 = vmatprep.subr.bf16.mxu0 %v6102
  %6337 = vmatpush1.bf16.msra.mxu0 %v6101
  %6338 = vmatprep.subr.bf16.mxu0 %v6110
  %6339 = vmatpush1.bf16.msra.mxu0 %v6109
  %6340 = vmatprep.subr.bf16.mxu0 %v6118
  %6341 = vmatpush1.bf16.msra.mxu0 %v6117
  %6342 = vmatprep.subr.bf16.mxu0 %v6126
  %6343 = vmatpush1.bf16.msra.mxu0 %v6125
  %6344 = vmatprep.subr.bf16.mxu0 %v6134
  %6345 = vmatpush1.bf16.msra.mxu0 %v6133
  %6346 = vmatprep.subr.bf16.mxu0 %v6142
  %6347 = vmatpush1.bf16.msra.mxu0 %v6141
  %6348 = vmatprep.mubr.bf16.mxu0 %v5506
  %6349 = vmatmul.mubr.bf16.gmra.mrb[0].mxu0 %v5505
  %v6350 = vpop.f32.mrb[0].mxu0
  %v6351 = vadd.f32 %v5499, %v6350
  %v6352 = vpop.f32.mrb[0].mxu0
  %v6353 = vadd.f32 %v5500, %v6352
  %v6354 = vpop.f32.mrb[0].mxu0
  %v6355 = vpop.f32.mrb[0].mxu0
  %6356 = vdwg.mxu0
  %6357 = vmatprep.subr.bf16.mxu0 %v6024
  %6358 = vmatpush1.bf16.msra.mxu0 %v6023
  %6359 = vmatprep.subr.bf16.mxu0 %v6032
  %6360 = vmatpush1.bf16.msra.mxu0 %v6031
  %6361 = vmatprep.subr.bf16.mxu0 %v6040
  %6362 = vmatpush1.bf16.msra.mxu0 %v6039
  %6363 = vmatprep.subr.bf16.mxu0 %v6048
  %6364 = vmatpush1.bf16.msra.mxu0 %v6047
  %6365 = vmatprep.subr.bf16.mxu0 %v6056
  %6366 = vmatpush1.bf16.msra.mxu0 %v6055
  %6367 = vmatprep.subr.bf16.mxu0 %v6064
  %6368 = vmatpush1.bf16.msra.mxu0 %v6063
  %6369 = vmatprep.subr.bf16.mxu0 %v6072
  %6370 = vmatpush1.bf16.msra.mxu0 %v6071
  %6371 = vmatprep.subr.bf16.mxu0 %v6080
  %6372 = vmatpush1.bf16.msra.mxu0 %v6079
  %6373 = vmatprep.subr.bf16.mxu0 %v6088
  %6374 = vmatpush1.bf16.msra.mxu0 %v6087
  %6375 = vmatprep.subr.bf16.mxu0 %v6096
  %6376 = vmatpush1.bf16.msra.mxu0 %v6095
  %6377 = vmatprep.subr.bf16.mxu0 %v6104
  %6378 = vmatpush1.bf16.msra.mxu0 %v6103
  %6379 = vmatprep.subr.bf16.mxu0 %v6112
  %6380 = vmatpush1.bf16.msra.mxu0 %v6111
  %6381 = vmatprep.subr.bf16.mxu0 %v6120
  %6382 = vmatpush1.bf16.msra.mxu0 %v6119
  %6383 = vmatprep.subr.bf16.mxu0 %v6128
  %6384 = vmatpush1.bf16.msra.mxu0 %v6127
  %6385 = vmatprep.subr.bf16.mxu0 %v6136
  %6386 = vmatpush1.bf16.msra.mxu0 %v6135
  %6387 = vmatprep.subr.bf16.mxu0 %v6144
  %6388 = vmatpush1.bf16.msra.mxu0 %v6143
  %6389 = vmatprep.mubr.bf16.mxu0 %v5506
  %6390 = vmatmul.mubr.bf16.gmra.mrb[0].mxu0 %v5505
  %v6391 = vpop.f32.mrb[0].mxu0
  %v6392 = vadd.f32 %v5501, %v6391
  %v6393 = vpop.f32.mrb[0].mxu0
  %v6394 = vadd.f32 %v5502, %v6393
  %v6395 = vpop.f32.mrb[0].mxu0
  %v6396 = vpop.f32.mrb[0].mxu0
  %6397 = vdwg.mxu0
  %6398 = vmatprep.subr.bf16.mxu0 %v6026
  %6399 = vmatpush1.bf16.msra.mxu0 %v6025
  %6400 = vmatprep.subr.bf16.mxu0 %v6034
  %6401 = vmatpush1.bf16.msra.mxu0 %v6033
  %6402 = vmatprep.subr.bf16.mxu0 %v6042
  %6403 = vmatpush1.bf16.msra.mxu0 %v6041
  %6404 = vmatprep.subr.bf16.mxu0 %v6050
  %6405 = vmatpush1.bf16.msra.mxu0 %v6049
  %6406 = vmatprep.subr.bf16.mxu0 %v6058
  %6407 = vmatpush1.bf16.msra.mxu0 %v6057
  %6408 = vmatprep.subr.bf16.mxu0 %v6066
  %6409 = vmatpush1.bf16.msra.mxu0 %v6065
  %6410 = vmatprep.subr.bf16.mxu0 %v6074
  %6411 = vmatpush1.bf16.msra.mxu0 %v6073
  %6412 = vmatprep.subr.bf16.mxu0 %v6082
  %6413 = vmatpush1.bf16.msra.mxu0 %v6081
  %6414 = vmatprep.subr.bf16.mxu0 %v6090
  %6415 = vmatpush1.bf16.msra.mxu0 %v6089
  %6416 = vmatprep.subr.bf16.mxu0 %v6098
  %6417 = vmatpush1.bf16.msra.mxu0 %v6097
  %6418 = vmatprep.subr.bf16.mxu0 %v6106
  %6419 = vmatpush1.bf16.msra.mxu0 %v6105
  %6420 = vmatprep.subr.bf16.mxu0 %v6114
  %6421 = vmatpush1.bf16.msra.mxu0 %v6113
  %6422 = vmatprep.subr.bf16.mxu0 %v6122
  %6423 = vmatpush1.bf16.msra.mxu0 %v6121
  %6424 = vmatprep.subr.bf16.mxu0 %v6130
  %6425 = vmatpush1.bf16.msra.mxu0 %v6129
  %6426 = vmatprep.subr.bf16.mxu0 %v6138
  %6427 = vmatpush1.bf16.msra.mxu0 %v6137
  %6428 = vmatprep.subr.bf16.mxu0 %v6146
  %6429 = vmatpush1.bf16.msra.mxu0 %v6145
  %6430 = vmatprep.mubr.bf16.mxu0 %v5506
  %6431 = vmatmul.mubr.bf16.gmra.mrb[0].mxu0 %v5505
  %v6432 = vpop.f32.mrb[0].mxu0
  %v6433 = vadd.f32 %v5503, %v6432
  %v6434 = vpop.f32.mrb[0].mxu0
  %v6435 = vadd.f32 %v5504, %v6434
  %v6436 = vpop.f32.mrb[0].mxu0
  %v6437 = vpop.f32.mrb[0].mxu0
  %6438 = vdwg.mxu0
  %v6439 = vxor.u32 %v6310, 2147483648
  %v6440 = vxor.u32 %v6312, 2147483648
  %v6441 = vmul.f32 %v6439, 1.442695
  %v6442 = vpow.pop %v6441
  %v6443 = vmul.f32 %v6440, 1.442695
  %v6444 = vpow.pop %v6443
  %v6445 = vadd.f32 %v6442, 1.0
  %v6446 = vadd.f32 %v6444, 1.0
  %v6447 = vrcp.pop %v6445
  %v6448 = vmul.f32 1.0, %v6447
  %v6449 = vrcp.pop %v6446
  %v6450 = vmul.f32 1.0, %v6449
  %v6451 = vxor.u32 %v6351, 2147483648
  %v6452 = vxor.u32 %v6353, 2147483648
  %v6453 = vmul.f32 %v6451, 1.442695
  %v6454 = vpow.pop %v6453
  %v6455 = vmul.f32 %v6452, 1.442695
  %v6456 = vpow.pop %v6455
  %v6457 = vadd.f32 %v6454, 1.0
  %v6458 = vadd.f32 %v6456, 1.0
  %v6459 = vrcp.pop %v6457
  %v6460 = vmul.f32 1.0, %v6459
  %v6461 = vrcp.pop %v6458
  %v6462 = vmul.f32 1.0, %v6461
  %v6463 = vtanh.pop %v6392
  %v6464 = vtanh.pop %v6394
  %v6465 = vxor.u32 %v6433, 2147483648
  %v6466 = vxor.u32 %v6435, 2147483648
  %v6467 = vmul.f32 %v6465, 1.442695
  %v6468 = vpow.pop %v6467
  %v6469 = vmul.f32 %v6466, 1.442695
  %v6470 = vpow.pop %v6469
  %v6471 = vadd.f32 %v6468, 1.0
  %v6472 = vadd.f32 %v6470, 1.0
  %v6473 = vrcp.pop %v6471
  %v6474 = vmul.f32 1.0, %v6473
  %v6475 = vrcp.pop %v6472
  %v6476 = vmul.f32 1.0, %v6475
  %v6477 = vmul.f32 %v6448, %v5486
  %v6478 = vmul.f32 %v6450, %v5487
  %v6479 = vmul.f32 %v6460, %v6463
  %v6480 = vmul.f32 %v6462, %v6464
  %v6481 = vadd.f32 %v6477, %v6479
  %v6482 = vadd.f32 %v6478, %v6480
  %v6483 = vtanh.pop %v6481
  %v6484 = vtanh.pop %v6482
  %v6485 = vmul.f32 %v6474, %v6483
  %v6486 = vmul.f32 %v6476, %v6484
  %s6487 = scalar_lea.vmem %s4, 40
  %6488 = vst [vmem:[%s6487] sm:$0xff] %v6486
  %s6489 = smul.u32 6, 8
  %s6490 = smul.addr %s6489, 8
  %s6491 = scalar_lea.vmem [#allocation2], %s6490
  %v6492 = vld [vmem:[%s6491] sm:$0xff]
  %v6493 = vld [vmem:[%s6491 + $0x8] sm:$0xff]
  %v6494 = vld [vmem:[%s6491 + $0x10] sm:$0xff]
  %v6495 = vld [vmem:[%s6491 + $0x18] sm:$0xff]
  %v6496 = vld [vmem:[%s6491 + $0x20] sm:$0xff]
  %v6497 = vld [vmem:[%s6491 + $0x28] sm:$0xff]
  %v6498 = vld [vmem:[%s6491 + $0x30] sm:$0xff]
  %v6499 = vld [vmem:[%s6491 + $0x38] sm:$0xff]
  %v6500 = vpack.c.bf16 %v6485, %v6485
  %v6501 = vpack.c.bf16 %v6486, %v6486
  %v6502 = vld [vmem:[%s2] sm:$0xff]
  %v6503 = vld [vmem:[%s2 + $0x8] sm:$0xff]
  %v6504 = vld [vmem:[%s2 + $0x10] sm:$0xff]
  %v6505 = vld [vmem:[%s2 + $0x18] sm:$0xff]
  %v6506 = vld [vmem:[%s2 + $0x20] sm:$0xff]
  %v6507 = vld [vmem:[%s2 + $0x28] sm:$0xff]
  %v6508 = vld [vmem:[%s2 + $0x30] sm:$0xff]
  %v6509 = vld [vmem:[%s2 + $0x38] sm:$0xff]
  %v6510 = vld [vmem:[%s2 + $0x40] sm:$0xff]
  %v6511 = vld [vmem:[%s2 + $0x48] sm:$0xff]
  %v6512 = vld [vmem:[%s2 + $0x50] sm:$0xff]
  %v6513 = vld [vmem:[%s2 + $0x58] sm:$0xff]
  %v6514 = vld [vmem:[%s2 + $0x60] sm:$0xff]
  %v6515 = vld [vmem:[%s2 + $0x68] sm:$0xff]
  %v6516 = vld [vmem:[%s2 + $0x70] sm:$0xff]
  %v6517 = vld [vmem:[%s2 + $0x78] sm:$0xff]
  %v6518 = vld [vmem:[%s2 + $0x80] sm:$0xff]
  %v6519 = vld [vmem:[%s2 + $0x88] sm:$0xff]
  %v6520 = vld [vmem:[%s2 + $0x90] sm:$0xff]
  %v6521 = vld [vmem:[%s2 + $0x98] sm:$0xff]
  %v6522 = vld [vmem:[%s2 + $0xa0] sm:$0xff]
  %v6523 = vld [vmem:[%s2 + $0xa8] sm:$0xff]
  %v6524 = vld [vmem:[%s2 + $0xb0] sm:$0xff]
  %v6525 = vld [vmem:[%s2 + $0xb8] sm:$0xff]
  %v6526 = vld [vmem:[%s2 + $0xc0] sm:$0xff]
  %v6527 = vld [vmem:[%s2 + $0xc8] sm:$0xff]
  %v6528 = vld [vmem:[%s2 + $0xd0] sm:$0xff]
  %v6529 = vld [vmem:[%s2 + $0xd8] sm:$0xff]
  %v6530 = vld [vmem:[%s2 + $0xe0] sm:$0xff]
  %v6531 = vld [vmem:[%s2 + $0xe8] sm:$0xff]
  %v6532 = vld [vmem:[%s2 + $0xf0] sm:$0xff]
  %v6533 = vld [vmem:[%s2 + $0xf8] sm:$0xff]
  %v6534 = vld [vmem:[%s2 + $0x100] sm:$0xff]
  %v6535 = vld [vmem:[%s2 + $0x108] sm:$0xff]
  %v6536 = vld [vmem:[%s2 + $0x110] sm:$0xff]
  %v6537 = vld [vmem:[%s2 + $0x118] sm:$0xff]
  %v6538 = vld [vmem:[%s2 + $0x120] sm:$0xff]
  %v6539 = vld [vmem:[%s2 + $0x128] sm:$0xff]
  %v6540 = vld [vmem:[%s2 + $0x130] sm:$0xff]
  %v6541 = vld [vmem:[%s2 + $0x138] sm:$0xff]
  %v6542 = vld [vmem:[%s2 + $0x140] sm:$0xff]
  %v6543 = vld [vmem:[%s2 + $0x148] sm:$0xff]
  %v6544 = vld [vmem:[%s2 + $0x150] sm:$0xff]
  %v6545 = vld [vmem:[%s2 + $0x158] sm:$0xff]
  %v6546 = vld [vmem:[%s2 + $0x160] sm:$0xff]
  %v6547 = vld [vmem:[%s2 + $0x168] sm:$0xff]
  %v6548 = vld [vmem:[%s2 + $0x170] sm:$0xff]
  %v6549 = vld [vmem:[%s2 + $0x178] sm:$0xff]
  %v6550 = vld [vmem:[%s2 + $0x180] sm:$0xff]
  %v6551 = vld [vmem:[%s2 + $0x188] sm:$0xff]
  %v6552 = vld [vmem:[%s2 + $0x190] sm:$0xff]
  %v6553 = vld [vmem:[%s2 + $0x198] sm:$0xff]
  %v6554 = vld [vmem:[%s2 + $0x1a0] sm:$0xff]
  %v6555 = vld [vmem:[%s2 + $0x1a8] sm:$0xff]
  %v6556 = vld [vmem:[%s2 + $0x1b0] sm:$0xff]
  %v6557 = vld [vmem:[%s2 + $0x1b8] sm:$0xff]
  %v6558 = vld [vmem:[%s2 + $0x1c0] sm:$0xff]
  %v6559 = vld [vmem:[%s2 + $0x1c8] sm:$0xff]
  %v6560 = vld [vmem:[%s2 + $0x1d0] sm:$0xff]
  %v6561 = vld [vmem:[%s2 + $0x1d8] sm:$0xff]
  %v6562 = vld [vmem:[%s2 + $0x1e0] sm:$0xff]
  %v6563 = vld [vmem:[%s2 + $0x1e8] sm:$0xff]
  %v6564 = vld [vmem:[%s2 + $0x1f0] sm:$0xff]
  %v6565 = vld [vmem:[%s2 + $0x1f8] sm:$0xff]
  %v6566 = vld [vmem:[%s2 + $0x200] sm:$0xff]
  %v6567 = vld [vmem:[%s2 + $0x208] sm:$0xff]
  %v6568 = vld [vmem:[%s2 + $0x210] sm:$0xff]
  %v6569 = vld [vmem:[%s2 + $0x218] sm:$0xff]
  %v6570 = vld [vmem:[%s2 + $0x220] sm:$0xff]
  %v6571 = vld [vmem:[%s2 + $0x228] sm:$0xff]
  %v6572 = vld [vmem:[%s2 + $0x230] sm:$0xff]
  %v6573 = vld [vmem:[%s2 + $0x238] sm:$0xff]
  %v6574 = vld [vmem:[%s2 + $0x240] sm:$0xff]
  %v6575 = vld [vmem:[%s2 + $0x248] sm:$0xff]
  %v6576 = vld [vmem:[%s2 + $0x250] sm:$0xff]
  %v6577 = vld [vmem:[%s2 + $0x258] sm:$0xff]
  %v6578 = vld [vmem:[%s2 + $0x260] sm:$0xff]
  %v6579 = vld [vmem:[%s2 + $0x268] sm:$0xff]
  %v6580 = vld [vmem:[%s2 + $0x270] sm:$0xff]
  %v6581 = vld [vmem:[%s2 + $0x278] sm:$0xff]
  %v6582 = vld [vmem:[%s2 + $0x280] sm:$0xff]
  %v6583 = vld [vmem:[%s2 + $0x288] sm:$0xff]
  %v6584 = vld [vmem:[%s2 + $0x290] sm:$0xff]
  %v6585 = vld [vmem:[%s2 + $0x298] sm:$0xff]
  %v6586 = vld [vmem:[%s2 + $0x2a0] sm:$0xff]
  %v6587 = vld [vmem:[%s2 + $0x2a8] sm:$0xff]
  %v6588 = vld [vmem:[%s2 + $0x2b0] sm:$0xff]
  %v6589 = vld [vmem:[%s2 + $0x2b8] sm:$0xff]
  %v6590 = vld [vmem:[%s2 + $0x2c0] sm:$0xff]
  %v6591 = vld [vmem:[%s2 + $0x2c8] sm:$0xff]
  %v6592 = vld [vmem:[%s2 + $0x2d0] sm:$0xff]
  %v6593 = vld [vmem:[%s2 + $0x2d8] sm:$0xff]
  %v6594 = vld [vmem:[%s2 + $0x2e0] sm:$0xff]
  %v6595 = vld [vmem:[%s2 + $0x2e8] sm:$0xff]
  %v6596 = vld [vmem:[%s2 + $0x2f0] sm:$0xff]
  %v6597 = vld [vmem:[%s2 + $0x2f8] sm:$0xff]
  %v6598 = vld [vmem:[%s2 + $0x300] sm:$0xff]
  %v6599 = vld [vmem:[%s2 + $0x308] sm:$0xff]
  %v6600 = vld [vmem:[%s2 + $0x310] sm:$0xff]
  %v6601 = vld [vmem:[%s2 + $0x318] sm:$0xff]
  %v6602 = vld [vmem:[%s2 + $0x320] sm:$0xff]
  %v6603 = vld [vmem:[%s2 + $0x328] sm:$0xff]
  %v6604 = vld [vmem:[%s2 + $0x330] sm:$0xff]
  %v6605 = vld [vmem:[%s2 + $0x338] sm:$0xff]
  %v6606 = vld [vmem:[%s2 + $0x340] sm:$0xff]
  %v6607 = vld [vmem:[%s2 + $0x348] sm:$0xff]
  %v6608 = vld [vmem:[%s2 + $0x350] sm:$0xff]
  %v6609 = vld [vmem:[%s2 + $0x358] sm:$0xff]
  %v6610 = vld [vmem:[%s2 + $0x360] sm:$0xff]
  %v6611 = vld [vmem:[%s2 + $0x368] sm:$0xff]
  %v6612 = vld [vmem:[%s2 + $0x370] sm:$0xff]
  %v6613 = vld [vmem:[%s2 + $0x378] sm:$0xff]
  %v6614 = vld [vmem:[%s2 + $0x380] sm:$0xff]
  %v6615 = vld [vmem:[%s2 + $0x388] sm:$0xff]
  %v6616 = vld [vmem:[%s2 + $0x390] sm:$0xff]
  %v6617 = vld [vmem:[%s2 + $0x398] sm:$0xff]
  %v6618 = vld [vmem:[%s2 + $0x3a0] sm:$0xff]
  %v6619 = vld [vmem:[%s2 + $0x3a8] sm:$0xff]
  %v6620 = vld [vmem:[%s2 + $0x3b0] sm:$0xff]
  %v6621 = vld [vmem:[%s2 + $0x3b8] sm:$0xff]
  %v6622 = vld [vmem:[%s2 + $0x3c0] sm:$0xff]
  %v6623 = vld [vmem:[%s2 + $0x3c8] sm:$0xff]
  %v6624 = vld [vmem:[%s2 + $0x3d0] sm:$0xff]
  %v6625 = vld [vmem:[%s2 + $0x3d8] sm:$0xff]
  %v6626 = vld [vmem:[%s2 + $0x3e0] sm:$0xff]
  %v6627 = vld [vmem:[%s2 + $0x3e8] sm:$0xff]
  %v6628 = vld [vmem:[%s2 + $0x3f0] sm:$0xff]
  %v6629 = vld [vmem:[%s2 + $0x3f8] sm:$0xff]
  %v6758 = vunpack.c.l.b16 %v6502
  %v6759 = vunpack.c.h.b16 %v6502
  %v6760 = vunpack.c.l.b16 %v6503
  %v6761 = vunpack.c.h.b16 %v6503
  %v6762 = vunpack.c.l.b16 %v6504
  %v6763 = vunpack.c.h.b16 %v6504
  %v6764 = vunpack.c.l.b16 %v6505
  %v6765 = vunpack.c.h.b16 %v6505
  %v6766 = vunpack.c.l.b16 %v6506
  %v6767 = vunpack.c.h.b16 %v6506
  %v6768 = vunpack.c.l.b16 %v6507
  %v6769 = vunpack.c.h.b16 %v6507
  %v6770 = vunpack.c.l.b16 %v6508
  %v6771 = vunpack.c.h.b16 %v6508
  %v6772 = vunpack.c.l.b16 %v6509
  %v6773 = vunpack.c.h.b16 %v6509
  %v6774 = vunpack.c.l.b16 %v6510
  %v6775 = vunpack.c.h.b16 %v6510
  %v6776 = vunpack.c.l.b16 %v6511
  %v6777 = vunpack.c.h.b16 %v6511
  %v6778 = vunpack.c.l.b16 %v6512
  %v6779 = vunpack.c.h.b16 %v6512
  %v6780 = vunpack.c.l.b16 %v6513
  %v6781 = vunpack.c.h.b16 %v6513
  %v6782 = vunpack.c.l.b16 %v6514
  %v6783 = vunpack.c.h.b16 %v6514
  %v6784 = vunpack.c.l.b16 %v6515
  %v6785 = vunpack.c.h.b16 %v6515
  %v6786 = vunpack.c.l.b16 %v6516
  %v6787 = vunpack.c.h.b16 %v6516
  %v6788 = vunpack.c.l.b16 %v6517
  %v6789 = vunpack.c.h.b16 %v6517
  %v6790 = vunpack.c.l.b16 %v6518
  %v6791 = vunpack.c.h.b16 %v6518
  %v6792 = vunpack.c.l.b16 %v6519
  %v6793 = vunpack.c.h.b16 %v6519
  %v6794 = vunpack.c.l.b16 %v6520
  %v6795 = vunpack.c.h.b16 %v6520
  %v6796 = vunpack.c.l.b16 %v6521
  %v6797 = vunpack.c.h.b16 %v6521
  %v6798 = vunpack.c.l.b16 %v6522
  %v6799 = vunpack.c.h.b16 %v6522
  %v6800 = vunpack.c.l.b16 %v6523
  %v6801 = vunpack.c.h.b16 %v6523
  %v6802 = vunpack.c.l.b16 %v6524
  %v6803 = vunpack.c.h.b16 %v6524
  %v6804 = vunpack.c.l.b16 %v6525
  %v6805 = vunpack.c.h.b16 %v6525
  %v6806 = vunpack.c.l.b16 %v6526
  %v6807 = vunpack.c.h.b16 %v6526
  %v6808 = vunpack.c.l.b16 %v6527
  %v6809 = vunpack.c.h.b16 %v6527
  %v6810 = vunpack.c.l.b16 %v6528
  %v6811 = vunpack.c.h.b16 %v6528
  %v6812 = vunpack.c.l.b16 %v6529
  %v6813 = vunpack.c.h.b16 %v6529
  %v6814 = vunpack.c.l.b16 %v6530
  %v6815 = vunpack.c.h.b16 %v6530
  %v6816 = vunpack.c.l.b16 %v6531
  %v6817 = vunpack.c.h.b16 %v6531
  %v6818 = vunpack.c.l.b16 %v6532
  %v6819 = vunpack.c.h.b16 %v6532
  %v6820 = vunpack.c.l.b16 %v6533
  %v6821 = vunpack.c.h.b16 %v6533
  %v6822 = vunpack.c.l.b16 %v6534
  %v6823 = vunpack.c.h.b16 %v6534
  %v6824 = vunpack.c.l.b16 %v6535
  %v6825 = vunpack.c.h.b16 %v6535
  %v6826 = vunpack.c.l.b16 %v6536
  %v6827 = vunpack.c.h.b16 %v6536
  %v6828 = vunpack.c.l.b16 %v6537
  %v6829 = vunpack.c.h.b16 %v6537
  %v6830 = vunpack.c.l.b16 %v6538
  %v6831 = vunpack.c.h.b16 %v6538
  %v6832 = vunpack.c.l.b16 %v6539
  %v6833 = vunpack.c.h.b16 %v6539
  %v6834 = vunpack.c.l.b16 %v6540
  %v6835 = vunpack.c.h.b16 %v6540
  %v6836 = vunpack.c.l.b16 %v6541
  %v6837 = vunpack.c.h.b16 %v6541
  %v6838 = vunpack.c.l.b16 %v6542
  %v6839 = vunpack.c.h.b16 %v6542
  %v6840 = vunpack.c.l.b16 %v6543
  %v6841 = vunpack.c.h.b16 %v6543
  %v6842 = vunpack.c.l.b16 %v6544
  %v6843 = vunpack.c.h.b16 %v6544
  %v6844 = vunpack.c.l.b16 %v6545
  %v6845 = vunpack.c.h.b16 %v6545
  %v6846 = vunpack.c.l.b16 %v6546
  %v6847 = vunpack.c.h.b16 %v6546
  %v6848 = vunpack.c.l.b16 %v6547
  %v6849 = vunpack.c.h.b16 %v6547
  %v6850 = vunpack.c.l.b16 %v6548
  %v6851 = vunpack.c.h.b16 %v6548
  %v6852 = vunpack.c.l.b16 %v6549
  %v6853 = vunpack.c.h.b16 %v6549
  %v6854 = vunpack.c.l.b16 %v6550
  %v6855 = vunpack.c.h.b16 %v6550
  %v6856 = vunpack.c.l.b16 %v6551
  %v6857 = vunpack.c.h.b16 %v6551
  %v6858 = vunpack.c.l.b16 %v6552
  %v6859 = vunpack.c.h.b16 %v6552
  %v6860 = vunpack.c.l.b16 %v6553
  %v6861 = vunpack.c.h.b16 %v6553
  %v6862 = vunpack.c.l.b16 %v6554
  %v6863 = vunpack.c.h.b16 %v6554
  %v6864 = vunpack.c.l.b16 %v6555
  %v6865 = vunpack.c.h.b16 %v6555
  %v6866 = vunpack.c.l.b16 %v6556
  %v6867 = vunpack.c.h.b16 %v6556
  %v6868 = vunpack.c.l.b16 %v6557
  %v6869 = vunpack.c.h.b16 %v6557
  %v6870 = vunpack.c.l.b16 %v6558
  %v6871 = vunpack.c.h.b16 %v6558
  %v6872 = vunpack.c.l.b16 %v6559
  %v6873 = vunpack.c.h.b16 %v6559
  %v6874 = vunpack.c.l.b16 %v6560
  %v6875 = vunpack.c.h.b16 %v6560
  %v6876 = vunpack.c.l.b16 %v6561
  %v6877 = vunpack.c.h.b16 %v6561
  %v6878 = vunpack.c.l.b16 %v6562
  %v6879 = vunpack.c.h.b16 %v6562
  %v6880 = vunpack.c.l.b16 %v6563
  %v6881 = vunpack.c.h.b16 %v6563
  %v6882 = vunpack.c.l.b16 %v6564
  %v6883 = vunpack.c.h.b16 %v6564
  %v6884 = vunpack.c.l.b16 %v6565
  %v6885 = vunpack.c.h.b16 %v6565
  %v6886 = vunpack.c.l.b16 %v6566
  %v6887 = vunpack.c.h.b16 %v6566
  %v6888 = vunpack.c.l.b16 %v6567
  %v6889 = vunpack.c.h.b16 %v6567
  %v6890 = vunpack.c.l.b16 %v6568
  %v6891 = vunpack.c.h.b16 %v6568
  %v6892 = vunpack.c.l.b16 %v6569
  %v6893 = vunpack.c.h.b16 %v6569
  %v6894 = vunpack.c.l.b16 %v6570
  %v6895 = vunpack.c.h.b16 %v6570
  %v6896 = vunpack.c.l.b16 %v6571
  %v6897 = vunpack.c.h.b16 %v6571
  %v6898 = vunpack.c.l.b16 %v6572
  %v6899 = vunpack.c.h.b16 %v6572
  %v6900 = vunpack.c.l.b16 %v6573
  %v6901 = vunpack.c.h.b16 %v6573
  %v6902 = vunpack.c.l.b16 %v6574
  %v6903 = vunpack.c.h.b16 %v6574
  %v6904 = vunpack.c.l.b16 %v6575
  %v6905 = vunpack.c.h.b16 %v6575
  %v6906 = vunpack.c.l.b16 %v6576
  %v6907 = vunpack.c.h.b16 %v6576
  %v6908 = vunpack.c.l.b16 %v6577
  %v6909 = vunpack.c.h.b16 %v6577
  %v6910 = vunpack.c.l.b16 %v6578
  %v6911 = vunpack.c.h.b16 %v6578
  %v6912 = vunpack.c.l.b16 %v6579
  %v6913 = vunpack.c.h.b16 %v6579
  %v6914 = vunpack.c.l.b16 %v6580
  %v6915 = vunpack.c.h.b16 %v6580
  %v6916 = vunpack.c.l.b16 %v6581
  %v6917 = vunpack.c.h.b16 %v6581
  %v6918 = vunpack.c.l.b16 %v6582
  %v6919 = vunpack.c.h.b16 %v6582
  %v6920 = vunpack.c.l.b16 %v6583
  %v6921 = vunpack.c.h.b16 %v6583
  %v6922 = vunpack.c.l.b16 %v6584
  %v6923 = vunpack.c.h.b16 %v6584
  %v6924 = vunpack.c.l.b16 %v6585
  %v6925 = vunpack.c.h.b16 %v6585
  %v6926 = vunpack.c.l.b16 %v6586
  %v6927 = vunpack.c.h.b16 %v6586
  %v6928 = vunpack.c.l.b16 %v6587
  %v6929 = vunpack.c.h.b16 %v6587
  %v6930 = vunpack.c.l.b16 %v6588
  %v6931 = vunpack.c.h.b16 %v6588
  %v6932 = vunpack.c.l.b16 %v6589
  %v6933 = vunpack.c.h.b16 %v6589
  %v6934 = vunpack.c.l.b16 %v6590
  %v6935 = vunpack.c.h.b16 %v6590
  %v6936 = vunpack.c.l.b16 %v6591
  %v6937 = vunpack.c.h.b16 %v6591
  %v6938 = vunpack.c.l.b16 %v6592
  %v6939 = vunpack.c.h.b16 %v6592
  %v6940 = vunpack.c.l.b16 %v6593
  %v6941 = vunpack.c.h.b16 %v6593
  %v6942 = vunpack.c.l.b16 %v6594
  %v6943 = vunpack.c.h.b16 %v6594
  %v6944 = vunpack.c.l.b16 %v6595
  %v6945 = vunpack.c.h.b16 %v6595
  %v6946 = vunpack.c.l.b16 %v6596
  %v6947 = vunpack.c.h.b16 %v6596
  %v6948 = vunpack.c.l.b16 %v6597
  %v6949 = vunpack.c.h.b16 %v6597
  %v6950 = vunpack.c.l.b16 %v6598
  %v6951 = vunpack.c.h.b16 %v6598
  %v6952 = vunpack.c.l.b16 %v6599
  %v6953 = vunpack.c.h.b16 %v6599
  %v6954 = vunpack.c.l.b16 %v6600
  %v6955 = vunpack.c.h.b16 %v6600
  %v6956 = vunpack.c.l.b16 %v6601
  %v6957 = vunpack.c.h.b16 %v6601
  %v6958 = vunpack.c.l.b16 %v6602
  %v6959 = vunpack.c.h.b16 %v6602
  %v6960 = vunpack.c.l.b16 %v6603
  %v6961 = vunpack.c.h.b16 %v6603
  %v6962 = vunpack.c.l.b16 %v6604
  %v6963 = vunpack.c.h.b16 %v6604
  %v6964 = vunpack.c.l.b16 %v6605
  %v6965 = vunpack.c.h.b16 %v6605
  %v6966 = vunpack.c.l.b16 %v6606
  %v6967 = vunpack.c.h.b16 %v6606
  %v6968 = vunpack.c.l.b16 %v6607
  %v6969 = vunpack.c.h.b16 %v6607
  %v6970 = vunpack.c.l.b16 %v6608
  %v6971 = vunpack.c.h.b16 %v6608
  %v6972 = vunpack.c.l.b16 %v6609
  %v6973 = vunpack.c.h.b16 %v6609
  %v6974 = vunpack.c.l.b16 %v6610
  %v6975 = vunpack.c.h.b16 %v6610
  %v6976 = vunpack.c.l.b16 %v6611
  %v6977 = vunpack.c.h.b16 %v6611
  %v6978 = vunpack.c.l.b16 %v6612
  %v6979 = vunpack.c.h.b16 %v6612
  %v6980 = vunpack.c.l.b16 %v6613
  %v6981 = vunpack.c.h.b16 %v6613
  %v6982 = vunpack.c.l.b16 %v6614
  %v6983 = vunpack.c.h.b16 %v6614
  %v6984 = vunpack.c.l.b16 %v6615
  %v6985 = vunpack.c.h.b16 %v6615
  %v6986 = vunpack.c.l.b16 %v6616
  %v6987 = vunpack.c.h.b16 %v6616
  %v6988 = vunpack.c.l.b16 %v6617
  %v6989 = vunpack.c.h.b16 %v6617
  %v6990 = vunpack.c.l.b16 %v6618
  %v6991 = vunpack.c.h.b16 %v6618
  %v6992 = vunpack.c.l.b16 %v6619
  %v6993 = vunpack.c.h.b16 %v6619
  %v6994 = vunpack.c.l.b16 %v6620
  %v6995 = vunpack.c.h.b16 %v6620
  %v6996 = vunpack.c.l.b16 %v6621
  %v6997 = vunpack.c.h.b16 %v6621
  %v6998 = vunpack.c.l.b16 %v6622
  %v6999 = vunpack.c.h.b16 %v6622
  %v7000 = vunpack.c.l.b16 %v6623
  %v7001 = vunpack.c.h.b16 %v6623
  %v7002 = vunpack.c.l.b16 %v6624
  %v7003 = vunpack.c.h.b16 %v6624
  %v7004 = vunpack.c.l.b16 %v6625
  %v7005 = vunpack.c.h.b16 %v6625
  %v7006 = vunpack.c.l.b16 %v6626
  %v7007 = vunpack.c.h.b16 %v6626
  %v7008 = vunpack.c.l.b16 %v6627
  %v7009 = vunpack.c.h.b16 %v6627
  %v7010 = vunpack.c.l.b16 %v6628
  %v7011 = vunpack.c.h.b16 %v6628
  %v7012 = vunpack.c.l.b16 %v6629
  %v7013 = vunpack.c.h.b16 %v6629
  %v7014 = vpack.c.b16 %v6766, %v6758
  %v7015 = vpack.c.b16 %v6767, %v6759
  %v7016 = vpack.c.b16 %v6768, %v6760
  %v7017 = vpack.c.b16 %v6769, %v6761
  %v7018 = vpack.c.b16 %v6770, %v6762
  %v7019 = vpack.c.b16 %v6771, %v6763
  %v7020 = vpack.c.b16 %v6772, %v6764
  %v7021 = vpack.c.b16 %v6773, %v6765
  %v7022 = vpack.c.b16 %v6782, %v6774
  %v7023 = vpack.c.b16 %v6783, %v6775
  %v7024 = vpack.c.b16 %v6784, %v6776
  %v7025 = vpack.c.b16 %v6785, %v6777
  %v7026 = vpack.c.b16 %v6786, %v6778
  %v7027 = vpack.c.b16 %v6787, %v6779
  %v7028 = vpack.c.b16 %v6788, %v6780
  %v7029 = vpack.c.b16 %v6789, %v6781
  %v7030 = vpack.c.b16 %v6798, %v6790
  %v7031 = vpack.c.b16 %v6799, %v6791
  %v7032 = vpack.c.b16 %v6800, %v6792
  %v7033 = vpack.c.b16 %v6801, %v6793
  %v7034 = vpack.c.b16 %v6802, %v6794
  %v7035 = vpack.c.b16 %v6803, %v6795
  %v7036 = vpack.c.b16 %v6804, %v6796
  %v7037 = vpack.c.b16 %v6805, %v6797
  %v7038 = vpack.c.b16 %v6814, %v6806
  %v7039 = vpack.c.b16 %v6815, %v6807
  %v7040 = vpack.c.b16 %v6816, %v6808
  %v7041 = vpack.c.b16 %v6817, %v6809
  %v7042 = vpack.c.b16 %v6818, %v6810
  %v7043 = vpack.c.b16 %v6819, %v6811
  %v7044 = vpack.c.b16 %v6820, %v6812
  %v7045 = vpack.c.b16 %v6821, %v6813
  %v7046 = vpack.c.b16 %v6830, %v6822
  %v7047 = vpack.c.b16 %v6831, %v6823
  %v7048 = vpack.c.b16 %v6832, %v6824
  %v7049 = vpack.c.b16 %v6833, %v6825
  %v7050 = vpack.c.b16 %v6834, %v6826
  %v7051 = vpack.c.b16 %v6835, %v6827
  %v7052 = vpack.c.b16 %v6836, %v6828
  %v7053 = vpack.c.b16 %v6837, %v6829
  %v7054 = vpack.c.b16 %v6846, %v6838
  %v7055 = vpack.c.b16 %v6847, %v6839
  %v7056 = vpack.c.b16 %v6848, %v6840
  %v7057 = vpack.c.b16 %v6849, %v6841
  %v7058 = vpack.c.b16 %v6850, %v6842
  %v7059 = vpack.c.b16 %v6851, %v6843
  %v7060 = vpack.c.b16 %v6852, %v6844
  %v7061 = vpack.c.b16 %v6853, %v6845
  %v7062 = vpack.c.b16 %v6862, %v6854
  %v7063 = vpack.c.b16 %v6863, %v6855
  %v7064 = vpack.c.b16 %v6864, %v6856
  %v7065 = vpack.c.b16 %v6865, %v6857
  %v7066 = vpack.c.b16 %v6866, %v6858
  %v7067 = vpack.c.b16 %v6867, %v6859
  %v7068 = vpack.c.b16 %v6868, %v6860
  %v7069 = vpack.c.b16 %v6869, %v6861
  %v7070 = vpack.c.b16 %v6878, %v6870
  %v7071 = vpack.c.b16 %v6879, %v6871
  %v7072 = vpack.c.b16 %v6880, %v6872
  %v7073 = vpack.c.b16 %v6881, %v6873
  %v7074 = vpack.c.b16 %v6882, %v6874
  %v7075 = vpack.c.b16 %v6883, %v6875
  %v7076 = vpack.c.b16 %v6884, %v6876
  %v7077 = vpack.c.b16 %v6885, %v6877
  %v7078 = vpack.c.b16 %v6894, %v6886
  %v7079 = vpack.c.b16 %v6895, %v6887
  %v7080 = vpack.c.b16 %v6896, %v6888
  %v7081 = vpack.c.b16 %v6897, %v6889
  %v7082 = vpack.c.b16 %v6898, %v6890
  %v7083 = vpack.c.b16 %v6899, %v6891
  %v7084 = vpack.c.b16 %v6900, %v6892
  %v7085 = vpack.c.b16 %v6901, %v6893
  %v7086 = vpack.c.b16 %v6910, %v6902
  %v7087 = vpack.c.b16 %v6911, %v6903
  %v7088 = vpack.c.b16 %v6912, %v6904
  %v7089 = vpack.c.b16 %v6913, %v6905
  %v7090 = vpack.c.b16 %v6914, %v6906
  %v7091 = vpack.c.b16 %v6915, %v6907
  %v7092 = vpack.c.b16 %v6916, %v6908
  %v7093 = vpack.c.b16 %v6917, %v6909
  %v7094 = vpack.c.b16 %v6926, %v6918
  %v7095 = vpack.c.b16 %v6927, %v6919
  %v7096 = vpack.c.b16 %v6928, %v6920
  %v7097 = vpack.c.b16 %v6929, %v6921
  %v7098 = vpack.c.b16 %v6930, %v6922
  %v7099 = vpack.c.b16 %v6931, %v6923
  %v7100 = vpack.c.b16 %v6932, %v6924
  %v7101 = vpack.c.b16 %v6933, %v6925
  %v7102 = vpack.c.b16 %v6942, %v6934
  %v7103 = vpack.c.b16 %v6943, %v6935
  %v7104 = vpack.c.b16 %v6944, %v6936
  %v7105 = vpack.c.b16 %v6945, %v6937
  %v7106 = vpack.c.b16 %v6946, %v6938
  %v7107 = vpack.c.b16 %v6947, %v6939
  %v7108 = vpack.c.b16 %v6948, %v6940
  %v7109 = vpack.c.b16 %v6949, %v6941
  %v7110 = vpack.c.b16 %v6958, %v6950
  %v7111 = vpack.c.b16 %v6959, %v6951
  %v7112 = vpack.c.b16 %v6960, %v6952
  %v7113 = vpack.c.b16 %v6961, %v6953
  %v7114 = vpack.c.b16 %v6962, %v6954
  %v7115 = vpack.c.b16 %v6963, %v6955
  %v7116 = vpack.c.b16 %v6964, %v6956
  %v7117 = vpack.c.b16 %v6965, %v6957
  %v7118 = vpack.c.b16 %v6974, %v6966
  %v7119 = vpack.c.b16 %v6975, %v6967
  %v7120 = vpack.c.b16 %v6976, %v6968
  %v7121 = vpack.c.b16 %v6977, %v6969
  %v7122 = vpack.c.b16 %v6978, %v6970
  %v7123 = vpack.c.b16 %v6979, %v6971
  %v7124 = vpack.c.b16 %v6980, %v6972
  %v7125 = vpack.c.b16 %v6981, %v6973
  %v7126 = vpack.c.b16 %v6990, %v6982
  %v7127 = vpack.c.b16 %v6991, %v6983
  %v7128 = vpack.c.b16 %v6992, %v6984
  %v7129 = vpack.c.b16 %v6993, %v6985
  %v7130 = vpack.c.b16 %v6994, %v6986
  %v7131 = vpack.c.b16 %v6995, %v6987
  %v7132 = vpack.c.b16 %v6996, %v6988
  %v7133 = vpack.c.b16 %v6997, %v6989
  %v7134 = vpack.c.b16 %v7006, %v6998
  %v7135 = vpack.c.b16 %v7007, %v6999
  %v7136 = vpack.c.b16 %v7008, %v7000
  %v7137 = vpack.c.b16 %v7009, %v7001
  %v7138 = vpack.c.b16 %v7010, %v7002
  %v7139 = vpack.c.b16 %v7011, %v7003
  %v7140 = vpack.c.b16 %v7012, %v7004
  %v7141 = vpack.c.b16 %v7013, %v7005
  %7270 = vmatprep.subr.bf16.mxu0 %v7015
  %7271 = vmatpush1.bf16.msra.mxu0 %v7014
  %7272 = vmatprep.subr.bf16.mxu0 %v7023
  %7273 = vmatpush1.bf16.msra.mxu0 %v7022
  %7274 = vmatprep.subr.bf16.mxu0 %v7031
  %7275 = vmatpush1.bf16.msra.mxu0 %v7030
  %7276 = vmatprep.subr.bf16.mxu0 %v7039
  %7277 = vmatpush1.bf16.msra.mxu0 %v7038
  %7278 = vmatprep.subr.bf16.mxu0 %v7047
  %7279 = vmatpush1.bf16.msra.mxu0 %v7046
  %7280 = vmatprep.subr.bf16.mxu0 %v7055
  %7281 = vmatpush1.bf16.msra.mxu0 %v7054
  %7282 = vmatprep.subr.bf16.mxu0 %v7063
  %7283 = vmatpush1.bf16.msra.mxu0 %v7062
  %7284 = vmatprep.subr.bf16.mxu0 %v7071
  %7285 = vmatpush1.bf16.msra.mxu0 %v7070
  %7286 = vmatprep.subr.bf16.mxu0 %v7079
  %7287 = vmatpush1.bf16.msra.mxu0 %v7078
  %7288 = vmatprep.subr.bf16.mxu0 %v7087
  %7289 = vmatpush1.bf16.msra.mxu0 %v7086
  %7290 = vmatprep.subr.bf16.mxu0 %v7095
  %7291 = vmatpush1.bf16.msra.mxu0 %v7094
  %7292 = vmatprep.subr.bf16.mxu0 %v7103
  %7293 = vmatpush1.bf16.msra.mxu0 %v7102
  %7294 = vmatprep.subr.bf16.mxu0 %v7111
  %7295 = vmatpush1.bf16.msra.mxu0 %v7110
  %7296 = vmatprep.subr.bf16.mxu0 %v7119
  %7297 = vmatpush1.bf16.msra.mxu0 %v7118
  %7298 = vmatprep.subr.bf16.mxu0 %v7127
  %7299 = vmatpush1.bf16.msra.mxu0 %v7126
  %7300 = vmatprep.subr.bf16.mxu0 %v7135
  %7301 = vmatpush1.bf16.msra.mxu0 %v7134
  %7302 = vmatprep.mubr.bf16.mxu0 %v6501
  %7303 = vmatmul.mubr.bf16.gmra.mrb[0].mxu0 %v6500
  %v7304 = vpop.f32.mrb[0].mxu0
  %v7305 = vadd.f32 %v6492, %v7304
  %v7306 = vpop.f32.mrb[0].mxu0
  %v7307 = vadd.f32 %v6493, %v7306
  %v7308 = vpop.f32.mrb[0].mxu0
  %v7309 = vpop.f32.mrb[0].mxu0
  %7310 = vdwg.mxu0
  %7311 = vmatprep.subr.bf16.mxu0 %v7017
  %7312 = vmatpush1.bf16.msra.mxu0 %v7016
  %7313 = vmatprep.subr.bf16.mxu0 %v7025
  %7314 = vmatpush1.bf16.msra.mxu0 %v7024
  %7315 = vmatprep.subr.bf16.mxu0 %v7033
  %7316 = vmatpush1.bf16.msra.mxu0 %v7032
  %7317 = vmatprep.subr.bf16.mxu0 %v7041
  %7318 = vmatpush1.bf16.msra.mxu0 %v7040
  %7319 = vmatprep.subr.bf16.mxu0 %v7049
  %7320 = vmatpush1.bf16.msra.mxu0 %v7048
  %7321 = vmatprep.subr.bf16.mxu0 %v7057
  %7322 = vmatpush1.bf16.msra.mxu0 %v7056
  %7323 = vmatprep.subr.bf16.mxu0 %v7065
  %7324 = vmatpush1.bf16.msra.mxu0 %v7064
  %7325 = vmatprep.subr.bf16.mxu0 %v7073
  %7326 = vmatpush1.bf16.msra.mxu0 %v7072
  %7327 = vmatprep.subr.bf16.mxu0 %v7081
  %7328 = vmatpush1.bf16.msra.mxu0 %v7080
  %7329 = vmatprep.subr.bf16.mxu0 %v7089
  %7330 = vmatpush1.bf16.msra.mxu0 %v7088
  %7331 = vmatprep.subr.bf16.mxu0 %v7097
  %7332 = vmatpush1.bf16.msra.mxu0 %v7096
  %7333 = vmatprep.subr.bf16.mxu0 %v7105
  %7334 = vmatpush1.bf16.msra.mxu0 %v7104
  %7335 = vmatprep.subr.bf16.mxu0 %v7113
  %7336 = vmatpush1.bf16.msra.mxu0 %v7112
  %7337 = vmatprep.subr.bf16.mxu0 %v7121
  %7338 = vmatpush1.bf16.msra.mxu0 %v7120
  %7339 = vmatprep.subr.bf16.mxu0 %v7129
  %7340 = vmatpush1.bf16.msra.mxu0 %v7128
  %7341 = vmatprep.subr.bf16.mxu0 %v7137
  %7342 = vmatpush1.bf16.msra.mxu0 %v7136
  %7343 = vmatprep.mubr.bf16.mxu0 %v6501
  %7344 = vmatmul.mubr.bf16.gmra.mrb[0].mxu0 %v6500
  %v7345 = vpop.f32.mrb[0].mxu0
  %v7346 = vadd.f32 %v6494, %v7345
  %v7347 = vpop.f32.mrb[0].mxu0
  %v7348 = vadd.f32 %v6495, %v7347
  %v7349 = vpop.f32.mrb[0].mxu0
  %v7350 = vpop.f32.mrb[0].mxu0
  %7351 = vdwg.mxu0
  %7352 = vmatprep.subr.bf16.mxu0 %v7019
  %7353 = vmatpush1.bf16.msra.mxu0 %v7018
  %7354 = vmatprep.subr.bf16.mxu0 %v7027
  %7355 = vmatpush1.bf16.msra.mxu0 %v7026
  %7356 = vmatprep.subr.bf16.mxu0 %v7035
  %7357 = vmatpush1.bf16.msra.mxu0 %v7034
  %7358 = vmatprep.subr.bf16.mxu0 %v7043
  %7359 = vmatpush1.bf16.msra.mxu0 %v7042
  %7360 = vmatprep.subr.bf16.mxu0 %v7051
  %7361 = vmatpush1.bf16.msra.mxu0 %v7050
  %7362 = vmatprep.subr.bf16.mxu0 %v7059
  %7363 = vmatpush1.bf16.msra.mxu0 %v7058
  %7364 = vmatprep.subr.bf16.mxu0 %v7067
  %7365 = vmatpush1.bf16.msra.mxu0 %v7066
  %7366 = vmatprep.subr.bf16.mxu0 %v7075
  %7367 = vmatpush1.bf16.msra.mxu0 %v7074
  %7368 = vmatprep.subr.bf16.mxu0 %v7083
  %7369 = vmatpush1.bf16.msra.mxu0 %v7082
  %7370 = vmatprep.subr.bf16.mxu0 %v7091
  %7371 = vmatpush1.bf16.msra.mxu0 %v7090
  %7372 = vmatprep.subr.bf16.mxu0 %v7099
  %7373 = vmatpush1.bf16.msra.mxu0 %v7098
  %7374 = vmatprep.subr.bf16.mxu0 %v7107
  %7375 = vmatpush1.bf16.msra.mxu0 %v7106
  %7376 = vmatprep.subr.bf16.mxu0 %v7115
  %7377 = vmatpush1.bf16.msra.mxu0 %v7114
  %7378 = vmatprep.subr.bf16.mxu0 %v7123
  %7379 = vmatpush1.bf16.msra.mxu0 %v7122
  %7380 = vmatprep.subr.bf16.mxu0 %v7131
  %7381 = vmatpush1.bf16.msra.mxu0 %v7130
  %7382 = vmatprep.subr.bf16.mxu0 %v7139
  %7383 = vmatpush1.bf16.msra.mxu0 %v7138
  %7384 = vmatprep.mubr.bf16.mxu0 %v6501
  %7385 = vmatmul.mubr.bf16.gmra.mrb[0].mxu0 %v6500
  %v7386 = vpop.f32.mrb[0].mxu0
  %v7387 = vadd.f32 %v6496, %v7386
  %v7388 = vpop.f32.mrb[0].mxu0
  %v7389 = vadd.f32 %v6497, %v7388
  %v7390 = vpop.f32.mrb[0].mxu0
  %v7391 = vpop.f32.mrb[0].mxu0
  %7392 = vdwg.mxu0
  %7393 = vmatprep.subr.bf16.mxu0 %v7021
  %7394 = vmatpush1.bf16.msra.mxu0 %v7020
  %7395 = vmatprep.subr.bf16.mxu0 %v7029
  %7396 = vmatpush1.bf16.msra.mxu0 %v7028
  %7397 = vmatprep.subr.bf16.mxu0 %v7037
  %7398 = vmatpush1.bf16.msra.mxu0 %v7036
  %7399 = vmatprep.subr.bf16.mxu0 %v7045
  %7400 = vmatpush1.bf16.msra.mxu0 %v7044
  %7401 = vmatprep.subr.bf16.mxu0 %v7053
  %7402 = vmatpush1.bf16.msra.mxu0 %v7052
  %7403 = vmatprep.subr.bf16.mxu0 %v7061
  %7404 = vmatpush1.bf16.msra.mxu0 %v7060
  %7405 = vmatprep.subr.bf16.mxu0 %v7069
  %7406 = vmatpush1.bf16.msra.mxu0 %v7068
  %7407 = vmatprep.subr.bf16.mxu0 %v7077
  %7408 = vmatpush1.bf16.msra.mxu0 %v7076
  %7409 = vmatprep.subr.bf16.mxu0 %v7085
  %7410 = vmatpush1.bf16.msra.mxu0 %v7084
  %7411 = vmatprep.subr.bf16.mxu0 %v7093
  %7412 = vmatpush1.bf16.msra.mxu0 %v7092
  %7413 = vmatprep.subr.bf16.mxu0 %v7101
  %7414 = vmatpush1.bf16.msra.mxu0 %v7100
  %7415 = vmatprep.subr.bf16.mxu0 %v7109
  %7416 = vmatpush1.bf16.msra.mxu0 %v7108
  %7417 = vmatprep.subr.bf16.mxu0 %v7117
  %7418 = vmatpush1.bf16.msra.mxu0 %v7116
  %7419 = vmatprep.subr.bf16.mxu0 %v7125
  %7420 = vmatpush1.bf16.msra.mxu0 %v7124
  %7421 = vmatprep.subr.bf16.mxu0 %v7133
  %7422 = vmatpush1.bf16.msra.mxu0 %v7132
  %7423 = vmatprep.subr.bf16.mxu0 %v7141
  %7424 = vmatpush1.bf16.msra.mxu0 %v7140
  %7425 = vmatprep.mubr.bf16.mxu0 %v6501
  %7426 = vmatmul.mubr.bf16.gmra.mrb[0].mxu0 %v6500
  %v7427 = vpop.f32.mrb[0].mxu0
  %v7428 = vadd.f32 %v6498, %v7427
  %v7429 = vpop.f32.mrb[0].mxu0
  %v7430 = vadd.f32 %v6499, %v7429
  %v7431 = vpop.f32.mrb[0].mxu0
  %v7432 = vpop.f32.mrb[0].mxu0
  %7433 = vdwg.mxu0
  %v7434 = vxor.u32 %v7305, 2147483648
  %v7435 = vxor.u32 %v7307, 2147483648
  %v7436 = vmul.f32 %v7434, 1.442695
  %v7437 = vpow.pop %v7436
  %v7438 = vmul.f32 %v7435, 1.442695
  %v7439 = vpow.pop %v7438
  %v7440 = vadd.f32 %v7437, 1.0
  %v7441 = vadd.f32 %v7439, 1.0
  %v7442 = vrcp.pop %v7440
  %v7443 = vmul.f32 1.0, %v7442
  %v7444 = vrcp.pop %v7441
  %v7445 = vmul.f32 1.0, %v7444
  %v7446 = vxor.u32 %v7346, 2147483648
  %v7447 = vxor.u32 %v7348, 2147483648
  %v7448 = vmul.f32 %v7446, 1.442695
  %v7449 = vpow.pop %v7448
  %v7450 = vmul.f32 %v7447, 1.442695
  %v7451 = vpow.pop %v7450
  %v7452 = vadd.f32 %v7449, 1.0
  %v7453 = vadd.f32 %v7451, 1.0
  %v7454 = vrcp.pop %v7452
  %v7455 = vmul.f32 1.0, %v7454
  %v7456 = vrcp.pop %v7453
  %v7457 = vmul.f32 1.0, %v7456
  %v7458 = vtanh.pop %v7387
  %v7459 = vtanh.pop %v7389
  %v7460 = vxor.u32 %v7428, 2147483648
  %v7461 = vxor.u32 %v7430, 2147483648
  %v7462 = vmul.f32 %v7460, 1.442695
  %v7463 = vpow.pop %v7462
  %v7464 = vmul.f32 %v7461, 1.442695
  %v7465 = vpow.pop %v7464
  %v7466 = vadd.f32 %v7463, 1.0
  %v7467 = vadd.f32 %v7465, 1.0
  %v7468 = vrcp.pop %v7466
  %v7469 = vmul.f32 1.0, %v7468
  %v7470 = vrcp.pop %v7467
  %v7471 = vmul.f32 1.0, %v7470
  %v7472 = vmul.f32 %v7443, %v6481
  %v7473 = vmul.f32 %v7445, %v6482
  %v7474 = vmul.f32 %v7455, %v7458
  %v7475 = vmul.f32 %v7457, %v7459
  %v7476 = vadd.f32 %v7472, %v7474
  %v7477 = vadd.f32 %v7473, %v7475
  %v7478 = vtanh.pop %v7476
  %v7479 = vtanh.pop %v7477
  %v7480 = vmul.f32 %v7469, %v7478
  %v7481 = vmul.f32 %v7471, %v7479
  %s7482 = scalar_lea.vmem %s4, 48
  %7483 = vst [vmem:[%s7482] sm:$0xff] %v7481
  %s7484 = smul.u32 7, 8
  %s7485 = smul.addr %s7484, 8
  %s7486 = scalar_lea.vmem [#allocation2], %s7485
  %v7487 = vld [vmem:[%s7486] sm:$0xff]
  %v7488 = vld [vmem:[%s7486 + $0x8] sm:$0xff]
  %v7489 = vld [vmem:[%s7486 + $0x10] sm:$0xff]
  %v7490 = vld [vmem:[%s7486 + $0x18] sm:$0xff]
  %v7491 = vld [vmem:[%s7486 + $0x20] sm:$0xff]
  %v7492 = vld [vmem:[%s7486 + $0x28] sm:$0xff]
  %v7493 = vld [vmem:[%s7486 + $0x30] sm:$0xff]
  %v7494 = vld [vmem:[%s7486 + $0x38] sm:$0xff]
  %v7495 = vpack.c.bf16 %v7480, %v7480
  %v7496 = vpack.c.bf16 %v7481, %v7481
  %v7497 = vld [vmem:[%s2] sm:$0xff]
  %v7498 = vld [vmem:[%s2 + $0x8] sm:$0xff]
  %v7499 = vld [vmem:[%s2 + $0x10] sm:$0xff]
  %v7500 = vld [vmem:[%s2 + $0x18] sm:$0xff]
  %v7501 = vld [vmem:[%s2 + $0x20] sm:$0xff]
  %v7502 = vld [vmem:[%s2 + $0x28] sm:$0xff]
  %v7503 = vld [vmem:[%s2 + $0x30] sm:$0xff]
  %v7504 = vld [vmem:[%s2 + $0x38] sm:$0xff]
  %v7505 = vld [vmem:[%s2 + $0x40] sm:$0xff]
  %v7506 = vld [vmem:[%s2 + $0x48] sm:$0xff]
  %v7507 = vld [vmem:[%s2 + $0x50] sm:$0xff]
  %v7508 = vld [vmem:[%s2 + $0x58] sm:$0xff]
  %v7509 = vld [vmem:[%s2 + $0x60] sm:$0xff]
  %v7510 = vld [vmem:[%s2 + $0x68] sm:$0xff]
  %v7511 = vld [vmem:[%s2 + $0x70] sm:$0xff]
  %v7512 = vld [vmem:[%s2 + $0x78] sm:$0xff]
  %v7513 = vld [vmem:[%s2 + $0x80] sm:$0xff]
  %v7514 = vld [vmem:[%s2 + $0x88] sm:$0xff]
  %v7515 = vld [vmem:[%s2 + $0x90] sm:$0xff]
  %v7516 = vld [vmem:[%s2 + $0x98] sm:$0xff]
  %v7517 = vld [vmem:[%s2 + $0xa0] sm:$0xff]
  %v7518 = vld [vmem:[%s2 + $0xa8] sm:$0xff]
  %v7519 = vld [vmem:[%s2 + $0xb0] sm:$0xff]
  %v7520 = vld [vmem:[%s2 + $0xb8] sm:$0xff]
  %v7521 = vld [vmem:[%s2 + $0xc0] sm:$0xff]
  %v7522 = vld [vmem:[%s2 + $0xc8] sm:$0xff]
  %v7523 = vld [vmem:[%s2 + $0xd0] sm:$0xff]
  %v7524 = vld [vmem:[%s2 + $0xd8] sm:$0xff]
  %v7525 = vld [vmem:[%s2 + $0xe0] sm:$0xff]
  %v7526 = vld [vmem:[%s2 + $0xe8] sm:$0xff]
  %v7527 = vld [vmem:[%s2 + $0xf0] sm:$0xff]
  %v7528 = vld [vmem:[%s2 + $0xf8] sm:$0xff]
  %v7529 = vld [vmem:[%s2 + $0x100] sm:$0xff]
  %v7530 = vld [vmem:[%s2 + $0x108] sm:$0xff]
  %v7531 = vld [vmem:[%s2 + $0x110] sm:$0xff]
  %v7532 = vld [vmem:[%s2 + $0x118] sm:$0xff]
  %v7533 = vld [vmem:[%s2 + $0x120] sm:$0xff]
  %v7534 = vld [vmem:[%s2 + $0x128] sm:$0xff]
  %v7535 = vld [vmem:[%s2 + $0x130] sm:$0xff]
  %v7536 = vld [vmem:[%s2 + $0x138] sm:$0xff]
  %v7537 = vld [vmem:[%s2 + $0x140] sm:$0xff]
  %v7538 = vld [vmem:[%s2 + $0x148] sm:$0xff]
  %v7539 = vld [vmem:[%s2 + $0x150] sm:$0xff]
  %v7540 = vld [vmem:[%s2 + $0x158] sm:$0xff]
  %v7541 = vld [vmem:[%s2 + $0x160] sm:$0xff]
  %v7542 = vld [vmem:[%s2 + $0x168] sm:$0xff]
  %v7543 = vld [vmem:[%s2 + $0x170] sm:$0xff]
  %v7544 = vld [vmem:[%s2 + $0x178] sm:$0xff]
  %v7545 = vld [vmem:[%s2 + $0x180] sm:$0xff]
  %v7546 = vld [vmem:[%s2 + $0x188] sm:$0xff]
  %v7547 = vld [vmem:[%s2 + $0x190] sm:$0xff]
  %v7548 = vld [vmem:[%s2 + $0x198] sm:$0xff]
  %v7549 = vld [vmem:[%s2 + $0x1a0] sm:$0xff]
  %v7550 = vld [vmem:[%s2 + $0x1a8] sm:$0xff]
  %v7551 = vld [vmem:[%s2 + $0x1b0] sm:$0xff]
  %v7552 = vld [vmem:[%s2 + $0x1b8] sm:$0xff]
  %v7553 = vld [vmem:[%s2 + $0x1c0] sm:$0xff]
  %v7554 = vld [vmem:[%s2 + $0x1c8] sm:$0xff]
  %v7555 = vld [vmem:[%s2 + $0x1d0] sm:$0xff]
  %v7556 = vld [vmem:[%s2 + $0x1d8] sm:$0xff]
  %v7557 = vld [vmem:[%s2 + $0x1e0] sm:$0xff]
  %v7558 = vld [vmem:[%s2 + $0x1e8] sm:$0xff]
  %v7559 = vld [vmem:[%s2 + $0x1f0] sm:$0xff]
  %v7560 = vld [vmem:[%s2 + $0x1f8] sm:$0xff]
  %v7561 = vld [vmem:[%s2 + $0x200] sm:$0xff]
  %v7562 = vld [vmem:[%s2 + $0x208] sm:$0xff]
  %v7563 = vld [vmem:[%s2 + $0x210] sm:$0xff]
  %v7564 = vld [vmem:[%s2 + $0x218] sm:$0xff]
  %v7565 = vld [vmem:[%s2 + $0x220] sm:$0xff]
  %v7566 = vld [vmem:[%s2 + $0x228] sm:$0xff]
  %v7567 = vld [vmem:[%s2 + $0x230] sm:$0xff]
  %v7568 = vld [vmem:[%s2 + $0x238] sm:$0xff]
  %v7569 = vld [vmem:[%s2 + $0x240] sm:$0xff]
  %v7570 = vld [vmem:[%s2 + $0x248] sm:$0xff]
  %v7571 = vld [vmem:[%s2 + $0x250] sm:$0xff]
  %v7572 = vld [vmem:[%s2 + $0x258] sm:$0xff]
  %v7573 = vld [vmem:[%s2 + $0x260] sm:$0xff]
  %v7574 = vld [vmem:[%s2 + $0x268] sm:$0xff]
  %v7575 = vld [vmem:[%s2 + $0x270] sm:$0xff]
  %v7576 = vld [vmem:[%s2 + $0x278] sm:$0xff]
  %v7577 = vld [vmem:[%s2 + $0x280] sm:$0xff]
  %v7578 = vld [vmem:[%s2 + $0x288] sm:$0xff]
  %v7579 = vld [vmem:[%s2 + $0x290] sm:$0xff]
  %v7580 = vld [vmem:[%s2 + $0x298] sm:$0xff]
  %v7581 = vld [vmem:[%s2 + $0x2a0] sm:$0xff]
  %v7582 = vld [vmem:[%s2 + $0x2a8] sm:$0xff]
  %v7583 = vld [vmem:[%s2 + $0x2b0] sm:$0xff]
  %v7584 = vld [vmem:[%s2 + $0x2b8] sm:$0xff]
  %v7585 = vld [vmem:[%s2 + $0x2c0] sm:$0xff]
  %v7586 = vld [vmem:[%s2 + $0x2c8] sm:$0xff]
  %v7587 = vld [vmem:[%s2 + $0x2d0] sm:$0xff]
  %v7588 = vld [vmem:[%s2 + $0x2d8] sm:$0xff]
  %v7589 = vld [vmem:[%s2 + $0x2e0] sm:$0xff]
  %v7590 = vld [vmem:[%s2 + $0x2e8] sm:$0xff]
  %v7591 = vld [vmem:[%s2 + $0x2f0] sm:$0xff]
  %v7592 = vld [vmem:[%s2 + $0x2f8] sm:$0xff]
  %v7593 = vld [vmem:[%s2 + $0x300] sm:$0xff]
  %v7594 = vld [vmem:[%s2 + $0x308] sm:$0xff]
  %v7595 = vld [vmem:[%s2 + $0x310] sm:$0xff]
  %v7596 = vld [vmem:[%s2 + $0x318] sm:$0xff]
  %v7597 = vld [vmem:[%s2 + $0x320] sm:$0xff]
  %v7598 = vld [vmem:[%s2 + $0x328] sm:$0xff]
  %v7599 = vld [vmem:[%s2 + $0x330] sm:$0xff]
  %v7600 = vld [vmem:[%s2 + $0x338] sm:$0xff]
  %v7601 = vld [vmem:[%s2 + $0x340] sm:$0xff]
  %v7602 = vld [vmem:[%s2 + $0x348] sm:$0xff]
  %v7603 = vld [vmem:[%s2 + $0x350] sm:$0xff]
  %v7604 = vld [vmem:[%s2 + $0x358] sm:$0xff]
  %v7605 = vld [vmem:[%s2 + $0x360] sm:$0xff]
  %v7606 = vld [vmem:[%s2 + $0x368] sm:$0xff]
  %v7607 = vld [vmem:[%s2 + $0x370] sm:$0xff]
  %v7608 = vld [vmem:[%s2 + $0x378] sm:$0xff]
  %v7609 = vld [vmem:[%s2 + $0x380] sm:$0xff]
  %v7610 = vld [vmem:[%s2 + $0x388] sm:$0xff]
  %v7611 = vld [vmem:[%s2 + $0x390] sm:$0xff]
  %v7612 = vld [vmem:[%s2 + $0x398] sm:$0xff]
  %v7613 = vld [vmem:[%s2 + $0x3a0] sm:$0xff]
  %v7614 = vld [vmem:[%s2 + $0x3a8] sm:$0xff]
  %v7615 = vld [vmem:[%s2 + $0x3b0] sm:$0xff]
  %v7616 = vld [vmem:[%s2 + $0x3b8] sm:$0xff]
  %v7617 = vld [vmem:[%s2 + $0x3c0] sm:$0xff]
  %v7618 = vld [vmem:[%s2 + $0x3c8] sm:$0xff]
  %v7619 = vld [vmem:[%s2 + $0x3d0] sm:$0xff]
  %v7620 = vld [vmem:[%s2 + $0x3d8] sm:$0xff]
  %v7621 = vld [vmem:[%s2 + $0x3e0] sm:$0xff]
  %v7622 = vld [vmem:[%s2 + $0x3e8] sm:$0xff]
  %v7623 = vld [vmem:[%s2 + $0x3f0] sm:$0xff]
  %v7624 = vld [vmem:[%s2 + $0x3f8] sm:$0xff]
  %v7753 = vunpack.c.l.b16 %v7497
  %v7754 = vunpack.c.h.b16 %v7497
  %v7755 = vunpack.c.l.b16 %v7498
  %v7756 = vunpack.c.h.b16 %v7498
  %v7757 = vunpack.c.l.b16 %v7499
  %v7758 = vunpack.c.h.b16 %v7499
  %v7759 = vunpack.c.l.b16 %v7500
  %v7760 = vunpack.c.h.b16 %v7500
  %v7761 = vunpack.c.l.b16 %v7501
  %v7762 = vunpack.c.h.b16 %v7501
  %v7763 = vunpack.c.l.b16 %v7502
  %v7764 = vunpack.c.h.b16 %v7502
  %v7765 = vunpack.c.l.b16 %v7503
  %v7766 = vunpack.c.h.b16 %v7503
  %v7767 = vunpack.c.l.b16 %v7504
  %v7768 = vunpack.c.h.b16 %v7504
  %v7769 = vunpack.c.l.b16 %v7505
  %v7770 = vunpack.c.h.b16 %v7505
  %v7771 = vunpack.c.l.b16 %v7506
  %v7772 = vunpack.c.h.b16 %v7506
  %v7773 = vunpack.c.l.b16 %v7507
  %v7774 = vunpack.c.h.b16 %v7507
  %v7775 = vunpack.c.l.b16 %v7508
  %v7776 = vunpack.c.h.b16 %v7508
  %v7777 = vunpack.c.l.b16 %v7509
  %v7778 = vunpack.c.h.b16 %v7509
  %v7779 = vunpack.c.l.b16 %v7510
  %v7780 = vunpack.c.h.b16 %v7510
  %v7781 = vunpack.c.l.b16 %v7511
  %v7782 = vunpack.c.h.b16 %v7511
  %v7783 = vunpack.c.l.b16 %v7512
  %v7784 = vunpack.c.h.b16 %v7512
  %v7785 = vunpack.c.l.b16 %v7513
  %v7786 = vunpack.c.h.b16 %v7513
  %v7787 = vunpack.c.l.b16 %v7514
  %v7788 = vunpack.c.h.b16 %v7514
  %v7789 = vunpack.c.l.b16 %v7515
  %v7790 = vunpack.c.h.b16 %v7515
  %v7791 = vunpack.c.l.b16 %v7516
  %v7792 = vunpack.c.h.b16 %v7516
  %v7793 = vunpack.c.l.b16 %v7517
  %v7794 = vunpack.c.h.b16 %v7517
  %v7795 = vunpack.c.l.b16 %v7518
  %v7796 = vunpack.c.h.b16 %v7518
  %v7797 = vunpack.c.l.b16 %v7519
  %v7798 = vunpack.c.h.b16 %v7519
  %v7799 = vunpack.c.l.b16 %v7520
  %v7800 = vunpack.c.h.b16 %v7520
  %v7801 = vunpack.c.l.b16 %v7521
  %v7802 = vunpack.c.h.b16 %v7521
  %v7803 = vunpack.c.l.b16 %v7522
  %v7804 = vunpack.c.h.b16 %v7522
  %v7805 = vunpack.c.l.b16 %v7523
  %v7806 = vunpack.c.h.b16 %v7523
  %v7807 = vunpack.c.l.b16 %v7524
  %v7808 = vunpack.c.h.b16 %v7524
  %v7809 = vunpack.c.l.b16 %v7525
  %v7810 = vunpack.c.h.b16 %v7525
  %v7811 = vunpack.c.l.b16 %v7526
  %v7812 = vunpack.c.h.b16 %v7526
  %v7813 = vunpack.c.l.b16 %v7527
  %v7814 = vunpack.c.h.b16 %v7527
  %v7815 = vunpack.c.l.b16 %v7528
  %v7816 = vunpack.c.h.b16 %v7528
  %v7817 = vunpack.c.l.b16 %v7529
  %v7818 = vunpack.c.h.b16 %v7529
  %v7819 = vunpack.c.l.b16 %v7530
  %v7820 = vunpack.c.h.b16 %v7530
  %v7821 = vunpack.c.l.b16 %v7531
  %v7822 = vunpack.c.h.b16 %v7531
  %v7823 = vunpack.c.l.b16 %v7532
  %v7824 = vunpack.c.h.b16 %v7532
  %v7825 = vunpack.c.l.b16 %v7533
  %v7826 = vunpack.c.h.b16 %v7533
  %v7827 = vunpack.c.l.b16 %v7534
  %v7828 = vunpack.c.h.b16 %v7534
  %v7829 = vunpack.c.l.b16 %v7535
  %v7830 = vunpack.c.h.b16 %v7535
  %v7831 = vunpack.c.l.b16 %v7536
  %v7832 = vunpack.c.h.b16 %v7536
  %v7833 = vunpack.c.l.b16 %v7537
  %v7834 = vunpack.c.h.b16 %v7537
  %v7835 = vunpack.c.l.b16 %v7538
  %v7836 = vunpack.c.h.b16 %v7538
  %v7837 = vunpack.c.l.b16 %v7539
  %v7838 = vunpack.c.h.b16 %v7539
  %v7839 = vunpack.c.l.b16 %v7540
  %v7840 = vunpack.c.h.b16 %v7540
  %v7841 = vunpack.c.l.b16 %v7541
  %v7842 = vunpack.c.h.b16 %v7541
  %v7843 = vunpack.c.l.b16 %v7542
  %v7844 = vunpack.c.h.b16 %v7542
  %v7845 = vunpack.c.l.b16 %v7543
  %v7846 = vunpack.c.h.b16 %v7543
  %v7847 = vunpack.c.l.b16 %v7544
  %v7848 = vunpack.c.h.b16 %v7544
  %v7849 = vunpack.c.l.b16 %v7545
  %v7850 = vunpack.c.h.b16 %v7545
  %v7851 = vunpack.c.l.b16 %v7546
  %v7852 = vunpack.c.h.b16 %v7546
  %v7853 = vunpack.c.l.b16 %v7547
  %v7854 = vunpack.c.h.b16 %v7547
  %v7855 = vunpack.c.l.b16 %v7548
  %v7856 = vunpack.c.h.b16 %v7548
  %v7857 = vunpack.c.l.b16 %v7549
  %v7858 = vunpack.c.h.b16 %v7549
  %v7859 = vunpack.c.l.b16 %v7550
  %v7860 = vunpack.c.h.b16 %v7550
  %v7861 = vunpack.c.l.b16 %v7551
  %v7862 = vunpack.c.h.b16 %v7551
  %v7863 = vunpack.c.l.b16 %v7552
  %v7864 = vunpack.c.h.b16 %v7552
  %v7865 = vunpack.c.l.b16 %v7553
  %v7866 = vunpack.c.h.b16 %v7553
  %v7867 = vunpack.c.l.b16 %v7554
  %v7868 = vunpack.c.h.b16 %v7554
  %v7869 = vunpack.c.l.b16 %v7555
  %v7870 = vunpack.c.h.b16 %v7555
  %v7871 = vunpack.c.l.b16 %v7556
  %v7872 = vunpack.c.h.b16 %v7556
  %v7873 = vunpack.c.l.b16 %v7557
  %v7874 = vunpack.c.h.b16 %v7557
  %v7875 = vunpack.c.l.b16 %v7558
  %v7876 = vunpack.c.h.b16 %v7558
  %v7877 = vunpack.c.l.b16 %v7559
  %v7878 = vunpack.c.h.b16 %v7559
  %v7879 = vunpack.c.l.b16 %v7560
  %v7880 = vunpack.c.h.b16 %v7560
  %v7881 = vunpack.c.l.b16 %v7561
  %v7882 = vunpack.c.h.b16 %v7561
  %v7883 = vunpack.c.l.b16 %v7562
  %v7884 = vunpack.c.h.b16 %v7562
  %v7885 = vunpack.c.l.b16 %v7563
  %v7886 = vunpack.c.h.b16 %v7563
  %v7887 = vunpack.c.l.b16 %v7564
  %v7888 = vunpack.c.h.b16 %v7564
  %v7889 = vunpack.c.l.b16 %v7565
  %v7890 = vunpack.c.h.b16 %v7565
  %v7891 = vunpack.c.l.b16 %v7566
  %v7892 = vunpack.c.h.b16 %v7566
  %v7893 = vunpack.c.l.b16 %v7567
  %v7894 = vunpack.c.h.b16 %v7567
  %v7895 = vunpack.c.l.b16 %v7568
  %v7896 = vunpack.c.h.b16 %v7568
  %v7897 = vunpack.c.l.b16 %v7569
  %v7898 = vunpack.c.h.b16 %v7569
  %v7899 = vunpack.c.l.b16 %v7570
  %v7900 = vunpack.c.h.b16 %v7570
  %v7901 = vunpack.c.l.b16 %v7571
  %v7902 = vunpack.c.h.b16 %v7571
  %v7903 = vunpack.c.l.b16 %v7572
  %v7904 = vunpack.c.h.b16 %v7572
  %v7905 = vunpack.c.l.b16 %v7573
  %v7906 = vunpack.c.h.b16 %v7573
  %v7907 = vunpack.c.l.b16 %v7574
  %v7908 = vunpack.c.h.b16 %v7574
  %v7909 = vunpack.c.l.b16 %v7575
  %v7910 = vunpack.c.h.b16 %v7575
  %v7911 = vunpack.c.l.b16 %v7576
  %v7912 = vunpack.c.h.b16 %v7576
  %v7913 = vunpack.c.l.b16 %v7577
  %v7914 = vunpack.c.h.b16 %v7577
  %v7915 = vunpack.c.l.b16 %v7578
  %v7916 = vunpack.c.h.b16 %v7578
  %v7917 = vunpack.c.l.b16 %v7579
  %v7918 = vunpack.c.h.b16 %v7579
  %v7919 = vunpack.c.l.b16 %v7580
  %v7920 = vunpack.c.h.b16 %v7580
  %v7921 = vunpack.c.l.b16 %v7581
  %v7922 = vunpack.c.h.b16 %v7581
  %v7923 = vunpack.c.l.b16 %v7582
  %v7924 = vunpack.c.h.b16 %v7582
  %v7925 = vunpack.c.l.b16 %v7583
  %v7926 = vunpack.c.h.b16 %v7583
  %v7927 = vunpack.c.l.b16 %v7584
  %v7928 = vunpack.c.h.b16 %v7584
  %v7929 = vunpack.c.l.b16 %v7585
  %v7930 = vunpack.c.h.b16 %v7585
  %v7931 = vunpack.c.l.b16 %v7586
  %v7932 = vunpack.c.h.b16 %v7586
  %v7933 = vunpack.c.l.b16 %v7587
  %v7934 = vunpack.c.h.b16 %v7587
  %v7935 = vunpack.c.l.b16 %v7588
  %v7936 = vunpack.c.h.b16 %v7588
  %v7937 = vunpack.c.l.b16 %v7589
  %v7938 = vunpack.c.h.b16 %v7589
  %v7939 = vunpack.c.l.b16 %v7590
  %v7940 = vunpack.c.h.b16 %v7590
  %v7941 = vunpack.c.l.b16 %v7591
  %v7942 = vunpack.c.h.b16 %v7591
  %v7943 = vunpack.c.l.b16 %v7592
  %v7944 = vunpack.c.h.b16 %v7592
  %v7945 = vunpack.c.l.b16 %v7593
  %v7946 = vunpack.c.h.b16 %v7593
  %v7947 = vunpack.c.l.b16 %v7594
  %v7948 = vunpack.c.h.b16 %v7594
  %v7949 = vunpack.c.l.b16 %v7595
  %v7950 = vunpack.c.h.b16 %v7595
  %v7951 = vunpack.c.l.b16 %v7596
  %v7952 = vunpack.c.h.b16 %v7596
  %v7953 = vunpack.c.l.b16 %v7597
  %v7954 = vunpack.c.h.b16 %v7597
  %v7955 = vunpack.c.l.b16 %v7598
  %v7956 = vunpack.c.h.b16 %v7598
  %v7957 = vunpack.c.l.b16 %v7599
  %v7958 = vunpack.c.h.b16 %v7599
  %v7959 = vunpack.c.l.b16 %v7600
  %v7960 = vunpack.c.h.b16 %v7600
  %v7961 = vunpack.c.l.b16 %v7601
  %v7962 = vunpack.c.h.b16 %v7601
  %v7963 = vunpack.c.l.b16 %v7602
  %v7964 = vunpack.c.h.b16 %v7602
  %v7965 = vunpack.c.l.b16 %v7603
  %v7966 = vunpack.c.h.b16 %v7603
  %v7967 = vunpack.c.l.b16 %v7604
  %v7968 = vunpack.c.h.b16 %v7604
  %v7969 = vunpack.c.l.b16 %v7605
  %v7970 = vunpack.c.h.b16 %v7605
  %v7971 = vunpack.c.l.b16 %v7606
  %v7972 = vunpack.c.h.b16 %v7606
  %v7973 = vunpack.c.l.b16 %v7607
  %v7974 = vunpack.c.h.b16 %v7607
  %v7975 = vunpack.c.l.b16 %v7608
  %v7976 = vunpack.c.h.b16 %v7608
  %v7977 = vunpack.c.l.b16 %v7609
  %v7978 = vunpack.c.h.b16 %v7609
  %v7979 = vunpack.c.l.b16 %v7610
  %v7980 = vunpack.c.h.b16 %v7610
  %v7981 = vunpack.c.l.b16 %v7611
  %v7982 = vunpack.c.h.b16 %v7611
  %v7983 = vunpack.c.l.b16 %v7612
  %v7984 = vunpack.c.h.b16 %v7612
  %v7985 = vunpack.c.l.b16 %v7613
  %v7986 = vunpack.c.h.b16 %v7613
  %v7987 = vunpack.c.l.b16 %v7614
  %v7988 = vunpack.c.h.b16 %v7614
  %v7989 = vunpack.c.l.b16 %v7615
  %v7990 = vunpack.c.h.b16 %v7615
  %v7991 = vunpack.c.l.b16 %v7616
  %v7992 = vunpack.c.h.b16 %v7616
  %v7993 = vunpack.c.l.b16 %v7617
  %v7994 = vunpack.c.h.b16 %v7617
  %v7995 = vunpack.c.l.b16 %v7618
  %v7996 = vunpack.c.h.b16 %v7618
  %v7997 = vunpack.c.l.b16 %v7619
  %v7998 = vunpack.c.h.b16 %v7619
  %v7999 = vunpack.c.l.b16 %v7620
  %v8000 = vunpack.c.h.b16 %v7620
  %v8001 = vunpack.c.l.b16 %v7621
  %v8002 = vunpack.c.h.b16 %v7621
  %v8003 = vunpack.c.l.b16 %v7622
  %v8004 = vunpack.c.h.b16 %v7622
  %v8005 = vunpack.c.l.b16 %v7623
  %v8006 = vunpack.c.h.b16 %v7623
  %v8007 = vunpack.c.l.b16 %v7624
  %v8008 = vunpack.c.h.b16 %v7624
  %v8009 = vpack.c.b16 %v7761, %v7753
  %v8010 = vpack.c.b16 %v7762, %v7754
  %v8011 = vpack.c.b16 %v7763, %v7755
  %v8012 = vpack.c.b16 %v7764, %v7756
  %v8013 = vpack.c.b16 %v7765, %v7757
  %v8014 = vpack.c.b16 %v7766, %v7758
  %v8015 = vpack.c.b16 %v7767, %v7759
  %v8016 = vpack.c.b16 %v7768, %v7760
  %v8017 = vpack.c.b16 %v7777, %v7769
  %v8018 = vpack.c.b16 %v7778, %v7770
  %v8019 = vpack.c.b16 %v7779, %v7771
  %v8020 = vpack.c.b16 %v7780, %v7772
  %v8021 = vpack.c.b16 %v7781, %v7773
  %v8022 = vpack.c.b16 %v7782, %v7774
  %v8023 = vpack.c.b16 %v7783, %v7775
  %v8024 = vpack.c.b16 %v7784, %v7776
  %v8025 = vpack.c.b16 %v7793, %v7785
  %v8026 = vpack.c.b16 %v7794, %v7786
  %v8027 = vpack.c.b16 %v7795, %v7787
  %v8028 = vpack.c.b16 %v7796, %v7788
  %v8029 = vpack.c.b16 %v7797, %v7789
  %v8030 = vpack.c.b16 %v7798, %v7790
  %v8031 = vpack.c.b16 %v7799, %v7791
  %v8032 = vpack.c.b16 %v7800, %v7792
  %v8033 = vpack.c.b16 %v7809, %v7801
  %v8034 = vpack.c.b16 %v7810, %v7802
  %v8035 = vpack.c.b16 %v7811, %v7803
  %v8036 = vpack.c.b16 %v7812, %v7804
  %v8037 = vpack.c.b16 %v7813, %v7805
  %v8038 = vpack.c.b16 %v7814, %v7806
  %v8039 = vpack.c.b16 %v7815, %v7807
  %v8040 = vpack.c.b16 %v7816, %v7808
  %v8041 = vpack.c.b16 %v7825, %v7817
  %v8042 = vpack.c.b16 %v7826, %v7818
  %v8043 = vpack.c.b16 %v7827, %v7819
  %v8044 = vpack.c.b16 %v7828, %v7820
  %v8045 = vpack.c.b16 %v7829, %v7821
  %v8046 = vpack.c.b16 %v7830, %v7822
  %v8047 = vpack.c.b16 %v7831, %v7823
  %v8048 = vpack.c.b16 %v7832, %v7824
  %v8049 = vpack.c.b16 %v7841, %v7833
  %v8050 = vpack.c.b16 %v7842, %v7834
  %v8051 = vpack.c.b16 %v7843, %v7835
  %v8052 = vpack.c.b16 %v7844, %v7836
  %v8053 = vpack.c.b16 %v7845, %v7837
  %v8054 = vpack.c.b16 %v7846, %v7838
  %v8055 = vpack.c.b16 %v7847, %v7839
  %v8056 = vpack.c.b16 %v7848, %v7840
  %v8057 = vpack.c.b16 %v7857, %v7849
  %v8058 = vpack.c.b16 %v7858, %v7850
  %v8059 = vpack.c.b16 %v7859, %v7851
  %v8060 = vpack.c.b16 %v7860, %v7852
  %v8061 = vpack.c.b16 %v7861, %v7853
  %v8062 = vpack.c.b16 %v7862, %v7854
  %v8063 = vpack.c.b16 %v7863, %v7855
  %v8064 = vpack.c.b16 %v7864, %v7856
  %v8065 = vpack.c.b16 %v7873, %v7865
  %v8066 = vpack.c.b16 %v7874, %v7866
  %v8067 = vpack.c.b16 %v7875, %v7867
  %v8068 = vpack.c.b16 %v7876, %v7868
  %v8069 = vpack.c.b16 %v7877, %v7869
  %v8070 = vpack.c.b16 %v7878, %v7870
  %v8071 = vpack.c.b16 %v7879, %v7871
  %v8072 = vpack.c.b16 %v7880, %v7872
  %v8073 = vpack.c.b16 %v7889, %v7881
  %v8074 = vpack.c.b16 %v7890, %v7882
  %v8075 = vpack.c.b16 %v7891, %v7883
  %v8076 = vpack.c.b16 %v7892, %v7884
  %v8077 = vpack.c.b16 %v7893, %v7885
  %v8078 = vpack.c.b16 %v7894, %v7886
  %v8079 = vpack.c.b16 %v7895, %v7887
  %v8080 = vpack.c.b16 %v7896, %v7888
  %v8081 = vpack.c.b16 %v7905, %v7897
  %v8082 = vpack.c.b16 %v7906, %v7898
  %v8083 = vpack.c.b16 %v7907, %v7899
  %v8084 = vpack.c.b16 %v7908, %v7900
  %v8085 = vpack.c.b16 %v7909, %v7901
  %v8086 = vpack.c.b16 %v7910, %v7902
  %v8087 = vpack.c.b16 %v7911, %v7903
  %v8088 = vpack.c.b16 %v7912, %v7904
  %v8089 = vpack.c.b16 %v7921, %v7913
  %v8090 = vpack.c.b16 %v7922, %v7914
  %v8091 = vpack.c.b16 %v7923, %v7915
  %v8092 = vpack.c.b16 %v7924, %v7916
  %v8093 = vpack.c.b16 %v7925, %v7917
  %v8094 = vpack.c.b16 %v7926, %v7918
  %v8095 = vpack.c.b16 %v7927, %v7919
  %v8096 = vpack.c.b16 %v7928, %v7920
  %v8097 = vpack.c.b16 %v7937, %v7929
  %v8098 = vpack.c.b16 %v7938, %v7930
  %v8099 = vpack.c.b16 %v7939, %v7931
  %v8100 = vpack.c.b16 %v7940, %v7932
  %v8101 = vpack.c.b16 %v7941, %v7933
  %v8102 = vpack.c.b16 %v7942, %v7934
  %v8103 = vpack.c.b16 %v7943, %v7935
  %v8104 = vpack.c.b16 %v7944, %v7936
  %v8105 = vpack.c.b16 %v7953, %v7945
  %v8106 = vpack.c.b16 %v7954, %v7946
  %v8107 = vpack.c.b16 %v7955, %v7947
  %v8108 = vpack.c.b16 %v7956, %v7948
  %v8109 = vpack.c.b16 %v7957, %v7949
  %v8110 = vpack.c.b16 %v7958, %v7950
  %v8111 = vpack.c.b16 %v7959, %v7951
  %v8112 = vpack.c.b16 %v7960, %v7952
  %v8113 = vpack.c.b16 %v7969, %v7961
  %v8114 = vpack.c.b16 %v7970, %v7962
  %v8115 = vpack.c.b16 %v7971, %v7963
  %v8116 = vpack.c.b16 %v7972, %v7964
  %v8117 = vpack.c.b16 %v7973, %v7965
  %v8118 = vpack.c.b16 %v7974, %v7966
  %v8119 = vpack.c.b16 %v7975, %v7967
  %v8120 = vpack.c.b16 %v7976, %v7968
  %v8121 = vpack.c.b16 %v7985, %v7977
  %v8122 = vpack.c.b16 %v7986, %v7978
  %v8123 = vpack.c.b16 %v7987, %v7979
  %v8124 = vpack.c.b16 %v7988, %v7980
  %v8125 = vpack.c.b16 %v7989, %v7981
  %v8126 = vpack.c.b16 %v7990, %v7982
  %v8127 = vpack.c.b16 %v7991, %v7983
  %v8128 = vpack.c.b16 %v7992, %v7984
  %v8129 = vpack.c.b16 %v8001, %v7993
  %v8130 = vpack.c.b16 %v8002, %v7994
  %v8131 = vpack.c.b16 %v8003, %v7995
  %v8132 = vpack.c.b16 %v8004, %v7996
  %v8133 = vpack.c.b16 %v8005, %v7997
  %v8134 = vpack.c.b16 %v8006, %v7998
  %v8135 = vpack.c.b16 %v8007, %v7999
  %v8136 = vpack.c.b16 %v8008, %v8000
  %8265 = vmatprep.subr.bf16.mxu0 %v8010
  %8266 = vmatpush1.bf16.msra.mxu0 %v8009
  %8267 = vmatprep.subr.bf16.mxu0 %v8018
  %8268 = vmatpush1.bf16.msra.mxu0 %v8017
  %8269 = vmatprep.subr.bf16.mxu0 %v8026
  %8270 = vmatpush1.bf16.msra.mxu0 %v8025
  %8271 = vmatprep.subr.bf16.mxu0 %v8034
  %8272 = vmatpush1.bf16.msra.mxu0 %v8033
  %8273 = vmatprep.subr.bf16.mxu0 %v8042
  %8274 = vmatpush1.bf16.msra.mxu0 %v8041
  %8275 = vmatprep.subr.bf16.mxu0 %v8050
  %8276 = vmatpush1.bf16.msra.mxu0 %v8049
  %8277 = vmatprep.subr.bf16.mxu0 %v8058
  %8278 = vmatpush1.bf16.msra.mxu0 %v8057
  %8279 = vmatprep.subr.bf16.mxu0 %v8066
  %8280 = vmatpush1.bf16.msra.mxu0 %v8065
  %8281 = vmatprep.subr.bf16.mxu0 %v8074
  %8282 = vmatpush1.bf16.msra.mxu0 %v8073
  %8283 = vmatprep.subr.bf16.mxu0 %v8082
  %8284 = vmatpush1.bf16.msra.mxu0 %v8081
  %8285 = vmatprep.subr.bf16.mxu0 %v8090
  %8286 = vmatpush1.bf16.msra.mxu0 %v8089
  %8287 = vmatprep.subr.bf16.mxu0 %v8098
  %8288 = vmatpush1.bf16.msra.mxu0 %v8097
  %8289 = vmatprep.subr.bf16.mxu0 %v8106
  %8290 = vmatpush1.bf16.msra.mxu0 %v8105
  %8291 = vmatprep.subr.bf16.mxu0 %v8114
  %8292 = vmatpush1.bf16.msra.mxu0 %v8113
  %8293 = vmatprep.subr.bf16.mxu0 %v8122
  %8294 = vmatpush1.bf16.msra.mxu0 %v8121
  %8295 = vmatprep.subr.bf16.mxu0 %v8130
  %8296 = vmatpush1.bf16.msra.mxu0 %v8129
  %8297 = vmatprep.mubr.bf16.mxu0 %v7496
  %8298 = vmatmul.mubr.bf16.gmra.mrb[0].mxu0 %v7495
  %v8299 = vpop.f32.mrb[0].mxu0
  %v8300 = vadd.f32 %v7487, %v8299
  %v8301 = vpop.f32.mrb[0].mxu0
  %v8302 = vadd.f32 %v7488, %v8301
  %v8303 = vpop.f32.mrb[0].mxu0
  %v8304 = vpop.f32.mrb[0].mxu0
  %8305 = vdwg.mxu0
  %8306 = vmatprep.subr.bf16.mxu0 %v8012
  %8307 = vmatpush1.bf16.msra.mxu0 %v8011
  %8308 = vmatprep.subr.bf16.mxu0 %v8020
  %8309 = vmatpush1.bf16.msra.mxu0 %v8019
  %8310 = vmatprep.subr.bf16.mxu0 %v8028
  %8311 = vmatpush1.bf16.msra.mxu0 %v8027
  %8312 = vmatprep.subr.bf16.mxu0 %v8036
  %8313 = vmatpush1.bf16.msra.mxu0 %v8035
  %8314 = vmatprep.subr.bf16.mxu0 %v8044
  %8315 = vmatpush1.bf16.msra.mxu0 %v8043
  %8316 = vmatprep.subr.bf16.mxu0 %v8052
  %8317 = vmatpush1.bf16.msra.mxu0 %v8051
  %8318 = vmatprep.subr.bf16.mxu0 %v8060
  %8319 = vmatpush1.bf16.msra.mxu0 %v8059
  %8320 = vmatprep.subr.bf16.mxu0 %v8068
  %8321 = vmatpush1.bf16.msra.mxu0 %v8067
  %8322 = vmatprep.subr.bf16.mxu0 %v8076
  %8323 = vmatpush1.bf16.msra.mxu0 %v8075
  %8324 = vmatprep.subr.bf16.mxu0 %v8084
  %8325 = vmatpush1.bf16.msra.mxu0 %v8083
  %8326 = vmatprep.subr.bf16.mxu0 %v8092
  %8327 = vmatpush1.bf16.msra.mxu0 %v8091
  %8328 = vmatprep.subr.bf16.mxu0 %v8100
  %8329 = vmatpush1.bf16.msra.mxu0 %v8099
  %8330 = vmatprep.subr.bf16.mxu0 %v8108
  %8331 = vmatpush1.bf16.msra.mxu0 %v8107
  %8332 = vmatprep.subr.bf16.mxu0 %v8116
  %8333 = vmatpush1.bf16.msra.mxu0 %v8115
  %8334 = vmatprep.subr.bf16.mxu0 %v8124
  %8335 = vmatpush1.bf16.msra.mxu0 %v8123
  %8336 = vmatprep.subr.bf16.mxu0 %v8132
  %8337 = vmatpush1.bf16.msra.mxu0 %v8131
  %8338 = vmatprep.mubr.bf16.mxu0 %v7496
  %8339 = vmatmul.mubr.bf16.gmra.mrb[0].mxu0 %v7495
  %v8340 = vpop.f32.mrb[0].mxu0
  %v8341 = vadd.f32 %v7489, %v8340
  %v8342 = vpop.f32.mrb[0].mxu0
  %v8343 = vadd.f32 %v7490, %v8342
  %v8344 = vpop.f32.mrb[0].mxu0
  %v8345 = vpop.f32.mrb[0].mxu0
  %8346 = vdwg.mxu0
  %8347 = vmatprep.subr.bf16.mxu0 %v8014
  %8348 = vmatpush1.bf16.msra.mxu0 %v8013
  %8349 = vmatprep.subr.bf16.mxu0 %v8022
  %8350 = vmatpush1.bf16.msra.mxu0 %v8021
  %8351 = vmatprep.subr.bf16.mxu0 %v8030
  %8352 = vmatpush1.bf16.msra.mxu0 %v8029
  %8353 = vmatprep.subr.bf16.mxu0 %v8038
  %8354 = vmatpush1.bf16.msra.mxu0 %v8037
  %8355 = vmatprep.subr.bf16.mxu0 %v8046
  %8356 = vmatpush1.bf16.msra.mxu0 %v8045
  %8357 = vmatprep.subr.bf16.mxu0 %v8054
  %8358 = vmatpush1.bf16.msra.mxu0 %v8053
  %8359 = vmatprep.subr.bf16.mxu0 %v8062
  %8360 = vmatpush1.bf16.msra.mxu0 %v8061
  %8361 = vmatprep.subr.bf16.mxu0 %v8070
  %8362 = vmatpush1.bf16.msra.mxu0 %v8069
  %8363 = vmatprep.subr.bf16.mxu0 %v8078
  %8364 = vmatpush1.bf16.msra.mxu0 %v8077
  %8365 = vmatprep.subr.bf16.mxu0 %v8086
  %8366 = vmatpush1.bf16.msra.mxu0 %v8085
  %8367 = vmatprep.subr.bf16.mxu0 %v8094
  %8368 = vmatpush1.bf16.msra.mxu0 %v8093
  %8369 = vmatprep.subr.bf16.mxu0 %v8102
  %8370 = vmatpush1.bf16.msra.mxu0 %v8101
  %8371 = vmatprep.subr.bf16.mxu0 %v8110
  %8372 = vmatpush1.bf16.msra.mxu0 %v8109
  %8373 = vmatprep.subr.bf16.mxu0 %v8118
  %8374 = vmatpush1.bf16.msra.mxu0 %v8117
  %8375 = vmatprep.subr.bf16.mxu0 %v8126
  %8376 = vmatpush1.bf16.msra.mxu0 %v8125
  %8377 = vmatprep.subr.bf16.mxu0 %v8134
  %8378 = vmatpush1.bf16.msra.mxu0 %v8133
  %8379 = vmatprep.mubr.bf16.mxu0 %v7496
  %8380 = vmatmul.mubr.bf16.gmra.mrb[0].mxu0 %v7495
  %v8381 = vpop.f32.mrb[0].mxu0
  %v8382 = vadd.f32 %v7491, %v8381
  %v8383 = vpop.f32.mrb[0].mxu0
  %v8384 = vadd.f32 %v7492, %v8383
  %v8385 = vpop.f32.mrb[0].mxu0
  %v8386 = vpop.f32.mrb[0].mxu0
  %8387 = vdwg.mxu0
  %8388 = vmatprep.subr.bf16.mxu0 %v8016
  %8389 = vmatpush1.bf16.msra.mxu0 %v8015
  %8390 = vmatprep.subr.bf16.mxu0 %v8024
  %8391 = vmatpush1.bf16.msra.mxu0 %v8023
  %8392 = vmatprep.subr.bf16.mxu0 %v8032
  %8393 = vmatpush1.bf16.msra.mxu0 %v8031
  %8394 = vmatprep.subr.bf16.mxu0 %v8040
  %8395 = vmatpush1.bf16.msra.mxu0 %v8039
  %8396 = vmatprep.subr.bf16.mxu0 %v8048
  %8397 = vmatpush1.bf16.msra.mxu0 %v8047
  %8398 = vmatprep.subr.bf16.mxu0 %v8056
  %8399 = vmatpush1.bf16.msra.mxu0 %v8055
  %8400 = vmatprep.subr.bf16.mxu0 %v8064
  %8401 = vmatpush1.bf16.msra.mxu0 %v8063
  %8402 = vmatprep.subr.bf16.mxu0 %v8072
  %8403 = vmatpush1.bf16.msra.mxu0 %v8071
  %8404 = vmatprep.subr.bf16.mxu0 %v8080
  %8405 = vmatpush1.bf16.msra.mxu0 %v8079
  %8406 = vmatprep.subr.bf16.mxu0 %v8088
  %8407 = vmatpush1.bf16.msra.mxu0 %v8087
  %8408 = vmatprep.subr.bf16.mxu0 %v8096
  %8409 = vmatpush1.bf16.msra.mxu0 %v8095
  %8410 = vmatprep.subr.bf16.mxu0 %v8104
  %8411 = vmatpush1.bf16.msra.mxu0 %v8103
  %8412 = vmatprep.subr.bf16.mxu0 %v8112
  %8413 = vmatpush1.bf16.msra.mxu0 %v8111
  %8414 = vmatprep.subr.bf16.mxu0 %v8120
  %8415 = vmatpush1.bf16.msra.mxu0 %v8119
  %8416 = vmatprep.subr.bf16.mxu0 %v8128
  %8417 = vmatpush1.bf16.msra.mxu0 %v8127
  %8418 = vmatprep.subr.bf16.mxu0 %v8136
  %8419 = vmatpush1.bf16.msra.mxu0 %v8135
  %8420 = vmatprep.mubr.bf16.mxu0 %v7496
  %8421 = vmatmul.mubr.bf16.gmra.mrb[0].mxu0 %v7495
  %v8422 = vpop.f32.mrb[0].mxu0
  %v8423 = vadd.f32 %v7493, %v8422
  %v8424 = vpop.f32.mrb[0].mxu0
  %v8425 = vadd.f32 %v7494, %v8424
  %v8426 = vpop.f32.mrb[0].mxu0
  %v8427 = vpop.f32.mrb[0].mxu0
  %8428 = vdwg.mxu0
  %v8429 = vxor.u32 %v8300, 2147483648
  %v8430 = vxor.u32 %v8302, 2147483648
  %v8431 = vmul.f32 %v8429, 1.442695
  %v8432 = vpow.pop %v8431
  %v8433 = vmul.f32 %v8430, 1.442695
  %v8434 = vpow.pop %v8433
  %v8435 = vadd.f32 %v8432, 1.0
  %v8436 = vadd.f32 %v8434, 1.0
  %v8437 = vrcp.pop %v8435
  %v8438 = vmul.f32 1.0, %v8437
  %v8439 = vrcp.pop %v8436
  %v8440 = vmul.f32 1.0, %v8439
  %v8441 = vxor.u32 %v8341, 2147483648
  %v8442 = vxor.u32 %v8343, 2147483648
  %v8443 = vmul.f32 %v8441, 1.442695
  %v8444 = vpow.pop %v8443
  %v8445 = vmul.f32 %v8442, 1.442695
  %v8446 = vpow.pop %v8445
  %v8447 = vadd.f32 %v8444, 1.0
  %v8448 = vadd.f32 %v8446, 1.0
  %v8449 = vrcp.pop %v8447
  %v8450 = vmul.f32 1.0, %v8449
  %v8451 = vrcp.pop %v8448
  %v8452 = vmul.f32 1.0, %v8451
  %v8453 = vtanh.pop %v8382
  %v8454 = vtanh.pop %v8384
  %v8455 = vxor.u32 %v8423, 2147483648
  %v8456 = vxor.u32 %v8425, 2147483648
  %v8457 = vmul.f32 %v8455, 1.442695
  %v8458 = vpow.pop %v8457
  %v8459 = vmul.f32 %v8456, 1.442695
  %v8460 = vpow.pop %v8459
  %v8461 = vadd.f32 %v8458, 1.0
  %v8462 = vadd.f32 %v8460, 1.0
  %v8463 = vrcp.pop %v8461
  %v8464 = vmul.f32 1.0, %v8463
  %v8465 = vrcp.pop %v8462
  %v8466 = vmul.f32 1.0, %v8465
  %v8467 = vmul.f32 %v8438, %v7476
  %v8468 = vmul.f32 %v8440, %v7477
  %v8469 = vmul.f32 %v8450, %v8453
  %v8470 = vmul.f32 %v8452, %v8454
  %v8471 = vadd.f32 %v8467, %v8469
  %v8472 = vadd.f32 %v8468, %v8470
  %v8473 = vtanh.pop %v8471
  %v8474 = vtanh.pop %v8472
  %v8475 = vmul.f32 %v8464, %v8473
  %v8476 = vmul.f32 %v8466, %v8474
  %s8477 = scalar_lea.vmem %s4, 56
  %8478 = vst [vmem:[%s8477] sm:$0xff] %v8476
  %8479 = vst [vmem:[%s5] sm:$0xff] %v8475
  %8480 = vst [vmem:[%s5 + $0x8] sm:$0xff] %v8476
  %8481 = vst [vmem:[%s6] sm:$0xff] %v8471
  %8482 = vst [vmem:[%s6 + $0x8] sm:$0xff] %v8472
  // Predicated region
  $region22: #{lstm_block_forward.1} parent=0 // pred_check
    _
  $region23: #{lstm_block_forward.1} parent=0 // pred_check_branch
    %8484 = sbr.rel (0) target = $region25
  $region24: #{lstm_block_forward.1} parent=0 // pred_region
    _
  $region25: #{lstm_block_forward.1} parent=0 // pred_fallthru
    _
  // Predicated region
  $region26: #{lstm_block_forward.1} parent=0 // pred_check
    _
  $region27: #{lstm_block_forward.1} parent=0 // pred_check_branch
    %8486 = sbr.rel (0) target = $region29
  $region28: #{lstm_block_forward.1} parent=0 // pred_region
    _
  $region29: #{lstm_block_forward.1} parent=0 // pred_fallthru
    _
  // Predicated region
  $region30: #{lstm_block_forward.1} parent=0 // pred_check
    _
  $region31: #{lstm_block_forward.1} parent=0 // pred_check_branch
    %8488 = sbr.rel (0) target = $region33
  $region32: #{lstm_block_forward.1} parent=0 // pred_region
    _
  $region33: #{lstm_block_forward.1} parent=0 // pred_fallthru
    _
  // Predicated region
  $region34: #{lstm_block_forward.1} parent=0 // pred_check
    _
  $region35: #{lstm_block_forward.1} parent=0 // pred_check_branch
    %8490 = sbr.rel (0) target = $region37
  $region36: #{lstm_block_forward.1} parent=0 // pred_region
    _
  $region37: #{lstm_block_forward.1} parent=0 // pred_fallthru
    _
  // Predicated region
  $region38: #{lstm_block_forward.1} parent=0 // pred_check
    _
  $region39: #{lstm_block_forward.1} parent=0 // pred_check_branch
    %8492 = sbr.rel (0) target = $region41
  $region40: #{lstm_block_forward.1} parent=0 // pred_region
    _
  $region41: #{lstm_block_forward.1} parent=0 // pred_fallthru
    _
  // Predicated region
  $region42: #{lstm_block_forward.1} parent=0 // pred_check
    _
  $region43: #{lstm_block_forward.1} parent=0 // pred_check_branch
    %8494 = sbr.rel (0) target = $region45
  $region44: #{lstm_block_forward.1} parent=0 // pred_region
    _
  $region45: #{lstm_block_forward.1} parent=0 // pred_fallthru
    _

</llo_original>
